<compile_context>
chip_gen: v7x
topology: tpu7x:2x2x1
jax: 0.10.0
libtpu: 0.0.40
codegen_flags: <defaults>
</compile_context>

<pallas_src>
import functools

import jax
import jax.numpy as jnp
from jax import lax
from jax.experimental import pallas as pl
from jax.experimental.pallas import tpu as pltpu


LANES = 128


def _residual_block_kernel(xpad_ref, wa_ref, wb_ref, sb_ref, out_ref, ypad_scr,
                           *, Bn, H, W, Cp, last_relu, matmul_dtype):
    """One grid step processes Bn images.

    xpad_ref : (Bn, H+2, W+2, Cp) f32  zero-padded (halo + channels) input
    wa_ref   : (9, Cp, Cp)  conv_a weights, tap-major (dy*3+dx), matmul dtype
    wb_ref   : (9, Cp, Cp)  conv_b weights, tap-major, matmul dtype
    sb_ref   : (8, Cp) f32  rows: [scale_a, bias_a, scale_b, bias_b, 0...]
    out_ref  : (Bn, H, W, Cp) f32
    ypad_scr : (Bn, H+2, W+2, Cp) f32  VMEM scratch: re-padded intermediate
    """
    f32 = jnp.float32
    M = Bn * H * W

    def conv3x3(src_ref, w_ref):
        # 9 accumulating (M, Cp) @ (Cp, Cp) MXU dots — no materialized im2col.
        acc = jnp.zeros((M, Cp), f32)
        for dy in range(3):
            for dx in range(3):
                tap = src_ref[:, dy:dy + H, dx:dx + W, :]
                tap = tap.reshape(M, Cp).astype(matmul_dtype)
                acc += jnp.dot(tap, w_ref[dy * 3 + dx],
                               preferred_element_type=f32)
        return acc

    # ---- conv_a -> bn_a (folded affine) -> ReLU, all post-matmul math in f32 ----
    y = conv3x3(xpad_ref, wa_ref)
    y = jnp.maximum(y * sb_ref[0:1, :] + sb_ref[1:2, :], 0.0)

    # ---- stage y into the zero-haloed scratch for conv_b ----
    # Re-zero only the 1-pixel halo ring each step.  (Scratch is not
    # guaranteed zero-initialized and a program_id==0 gate is wrong under
    # megacore sharding, so per-step halo zeroing is the cheap correct choice.)
    ypad_scr[:, 0:1, :, :] = jnp.zeros((Bn, 1, W + 2, Cp), f32)
    ypad_scr[:, H + 1:H + 2, :, :] = jnp.zeros((Bn, 1, W + 2, Cp), f32)
    ypad_scr[:, :, 0:1, :] = jnp.zeros((Bn, H + 2, 1, Cp), f32)
    ypad_scr[:, :, W + 1:W + 2, :] = jnp.zeros((Bn, H + 2, 1, Cp), f32)
    ypad_scr[:, 1:H + 1, 1:W + 1, :] = y.reshape(Bn, H, W, Cp)

    # ---- conv_b -> bn_b ----
    y2 = conv3x3(ypad_scr, wb_ref)
    y2 = y2 * sb_ref[2:3, :] + sb_ref[3:4, :]

    # ---- identity residual (increase_dim=False), exact f32 skip path ----
    res = xpad_ref[:, 1:H + 1, 1:W + 1, :].reshape(M, Cp)
    out = res + y2
    if last_relu:
        out = jnp.maximum(out, 0.0)
    out_ref[...] = out.reshape(Bn, H, W, Cp).astype(out_ref.dtype)


def _tpu_params():
    """(per-core VMEM capacity bytes, TensorCores per chip) with safe fallbacks."""
    vmem_bytes = 64 << 20          # conservative default (v7x per-TC capacity)
    num_cores = 1
    try:
        info = pltpu.get_tpu_info()
        vmem_bytes = int(info.vmem_capacity_bytes)
        for attr in ("num_cores", "tensor_core_count", "num_tensorcores"):
            v = getattr(info, attr, None)
            if v:
                num_cores = int(v)
                break
    except Exception:
        pass
    try:
        kind = jax.devices()[0].device_kind.lower()
        if "v7" in kind:
            num_cores = max(num_cores, 2)
            vmem_bytes = min(vmem_bytes, 64 << 20)   # per-TC on v7x
    except Exception:
        pass
    return vmem_bytes, num_cores


def _choose_block_n(N, H, W, Cp, *, mm_itemsize, vmem_bytes, num_cores):
    """Images per grid step, derived from the actual VMEM capacity.

    On multi-TensorCore parts (v7x) keep >= num_cores grid steps so the
    'parallel' grid axis can be sharded; on 1-TC chips (v5e/v6e) just pick the
    largest Bn that fits (the grid is a sequential loop there).
    """
    halo = (H + 2) * (W + 2) * Cp
    body = H * W * Cp
    per_img = halo * 4 * 2                 # f32 xpad block, double-buffered
    per_img += body * 4 * 2                # f32 out block, double-buffered
    per_img += halo * 4                    # f32 ypad staging scratch
    per_img += body * 4 * 3                # f32 accumulator / bn / staged-y temps
    per_img += body * mm_itemsize * 2      # matmul-dtype tap copies in flight
    fixed = 2 * 9 * Cp * Cp * mm_itemsize * 2 + 8 * Cp * 4 * 2  # weights + bn tile
    budget = max(per_img, int(vmem_bytes * 0.6) - fixed)
    max_bn = max(1, budget // per_img)
    cap = N if num_cores <= 1 else max(1, N // num_cores)
    bn = int(min(max_bn, cap))
    while N % bn:
        bn -= 1
    return bn


def residual_block_forward(x_nchw, params, *, last_relu=False, eps=1e-5,
                           matmul_dtype=jnp.bfloat16):
    """Pallas ResidualBlock forward. Input/output are NCHW float32.

    matmul_dtype controls only the MXU input precision (default bf16, f32
    accumulation); BN, the residual add and the output stay in f32.  Pass
    matmul_dtype=jnp.float32 for bit-for-bit-style parity with PyTorch f32.
    """
    N, C, H, W = x_nchw.shape
    Cp = ((C + LANES - 1) // LANES) * LANES

    # NHWC + single boundary pad: 1-pixel spatial halo and channel pad to Cp.
    x = jnp.transpose(x_nchw, (0, 2, 3, 1)).astype(jnp.float32)
    xpad = jnp.pad(x, ((0, 0), (1, 1), (1, 1), (0, Cp - C)))

    # Conv weights (HWIO) -> channel-pad and keep 9 separate (Cp, Cp) tap blocks,
    # pre-cast to the matmul dtype so the kernel never re-casts them per step.
    def prep_w(w):
        wp = jnp.pad(w.astype(jnp.float32),
                     ((0, 0), (0, 0), (0, Cp - C), (0, Cp - C)))
        return wp.reshape(9, Cp, Cp).astype(matmul_dtype)

    wa = prep_w(params["wa"])
    wb = prep_w(params["wb"])

    # Fold BatchNorm running stats into per-channel scale/bias; one (8, Cp) tile.
    sa = params["gamma_a"] / jnp.sqrt(params["var_a"] + eps)
    ba = params["beta_a"] - params["mean_a"] * sa
    sb = params["gamma_b"] / jnp.sqrt(params["var_b"] + eps)
    bb = params["beta_b"] - params["mean_b"] * sb
    sbias = (jnp.zeros((8, Cp), jnp.float32)
             .at[0, :C].set(sa).at[1, :C].set(ba)
             .at[2, :C].set(sb).at[3, :C].set(bb))

    vmem_bytes, num_cores = _tpu_params()
    mm_itemsize = jnp.dtype(matmul_dtype).itemsize
    Bn = _choose_block_n(N, H, W, Cp, mm_itemsize=mm_itemsize,
                         vmem_bytes=vmem_bytes, num_cores=num_cores)

    kernel = functools.partial(_residual_block_kernel,
                               Bn=Bn, H=H, W=W, Cp=Cp,
                               last_relu=last_relu, matmul_dtype=matmul_dtype)

    # TODO(synk): constant operands (wa/wb/sbias) could be single-buffered via
    #             pipeline_mode=pl.Buffered(1) to save ~0.6 MB VMEM.
    out = pl.pallas_call(
        kernel,
        out_shape=jax.ShapeDtypeStruct((N, H, W, Cp), jnp.float32),
        grid_spec=pltpu.PrefetchScalarGridSpec(
            num_scalar_prefetch=0,
            grid=(N // Bn,),
            in_specs=[
                pl.BlockSpec((Bn, H + 2, W + 2, Cp), lambda n: (n, 0, 0, 0)),
                pl.BlockSpec((9, Cp, Cp), lambda n: (0, 0, 0)),
                pl.BlockSpec((9, Cp, Cp), lambda n: (0, 0, 0)),
                pl.BlockSpec((8, Cp), lambda n: (0, 0)),
            ],
            out_specs=pl.BlockSpec((Bn, H, W, Cp), lambda n: (n, 0, 0, 0)),
            scratch_shapes=[pltpu.VMEM((Bn, H + 2, W + 2, Cp), jnp.float32)],
        ),
        compiler_params=pltpu.CompilerParams(
            dimension_semantics=("parallel",),
            vmem_limit_bytes=int(vmem_bytes * 3 // 4)),
    )(xpad, wa, wb, sbias)

    # Drop the channel padding and return NCHW.
    return jnp.transpose(out[..., :C], (0, 3, 1, 2))


def reference_forward(x_nchw, params, *, last_relu=False, eps=1e-5,
                      matmul_dtype=jnp.float32):
    """Pure-JAX reference (same inference-mode BN semantics).

    matmul_dtype mirrors the kernel's MXU input precision (f32 accumulation,
    f32 BN/residual) so both precisions can be checked tightly.
    """
    x = x_nchw.astype(jnp.float32)

    def conv(z, w_hwio):
        w_oihw = jnp.transpose(w_hwio, (3, 2, 0, 1)).astype(matmul_dtype)
        return lax.conv_general_dilated(
            z.astype(matmul_dtype), w_oihw, window_strides=(1, 1),
            padding=((1, 1), (1, 1)),
            dimension_numbers=("NCHW", "OIHW", "NCHW"),
            preferred_element_type=jnp.float32)

    def bn(z, g, b, m, v):
        g, b, m, v = (t[None, :, None, None] for t in (g, b, m, v))
        return (z - m) / jnp.sqrt(v + eps) * g + b

    y = conv(x, params["wa"])
    y = bn(y, params["gamma_a"], params["beta_a"],
           params["mean_a"], params["var_a"])
    y = jnp.maximum(y, 0.0)
    y = conv(y, params["wb"])
    y = bn(y, params["gamma_b"], params["beta_b"],
           params["mean_b"], params["var_b"])
    y = x + y
    if last_relu:
        y = jnp.maximum(y, 0.0)
    return y


if __name__ == "__main__":
    key = jax.random.PRNGKey(0)
    ks = jax.random.split(key, 12)

    N, C, H, W = 2, 4, 16, 16   # inplanes=4, increase_dim=False

    params = {
        # conv weights stored directly in HWIO (3, 3, in, out), no bias.
        "wa": jax.random.normal(ks[0], (3, 3, C, C), jnp.float32) * 0.2,
        "wb": jax.random.normal(ks[1], (3, 3, C, C), jnp.float32) * 0.2,
        # BatchNorm affine params + running stats (deterministic, non-trivial).
        "gamma_a": 1.0 + 0.1 * jax.random.normal(ks[2], (C,), jnp.float32),
        "beta_a": 0.1 * jax.random.normal(ks[3], (C,), jnp.float32),
        "mean_a": 0.1 * jax.random.normal(ks[4], (C,), jnp.float32),
        "var_a": 0.5 + jnp.abs(jax.random.normal(ks[5], (C,), jnp.float32)),
        "gamma_b": 1.0 + 0.1 * jax.random.normal(ks[6], (C,), jnp.float32),
        "beta_b": 0.1 * jax.random.normal(ks[7], (C,), jnp.float32),
        "mean_b": 0.1 * jax.random.normal(ks[8], (C,), jnp.float32),
        "var_b": 0.5 + jnp.abs(jax.random.normal(ks[9], (C,), jnp.float32)),
    }

    x = jax.random.normal(ks[10], (N, C, H, W), jnp.float32)

    # 1) Strict check: f32 MXU path must match the f32 reference tightly
    #    (proves the conv/BN/residual algorithm is exact).
    out_f32 = jax.block_until_ready(
        residual_block_forward(x, params, last_relu=False,
                               matmul_dtype=jnp.float32))
    ref_f32 = reference_forward(x, params, last_relu=False)
    assert out_f32.shape == (N, C, H, W)
    assert jnp.allclose(out_f32, ref_f32, atol=1e-4, rtol=1e-4), (
        "f32 path mismatch vs reference: max abs err = "
        f"{float(jnp.max(jnp.abs(out_f32 - ref_f32)))}")

    # 2) Fast (default) path: bf16 MXU inputs + f32 accumulation, compared
    #    against a reference that rounds the conv inputs the same way.  The
    #    looser tolerance only absorbs occasional bf16 rounding-boundary flips
    #    of the intermediate activation.
    out_bf = jax.block_until_ready(
        residual_block_forward(x, params, last_relu=False))
    ref_bf = reference_forward(x, params, last_relu=False,
                               matmul_dtype=jnp.bfloat16)
    assert jnp.allclose(out_bf, ref_bf, atol=5e-2, rtol=5e-2), (
        "bf16 path mismatch vs bf16 reference: max abs err = "
        f"{float(jnp.max(jnp.abs(out_bf - ref_bf)))}")

    print("KERNEL_OK")
</pallas_src>

<mosaic_0001>
module attributes {stable_mosaic.version = 11 : i64} {
  func.func @_residual_block_kernel(%arg0: i32, %arg1: memref<2x18x18x128xf32, #tpu.memory_space<vmem>>, %arg2: memref<9x128x128xf32, #tpu.memory_space<vmem>>, %arg3: memref<9x128x128xf32, #tpu.memory_space<vmem>>, %arg4: memref<8x128xf32, #tpu.memory_space<vmem>>, %arg5: memref<2x16x16x128xf32, #tpu.memory_space<vmem>>, %arg6: memref<2x18x18x128xf32, #tpu.memory_space<vmem>>) attributes {dimension_semantics = [#tpu.dimension_semantics<parallel>], iteration_bounds = array<i64: 1>, scalar_prefetch = 0 : i64, scratch_operands = 1 : i64, tpu.core_type = #tpu.core_type<tc>, window_params = [{transform_indices = @transform_0, window_bounds = array<i64: 2, 18, 18, 128>}, {pipeline_mode = #tpu.pipeline_mode<synchronous>, transform_indices = @transform_1, window_bounds = array<i64: 9, 128, 128>}, {pipeline_mode = #tpu.pipeline_mode<synchronous>, transform_indices = @transform_2, window_bounds = array<i64: 9, 128, 128>}, {pipeline_mode = #tpu.pipeline_mode<synchronous>, transform_indices = @transform_3, window_bounds = array<i64: 8, 128>}, {transform_indices = @transform_4, window_bounds = array<i64: 2, 16, 16, 128>}]} {
    %cst = arith.constant 0.000000e+00 : f32
    %0 = vector.broadcast %cst : f32 to vector<512x128xf32>
    %c0 = arith.constant 0 : index
    %c0_0 = arith.constant 0 : index
    %c0_1 = arith.constant 0 : index
    %c0_2 = arith.constant 0 : index
    %1 = vector.load %arg1[%c0, %c0_0, %c0_1, %c0_2] : memref<2x18x18x128xf32, #tpu.memory_space<vmem>>, vector<2x16x16x128xf32>
    %2 = vector.shape_cast %1 : vector<2x16x16x128xf32> to vector<512x128xf32>
    %c0_3 = arith.constant 0 : index
    %c0_4 = arith.constant 0 : index
    %c0_5 = arith.constant 0 : index
    %3 = vector.load %arg2[%c0_3, %c0_4, %c0_5] : memref<9x128x128xf32, #tpu.memory_space<vmem>>, vector<1x128x128xf32>
    %4 = vector.shape_cast %3 : vector<1x128x128xf32> to vector<128x128xf32>
    %cst_6 = arith.constant dense<0.000000e+00> : vector<512x128xf32>
    %5 = tpu.matmul %2, %4, %cst_6 {dimension_numbers = #tpu.dot_dimension_numbers<[1], [0], [0], [1], [0, 0, 1, 1], [], []>} : vector<512x128xf32>, vector<128x128xf32>, vector<512x128xf32> -> vector<512x128xf32>
    %6 = arith.addf %0, %5 : vector<512x128xf32>
    %c0_7 = arith.constant 0 : index
    %c0_8 = arith.constant 0 : index
    %c1 = arith.constant 1 : index
    %c0_9 = arith.constant 0 : index
    %7 = vector.load %arg1[%c0_7, %c0_8, %c1, %c0_9] : memref<2x18x18x128xf32, #tpu.memory_space<vmem>>, vector<2x16x16x128xf32>
    %8 = vector.shape_cast %7 : vector<2x16x16x128xf32> to vector<512x128xf32>
    %c1_10 = arith.constant 1 : index
    %c0_11 = arith.constant 0 : index
    %c0_12 = arith.constant 0 : index
    %9 = vector.load %arg2[%c1_10, %c0_11, %c0_12] : memref<9x128x128xf32, #tpu.memory_space<vmem>>, vector<1x128x128xf32>
    %10 = vector.shape_cast %9 : vector<1x128x128xf32> to vector<128x128xf32>
    %cst_13 = arith.constant dense<0.000000e+00> : vector<512x128xf32>
    %11 = tpu.matmul %8, %10, %cst_13 {dimension_numbers = #tpu.dot_dimension_numbers<[1], [0], [0], [1], [0, 0, 1, 1], [], []>} : vector<512x128xf32>, vector<128x128xf32>, vector<512x128xf32> -> vector<512x128xf32>
    %12 = arith.addf %6, %11 : vector<512x128xf32>
    %c0_14 = arith.constant 0 : index
    %c0_15 = arith.constant 0 : index
    %c2 = arith.constant 2 : index
    %c0_16 = arith.constant 0 : index
    %13 = vector.load %arg1[%c0_14, %c0_15, %c2, %c0_16] : memref<2x18x18x128xf32, #tpu.memory_space<vmem>>, vector<2x16x16x128xf32>
    %14 = vector.shape_cast %13 : vector<2x16x16x128xf32> to vector<512x128xf32>
    %c2_17 = arith.constant 2 : index
    %c0_18 = arith.constant 0 : index
    %c0_19 = arith.constant 0 : index
    %15 = vector.load %arg2[%c2_17, %c0_18, %c0_19] : memref<9x128x128xf32, #tpu.memory_space<vmem>>, vector<1x128x128xf32>
    %16 = vector.shape_cast %15 : vector<1x128x128xf32> to vector<128x128xf32>
    %cst_20 = arith.constant dense<0.000000e+00> : vector<512x128xf32>
    %17 = tpu.matmul %14, %16, %cst_20 {dimension_numbers = #tpu.dot_dimension_numbers<[1], [0], [0], [1], [0, 0, 1, 1], [], []>} : vector<512x128xf32>, vector<128x128xf32>, vector<512x128xf32> -> vector<512x128xf32>
    %18 = arith.addf %12, %17 : vector<512x128xf32>
    %c0_21 = arith.constant 0 : index
    %c1_22 = arith.constant 1 : index
    %c0_23 = arith.constant 0 : index
    %c0_24 = arith.constant 0 : index
    %19 = vector.load %arg1[%c0_21, %c1_22, %c0_23, %c0_24] : memref<2x18x18x128xf32, #tpu.memory_space<vmem>>, vector<2x16x16x128xf32>
    %20 = vector.shape_cast %19 : vector<2x16x16x128xf32> to vector<512x128xf32>
    %c3 = arith.constant 3 : index
    %c0_25 = arith.constant 0 : index
    %c0_26 = arith.constant 0 : index
    %21 = vector.load %arg2[%c3, %c0_25, %c0_26] : memref<9x128x128xf32, #tpu.memory_space<vmem>>, vector<1x128x128xf32>
    %22 = vector.shape_cast %21 : vector<1x128x128xf32> to vector<128x128xf32>
    %cst_27 = arith.constant dense<0.000000e+00> : vector<512x128xf32>
    %23 = tpu.matmul %20, %22, %cst_27 {dimension_numbers = #tpu.dot_dimension_numbers<[1], [0], [0], [1], [0, 0, 1, 1], [], []>} : vector<512x128xf32>, vector<128x128xf32>, vector<512x128xf32> -> vector<512x128xf32>
    %24 = arith.addf %18, %23 : vector<512x128xf32>
    %c0_28 = arith.constant 0 : index
    %c1_29 = arith.constant 1 : index
    %c1_30 = arith.constant 1 : index
    %c0_31 = arith.constant 0 : index
    %25 = vector.load %arg1[%c0_28, %c1_29, %c1_30, %c0_31] : memref<2x18x18x128xf32, #tpu.memory_space<vmem>>, vector<2x16x16x128xf32>
    %26 = vector.shape_cast %25 : vector<2x16x16x128xf32> to vector<512x128xf32>
    %c4 = arith.constant 4 : index
    %c0_32 = arith.constant 0 : index
    %c0_33 = arith.constant 0 : index
    %27 = vector.load %arg2[%c4, %c0_32, %c0_33] : memref<9x128x128xf32, #tpu.memory_space<vmem>>, vector<1x128x128xf32>
    %28 = vector.shape_cast %27 : vector<1x128x128xf32> to vector<128x128xf32>
    %cst_34 = arith.constant dense<0.000000e+00> : vector<512x128xf32>
    %29 = tpu.matmul %26, %28, %cst_34 {dimension_numbers = #tpu.dot_dimension_numbers<[1], [0], [0], [1], [0, 0, 1, 1], [], []>} : vector<512x128xf32>, vector<128x128xf32>, vector<512x128xf32> -> vector<512x128xf32>
    %30 = arith.addf %24, %29 : vector<512x128xf32>
    %c0_35 = arith.constant 0 : index
    %c1_36 = arith.constant 1 : index
    %c2_37 = arith.constant 2 : index
    %c0_38 = arith.constant 0 : index
    %31 = vector.load %arg1[%c0_35, %c1_36, %c2_37, %c0_38] : memref<2x18x18x128xf32, #tpu.memory_space<vmem>>, vector<2x16x16x128xf32>
    %32 = vector.shape_cast %31 : vector<2x16x16x128xf32> to vector<512x128xf32>
    %c5 = arith.constant 5 : index
    %c0_39 = arith.constant 0 : index
    %c0_40 = arith.constant 0 : index
    %33 = vector.load %arg2[%c5, %c0_39, %c0_40] : memref<9x128x128xf32, #tpu.memory_space<vmem>>, vector<1x128x128xf32>
    %34 = vector.shape_cast %33 : vector<1x128x128xf32> to vector<128x128xf32>
    %cst_41 = arith.constant dense<0.000000e+00> : vector<512x128xf32>
    %35 = tpu.matmul %32, %34, %cst_41 {dimension_numbers = #tpu.dot_dimension_numbers<[1], [0], [0], [1], [0, 0, 1, 1], [], []>} : vector<512x128xf32>, vector<128x128xf32>, vector<512x128xf32> -> vector<512x128xf32>
    %36 = arith.addf %30, %35 : vector<512x128xf32>
    %c0_42 = arith.constant 0 : index
    %c2_43 = arith.constant 2 : index
    %c0_44 = arith.constant 0 : index
    %c0_45 = arith.constant 0 : index
    %37 = vector.load %arg1[%c0_42, %c2_43, %c0_44, %c0_45] : memref<2x18x18x128xf32, #tpu.memory_space<vmem>>, vector<2x16x16x128xf32>
    %38 = vector.shape_cast %37 : vector<2x16x16x128xf32> to vector<512x128xf32>
    %c6 = arith.constant 6 : index
    %c0_46 = arith.constant 0 : index
    %c0_47 = arith.constant 0 : index
    %39 = vector.load %arg2[%c6, %c0_46, %c0_47] : memref<9x128x128xf32, #tpu.memory_space<vmem>>, vector<1x128x128xf32>
    %40 = vector.shape_cast %39 : vector<1x128x128xf32> to vector<128x128xf32>
    %cst_48 = arith.constant dense<0.000000e+00> : vector<512x128xf32>
    %41 = tpu.matmul %38, %40, %cst_48 {dimension_numbers = #tpu.dot_dimension_numbers<[1], [0], [0], [1], [0, 0, 1, 1], [], []>} : vector<512x128xf32>, vector<128x128xf32>, vector<512x128xf32> -> vector<512x128xf32>
    %42 = arith.addf %36, %41 : vector<512x128xf32>
    %c0_49 = arith.constant 0 : index
    %c2_50 = arith.constant 2 : index
    %c1_51 = arith.constant 1 : index
    %c0_52 = arith.constant 0 : index
    %43 = vector.load %arg1[%c0_49, %c2_50, %c1_51, %c0_52] : memref<2x18x18x128xf32, #tpu.memory_space<vmem>>, vector<2x16x16x128xf32>
    %44 = vector.shape_cast %43 : vector<2x16x16x128xf32> to vector<512x128xf32>
    %c7 = arith.constant 7 : index
    %c0_53 = arith.constant 0 : index
    %c0_54 = arith.constant 0 : index
    %45 = vector.load %arg2[%c7, %c0_53, %c0_54] : memref<9x128x128xf32, #tpu.memory_space<vmem>>, vector<1x128x128xf32>
    %46 = vector.shape_cast %45 : vector<1x128x128xf32> to vector<128x128xf32>
    %cst_55 = arith.constant dense<0.000000e+00> : vector<512x128xf32>
    %47 = tpu.matmul %44, %46, %cst_55 {dimension_numbers = #tpu.dot_dimension_numbers<[1], [0], [0], [1], [0, 0, 1, 1], [], []>} : vector<512x128xf32>, vector<128x128xf32>, vector<512x128xf32> -> vector<512x128xf32>
    %48 = arith.addf %42, %47 : vector<512x128xf32>
    %c0_56 = arith.constant 0 : index
    %c2_57 = arith.constant 2 : index
    %c2_58 = arith.constant 2 : index
    %c0_59 = arith.constant 0 : index
    %49 = vector.load %arg1[%c0_56, %c2_57, %c2_58, %c0_59] : memref<2x18x18x128xf32, #tpu.memory_space<vmem>>, vector<2x16x16x128xf32>
    %50 = vector.shape_cast %49 : vector<2x16x16x128xf32> to vector<512x128xf32>
    %c8 = arith.constant 8 : index
    %c0_60 = arith.constant 0 : index
    %c0_61 = arith.constant 0 : index
    %51 = vector.load %arg2[%c8, %c0_60, %c0_61] : memref<9x128x128xf32, #tpu.memory_space<vmem>>, vector<1x128x128xf32>
    %52 = vector.shape_cast %51 : vector<1x128x128xf32> to vector<128x128xf32>
    %cst_62 = arith.constant dense<0.000000e+00> : vector<512x128xf32>
    %53 = tpu.matmul %50, %52, %cst_62 {dimension_numbers = #tpu.dot_dimension_numbers<[1], [0], [0], [1], [0, 0, 1, 1], [], []>} : vector<512x128xf32>, vector<128x128xf32>, vector<512x128xf32> -> vector<512x128xf32>
    %54 = arith.addf %48, %53 : vector<512x128xf32>
    %c0_63 = arith.constant 0 : index
    %c0_64 = arith.constant 0 : index
    %55 = vector.load %arg4[%c0_63, %c0_64] : memref<8x128xf32, #tpu.memory_space<vmem>>, vector<1x128xf32>
    %56 = vector.broadcast %55 : vector<1x128xf32> to vector<512x128xf32>
    %57 = arith.mulf %54, %56 : vector<512x128xf32>
    %c1_65 = arith.constant 1 : index
    %c0_66 = arith.constant 0 : index
    %58 = vector.load %arg4[%c1_65, %c0_66] : memref<8x128xf32, #tpu.memory_space<vmem>>, vector<1x128xf32>
    %59 = vector.broadcast %58 : vector<1x128xf32> to vector<512x128xf32>
    %60 = arith.addf %57, %59 : vector<512x128xf32>
    %cst_67 = arith.constant 0.000000e+00 : f32
    %61 = vector.broadcast %cst_67 : f32 to vector<512x128xf32>
    %62 = arith.maximumf %60, %61 : vector<512x128xf32>
    %cst_68 = arith.constant 0.000000e+00 : f32
    %63 = vector.broadcast %cst_68 : f32 to vector<2x1x18x128xf32>
    %c0_69 = arith.constant 0 : index
    %c0_70 = arith.constant 0 : index
    %c0_71 = arith.constant 0 : index
    %c0_72 = arith.constant 0 : index
    %64 = vector.load %arg6[%c0_69, %c0_70, %c0_71, %c0_72] : memref<2x18x18x128xf32, #tpu.memory_space<vmem>>, vector<2x1x18x128xf32>
    tpu.vector_store %arg6[%c0_69, %c0_70, %c0_71, %c0_72], %63 {strides = array<i32>} : memref<2x18x18x128xf32, #tpu.memory_space<vmem>>, vector<2x1x18x128xf32>,
    %cst_73 = arith.constant 0.000000e+00 : f32
    %65 = vector.broadcast %cst_73 : f32 to vector<2x1x18x128xf32>
    %c0_74 = arith.constant 0 : index
    %c17 = arith.constant 17 : index
    %c0_75 = arith.constant 0 : index
    %c0_76 = arith.constant 0 : index
    %66 = vector.load %arg6[%c0_74, %c17, %c0_75, %c0_76] : memref<2x18x18x128xf32, #tpu.memory_space<vmem>>, vector<2x1x18x128xf32>
    tpu.vector_store %arg6[%c0_74, %c17, %c0_75, %c0_76], %65 {strides = array<i32>} : memref<2x18x18x128xf32, #tpu.memory_space<vmem>>, vector<2x1x18x128xf32>,
    %cst_77 = arith.constant 0.000000e+00 : f32
    %67 = vector.broadcast %cst_77 : f32 to vector<2x18x1x128xf32>
    %c0_78 = arith.constant 0 : index
    %c0_79 = arith.constant 0 : index
    %c0_80 = arith.constant 0 : index
    %c0_81 = arith.constant 0 : index
    %68 = vector.load %arg6[%c0_78, %c0_79, %c0_80, %c0_81] : memref<2x18x18x128xf32, #tpu.memory_space<vmem>>, vector<2x18x1x128xf32>
    tpu.vector_store %arg6[%c0_78, %c0_79, %c0_80, %c0_81], %67 {strides = array<i32>} : memref<2x18x18x128xf32, #tpu.memory_space<vmem>>, vector<2x18x1x128xf32>,
    %cst_82 = arith.constant 0.000000e+00 : f32
    %69 = vector.broadcast %cst_82 : f32 to vector<2x18x1x128xf32>
    %c0_83 = arith.constant 0 : index
    %c0_84 = arith.constant 0 : index
    %c17_85 = arith.constant 17 : index
    %c0_86 = arith.constant 0 : index
    %70 = vector.load %arg6[%c0_83, %c0_84, %c17_85, %c0_86] : memref<2x18x18x128xf32, #tpu.memory_space<vmem>>, vector<2x18x1x128xf32>
    tpu.vector_store %arg6[%c0_83, %c0_84, %c17_85, %c0_86], %69 {strides = array<i32>} : memref<2x18x18x128xf32, #tpu.memory_space<vmem>>, vector<2x18x1x128xf32>,
    %71 = vector.shape_cast %62 : vector<512x128xf32> to vector<2x16x16x128xf32>
    %c0_87 = arith.constant 0 : index
    %c1_88 = arith.constant 1 : index
    %c1_89 = arith.constant 1 : index
    %c0_90 = arith.constant 0 : index
    %72 = vector.load %arg6[%c0_87, %c1_88, %c1_89, %c0_90] : memref<2x18x18x128xf32, #tpu.memory_space<vmem>>, vector<2x16x16x128xf32>
    tpu.vector_store %arg6[%c0_87, %c1_88, %c1_89, %c0_90], %71 {strides = array<i32>} : memref<2x18x18x128xf32, #tpu.memory_space<vmem>>, vector<2x16x16x128xf32>,
    %cst_91 = arith.constant 0.000000e+00 : f32
    %73 = vector.broadcast %cst_91 : f32 to vector<512x128xf32>
    %c0_92 = arith.constant 0 : index
    %c0_93 = arith.constant 0 : index
    %c0_94 = arith.constant 0 : index
    %c0_95 = arith.constant 0 : index
    %74 = vector.load %arg6[%c0_92, %c0_93, %c0_94, %c0_95] : memref<2x18x18x128xf32, #tpu.memory_space<vmem>>, vector<2x16x16x128xf32>
    %75 = vector.shape_cast %74 : vector<2x16x16x128xf32> to vector<512x128xf32>
    %c0_96 = arith.constant 0 : index
    %c0_97 = arith.constant 0 : index
    %c0_98 = arith.constant 0 : index
    %76 = vector.load %arg3[%c0_96, %c0_97, %c0_98] : memref<9x128x128xf32, #tpu.memory_space<vmem>>, vector<1x128x128xf32>
    %77 = vector.shape_cast %76 : vector<1x128x128xf32> to vector<128x128xf32>
    %cst_99 = arith.constant dense<0.000000e+00> : vector<512x128xf32>
    %78 = tpu.matmul %75, %77, %cst_99 {dimension_numbers = #tpu.dot_dimension_numbers<[1], [0], [0], [1], [0, 0, 1, 1], [], []>} : vector<512x128xf32>, vector<128x128xf32>, vector<512x128xf32> -> vector<512x128xf32>
    %79 = arith.addf %73, %78 : vector<512x128xf32>
    %c0_100 = arith.constant 0 : index
    %c0_101 = arith.constant 0 : index
    %c1_102 = arith.constant 1 : index
    %c0_103 = arith.constant 0 : index
    %80 = vector.load %arg6[%c0_100, %c0_101, %c1_102, %c0_103] : memref<2x18x18x128xf32, #tpu.memory_space<vmem>>, vector<2x16x16x128xf32>
    %81 = vector.shape_cast %80 : vector<2x16x16x128xf32> to vector<512x128xf32>
    %c1_104 = arith.constant 1 : index
    %c0_105 = arith.constant 0 : index
    %c0_106 = arith.constant 0 : index
    %82 = vector.load %arg3[%c1_104, %c0_105, %c0_106] : memref<9x128x128xf32, #tpu.memory_space<vmem>>, vector<1x128x128xf32>
    %83 = vector.shape_cast %82 : vector<1x128x128xf32> to vector<128x128xf32>
    %cst_107 = arith.constant dense<0.000000e+00> : vector<512x128xf32>
    %84 = tpu.matmul %81, %83, %cst_107 {dimension_numbers = #tpu.dot_dimension_numbers<[1], [0], [0], [1], [0, 0, 1, 1], [], []>} : vector<512x128xf32>, vector<128x128xf32>, vector<512x128xf32> -> vector<512x128xf32>
    %85 = arith.addf %79, %84 : vector<512x128xf32>
    %c0_108 = arith.constant 0 : index
    %c0_109 = arith.constant 0 : index
    %c2_110 = arith.constant 2 : index
    %c0_111 = arith.constant 0 : index
    %86 = vector.load %arg6[%c0_108, %c0_109, %c2_110, %c0_111] : memref<2x18x18x128xf32, #tpu.memory_space<vmem>>, vector<2x16x16x128xf32>
    %87 = vector.shape_cast %86 : vector<2x16x16x128xf32> to vector<512x128xf32>
    %c2_112 = arith.constant 2 : index
    %c0_113 = arith.constant 0 : index
    %c0_114 = arith.constant 0 : index
    %88 = vector.load %arg3[%c2_112, %c0_113, %c0_114] : memref<9x128x128xf32, #tpu.memory_space<vmem>>, vector<1x128x128xf32>
    %89 = vector.shape_cast %88 : vector<1x128x128xf32> to vector<128x128xf32>
    %cst_115 = arith.constant dense<0.000000e+00> : vector<512x128xf32>
    %90 = tpu.matmul %87, %89, %cst_115 {dimension_numbers = #tpu.dot_dimension_numbers<[1], [0], [0], [1], [0, 0, 1, 1], [], []>} : vector<512x128xf32>, vector<128x128xf32>, vector<512x128xf32> -> vector<512x128xf32>
    %91 = arith.addf %85, %90 : vector<512x128xf32>
    %c0_116 = arith.constant 0 : index
    %c1_117 = arith.constant 1 : index
    %c0_118 = arith.constant 0 : index
    %c0_119 = arith.constant 0 : index
    %92 = vector.load %arg6[%c0_116, %c1_117, %c0_118, %c0_119] : memref<2x18x18x128xf32, #tpu.memory_space<vmem>>, vector<2x16x16x128xf32>
    %93 = vector.shape_cast %92 : vector<2x16x16x128xf32> to vector<512x128xf32>
    %c3_120 = arith.constant 3 : index
    %c0_121 = arith.constant 0 : index
    %c0_122 = arith.constant 0 : index
    %94 = vector.load %arg3[%c3_120, %c0_121, %c0_122] : memref<9x128x128xf32, #tpu.memory_space<vmem>>, vector<1x128x128xf32>
    %95 = vector.shape_cast %94 : vector<1x128x128xf32> to vector<128x128xf32>
    %cst_123 = arith.constant dense<0.000000e+00> : vector<512x128xf32>
    %96 = tpu.matmul %93, %95, %cst_123 {dimension_numbers = #tpu.dot_dimension_numbers<[1], [0], [0], [1], [0, 0, 1, 1], [], []>} : vector<512x128xf32>, vector<128x128xf32>, vector<512x128xf32> -> vector<512x128xf32>
    %97 = arith.addf %91, %96 : vector<512x128xf32>
    %c0_124 = arith.constant 0 : index
    %c1_125 = arith.constant 1 : index
    %c1_126 = arith.constant 1 : index
    %c0_127 = arith.constant 0 : index
    %98 = vector.load %arg6[%c0_124, %c1_125, %c1_126, %c0_127] : memref<2x18x18x128xf32, #tpu.memory_space<vmem>>, vector<2x16x16x128xf32>
    %99 = vector.shape_cast %98 : vector<2x16x16x128xf32> to vector<512x128xf32>
    %c4_128 = arith.constant 4 : index
    %c0_129 = arith.constant 0 : index
    %c0_130 = arith.constant 0 : index
    %100 = vector.load %arg3[%c4_128, %c0_129, %c0_130] : memref<9x128x128xf32, #tpu.memory_space<vmem>>, vector<1x128x128xf32>
    %101 = vector.shape_cast %100 : vector<1x128x128xf32> to vector<128x128xf32>
    %cst_131 = arith.constant dense<0.000000e+00> : vector<512x128xf32>
    %102 = tpu.matmul %99, %101, %cst_131 {dimension_numbers = #tpu.dot_dimension_numbers<[1], [0], [0], [1], [0, 0, 1, 1], [], []>} : vector<512x128xf32>, vector<128x128xf32>, vector<512x128xf32> -> vector<512x128xf32>
    %103 = arith.addf %97, %102 : vector<512x128xf32>
    %c0_132 = arith.constant 0 : index
    %c1_133 = arith.constant 1 : index
    %c2_134 = arith.constant 2 : index
    %c0_135 = arith.constant 0 : index
    %104 = vector.load %arg6[%c0_132, %c1_133, %c2_134, %c0_135] : memref<2x18x18x128xf32, #tpu.memory_space<vmem>>, vector<2x16x16x128xf32>
    %105 = vector.shape_cast %104 : vector<2x16x16x128xf32> to vector<512x128xf32>
    %c5_136 = arith.constant 5 : index
    %c0_137 = arith.constant 0 : index
    %c0_138 = arith.constant 0 : index
    %106 = vector.load %arg3[%c5_136, %c0_137, %c0_138] : memref<9x128x128xf32, #tpu.memory_space<vmem>>, vector<1x128x128xf32>
    %107 = vector.shape_cast %106 : vector<1x128x128xf32> to vector<128x128xf32>
    %cst_139 = arith.constant dense<0.000000e+00> : vector<512x128xf32>
    %108 = tpu.matmul %105, %107, %cst_139 {dimension_numbers = #tpu.dot_dimension_numbers<[1], [0], [0], [1], [0, 0, 1, 1], [], []>} : vector<512x128xf32>, vector<128x128xf32>, vector<512x128xf32> -> vector<512x128xf32>
    %109 = arith.addf %103, %108 : vector<512x128xf32>
    %c0_140 = arith.constant 0 : index
    %c2_141 = arith.constant 2 : index
    %c0_142 = arith.constant 0 : index
    %c0_143 = arith.constant 0 : index
    %110 = vector.load %arg6[%c0_140, %c2_141, %c0_142, %c0_143] : memref<2x18x18x128xf32, #tpu.memory_space<vmem>>, vector<2x16x16x128xf32>
    %111 = vector.shape_cast %110 : vector<2x16x16x128xf32> to vector<512x128xf32>
    %c6_144 = arith.constant 6 : index
    %c0_145 = arith.constant 0 : index
    %c0_146 = arith.constant 0 : index
    %112 = vector.load %arg3[%c6_144, %c0_145, %c0_146] : memref<9x128x128xf32, #tpu.memory_space<vmem>>, vector<1x128x128xf32>
    %113 = vector.shape_cast %112 : vector<1x128x128xf32> to vector<128x128xf32>
    %cst_147 = arith.constant dense<0.000000e+00> : vector<512x128xf32>
    %114 = tpu.matmul %111, %113, %cst_147 {dimension_numbers = #tpu.dot_dimension_numbers<[1], [0], [0], [1], [0, 0, 1, 1], [], []>} : vector<512x128xf32>, vector<128x128xf32>, vector<512x128xf32> -> vector<512x128xf32>
    %115 = arith.addf %109, %114 : vector<512x128xf32>
    %c0_148 = arith.constant 0 : index
    %c2_149 = arith.constant 2 : index
    %c1_150 = arith.constant 1 : index
    %c0_151 = arith.constant 0 : index
    %116 = vector.load %arg6[%c0_148, %c2_149, %c1_150, %c0_151] : memref<2x18x18x128xf32, #tpu.memory_space<vmem>>, vector<2x16x16x128xf32>
    %117 = vector.shape_cast %116 : vector<2x16x16x128xf32> to vector<512x128xf32>
    %c7_152 = arith.constant 7 : index
    %c0_153 = arith.constant 0 : index
    %c0_154 = arith.constant 0 : index
    %118 = vector.load %arg3[%c7_152, %c0_153, %c0_154] : memref<9x128x128xf32, #tpu.memory_space<vmem>>, vector<1x128x128xf32>
    %119 = vector.shape_cast %118 : vector<1x128x128xf32> to vector<128x128xf32>
    %cst_155 = arith.constant dense<0.000000e+00> : vector<512x128xf32>
    %120 = tpu.matmul %117, %119, %cst_155 {dimension_numbers = #tpu.dot_dimension_numbers<[1], [0], [0], [1], [0, 0, 1, 1], [], []>} : vector<512x128xf32>, vector<128x128xf32>, vector<512x128xf32> -> vector<512x128xf32>
    %121 = arith.addf %115, %120 : vector<512x128xf32>
    %c0_156 = arith.constant 0 : index
    %c2_157 = arith.constant 2 : index
    %c2_158 = arith.constant 2 : index
    %c0_159 = arith.constant 0 : index
    %122 = vector.load %arg6[%c0_156, %c2_157, %c2_158, %c0_159] : memref<2x18x18x128xf32, #tpu.memory_space<vmem>>, vector<2x16x16x128xf32>
    %123 = vector.shape_cast %122 : vector<2x16x16x128xf32> to vector<512x128xf32>
    %c8_160 = arith.constant 8 : index
    %c0_161 = arith.constant 0 : index
    %c0_162 = arith.constant 0 : index
    %124 = vector.load %arg3[%c8_160, %c0_161, %c0_162] : memref<9x128x128xf32, #tpu.memory_space<vmem>>, vector<1x128x128xf32>
    %125 = vector.shape_cast %124 : vector<1x128x128xf32> to vector<128x128xf32>
    %cst_163 = arith.constant dense<0.000000e+00> : vector<512x128xf32>
    %126 = tpu.matmul %123, %125, %cst_163 {dimension_numbers = #tpu.dot_dimension_numbers<[1], [0], [0], [1], [0, 0, 1, 1], [], []>} : vector<512x128xf32>, vector<128x128xf32>, vector<512x128xf32> -> vector<512x128xf32>
    %127 = arith.addf %121, %126 : vector<512x128xf32>
    %c2_164 = arith.constant 2 : index
    %c0_165 = arith.constant 0 : index
    %128 = vector.load %arg4[%c2_164, %c0_165] : memref<8x128xf32, #tpu.memory_space<vmem>>, vector<1x128xf32>
    %129 = vector.broadcast %128 : vector<1x128xf32> to vector<512x128xf32>
    %130 = arith.mulf %127, %129 : vector<512x128xf32>
    %c3_166 = arith.constant 3 : index
    %c0_167 = arith.constant 0 : index
    %131 = vector.load %arg4[%c3_166, %c0_167] : memref<8x128xf32, #tpu.memory_space<vmem>>, vector<1x128xf32>
    %132 = vector.broadcast %131 : vector<1x128xf32> to vector<512x128xf32>
    %133 = arith.addf %130, %132 : vector<512x128xf32>
    %c0_168 = arith.constant 0 : index
    %c1_169 = arith.constant 1 : index
    %c1_170 = arith.constant 1 : index
    %c0_171 = arith.constant 0 : index
    %134 = vector.load %arg1[%c0_168, %c1_169, %c1_170, %c0_171] : memref<2x18x18x128xf32, #tpu.memory_space<vmem>>, vector<2x16x16x128xf32>
    %135 = vector.shape_cast %134 : vector<2x16x16x128xf32> to vector<512x128xf32>
    %136 = arith.addf %135, %133 : vector<512x128xf32>
    %137 = vector.shape_cast %136 : vector<512x128xf32> to vector<2x16x16x128xf32>
    %c0_172 = arith.constant 0 : index
    %c0_173 = arith.constant 0 : index
    %c0_174 = arith.constant 0 : index
    %c0_175 = arith.constant 0 : index
    %138 = vector.load %arg5[%c0_172, %c0_173, %c0_174, %c0_175] : memref<2x16x16x128xf32, #tpu.memory_space<vmem>>, vector<2x16x16x128xf32>
    tpu.vector_store %arg5[%c0_172, %c0_173, %c0_174, %c0_175], %137 {strides = array<i32>} : memref<2x16x16x128xf32, #tpu.memory_space<vmem>>, vector<2x16x16x128xf32>,
    return
  }
  func.func @transform_0(%arg0: i32) -> (i32, i32, i32, i32) {
    %c0_i32 = arith.constant 0 : i32
    %c0_i32_0 = arith.constant 0 : i32
    %c0_i32_1 = arith.constant 0 : i32
    %c0_i32_2 = arith.constant 0 : i32
    return %arg0, %c0_i32, %c0_i32_0, %c0_i32_1 : i32, i32, i32, i32
  }
  func.func @transform_1(%arg0: i32) -> (i32, i32, i32) {
    %c0_i32 = arith.constant 0 : i32
    %c0_i32_0 = arith.constant 0 : i32
    %c0_i32_1 = arith.constant 0 : i32
    %c0_i32_2 = arith.constant 0 : i32
    return %c0_i32, %c0_i32_0, %c0_i32_1 : i32, i32, i32
  }
  func.func @transform_2(%arg0: i32) -> (i32, i32, i32) {
    %c0_i32 = arith.constant 0 : i32
    %c0_i32_0 = arith.constant 0 : i32
    %c0_i32_1 = arith.constant 0 : i32
    %c0_i32_2 = arith.constant 0 : i32
    return %c0_i32, %c0_i32_0, %c0_i32_1 : i32, i32, i32
  }
  func.func @transform_3(%arg0: i32) -> (i32, i32) {
    %c0_i32 = arith.constant 0 : i32
    %c0_i32_0 = arith.constant 0 : i32
    %c0_i32_1 = arith.constant 0 : i32
    return %c0_i32, %c0_i32_0 : i32, i32
  }
  func.func @transform_4(%arg0: i32) -> (i32, i32, i32, i32) {
    %c0_i32 = arith.constant 0 : i32
    %c0_i32_0 = arith.constant 0 : i32
    %c0_i32_1 = arith.constant 0 : i32
    %c0_i32_2 = arith.constant 0 : i32
    return %arg0, %c0_i32, %c0_i32_0, %c0_i32_1 : i32, i32, i32, i32
  }
}

</mosaic_0001>

<llo_original>
// kernel: tpu_custom_call.1
$region0: #{tpu_custom_call.1}
  #allocation0 [shape = 'u32[]', space=smem, size = 0x4, offset = 0x4, fixed_abs, tag = 'smem constant byte address 0x4 - core index']
  #allocation1 [shape = 'u32[144,128]{1,0:T(1,128)}', space=vmem, size = 0x12000, scoped, tag = 'internal scratch']
  #allocation2 [shape = 'f32[2,18,18,128]{3,2,1,0:T(8,128)}', space=vmem, size = 0x6c000, scoped, tag = 'scratch operand']
  %s0 = inlined_call_operand.vmem [shape: f32[2,18,18,128], index: 0, kind: input, shape index: {}]
  %s1 = inlined_call_operand.vmem [shape: f32[9,128,128], index: 1, kind: input, shape index: {}]
  %s2 = inlined_call_operand.hbm [shape: f32[9,128,128], index: 2, kind: input, shape index: {}]
  %s3 = inlined_call_operand.vmem [shape: f32[8,128], index: 3, kind: input, shape index: {}]
  %s4 = inlined_call_operand.hbm [shape: f32[2,16,16,128], index: 4, kind: output, shape index: {}]
  %s5 = sld [smem:[#allocation0]]
  $region30: #{tpu_custom_call.1} parent=0
    _
  %s7 = ssub.s32 1, %s5
  %s8 = scalar_select 0, %s7, %s5
  $region1: #{tpu_custom_call.1} parent=0
    #allocation3 [shape = 'u8[589824]{0}', space=vmem, size = 0x90000, scoped, tag = 'input window, operand 2, single buffered']
    #allocation4 [shape = 's32[1]{0}', space=sflag, size = 0x4, scoped, tag = 'scoped memory for tpu_custom_call.1']
    #allocation5 [shape = 's32[1]{0}', space=sflag, size = 0x4, scoped, tag = 'scoped memory for tpu_custom_call.1']
    #allocation6 [shape = 'u8[262144]{0}', space=vmem, size = 0x40000, scoped, tag = 'output window, operand 0, single buffered']
    %9 = vsyncpa [#allocation4], 0
    %10 = vsyncpa [#allocation5], 0
    // Predicated region
    $region2: #{tpu_custom_call.1} parent=1 // pred_check
      _
    $region3: #{tpu_custom_call.1} parent=1 // pred_check_branch
      %12 = sbr.rel (0) target = $region5
    $region4: #{tpu_custom_call.1} parent=1 // pred_region
      _
    $region5: #{tpu_custom_call.1} parent=1 // pred_fallthru
      _
    // Predicated region
    $region6: #{tpu_custom_call.1} parent=1 // pred_check
      _
    $region7: #{tpu_custom_call.1} parent=1 // pred_check_branch
      %14 = sbr.rel (0) target = $region9
    $region8: #{tpu_custom_call.1} parent=1 // pred_region
      _
    $region9: #{tpu_custom_call.1} parent=1 // pred_fallthru
      _
    // Predicated region
    $region10: #{tpu_custom_call.1} parent=1 // pred_check
      _
    $region11: #{tpu_custom_call.1} parent=1 // pred_check_branch
      %16 = sbr.rel (0) target = $region13
    $region12: #{tpu_custom_call.1} parent=1 // pred_region
      %s18 = ssub.s32 18432, 18432
      %19 = vsyncadd [#allocation4], %s18
      %s20 = sshll.u32 [#allocation3], 4
      %s21 = int_to_ptr.vmem [resolvable:$true] %s20
      %26 = dma.hbm_to_vmem [thread:$0]  %s2, 18432, %s21, [#allocation4], 128, 128, 8
    $region13: #{tpu_custom_call.1} parent=1 // pred_fallthru
      _
    // Predicated region
    $region14: #{tpu_custom_call.1} parent=1 // pred_check
      _
    $region15: #{tpu_custom_call.1} parent=1 // pred_check_branch
      %28 = sbr.rel (0) target = $region17
    $region16: #{tpu_custom_call.1} parent=1 // pred_region
      _
    $region17: #{tpu_custom_call.1} parent=1 // pred_fallthru
      _
    // Predicated region
    $region18: #{tpu_custom_call.1} parent=1 // pred_check
      _
    $region19: #{tpu_custom_call.1} parent=1 // pred_check_branch
      %30 = sbr.rel (0) target = $region21
    $region20: #{tpu_custom_call.1} parent=1 // pred_region
      %31 = dma.done [#allocation4], 18432
    $region21: #{tpu_custom_call.1} parent=1 // pred_fallthru
      _
    %v32 = vld [vmem:[%s0] sm:$0xff]
    %v33 = vld [vmem:[%s0 + $0x8] sm:$0xff]
    %v34 = vld [vmem:[%s0 + $0x18] sm:$0xff]
    %v35 = vld [vmem:[%s0 + $0x20] sm:$0xff]
    %v36 = vld [vmem:[%s0 + $0x30] sm:$0xff]
    %v37 = vld [vmem:[%s0 + $0x38] sm:$0xff]
    %v38 = vld [vmem:[%s0 + $0x48] sm:$0xff]
    %v39 = vld [vmem:[%s0 + $0x50] sm:$0xff]
    %v40 = vld [vmem:[%s0 + $0x60] sm:$0xff]
    %v41 = vld [vmem:[%s0 + $0x68] sm:$0xff]
    %v42 = vld [vmem:[%s0 + $0x78] sm:$0xff]
    %v43 = vld [vmem:[%s0 + $0x80] sm:$0xff]
    %v44 = vld [vmem:[%s0 + $0x90] sm:$0xff]
    %v45 = vld [vmem:[%s0 + $0x98] sm:$0xff]
    %v46 = vld [vmem:[%s0 + $0xa8] sm:$0xff]
    %v47 = vld [vmem:[%s0 + $0xb0] sm:$0xff]
    %v48 = vld [vmem:[%s0 + $0xc0] sm:$0xff]
    %v49 = vld [vmem:[%s0 + $0xc8] sm:$0xff]
    %v50 = vld [vmem:[%s0 + $0xd8] sm:$0xff]
    %v51 = vld [vmem:[%s0 + $0xe0] sm:$0xff]
    %v52 = vld [vmem:[%s0 + $0xf0] sm:$0xff]
    %v53 = vld [vmem:[%s0 + $0xf8] sm:$0xff]
    %v54 = vld [vmem:[%s0 + $0x108] sm:$0xff]
    %v55 = vld [vmem:[%s0 + $0x110] sm:$0xff]
    %v56 = vld [vmem:[%s0 + $0x120] sm:$0xff]
    %v57 = vld [vmem:[%s0 + $0x128] sm:$0xff]
    %v58 = vld [vmem:[%s0 + $0x138] sm:$0xff]
    %v59 = vld [vmem:[%s0 + $0x140] sm:$0xff]
    %v60 = vld [vmem:[%s0 + $0x150] sm:$0xff]
    %v61 = vld [vmem:[%s0 + $0x158] sm:$0xff]
    %v62 = vld [vmem:[%s0 + $0x168] sm:$0xff]
    %v63 = vld [vmem:[%s0 + $0x170] sm:$0xff]
    %v64 = vld [vmem:[%s0 + $0x1b0] sm:$0xff]
    %v65 = vld [vmem:[%s0 + $0x1b8] sm:$0xff]
    %v66 = vld [vmem:[%s0 + $0x1c8] sm:$0xff]
    %v67 = vld [vmem:[%s0 + $0x1d0] sm:$0xff]
    %v68 = vld [vmem:[%s0 + $0x1e0] sm:$0xff]
    %v69 = vld [vmem:[%s0 + $0x1e8] sm:$0xff]
    %v70 = vld [vmem:[%s0 + $0x1f8] sm:$0xff]
    %v71 = vld [vmem:[%s0 + $0x200] sm:$0xff]
    %v72 = vld [vmem:[%s0 + $0x210] sm:$0xff]
    %v73 = vld [vmem:[%s0 + $0x218] sm:$0xff]
    %v74 = vld [vmem:[%s0 + $0x228] sm:$0xff]
    %v75 = vld [vmem:[%s0 + $0x230] sm:$0xff]
    %v76 = vld [vmem:[%s0 + $0x240] sm:$0xff]
    %v77 = vld [vmem:[%s0 + $0x248] sm:$0xff]
    %v78 = vld [vmem:[%s0 + $0x258] sm:$0xff]
    %v79 = vld [vmem:[%s0 + $0x260] sm:$0xff]
    %v80 = vld [vmem:[%s0 + $0x270] sm:$0xff]
    %v81 = vld [vmem:[%s0 + $0x278] sm:$0xff]
    %v82 = vld [vmem:[%s0 + $0x288] sm:$0xff]
    %v83 = vld [vmem:[%s0 + $0x290] sm:$0xff]
    %v84 = vld [vmem:[%s0 + $0x2a0] sm:$0xff]
    %v85 = vld [vmem:[%s0 + $0x2a8] sm:$0xff]
    %v86 = vld [vmem:[%s0 + $0x2b8] sm:$0xff]
    %v87 = vld [vmem:[%s0 + $0x2c0] sm:$0xff]
    %v88 = vld [vmem:[%s0 + $0x2d0] sm:$0xff]
    %v89 = vld [vmem:[%s0 + $0x2d8] sm:$0xff]
    %v90 = vld [vmem:[%s0 + $0x2e8] sm:$0xff]
    %v91 = vld [vmem:[%s0 + $0x2f0] sm:$0xff]
    %v92 = vld [vmem:[%s0 + $0x300] sm:$0xff]
    %v93 = vld [vmem:[%s0 + $0x308] sm:$0xff]
    %v94 = vld [vmem:[%s0 + $0x318] sm:$0xff]
    %v95 = vld [vmem:[%s0 + $0x320] sm:$0xff]
    %v96 = vld [vmem:[%s1] sm:$0xff]
    %v97 = vld [vmem:[%s1 + $0x8] sm:$0xff]
    %v98 = vld [vmem:[%s1 + $0x10] sm:$0xff]
    %v99 = vld [vmem:[%s1 + $0x18] sm:$0xff]
    %v100 = vld [vmem:[%s1 + $0x20] sm:$0xff]
    %v101 = vld [vmem:[%s1 + $0x28] sm:$0xff]
    %v102 = vld [vmem:[%s1 + $0x30] sm:$0xff]
    %v103 = vld [vmem:[%s1 + $0x38] sm:$0xff]
    %v104 = vld [vmem:[%s1 + $0x40] sm:$0xff]
    %v105 = vld [vmem:[%s1 + $0x48] sm:$0xff]
    %v106 = vld [vmem:[%s1 + $0x50] sm:$0xff]
    %v107 = vld [vmem:[%s1 + $0x58] sm:$0xff]
    %v108 = vld [vmem:[%s1 + $0x60] sm:$0xff]
    %v109 = vld [vmem:[%s1 + $0x68] sm:$0xff]
    %v110 = vld [vmem:[%s1 + $0x70] sm:$0xff]
    %v111 = vld [vmem:[%s1 + $0x78] sm:$0xff]
    %v112 = vld [vmem:[%s0 + $0x1] sm:$0xff]
    %v113 = vld [vmem:[%s0 + $0x9] sm:$0xff]
    %v114 = vld [vmem:[%s0 + $0x19] sm:$0xff]
    %v115 = vld [vmem:[%s0 + $0x21] sm:$0xff]
    %v116 = vld [vmem:[%s0 + $0x31] sm:$0xff]
    %v117 = vld [vmem:[%s0 + $0x39] sm:$0xff]
    %v118 = vld [vmem:[%s0 + $0x49] sm:$0xff]
    %v119 = vld [vmem:[%s0 + $0x51] sm:$0xff]
    %v120 = vld [vmem:[%s0 + $0x61] sm:$0xff]
    %v121 = vld [vmem:[%s0 + $0x69] sm:$0xff]
    %v122 = vld [vmem:[%s0 + $0x79] sm:$0xff]
    %v123 = vld [vmem:[%s0 + $0x81] sm:$0xff]
    %v124 = vld [vmem:[%s0 + $0x91] sm:$0xff]
    %v125 = vld [vmem:[%s0 + $0x99] sm:$0xff]
    %v126 = vld [vmem:[%s0 + $0xa9] sm:$0xff]
    %v127 = vld [vmem:[%s0 + $0xb1] sm:$0xff]
    %v128 = vld [vmem:[%s0 + $0xc1] sm:$0xff]
    %v129 = vld [vmem:[%s0 + $0xc9] sm:$0xff]
    %v130 = vld [vmem:[%s0 + $0xd9] sm:$0xff]
    %v131 = vld [vmem:[%s0 + $0xe1] sm:$0xff]
    %v132 = vld [vmem:[%s0 + $0xf1] sm:$0xff]
    %v133 = vld [vmem:[%s0 + $0xf9] sm:$0xff]
    %v134 = vld [vmem:[%s0 + $0x109] sm:$0xff]
    %v135 = vld [vmem:[%s0 + $0x111] sm:$0xff]
    %v136 = vld [vmem:[%s0 + $0x121] sm:$0xff]
    %v137 = vld [vmem:[%s0 + $0x129] sm:$0xff]
    %v138 = vld [vmem:[%s0 + $0x139] sm:$0xff]
    %v139 = vld [vmem:[%s0 + $0x141] sm:$0xff]
    %v140 = vld [vmem:[%s0 + $0x151] sm:$0xff]
    %v141 = vld [vmem:[%s0 + $0x159] sm:$0xff]
    %v142 = vld [vmem:[%s0 + $0x169] sm:$0xff]
    %v143 = vld [vmem:[%s0 + $0x171] sm:$0xff]
    %v144 = vld [vmem:[%s0 + $0x1b1] sm:$0xff]
    %v145 = vld [vmem:[%s0 + $0x1b9] sm:$0xff]
    %v146 = vld [vmem:[%s0 + $0x1c9] sm:$0xff]
    %v147 = vld [vmem:[%s0 + $0x1d1] sm:$0xff]
    %v148 = vld [vmem:[%s0 + $0x1e1] sm:$0xff]
    %v149 = vld [vmem:[%s0 + $0x1e9] sm:$0xff]
    %v150 = vld [vmem:[%s0 + $0x1f9] sm:$0xff]
    %v151 = vld [vmem:[%s0 + $0x201] sm:$0xff]
    %v152 = vld [vmem:[%s0 + $0x211] sm:$0xff]
    %v153 = vld [vmem:[%s0 + $0x219] sm:$0xff]
    %v154 = vld [vmem:[%s0 + $0x229] sm:$0xff]
    %v155 = vld [vmem:[%s0 + $0x231] sm:$0xff]
    %v156 = vld [vmem:[%s0 + $0x241] sm:$0xff]
    %v157 = vld [vmem:[%s0 + $0x249] sm:$0xff]
    %v158 = vld [vmem:[%s0 + $0x259] sm:$0xff]
    %v159 = vld [vmem:[%s0 + $0x261] sm:$0xff]
    %v160 = vld [vmem:[%s0 + $0x271] sm:$0xff]
    %v161 = vld [vmem:[%s0 + $0x279] sm:$0xff]
    %v162 = vld [vmem:[%s0 + $0x289] sm:$0xff]
    %v163 = vld [vmem:[%s0 + $0x291] sm:$0xff]
    %v164 = vld [vmem:[%s0 + $0x2a1] sm:$0xff]
    %v165 = vld [vmem:[%s0 + $0x2a9] sm:$0xff]
    %v166 = vld [vmem:[%s0 + $0x2b9] sm:$0xff]
    %v167 = vld [vmem:[%s0 + $0x2c1] sm:$0xff]
    %v168 = vld [vmem:[%s0 + $0x2d1] sm:$0xff]
    %v169 = vld [vmem:[%s0 + $0x2d9] sm:$0xff]
    %v170 = vld [vmem:[%s0 + $0x2e9] sm:$0xff]
    %v171 = vld [vmem:[%s0 + $0x2f1] sm:$0xff]
    %v172 = vld [vmem:[%s0 + $0x301] sm:$0xff]
    %v173 = vld [vmem:[%s0 + $0x309] sm:$0xff]
    %v174 = vld [vmem:[%s0 + $0x319] sm:$0xff]
    %v175 = vld [vmem:[%s0 + $0x321] sm:$0xff]
    %s176 = scalar_lea.vmem %s1, 128
    %v177 = vld [vmem:[%s176] sm:$0xff]
    %v178 = vld [vmem:[%s176 + $0x8] sm:$0xff]
    %v179 = vld [vmem:[%s176 + $0x10] sm:$0xff]
    %v180 = vld [vmem:[%s176 + $0x18] sm:$0xff]
    %v181 = vld [vmem:[%s176 + $0x20] sm:$0xff]
    %v182 = vld [vmem:[%s176 + $0x28] sm:$0xff]
    %v183 = vld [vmem:[%s176 + $0x30] sm:$0xff]
    %v184 = vld [vmem:[%s176 + $0x38] sm:$0xff]
    %v185 = vld [vmem:[%s176 + $0x40] sm:$0xff]
    %v186 = vld [vmem:[%s176 + $0x48] sm:$0xff]
    %v187 = vld [vmem:[%s176 + $0x50] sm:$0xff]
    %v188 = vld [vmem:[%s176 + $0x58] sm:$0xff]
    %v189 = vld [vmem:[%s176 + $0x60] sm:$0xff]
    %v190 = vld [vmem:[%s176 + $0x68] sm:$0xff]
    %v191 = vld [vmem:[%s176 + $0x70] sm:$0xff]
    %v192 = vld [vmem:[%s176 + $0x78] sm:$0xff]
    %193 = vmatprep.subr.mxu0 0.0
    %194 = vmatpush1.msra.mxu0 %v177
    %195 = vmatprep.subr.mxu0 0.0
    %196 = vmatpush1.msra.mxu0 %v178
    %197 = vmatprep.subr.mxu0 0.0
    %198 = vmatpush1.msra.mxu0 %v179
    %199 = vmatprep.subr.mxu0 0.0
    %200 = vmatpush1.msra.mxu0 %v180
    %201 = vmatprep.subr.mxu0 0.0
    %202 = vmatpush1.msra.mxu0 %v181
    %203 = vmatprep.subr.mxu0 0.0
    %204 = vmatpush1.msra.mxu0 %v182
    %205 = vmatprep.subr.mxu0 0.0
    %206 = vmatpush1.msra.mxu0 %v183
    %207 = vmatprep.subr.mxu0 0.0
    %208 = vmatpush1.msra.mxu0 %v184
    %209 = vmatprep.subr.mxu0 0.0
    %210 = vmatpush1.msra.mxu0 %v185
    %211 = vmatprep.subr.mxu0 0.0
    %212 = vmatpush1.msra.mxu0 %v186
    %213 = vmatprep.subr.mxu0 0.0
    %214 = vmatpush1.msra.mxu0 %v187
    %215 = vmatprep.subr.mxu0 0.0
    %216 = vmatpush1.msra.mxu0 %v188
    %217 = vmatprep.subr.mxu0 0.0
    %218 = vmatpush1.msra.mxu0 %v189
    %219 = vmatprep.subr.mxu0 0.0
    %220 = vmatpush1.msra.mxu0 %v190
    %221 = vmatprep.subr.mxu0 0.0
    %222 = vmatpush1.msra.mxu0 %v191
    %223 = vmatprep.subr.mxu0 0.0
    %224 = vmatpush1.msra.mxu0 %v192
    %225 = vmatprep.subr.mxu0 0.0
    %226 = vmatpush1.msra.mxu0 0.0
    %227 = vmatprep.subr.mxu0 0.0
    %228 = vmatpush1.msra.mxu0 0.0
    %229 = vmatprep.subr.mxu0 0.0
    %230 = vmatpush1.msra.mxu0 0.0
    %231 = vmatprep.subr.mxu0 0.0
    %232 = vmatpush1.msra.mxu0 0.0
    %233 = vmatprep.subr.mxu0 0.0
    %234 = vmatpush1.msra.mxu0 0.0
    %235 = vmatprep.subr.mxu0 0.0
    %236 = vmatpush1.msra.mxu0 0.0
    %237 = vmatprep.subr.mxu0 0.0
    %238 = vmatpush1.msra.mxu0 0.0
    %239 = vmatprep.subr.mxu0 0.0
    %240 = vmatpush1.msra.mxu0 0.0
    %241 = vmatprep.subr.mxu0 0.0
    %242 = vmatpush1.msra.mxu0 0.0
    %243 = vmatprep.subr.mxu0 0.0
    %244 = vmatpush1.msra.mxu0 0.0
    %245 = vmatprep.subr.mxu0 0.0
    %246 = vmatpush1.msra.mxu0 0.0
    %247 = vmatprep.subr.mxu0 0.0
    %248 = vmatpush1.msra.mxu0 0.0
    %249 = vmatprep.subr.mxu0 0.0
    %250 = vmatpush1.msra.mxu0 0.0
    %251 = vmatprep.subr.mxu0 0.0
    %252 = vmatpush1.msra.mxu0 0.0
    %253 = vmatprep.subr.mxu0 0.0
    %254 = vmatpush1.msra.mxu0 0.0
    %255 = vmatprep.subr.mxu0 0.0
    %256 = vmatpush1.msra.mxu0 0.0
    %257 = vmatprep.mubr.f32.mxu0 0.0
    %258 = vmatmul.mubr.f32.gmra.mrb[0].mxu0 %v112
    %v259 = vpop.f32.mrb[0].mxu0
    %v260 = vadd.f32 0.0, %v259
    %v261 = vpop.f32.mrb[0].mxu0
    %262 = vmatprep.mubr.f32.mxu0 0.0
    %263 = vmatmul.mubr.f32.gmra.mrb[0].mxu0 %v113
    %v264 = vpop.f32.mrb[0].mxu0
    %v265 = vadd.f32 0.0, %v264
    %v266 = vpop.f32.mrb[0].mxu0
    %267 = vmatprep.mubr.f32.mxu0 0.0
    %268 = vmatmul.mubr.f32.gmra.mrb[0].mxu0 %v114
    %v269 = vpop.f32.mrb[0].mxu0
    %v270 = vadd.f32 0.0, %v269
    %v271 = vpop.f32.mrb[0].mxu0
    %272 = vmatprep.mubr.f32.mxu0 0.0
    %273 = vmatmul.mubr.f32.gmra.mrb[0].mxu0 %v115
    %v274 = vpop.f32.mrb[0].mxu0
    %v275 = vadd.f32 0.0, %v274
    %v276 = vpop.f32.mrb[0].mxu0
    %277 = vmatprep.mubr.f32.mxu0 0.0
    %278 = vmatmul.mubr.f32.gmra.mrb[0].mxu0 %v116
    %v279 = vpop.f32.mrb[0].mxu0
    %v280 = vadd.f32 0.0, %v279
    %v281 = vpop.f32.mrb[0].mxu0
    %282 = vmatprep.mubr.f32.mxu0 0.0
    %283 = vmatmul.mubr.f32.gmra.mrb[0].mxu0 %v117
    %v284 = vpop.f32.mrb[0].mxu0
    %v285 = vadd.f32 0.0, %v284
    %v286 = vpop.f32.mrb[0].mxu0
    %287 = vmatprep.mubr.f32.mxu0 0.0
    %288 = vmatmul.mubr.f32.gmra.mrb[0].mxu0 %v118
    %v289 = vpop.f32.mrb[0].mxu0
    %v290 = vadd.f32 0.0, %v289
    %v291 = vpop.f32.mrb[0].mxu0
    %292 = vmatprep.mubr.f32.mxu0 0.0
    %293 = vmatmul.mubr.f32.gmra.mrb[0].mxu0 %v119
    %v294 = vpop.f32.mrb[0].mxu0
    %v295 = vadd.f32 0.0, %v294
    %v296 = vpop.f32.mrb[0].mxu0
    %297 = vmatprep.mubr.f32.mxu0 0.0
    %298 = vmatmul.mubr.f32.gmra.mrb[0].mxu0 %v120
    %v299 = vpop.f32.mrb[0].mxu0
    %v300 = vadd.f32 0.0, %v299
    %v301 = vpop.f32.mrb[0].mxu0
    %302 = vmatprep.mubr.f32.mxu0 0.0
    %303 = vmatmul.mubr.f32.gmra.mrb[0].mxu0 %v121
    %v304 = vpop.f32.mrb[0].mxu0
    %v305 = vadd.f32 0.0, %v304
    %v306 = vpop.f32.mrb[0].mxu0
    %307 = vmatprep.mubr.f32.mxu0 0.0
    %308 = vmatmul.mubr.f32.gmra.mrb[0].mxu0 %v122
    %v309 = vpop.f32.mrb[0].mxu0
    %v310 = vadd.f32 0.0, %v309
    %v311 = vpop.f32.mrb[0].mxu0
    %312 = vmatprep.mubr.f32.mxu0 0.0
    %313 = vmatmul.mubr.f32.gmra.mrb[0].mxu0 %v123
    %v314 = vpop.f32.mrb[0].mxu0
    %v315 = vadd.f32 0.0, %v314
    %v316 = vpop.f32.mrb[0].mxu0
    %317 = vmatprep.mubr.f32.mxu0 0.0
    %318 = vmatmul.mubr.f32.gmra.mrb[0].mxu0 %v124
    %v319 = vpop.f32.mrb[0].mxu0
    %v320 = vadd.f32 0.0, %v319
    %v321 = vpop.f32.mrb[0].mxu0
    %322 = vmatprep.mubr.f32.mxu0 0.0
    %323 = vmatmul.mubr.f32.gmra.mrb[0].mxu0 %v125
    %v324 = vpop.f32.mrb[0].mxu0
    %v325 = vadd.f32 0.0, %v324
    %v326 = vpop.f32.mrb[0].mxu0
    %327 = vmatprep.mubr.f32.mxu0 0.0
    %328 = vmatmul.mubr.f32.gmra.mrb[0].mxu0 %v126
    %v329 = vpop.f32.mrb[0].mxu0
    %v330 = vadd.f32 0.0, %v329
    %v331 = vpop.f32.mrb[0].mxu0
    %332 = vmatprep.mubr.f32.mxu0 0.0
    %333 = vmatmul.mubr.f32.gmra.mrb[0].mxu0 %v127
    %v334 = vpop.f32.mrb[0].mxu0
    %v335 = vadd.f32 0.0, %v334
    %v336 = vpop.f32.mrb[0].mxu0
    %337 = vmatprep.mubr.f32.mxu0 0.0
    %338 = vmatmul.mubr.f32.gmra.mrb[0].mxu0 %v128
    %v339 = vpop.f32.mrb[0].mxu0
    %v340 = vadd.f32 0.0, %v339
    %v341 = vpop.f32.mrb[0].mxu0
    %342 = vmatprep.mubr.f32.mxu0 0.0
    %343 = vmatmul.mubr.f32.gmra.mrb[0].mxu0 %v129
    %v344 = vpop.f32.mrb[0].mxu0
    %v345 = vadd.f32 0.0, %v344
    %v346 = vpop.f32.mrb[0].mxu0
    %347 = vmatprep.mubr.f32.mxu0 0.0
    %348 = vmatmul.mubr.f32.gmra.mrb[0].mxu0 %v130
    %v349 = vpop.f32.mrb[0].mxu0
    %v350 = vadd.f32 0.0, %v349
    %v351 = vpop.f32.mrb[0].mxu0
    %352 = vmatprep.mubr.f32.mxu0 0.0
    %353 = vmatmul.mubr.f32.gmra.mrb[0].mxu0 %v131
    %v354 = vpop.f32.mrb[0].mxu0
    %v355 = vadd.f32 0.0, %v354
    %v356 = vpop.f32.mrb[0].mxu0
    %357 = vmatprep.mubr.f32.mxu0 0.0
    %358 = vmatmul.mubr.f32.gmra.mrb[0].mxu0 %v132
    %v359 = vpop.f32.mrb[0].mxu0
    %v360 = vadd.f32 0.0, %v359
    %v361 = vpop.f32.mrb[0].mxu0
    %362 = vmatprep.mubr.f32.mxu0 0.0
    %363 = vmatmul.mubr.f32.gmra.mrb[0].mxu0 %v133
    %v364 = vpop.f32.mrb[0].mxu0
    %v365 = vadd.f32 0.0, %v364
    %v366 = vpop.f32.mrb[0].mxu0
    %367 = vmatprep.mubr.f32.mxu0 0.0
    %368 = vmatmul.mubr.f32.gmra.mrb[0].mxu0 %v134
    %v369 = vpop.f32.mrb[0].mxu0
    %v370 = vadd.f32 0.0, %v369
    %v371 = vpop.f32.mrb[0].mxu0
    %372 = vmatprep.mubr.f32.mxu0 0.0
    %373 = vmatmul.mubr.f32.gmra.mrb[0].mxu0 %v135
    %v374 = vpop.f32.mrb[0].mxu0
    %v375 = vadd.f32 0.0, %v374
    %v376 = vpop.f32.mrb[0].mxu0
    %377 = vmatprep.mubr.f32.mxu0 0.0
    %378 = vmatmul.mubr.f32.gmra.mrb[0].mxu0 %v136
    %v379 = vpop.f32.mrb[0].mxu0
    %v380 = vadd.f32 0.0, %v379
    %v381 = vpop.f32.mrb[0].mxu0
    %382 = vmatprep.mubr.f32.mxu0 0.0
    %383 = vmatmul.mubr.f32.gmra.mrb[0].mxu0 %v137
    %v384 = vpop.f32.mrb[0].mxu0
    %v385 = vadd.f32 0.0, %v384
    %v386 = vpop.f32.mrb[0].mxu0
    %387 = vmatprep.mubr.f32.mxu0 0.0
    %388 = vmatmul.mubr.f32.gmra.mrb[0].mxu0 %v138
    %v389 = vpop.f32.mrb[0].mxu0
    %v390 = vadd.f32 0.0, %v389
    %v391 = vpop.f32.mrb[0].mxu0
    %392 = vmatprep.mubr.f32.mxu0 0.0
    %393 = vmatmul.mubr.f32.gmra.mrb[0].mxu0 %v139
    %v394 = vpop.f32.mrb[0].mxu0
    %v395 = vadd.f32 0.0, %v394
    %v396 = vpop.f32.mrb[0].mxu0
    %397 = vmatprep.mubr.f32.mxu0 0.0
    %398 = vmatmul.mubr.f32.gmra.mrb[0].mxu0 %v140
    %v399 = vpop.f32.mrb[0].mxu0
    %v400 = vadd.f32 0.0, %v399
    %v401 = vpop.f32.mrb[0].mxu0
    %402 = vmatprep.mubr.f32.mxu0 0.0
    %403 = vmatmul.mubr.f32.gmra.mrb[0].mxu0 %v141
    %v404 = vpop.f32.mrb[0].mxu0
    %v405 = vadd.f32 0.0, %v404
    %v406 = vpop.f32.mrb[0].mxu0
    %407 = vmatprep.mubr.f32.mxu0 0.0
    %408 = vmatmul.mubr.f32.gmra.mrb[0].mxu0 %v142
    %v409 = vpop.f32.mrb[0].mxu0
    %v410 = vadd.f32 0.0, %v409
    %v411 = vpop.f32.mrb[0].mxu0
    %412 = vmatprep.mubr.f32.mxu0 0.0
    %413 = vmatmul.mubr.f32.gmra.mrb[0].mxu0 %v143
    %v414 = vpop.f32.mrb[0].mxu0
    %v415 = vadd.f32 0.0, %v414
    %v416 = vpop.f32.mrb[0].mxu0
    %417 = vmatprep.mubr.f32.mxu0 0.0
    %418 = vmatmul.mubr.f32.gmra.mrb[0].mxu0 %v144
    %v419 = vpop.f32.mrb[0].mxu0
    %v420 = vadd.f32 0.0, %v419
    %v421 = vpop.f32.mrb[0].mxu0
    %422 = vmatprep.mubr.f32.mxu0 0.0
    %423 = vmatmul.mubr.f32.gmra.mrb[0].mxu0 %v145
    %v424 = vpop.f32.mrb[0].mxu0
    %v425 = vadd.f32 0.0, %v424
    %v426 = vpop.f32.mrb[0].mxu0
    %427 = vmatprep.mubr.f32.mxu0 0.0
    %428 = vmatmul.mubr.f32.gmra.mrb[0].mxu0 %v146
    %v429 = vpop.f32.mrb[0].mxu0
    %v430 = vadd.f32 0.0, %v429
    %v431 = vpop.f32.mrb[0].mxu0
    %432 = vmatprep.mubr.f32.mxu0 0.0
    %433 = vmatmul.mubr.f32.gmra.mrb[0].mxu0 %v147
    %v434 = vpop.f32.mrb[0].mxu0
    %v435 = vadd.f32 0.0, %v434
    %v436 = vpop.f32.mrb[0].mxu0
    %437 = vmatprep.mubr.f32.mxu0 0.0
    %438 = vmatmul.mubr.f32.gmra.mrb[0].mxu0 %v148
    %v439 = vpop.f32.mrb[0].mxu0
    %v440 = vadd.f32 0.0, %v439
    %v441 = vpop.f32.mrb[0].mxu0
    %442 = vmatprep.mubr.f32.mxu0 0.0
    %443 = vmatmul.mubr.f32.gmra.mrb[0].mxu0 %v149
    %v444 = vpop.f32.mrb[0].mxu0
    %v445 = vadd.f32 0.0, %v444
    %v446 = vpop.f32.mrb[0].mxu0
    %447 = vmatprep.mubr.f32.mxu0 0.0
    %448 = vmatmul.mubr.f32.gmra.mrb[0].mxu0 %v150
    %v449 = vpop.f32.mrb[0].mxu0
    %v450 = vadd.f32 0.0, %v449
    %v451 = vpop.f32.mrb[0].mxu0
    %452 = vmatprep.mubr.f32.mxu0 0.0
    %453 = vmatmul.mubr.f32.gmra.mrb[0].mxu0 %v151
    %v454 = vpop.f32.mrb[0].mxu0
    %v455 = vadd.f32 0.0, %v454
    %v456 = vpop.f32.mrb[0].mxu0
    %457 = vmatprep.mubr.f32.mxu0 0.0
    %458 = vmatmul.mubr.f32.gmra.mrb[0].mxu0 %v152
    %v459 = vpop.f32.mrb[0].mxu0
    %v460 = vadd.f32 0.0, %v459
    %v461 = vpop.f32.mrb[0].mxu0
    %462 = vmatprep.mubr.f32.mxu0 0.0
    %463 = vmatmul.mubr.f32.gmra.mrb[0].mxu0 %v153
    %v464 = vpop.f32.mrb[0].mxu0
    %v465 = vadd.f32 0.0, %v464
    %v466 = vpop.f32.mrb[0].mxu0
    %467 = vmatprep.mubr.f32.mxu0 0.0
    %468 = vmatmul.mubr.f32.gmra.mrb[0].mxu0 %v154
    %v469 = vpop.f32.mrb[0].mxu0
    %v470 = vadd.f32 0.0, %v469
    %v471 = vpop.f32.mrb[0].mxu0
    %472 = vmatprep.mubr.f32.mxu0 0.0
    %473 = vmatmul.mubr.f32.gmra.mrb[0].mxu0 %v155
    %v474 = vpop.f32.mrb[0].mxu0
    %v475 = vadd.f32 0.0, %v474
    %v476 = vpop.f32.mrb[0].mxu0
    %477 = vmatprep.mubr.f32.mxu0 0.0
    %478 = vmatmul.mubr.f32.gmra.mrb[0].mxu0 %v156
    %v479 = vpop.f32.mrb[0].mxu0
    %v480 = vadd.f32 0.0, %v479
    %v481 = vpop.f32.mrb[0].mxu0
    %482 = vmatprep.mubr.f32.mxu0 0.0
    %483 = vmatmul.mubr.f32.gmra.mrb[0].mxu0 %v157
    %v484 = vpop.f32.mrb[0].mxu0
    %v485 = vadd.f32 0.0, %v484
    %v486 = vpop.f32.mrb[0].mxu0
    %487 = vmatprep.mubr.f32.mxu0 0.0
    %488 = vmatmul.mubr.f32.gmra.mrb[0].mxu0 %v158
    %v489 = vpop.f32.mrb[0].mxu0
    %v490 = vadd.f32 0.0, %v489
    %v491 = vpop.f32.mrb[0].mxu0
    %492 = vmatprep.mubr.f32.mxu0 0.0
    %493 = vmatmul.mubr.f32.gmra.mrb[0].mxu0 %v159
    %v494 = vpop.f32.mrb[0].mxu0
    %v495 = vadd.f32 0.0, %v494
    %v496 = vpop.f32.mrb[0].mxu0
    %497 = vmatprep.mubr.f32.mxu0 0.0
    %498 = vmatmul.mubr.f32.gmra.mrb[0].mxu0 %v160
    %v499 = vpop.f32.mrb[0].mxu0
    %v500 = vadd.f32 0.0, %v499
    %v501 = vpop.f32.mrb[0].mxu0
    %502 = vmatprep.mubr.f32.mxu0 0.0
    %503 = vmatmul.mubr.f32.gmra.mrb[0].mxu0 %v161
    %v504 = vpop.f32.mrb[0].mxu0
    %v505 = vadd.f32 0.0, %v504
    %v506 = vpop.f32.mrb[0].mxu0
    %507 = vmatprep.mubr.f32.mxu0 0.0
    %508 = vmatmul.mubr.f32.gmra.mrb[0].mxu0 %v162
    %v509 = vpop.f32.mrb[0].mxu0
    %v510 = vadd.f32 0.0, %v509
    %v511 = vpop.f32.mrb[0].mxu0
    %512 = vmatprep.mubr.f32.mxu0 0.0
    %513 = vmatmul.mubr.f32.gmra.mrb[0].mxu0 %v163
    %v514 = vpop.f32.mrb[0].mxu0
    %v515 = vadd.f32 0.0, %v514
    %v516 = vpop.f32.mrb[0].mxu0
    %517 = vmatprep.mubr.f32.mxu0 0.0
    %518 = vmatmul.mubr.f32.gmra.mrb[0].mxu0 %v164
    %v519 = vpop.f32.mrb[0].mxu0
    %v520 = vadd.f32 0.0, %v519
    %v521 = vpop.f32.mrb[0].mxu0
    %522 = vmatprep.mubr.f32.mxu0 0.0
    %523 = vmatmul.mubr.f32.gmra.mrb[0].mxu0 %v165
    %v524 = vpop.f32.mrb[0].mxu0
    %v525 = vadd.f32 0.0, %v524
    %v526 = vpop.f32.mrb[0].mxu0
    %527 = vmatprep.mubr.f32.mxu0 0.0
    %528 = vmatmul.mubr.f32.gmra.mrb[0].mxu0 %v166
    %v529 = vpop.f32.mrb[0].mxu0
    %v530 = vadd.f32 0.0, %v529
    %v531 = vpop.f32.mrb[0].mxu0
    %532 = vmatprep.mubr.f32.mxu0 0.0
    %533 = vmatmul.mubr.f32.gmra.mrb[0].mxu0 %v167
    %v534 = vpop.f32.mrb[0].mxu0
    %v535 = vadd.f32 0.0, %v534
    %v536 = vpop.f32.mrb[0].mxu0
    %537 = vmatprep.mubr.f32.mxu0 0.0
    %538 = vmatmul.mubr.f32.gmra.mrb[0].mxu0 %v168
    %v539 = vpop.f32.mrb[0].mxu0
    %v540 = vadd.f32 0.0, %v539
    %v541 = vpop.f32.mrb[0].mxu0
    %542 = vmatprep.mubr.f32.mxu0 0.0
    %543 = vmatmul.mubr.f32.gmra.mrb[0].mxu0 %v169
    %v544 = vpop.f32.mrb[0].mxu0
    %v545 = vadd.f32 0.0, %v544
    %v546 = vpop.f32.mrb[0].mxu0
    %547 = vmatprep.mubr.f32.mxu0 0.0
    %548 = vmatmul.mubr.f32.gmra.mrb[0].mxu0 %v170
    %v549 = vpop.f32.mrb[0].mxu0
    %v550 = vadd.f32 0.0, %v549
    %v551 = vpop.f32.mrb[0].mxu0
    %552 = vmatprep.mubr.f32.mxu0 0.0
    %553 = vmatmul.mubr.f32.gmra.mrb[0].mxu0 %v171
    %v554 = vpop.f32.mrb[0].mxu0
    %v555 = vadd.f32 0.0, %v554
    %v556 = vpop.f32.mrb[0].mxu0
    %557 = vmatprep.mubr.f32.mxu0 0.0
    %558 = vmatmul.mubr.f32.gmra.mrb[0].mxu0 %v172
    %v559 = vpop.f32.mrb[0].mxu0
    %v560 = vadd.f32 0.0, %v559
    %v561 = vpop.f32.mrb[0].mxu0
    %562 = vmatprep.mubr.f32.mxu0 0.0
    %563 = vmatmul.mubr.f32.gmra.mrb[0].mxu0 %v173
    %v564 = vpop.f32.mrb[0].mxu0
    %v565 = vadd.f32 0.0, %v564
    %v566 = vpop.f32.mrb[0].mxu0
    %567 = vmatprep.mubr.f32.mxu0 0.0
    %568 = vmatmul.mubr.f32.gmra.mrb[0].mxu0 %v174
    %v569 = vpop.f32.mrb[0].mxu0
    %v570 = vadd.f32 0.0, %v569
    %v571 = vpop.f32.mrb[0].mxu0
    %572 = vmatprep.mubr.f32.mxu0 0.0
    %573 = vmatmul.mubr.f32.gmra.mrb[0].mxu0 %v175
    %v574 = vpop.f32.mrb[0].mxu0
    %v575 = vadd.f32 0.0, %v574
    %v576 = vpop.f32.mrb[0].mxu0
    %577 = vdwg.mxu0
    %578 = vmatprep.subr.mxu0 0.0
    %579 = vmatpush1.msra.mxu0 %v96
    %580 = vmatprep.subr.mxu0 0.0
    %581 = vmatpush1.msra.mxu0 %v97
    %582 = vmatprep.subr.mxu0 0.0
    %583 = vmatpush1.msra.mxu0 %v98
    %584 = vmatprep.subr.mxu0 0.0
    %585 = vmatpush1.msra.mxu0 %v99
    %586 = vmatprep.subr.mxu0 0.0
    %587 = vmatpush1.msra.mxu0 %v100
    %588 = vmatprep.subr.mxu0 0.0
    %589 = vmatpush1.msra.mxu0 %v101
    %590 = vmatprep.subr.mxu0 0.0
    %591 = vmatpush1.msra.mxu0 %v102
    %592 = vmatprep.subr.mxu0 0.0
    %593 = vmatpush1.msra.mxu0 %v103
    %594 = vmatprep.subr.mxu0 0.0
    %595 = vmatpush1.msra.mxu0 %v104
    %596 = vmatprep.subr.mxu0 0.0
    %597 = vmatpush1.msra.mxu0 %v105
    %598 = vmatprep.subr.mxu0 0.0
    %599 = vmatpush1.msra.mxu0 %v106
    %600 = vmatprep.subr.mxu0 0.0
    %601 = vmatpush1.msra.mxu0 %v107
    %602 = vmatprep.subr.mxu0 0.0
    %603 = vmatpush1.msra.mxu0 %v108
    %604 = vmatprep.subr.mxu0 0.0
    %605 = vmatpush1.msra.mxu0 %v109
    %606 = vmatprep.subr.mxu0 0.0
    %607 = vmatpush1.msra.mxu0 %v110
    %608 = vmatprep.subr.mxu0 0.0
    %609 = vmatpush1.msra.mxu0 %v111
    %610 = vmatprep.subr.mxu0 0.0
    %611 = vmatpush1.msra.mxu0 0.0
    %612 = vmatprep.subr.mxu0 0.0
    %613 = vmatpush1.msra.mxu0 0.0
    %614 = vmatprep.subr.mxu0 0.0
    %615 = vmatpush1.msra.mxu0 0.0
    %616 = vmatprep.subr.mxu0 0.0
    %617 = vmatpush1.msra.mxu0 0.0
    %618 = vmatprep.subr.mxu0 0.0
    %619 = vmatpush1.msra.mxu0 0.0
    %620 = vmatprep.subr.mxu0 0.0
    %621 = vmatpush1.msra.mxu0 0.0
    %622 = vmatprep.subr.mxu0 0.0
    %623 = vmatpush1.msra.mxu0 0.0
    %624 = vmatprep.subr.mxu0 0.0
    %625 = vmatpush1.msra.mxu0 0.0
    %626 = vmatprep.subr.mxu0 0.0
    %627 = vmatpush1.msra.mxu0 0.0
    %628 = vmatprep.subr.mxu0 0.0
    %629 = vmatpush1.msra.mxu0 0.0
    %630 = vmatprep.subr.mxu0 0.0
    %631 = vmatpush1.msra.mxu0 0.0
    %632 = vmatprep.subr.mxu0 0.0
    %633 = vmatpush1.msra.mxu0 0.0
    %634 = vmatprep.subr.mxu0 0.0
    %635 = vmatpush1.msra.mxu0 0.0
    %636 = vmatprep.subr.mxu0 0.0
    %637 = vmatpush1.msra.mxu0 0.0
    %638 = vmatprep.subr.mxu0 0.0
    %639 = vmatpush1.msra.mxu0 0.0
    %640 = vmatprep.subr.mxu0 0.0
    %641 = vmatpush1.msra.mxu0 0.0
    %642 = vmatprep.mubr.f32.mxu0 0.0
    %643 = vmatmul.mubr.f32.gmra.mrb[0].mxu0 %v32
    %v644 = vpop.f32.mrb[0].mxu0
    %v645 = vadd.f32 %v260, %v644
    %v646 = vpop.f32.mrb[0].mxu0
    %647 = vmatprep.mubr.f32.mxu0 0.0
    %648 = vmatmul.mubr.f32.gmra.mrb[0].mxu0 %v33
    %v649 = vpop.f32.mrb[0].mxu0
    %v650 = vadd.f32 %v265, %v649
    %v651 = vpop.f32.mrb[0].mxu0
    %652 = vmatprep.mubr.f32.mxu0 0.0
    %653 = vmatmul.mubr.f32.gmra.mrb[0].mxu0 %v34
    %v654 = vpop.f32.mrb[0].mxu0
    %v655 = vadd.f32 %v270, %v654
    %v656 = vpop.f32.mrb[0].mxu0
    %657 = vmatprep.mubr.f32.mxu0 0.0
    %658 = vmatmul.mubr.f32.gmra.mrb[0].mxu0 %v35
    %v659 = vpop.f32.mrb[0].mxu0
    %v660 = vadd.f32 %v275, %v659
    %v661 = vpop.f32.mrb[0].mxu0
    %662 = vmatprep.mubr.f32.mxu0 0.0
    %663 = vmatmul.mubr.f32.gmra.mrb[0].mxu0 %v36
    %v664 = vpop.f32.mrb[0].mxu0
    %v665 = vadd.f32 %v280, %v664
    %v666 = vpop.f32.mrb[0].mxu0
    %667 = vmatprep.mubr.f32.mxu0 0.0
    %668 = vmatmul.mubr.f32.gmra.mrb[0].mxu0 %v37
    %v669 = vpop.f32.mrb[0].mxu0
    %v670 = vadd.f32 %v285, %v669
    %v671 = vpop.f32.mrb[0].mxu0
    %672 = vmatprep.mubr.f32.mxu0 0.0
    %673 = vmatmul.mubr.f32.gmra.mrb[0].mxu0 %v38
    %v674 = vpop.f32.mrb[0].mxu0
    %v675 = vadd.f32 %v290, %v674
    %v676 = vpop.f32.mrb[0].mxu0
    %677 = vmatprep.mubr.f32.mxu0 0.0
    %678 = vmatmul.mubr.f32.gmra.mrb[0].mxu0 %v39
    %v679 = vpop.f32.mrb[0].mxu0
    %v680 = vadd.f32 %v295, %v679
    %v681 = vpop.f32.mrb[0].mxu0
    %682 = vmatprep.mubr.f32.mxu0 0.0
    %683 = vmatmul.mubr.f32.gmra.mrb[0].mxu0 %v40
    %v684 = vpop.f32.mrb[0].mxu0
    %v685 = vadd.f32 %v300, %v684
    %v686 = vpop.f32.mrb[0].mxu0
    %687 = vmatprep.mubr.f32.mxu0 0.0
    %688 = vmatmul.mubr.f32.gmra.mrb[0].mxu0 %v41
    %v689 = vpop.f32.mrb[0].mxu0
    %v690 = vadd.f32 %v305, %v689
    %v691 = vpop.f32.mrb[0].mxu0
    %692 = vmatprep.mubr.f32.mxu0 0.0
    %693 = vmatmul.mubr.f32.gmra.mrb[0].mxu0 %v42
    %v694 = vpop.f32.mrb[0].mxu0
    %v695 = vadd.f32 %v310, %v694
    %v696 = vpop.f32.mrb[0].mxu0
    %697 = vmatprep.mubr.f32.mxu0 0.0
    %698 = vmatmul.mubr.f32.gmra.mrb[0].mxu0 %v43
    %v699 = vpop.f32.mrb[0].mxu0
    %v700 = vadd.f32 %v315, %v699
    %v701 = vpop.f32.mrb[0].mxu0
    %702 = vmatprep.mubr.f32.mxu0 0.0
    %703 = vmatmul.mubr.f32.gmra.mrb[0].mxu0 %v44
    %v704 = vpop.f32.mrb[0].mxu0
    %v705 = vadd.f32 %v320, %v704
    %v706 = vpop.f32.mrb[0].mxu0
    %707 = vmatprep.mubr.f32.mxu0 0.0
    %708 = vmatmul.mubr.f32.gmra.mrb[0].mxu0 %v45
    %v709 = vpop.f32.mrb[0].mxu0
    %v710 = vadd.f32 %v325, %v709
    %v711 = vpop.f32.mrb[0].mxu0
    %712 = vmatprep.mubr.f32.mxu0 0.0
    %713 = vmatmul.mubr.f32.gmra.mrb[0].mxu0 %v46
    %v714 = vpop.f32.mrb[0].mxu0
    %v715 = vadd.f32 %v330, %v714
    %v716 = vpop.f32.mrb[0].mxu0
    %717 = vmatprep.mubr.f32.mxu0 0.0
    %718 = vmatmul.mubr.f32.gmra.mrb[0].mxu0 %v47
    %v719 = vpop.f32.mrb[0].mxu0
    %v720 = vadd.f32 %v335, %v719
    %v721 = vpop.f32.mrb[0].mxu0
    %722 = vmatprep.mubr.f32.mxu0 0.0
    %723 = vmatmul.mubr.f32.gmra.mrb[0].mxu0 %v48
    %v724 = vpop.f32.mrb[0].mxu0
    %v725 = vadd.f32 %v340, %v724
    %v726 = vpop.f32.mrb[0].mxu0
    %727 = vmatprep.mubr.f32.mxu0 0.0
    %728 = vmatmul.mubr.f32.gmra.mrb[0].mxu0 %v49
    %v729 = vpop.f32.mrb[0].mxu0
    %v730 = vadd.f32 %v345, %v729
    %v731 = vpop.f32.mrb[0].mxu0
    %732 = vmatprep.mubr.f32.mxu0 0.0
    %733 = vmatmul.mubr.f32.gmra.mrb[0].mxu0 %v50
    %v734 = vpop.f32.mrb[0].mxu0
    %v735 = vadd.f32 %v350, %v734
    %v736 = vpop.f32.mrb[0].mxu0
    %737 = vmatprep.mubr.f32.mxu0 0.0
    %738 = vmatmul.mubr.f32.gmra.mrb[0].mxu0 %v51
    %v739 = vpop.f32.mrb[0].mxu0
    %v740 = vadd.f32 %v355, %v739
    %v741 = vpop.f32.mrb[0].mxu0
    %742 = vmatprep.mubr.f32.mxu0 0.0
    %743 = vmatmul.mubr.f32.gmra.mrb[0].mxu0 %v52
    %v744 = vpop.f32.mrb[0].mxu0
    %v745 = vadd.f32 %v360, %v744
    %v746 = vpop.f32.mrb[0].mxu0
    %747 = vmatprep.mubr.f32.mxu0 0.0
    %748 = vmatmul.mubr.f32.gmra.mrb[0].mxu0 %v53
    %v749 = vpop.f32.mrb[0].mxu0
    %v750 = vadd.f32 %v365, %v749
    %v751 = vpop.f32.mrb[0].mxu0
    %752 = vmatprep.mubr.f32.mxu0 0.0
    %753 = vmatmul.mubr.f32.gmra.mrb[0].mxu0 %v54
    %v754 = vpop.f32.mrb[0].mxu0
    %v755 = vadd.f32 %v370, %v754
    %v756 = vpop.f32.mrb[0].mxu0
    %757 = vmatprep.mubr.f32.mxu0 0.0
    %758 = vmatmul.mubr.f32.gmra.mrb[0].mxu0 %v55
    %v759 = vpop.f32.mrb[0].mxu0
    %v760 = vadd.f32 %v375, %v759
    %v761 = vpop.f32.mrb[0].mxu0
    %762 = vmatprep.mubr.f32.mxu0 0.0
    %763 = vmatmul.mubr.f32.gmra.mrb[0].mxu0 %v56
    %v764 = vpop.f32.mrb[0].mxu0
    %v765 = vadd.f32 %v380, %v764
    %v766 = vpop.f32.mrb[0].mxu0
    %767 = vmatprep.mubr.f32.mxu0 0.0
    %768 = vmatmul.mubr.f32.gmra.mrb[0].mxu0 %v57
    %v769 = vpop.f32.mrb[0].mxu0
    %v770 = vadd.f32 %v385, %v769
    %v771 = vpop.f32.mrb[0].mxu0
    %772 = vmatprep.mubr.f32.mxu0 0.0
    %773 = vmatmul.mubr.f32.gmra.mrb[0].mxu0 %v58
    %v774 = vpop.f32.mrb[0].mxu0
    %v775 = vadd.f32 %v390, %v774
    %v776 = vpop.f32.mrb[0].mxu0
    %777 = vmatprep.mubr.f32.mxu0 0.0
    %778 = vmatmul.mubr.f32.gmra.mrb[0].mxu0 %v59
    %v779 = vpop.f32.mrb[0].mxu0
    %v780 = vadd.f32 %v395, %v779
    %v781 = vpop.f32.mrb[0].mxu0
    %782 = vmatprep.mubr.f32.mxu0 0.0
    %783 = vmatmul.mubr.f32.gmra.mrb[0].mxu0 %v60
    %v784 = vpop.f32.mrb[0].mxu0
    %v785 = vadd.f32 %v400, %v784
    %v786 = vpop.f32.mrb[0].mxu0
    %787 = vmatprep.mubr.f32.mxu0 0.0
    %788 = vmatmul.mubr.f32.gmra.mrb[0].mxu0 %v61
    %v789 = vpop.f32.mrb[0].mxu0
    %v790 = vadd.f32 %v405, %v789
    %v791 = vpop.f32.mrb[0].mxu0
    %792 = vmatprep.mubr.f32.mxu0 0.0
    %793 = vmatmul.mubr.f32.gmra.mrb[0].mxu0 %v62
    %v794 = vpop.f32.mrb[0].mxu0
    %v795 = vadd.f32 %v410, %v794
    %v796 = vpop.f32.mrb[0].mxu0
    %797 = vmatprep.mubr.f32.mxu0 0.0
    %798 = vmatmul.mubr.f32.gmra.mrb[0].mxu0 %v63
    %v799 = vpop.f32.mrb[0].mxu0
    %v800 = vadd.f32 %v415, %v799
    %v801 = vpop.f32.mrb[0].mxu0
    %802 = vmatprep.mubr.f32.mxu0 0.0
    %803 = vmatmul.mubr.f32.gmra.mrb[0].mxu0 %v64
    %v804 = vpop.f32.mrb[0].mxu0
    %v805 = vadd.f32 %v420, %v804
    %v806 = vpop.f32.mrb[0].mxu0
    %807 = vmatprep.mubr.f32.mxu0 0.0
    %808 = vmatmul.mubr.f32.gmra.mrb[0].mxu0 %v65
    %v809 = vpop.f32.mrb[0].mxu0
    %v810 = vadd.f32 %v425, %v809
    %v811 = vpop.f32.mrb[0].mxu0
    %812 = vmatprep.mubr.f32.mxu0 0.0
    %813 = vmatmul.mubr.f32.gmra.mrb[0].mxu0 %v66
    %v814 = vpop.f32.mrb[0].mxu0
    %v815 = vadd.f32 %v430, %v814
    %v816 = vpop.f32.mrb[0].mxu0
    %817 = vmatprep.mubr.f32.mxu0 0.0
    %818 = vmatmul.mubr.f32.gmra.mrb[0].mxu0 %v67
    %v819 = vpop.f32.mrb[0].mxu0
    %v820 = vadd.f32 %v435, %v819
    %v821 = vpop.f32.mrb[0].mxu0
    %822 = vmatprep.mubr.f32.mxu0 0.0
    %823 = vmatmul.mubr.f32.gmra.mrb[0].mxu0 %v68
    %v824 = vpop.f32.mrb[0].mxu0
    %v825 = vadd.f32 %v440, %v824
    %v826 = vpop.f32.mrb[0].mxu0
    %827 = vmatprep.mubr.f32.mxu0 0.0
    %828 = vmatmul.mubr.f32.gmra.mrb[0].mxu0 %v69
    %v829 = vpop.f32.mrb[0].mxu0
    %v830 = vadd.f32 %v445, %v829
    %v831 = vpop.f32.mrb[0].mxu0
    %832 = vmatprep.mubr.f32.mxu0 0.0
    %833 = vmatmul.mubr.f32.gmra.mrb[0].mxu0 %v70
    %v834 = vpop.f32.mrb[0].mxu0
    %v835 = vadd.f32 %v450, %v834
    %v836 = vpop.f32.mrb[0].mxu0
    %837 = vmatprep.mubr.f32.mxu0 0.0
    %838 = vmatmul.mubr.f32.gmra.mrb[0].mxu0 %v71
    %v839 = vpop.f32.mrb[0].mxu0
    %v840 = vadd.f32 %v455, %v839
    %v841 = vpop.f32.mrb[0].mxu0
    %842 = vmatprep.mubr.f32.mxu0 0.0
    %843 = vmatmul.mubr.f32.gmra.mrb[0].mxu0 %v72
    %v844 = vpop.f32.mrb[0].mxu0
    %v845 = vadd.f32 %v460, %v844
    %v846 = vpop.f32.mrb[0].mxu0
    %847 = vmatprep.mubr.f32.mxu0 0.0
    %848 = vmatmul.mubr.f32.gmra.mrb[0].mxu0 %v73
    %v849 = vpop.f32.mrb[0].mxu0
    %v850 = vadd.f32 %v465, %v849
    %v851 = vpop.f32.mrb[0].mxu0
    %852 = vmatprep.mubr.f32.mxu0 0.0
    %853 = vmatmul.mubr.f32.gmra.mrb[0].mxu0 %v74
    %v854 = vpop.f32.mrb[0].mxu0
    %v855 = vadd.f32 %v470, %v854
    %v856 = vpop.f32.mrb[0].mxu0
    %857 = vmatprep.mubr.f32.mxu0 0.0
    %858 = vmatmul.mubr.f32.gmra.mrb[0].mxu0 %v75
    %v859 = vpop.f32.mrb[0].mxu0
    %v860 = vadd.f32 %v475, %v859
    %v861 = vpop.f32.mrb[0].mxu0
    %862 = vmatprep.mubr.f32.mxu0 0.0
    %863 = vmatmul.mubr.f32.gmra.mrb[0].mxu0 %v76
    %v864 = vpop.f32.mrb[0].mxu0
    %v865 = vadd.f32 %v480, %v864
    %v866 = vpop.f32.mrb[0].mxu0
    %867 = vmatprep.mubr.f32.mxu0 0.0
    %868 = vmatmul.mubr.f32.gmra.mrb[0].mxu0 %v77
    %v869 = vpop.f32.mrb[0].mxu0
    %v870 = vadd.f32 %v485, %v869
    %v871 = vpop.f32.mrb[0].mxu0
    %872 = vmatprep.mubr.f32.mxu0 0.0
    %873 = vmatmul.mubr.f32.gmra.mrb[0].mxu0 %v78
    %v874 = vpop.f32.mrb[0].mxu0
    %v875 = vadd.f32 %v490, %v874
    %v876 = vpop.f32.mrb[0].mxu0
    %877 = vmatprep.mubr.f32.mxu0 0.0
    %878 = vmatmul.mubr.f32.gmra.mrb[0].mxu0 %v79
    %v879 = vpop.f32.mrb[0].mxu0
    %v880 = vadd.f32 %v495, %v879
    %v881 = vpop.f32.mrb[0].mxu0
    %882 = vmatprep.mubr.f32.mxu0 0.0
    %883 = vmatmul.mubr.f32.gmra.mrb[0].mxu0 %v80
    %v884 = vpop.f32.mrb[0].mxu0
    %v885 = vadd.f32 %v500, %v884
    %v886 = vpop.f32.mrb[0].mxu0
    %887 = vmatprep.mubr.f32.mxu0 0.0
    %888 = vmatmul.mubr.f32.gmra.mrb[0].mxu0 %v81
    %v889 = vpop.f32.mrb[0].mxu0
    %v890 = vadd.f32 %v505, %v889
    %v891 = vpop.f32.mrb[0].mxu0
    %892 = vmatprep.mubr.f32.mxu0 0.0
    %893 = vmatmul.mubr.f32.gmra.mrb[0].mxu0 %v82
    %v894 = vpop.f32.mrb[0].mxu0
    %v895 = vadd.f32 %v510, %v894
    %v896 = vpop.f32.mrb[0].mxu0
    %897 = vmatprep.mubr.f32.mxu0 0.0
    %898 = vmatmul.mubr.f32.gmra.mrb[0].mxu0 %v83
    %v899 = vpop.f32.mrb[0].mxu0
    %v900 = vadd.f32 %v515, %v899
    %v901 = vpop.f32.mrb[0].mxu0
    %902 = vmatprep.mubr.f32.mxu0 0.0
    %903 = vmatmul.mubr.f32.gmra.mrb[0].mxu0 %v84
    %v904 = vpop.f32.mrb[0].mxu0
    %v905 = vadd.f32 %v520, %v904
    %v906 = vpop.f32.mrb[0].mxu0
    %907 = vmatprep.mubr.f32.mxu0 0.0
    %908 = vmatmul.mubr.f32.gmra.mrb[0].mxu0 %v85
    %v909 = vpop.f32.mrb[0].mxu0
    %v910 = vadd.f32 %v525, %v909
    %v911 = vpop.f32.mrb[0].mxu0
    %912 = vmatprep.mubr.f32.mxu0 0.0
    %913 = vmatmul.mubr.f32.gmra.mrb[0].mxu0 %v86
    %v914 = vpop.f32.mrb[0].mxu0
    %v915 = vadd.f32 %v530, %v914
    %v916 = vpop.f32.mrb[0].mxu0
    %917 = vmatprep.mubr.f32.mxu0 0.0
    %918 = vmatmul.mubr.f32.gmra.mrb[0].mxu0 %v87
    %v919 = vpop.f32.mrb[0].mxu0
    %v920 = vadd.f32 %v535, %v919
    %v921 = vpop.f32.mrb[0].mxu0
    %922 = vmatprep.mubr.f32.mxu0 0.0
    %923 = vmatmul.mubr.f32.gmra.mrb[0].mxu0 %v88
    %v924 = vpop.f32.mrb[0].mxu0
    %v925 = vadd.f32 %v540, %v924
    %v926 = vpop.f32.mrb[0].mxu0
    %927 = vmatprep.mubr.f32.mxu0 0.0
    %928 = vmatmul.mubr.f32.gmra.mrb[0].mxu0 %v89
    %v929 = vpop.f32.mrb[0].mxu0
    %v930 = vadd.f32 %v545, %v929
    %v931 = vpop.f32.mrb[0].mxu0
    %932 = vmatprep.mubr.f32.mxu0 0.0
    %933 = vmatmul.mubr.f32.gmra.mrb[0].mxu0 %v90
    %v934 = vpop.f32.mrb[0].mxu0
    %v935 = vadd.f32 %v550, %v934
    %v936 = vpop.f32.mrb[0].mxu0
    %937 = vmatprep.mubr.f32.mxu0 0.0
    %938 = vmatmul.mubr.f32.gmra.mrb[0].mxu0 %v91
    %v939 = vpop.f32.mrb[0].mxu0
    %v940 = vadd.f32 %v555, %v939
    %v941 = vpop.f32.mrb[0].mxu0
    %942 = vmatprep.mubr.f32.mxu0 0.0
    %943 = vmatmul.mubr.f32.gmra.mrb[0].mxu0 %v92
    %v944 = vpop.f32.mrb[0].mxu0
    %v945 = vadd.f32 %v560, %v944
    %v946 = vpop.f32.mrb[0].mxu0
    %947 = vmatprep.mubr.f32.mxu0 0.0
    %948 = vmatmul.mubr.f32.gmra.mrb[0].mxu0 %v93
    %v949 = vpop.f32.mrb[0].mxu0
    %v950 = vadd.f32 %v565, %v949
    %v951 = vpop.f32.mrb[0].mxu0
    %952 = vmatprep.mubr.f32.mxu0 0.0
    %953 = vmatmul.mubr.f32.gmra.mrb[0].mxu0 %v94
    %v954 = vpop.f32.mrb[0].mxu0
    %v955 = vadd.f32 %v570, %v954
    %v956 = vpop.f32.mrb[0].mxu0
    %957 = vmatprep.mubr.f32.mxu0 0.0
    %958 = vmatmul.mubr.f32.gmra.mrb[0].mxu0 %v95
    %v959 = vpop.f32.mrb[0].mxu0
    %v960 = vadd.f32 %v575, %v959
    %v961 = vpop.f32.mrb[0].mxu0
    %962 = vdwg.mxu0
    %v963 = vld [vmem:[%s0 + $0x2] sm:$0xff]
    %v964 = vld [vmem:[%s0 + $0xa] sm:$0xff]
    %v965 = vld [vmem:[%s0 + $0x1a] sm:$0xff]
    %v966 = vld [vmem:[%s0 + $0x22] sm:$0xff]
    %v967 = vld [vmem:[%s0 + $0x32] sm:$0xff]
    %v968 = vld [vmem:[%s0 + $0x3a] sm:$0xff]
    %v969 = vld [vmem:[%s0 + $0x4a] sm:$0xff]
    %v970 = vld [vmem:[%s0 + $0x52] sm:$0xff]
    %v971 = vld [vmem:[%s0 + $0x62] sm:$0xff]
    %v972 = vld [vmem:[%s0 + $0x6a] sm:$0xff]
    %v973 = vld [vmem:[%s0 + $0x7a] sm:$0xff]
    %v974 = vld [vmem:[%s0 + $0x82] sm:$0xff]
    %v975 = vld [vmem:[%s0 + $0x92] sm:$0xff]
    %v976 = vld [vmem:[%s0 + $0x9a] sm:$0xff]
    %v977 = vld [vmem:[%s0 + $0xaa] sm:$0xff]
    %v978 = vld [vmem:[%s0 + $0xb2] sm:$0xff]
    %v979 = vld [vmem:[%s0 + $0xc2] sm:$0xff]
    %v980 = vld [vmem:[%s0 + $0xca] sm:$0xff]
    %v981 = vld [vmem:[%s0 + $0xda] sm:$0xff]
    %v982 = vld [vmem:[%s0 + $0xe2] sm:$0xff]
    %v983 = vld [vmem:[%s0 + $0xf2] sm:$0xff]
    %v984 = vld [vmem:[%s0 + $0xfa] sm:$0xff]
    %v985 = vld [vmem:[%s0 + $0x10a] sm:$0xff]
    %v986 = vld [vmem:[%s0 + $0x112] sm:$0xff]
    %v987 = vld [vmem:[%s0 + $0x122] sm:$0xff]
    %v988 = vld [vmem:[%s0 + $0x12a] sm:$0xff]
    %v989 = vld [vmem:[%s0 + $0x13a] sm:$0xff]
    %v990 = vld [vmem:[%s0 + $0x142] sm:$0xff]
    %v991 = vld [vmem:[%s0 + $0x152] sm:$0xff]
    %v992 = vld [vmem:[%s0 + $0x15a] sm:$0xff]
    %v993 = vld [vmem:[%s0 + $0x16a] sm:$0xff]
    %v994 = vld [vmem:[%s0 + $0x172] sm:$0xff]
    %v995 = vld [vmem:[%s0 + $0x1b2] sm:$0xff]
    %v996 = vld [vmem:[%s0 + $0x1ba] sm:$0xff]
    %v997 = vld [vmem:[%s0 + $0x1ca] sm:$0xff]
    %v998 = vld [vmem:[%s0 + $0x1d2] sm:$0xff]
    %v999 = vld [vmem:[%s0 + $0x1e2] sm:$0xff]
    %v1000 = vld [vmem:[%s0 + $0x1ea] sm:$0xff]
    %v1001 = vld [vmem:[%s0 + $0x1fa] sm:$0xff]
    %v1002 = vld [vmem:[%s0 + $0x202] sm:$0xff]
    %v1003 = vld [vmem:[%s0 + $0x212] sm:$0xff]
    %v1004 = vld [vmem:[%s0 + $0x21a] sm:$0xff]
    %v1005 = vld [vmem:[%s0 + $0x22a] sm:$0xff]
    %v1006 = vld [vmem:[%s0 + $0x232] sm:$0xff]
    %v1007 = vld [vmem:[%s0 + $0x242] sm:$0xff]
    %v1008 = vld [vmem:[%s0 + $0x24a] sm:$0xff]
    %v1009 = vld [vmem:[%s0 + $0x25a] sm:$0xff]
    %v1010 = vld [vmem:[%s0 + $0x262] sm:$0xff]
    %v1011 = vld [vmem:[%s0 + $0x272] sm:$0xff]
    %v1012 = vld [vmem:[%s0 + $0x27a] sm:$0xff]
    %v1013 = vld [vmem:[%s0 + $0x28a] sm:$0xff]
    %v1014 = vld [vmem:[%s0 + $0x292] sm:$0xff]
    %v1015 = vld [vmem:[%s0 + $0x2a2] sm:$0xff]
    %v1016 = vld [vmem:[%s0 + $0x2aa] sm:$0xff]
    %v1017 = vld [vmem:[%s0 + $0x2ba] sm:$0xff]
    %v1018 = vld [vmem:[%s0 + $0x2c2] sm:$0xff]
    %v1019 = vld [vmem:[%s0 + $0x2d2] sm:$0xff]
    %v1020 = vld [vmem:[%s0 + $0x2da] sm:$0xff]
    %v1021 = vld [vmem:[%s0 + $0x2ea] sm:$0xff]
    %v1022 = vld [vmem:[%s0 + $0x2f2] sm:$0xff]
    %v1023 = vld [vmem:[%s0 + $0x302] sm:$0xff]
    %v1024 = vld [vmem:[%s0 + $0x30a] sm:$0xff]
    %v1025 = vld [vmem:[%s0 + $0x31a] sm:$0xff]
    %v1026 = vld [vmem:[%s0 + $0x322] sm:$0xff]
    %s1027 = scalar_lea.vmem %s1, 256
    %v1028 = vld [vmem:[%s1027] sm:$0xff]
    %v1029 = vld [vmem:[%s1027 + $0x8] sm:$0xff]
    %v1030 = vld [vmem:[%s1027 + $0x10] sm:$0xff]
    %v1031 = vld [vmem:[%s1027 + $0x18] sm:$0xff]
    %v1032 = vld [vmem:[%s1027 + $0x20] sm:$0xff]
    %v1033 = vld [vmem:[%s1027 + $0x28] sm:$0xff]
    %v1034 = vld [vmem:[%s1027 + $0x30] sm:$0xff]
    %v1035 = vld [vmem:[%s1027 + $0x38] sm:$0xff]
    %v1036 = vld [vmem:[%s1027 + $0x40] sm:$0xff]
    %v1037 = vld [vmem:[%s1027 + $0x48] sm:$0xff]
    %v1038 = vld [vmem:[%s1027 + $0x50] sm:$0xff]
    %v1039 = vld [vmem:[%s1027 + $0x58] sm:$0xff]
    %v1040 = vld [vmem:[%s1027 + $0x60] sm:$0xff]
    %v1041 = vld [vmem:[%s1027 + $0x68] sm:$0xff]
    %v1042 = vld [vmem:[%s1027 + $0x70] sm:$0xff]
    %v1043 = vld [vmem:[%s1027 + $0x78] sm:$0xff]
    %1044 = vmatprep.subr.mxu0 0.0
    %1045 = vmatpush1.msra.mxu0 %v1028
    %1046 = vmatprep.subr.mxu0 0.0
    %1047 = vmatpush1.msra.mxu0 %v1029
    %1048 = vmatprep.subr.mxu0 0.0
    %1049 = vmatpush1.msra.mxu0 %v1030
    %1050 = vmatprep.subr.mxu0 0.0
    %1051 = vmatpush1.msra.mxu0 %v1031
    %1052 = vmatprep.subr.mxu0 0.0
    %1053 = vmatpush1.msra.mxu0 %v1032
    %1054 = vmatprep.subr.mxu0 0.0
    %1055 = vmatpush1.msra.mxu0 %v1033
    %1056 = vmatprep.subr.mxu0 0.0
    %1057 = vmatpush1.msra.mxu0 %v1034
    %1058 = vmatprep.subr.mxu0 0.0
    %1059 = vmatpush1.msra.mxu0 %v1035
    %1060 = vmatprep.subr.mxu0 0.0
    %1061 = vmatpush1.msra.mxu0 %v1036
    %1062 = vmatprep.subr.mxu0 0.0
    %1063 = vmatpush1.msra.mxu0 %v1037
    %1064 = vmatprep.subr.mxu0 0.0
    %1065 = vmatpush1.msra.mxu0 %v1038
    %1066 = vmatprep.subr.mxu0 0.0
    %1067 = vmatpush1.msra.mxu0 %v1039
    %1068 = vmatprep.subr.mxu0 0.0
    %1069 = vmatpush1.msra.mxu0 %v1040
    %1070 = vmatprep.subr.mxu0 0.0
    %1071 = vmatpush1.msra.mxu0 %v1041
    %1072 = vmatprep.subr.mxu0 0.0
    %1073 = vmatpush1.msra.mxu0 %v1042
    %1074 = vmatprep.subr.mxu0 0.0
    %1075 = vmatpush1.msra.mxu0 %v1043
    %1076 = vmatprep.subr.mxu0 0.0
    %1077 = vmatpush1.msra.mxu0 0.0
    %1078 = vmatprep.subr.mxu0 0.0
    %1079 = vmatpush1.msra.mxu0 0.0
    %1080 = vmatprep.subr.mxu0 0.0
    %1081 = vmatpush1.msra.mxu0 0.0
    %1082 = vmatprep.subr.mxu0 0.0
    %1083 = vmatpush1.msra.mxu0 0.0
    %1084 = vmatprep.subr.mxu0 0.0
    %1085 = vmatpush1.msra.mxu0 0.0
    %1086 = vmatprep.subr.mxu0 0.0
    %1087 = vmatpush1.msra.mxu0 0.0
    %1088 = vmatprep.subr.mxu0 0.0
    %1089 = vmatpush1.msra.mxu0 0.0
    %1090 = vmatprep.subr.mxu0 0.0
    %1091 = vmatpush1.msra.mxu0 0.0
    %1092 = vmatprep.subr.mxu0 0.0
    %1093 = vmatpush1.msra.mxu0 0.0
    %1094 = vmatprep.subr.mxu0 0.0
    %1095 = vmatpush1.msra.mxu0 0.0
    %1096 = vmatprep.subr.mxu0 0.0
    %1097 = vmatpush1.msra.mxu0 0.0
    %1098 = vmatprep.subr.mxu0 0.0
    %1099 = vmatpush1.msra.mxu0 0.0
    %1100 = vmatprep.subr.mxu0 0.0
    %1101 = vmatpush1.msra.mxu0 0.0
    %1102 = vmatprep.subr.mxu0 0.0
    %1103 = vmatpush1.msra.mxu0 0.0
    %1104 = vmatprep.subr.mxu0 0.0
    %1105 = vmatpush1.msra.mxu0 0.0
    %1106 = vmatprep.subr.mxu0 0.0
    %1107 = vmatpush1.msra.mxu0 0.0
    %1108 = vmatprep.mubr.f32.mxu0 0.0
    %1109 = vmatmul.mubr.f32.gmra.mrb[0].mxu0 %v963
    %v1110 = vpop.f32.mrb[0].mxu0
    %v1111 = vadd.f32 0.0, %v1110
    %v1112 = vpop.f32.mrb[0].mxu0
    %1113 = vmatprep.mubr.f32.mxu0 0.0
    %1114 = vmatmul.mubr.f32.gmra.mrb[0].mxu0 %v964
    %v1115 = vpop.f32.mrb[0].mxu0
    %v1116 = vadd.f32 0.0, %v1115
    %v1117 = vpop.f32.mrb[0].mxu0
    %1118 = vmatprep.mubr.f32.mxu0 0.0
    %1119 = vmatmul.mubr.f32.gmra.mrb[0].mxu0 %v965
    %v1120 = vpop.f32.mrb[0].mxu0
    %v1121 = vadd.f32 0.0, %v1120
    %v1122 = vpop.f32.mrb[0].mxu0
    %1123 = vmatprep.mubr.f32.mxu0 0.0
    %1124 = vmatmul.mubr.f32.gmra.mrb[0].mxu0 %v966
    %v1125 = vpop.f32.mrb[0].mxu0
    %v1126 = vadd.f32 0.0, %v1125
    %v1127 = vpop.f32.mrb[0].mxu0
    %1128 = vmatprep.mubr.f32.mxu0 0.0
    %1129 = vmatmul.mubr.f32.gmra.mrb[0].mxu0 %v967
    %v1130 = vpop.f32.mrb[0].mxu0
    %v1131 = vadd.f32 0.0, %v1130
    %v1132 = vpop.f32.mrb[0].mxu0
    %1133 = vmatprep.mubr.f32.mxu0 0.0
    %1134 = vmatmul.mubr.f32.gmra.mrb[0].mxu0 %v968
    %v1135 = vpop.f32.mrb[0].mxu0
    %v1136 = vadd.f32 0.0, %v1135
    %v1137 = vpop.f32.mrb[0].mxu0
    %1138 = vmatprep.mubr.f32.mxu0 0.0
    %1139 = vmatmul.mubr.f32.gmra.mrb[0].mxu0 %v969
    %v1140 = vpop.f32.mrb[0].mxu0
    %v1141 = vadd.f32 0.0, %v1140
    %v1142 = vpop.f32.mrb[0].mxu0
    %1143 = vmatprep.mubr.f32.mxu0 0.0
    %1144 = vmatmul.mubr.f32.gmra.mrb[0].mxu0 %v970
    %v1145 = vpop.f32.mrb[0].mxu0
    %v1146 = vadd.f32 0.0, %v1145
    %v1147 = vpop.f32.mrb[0].mxu0
    %1148 = vmatprep.mubr.f32.mxu0 0.0
    %1149 = vmatmul.mubr.f32.gmra.mrb[0].mxu0 %v971
    %v1150 = vpop.f32.mrb[0].mxu0
    %v1151 = vadd.f32 0.0, %v1150
    %v1152 = vpop.f32.mrb[0].mxu0
    %1153 = vmatprep.mubr.f32.mxu0 0.0
    %1154 = vmatmul.mubr.f32.gmra.mrb[0].mxu0 %v972
    %v1155 = vpop.f32.mrb[0].mxu0
    %v1156 = vadd.f32 0.0, %v1155
    %v1157 = vpop.f32.mrb[0].mxu0
    %1158 = vmatprep.mubr.f32.mxu0 0.0
    %1159 = vmatmul.mubr.f32.gmra.mrb[0].mxu0 %v973
    %v1160 = vpop.f32.mrb[0].mxu0
    %v1161 = vadd.f32 0.0, %v1160
    %v1162 = vpop.f32.mrb[0].mxu0
    %1163 = vmatprep.mubr.f32.mxu0 0.0
    %1164 = vmatmul.mubr.f32.gmra.mrb[0].mxu0 %v974
    %v1165 = vpop.f32.mrb[0].mxu0
    %v1166 = vadd.f32 0.0, %v1165
    %v1167 = vpop.f32.mrb[0].mxu0
    %1168 = vmatprep.mubr.f32.mxu0 0.0
    %1169 = vmatmul.mubr.f32.gmra.mrb[0].mxu0 %v975
    %v1170 = vpop.f32.mrb[0].mxu0
    %v1171 = vadd.f32 0.0, %v1170
    %v1172 = vpop.f32.mrb[0].mxu0
    %1173 = vmatprep.mubr.f32.mxu0 0.0
    %1174 = vmatmul.mubr.f32.gmra.mrb[0].mxu0 %v976
    %v1175 = vpop.f32.mrb[0].mxu0
    %v1176 = vadd.f32 0.0, %v1175
    %v1177 = vpop.f32.mrb[0].mxu0
    %1178 = vmatprep.mubr.f32.mxu0 0.0
    %1179 = vmatmul.mubr.f32.gmra.mrb[0].mxu0 %v977
    %v1180 = vpop.f32.mrb[0].mxu0
    %v1181 = vadd.f32 0.0, %v1180
    %v1182 = vpop.f32.mrb[0].mxu0
    %1183 = vmatprep.mubr.f32.mxu0 0.0
    %1184 = vmatmul.mubr.f32.gmra.mrb[0].mxu0 %v978
    %v1185 = vpop.f32.mrb[0].mxu0
    %v1186 = vadd.f32 0.0, %v1185
    %v1187 = vpop.f32.mrb[0].mxu0
    %1188 = vmatprep.mubr.f32.mxu0 0.0
    %1189 = vmatmul.mubr.f32.gmra.mrb[0].mxu0 %v979
    %v1190 = vpop.f32.mrb[0].mxu0
    %v1191 = vadd.f32 0.0, %v1190
    %v1192 = vpop.f32.mrb[0].mxu0
    %1193 = vmatprep.mubr.f32.mxu0 0.0
    %1194 = vmatmul.mubr.f32.gmra.mrb[0].mxu0 %v980
    %v1195 = vpop.f32.mrb[0].mxu0
    %v1196 = vadd.f32 0.0, %v1195
    %v1197 = vpop.f32.mrb[0].mxu0
    %1198 = vmatprep.mubr.f32.mxu0 0.0
    %1199 = vmatmul.mubr.f32.gmra.mrb[0].mxu0 %v981
    %v1200 = vpop.f32.mrb[0].mxu0
    %v1201 = vadd.f32 0.0, %v1200
    %v1202 = vpop.f32.mrb[0].mxu0
    %1203 = vmatprep.mubr.f32.mxu0 0.0
    %1204 = vmatmul.mubr.f32.gmra.mrb[0].mxu0 %v982
    %v1205 = vpop.f32.mrb[0].mxu0
    %v1206 = vadd.f32 0.0, %v1205
    %v1207 = vpop.f32.mrb[0].mxu0
    %1208 = vmatprep.mubr.f32.mxu0 0.0
    %1209 = vmatmul.mubr.f32.gmra.mrb[0].mxu0 %v983
    %v1210 = vpop.f32.mrb[0].mxu0
    %v1211 = vadd.f32 0.0, %v1210
    %v1212 = vpop.f32.mrb[0].mxu0
    %1213 = vmatprep.mubr.f32.mxu0 0.0
    %1214 = vmatmul.mubr.f32.gmra.mrb[0].mxu0 %v984
    %v1215 = vpop.f32.mrb[0].mxu0
    %v1216 = vadd.f32 0.0, %v1215
    %v1217 = vpop.f32.mrb[0].mxu0
    %1218 = vmatprep.mubr.f32.mxu0 0.0
    %1219 = vmatmul.mubr.f32.gmra.mrb[0].mxu0 %v985
    %v1220 = vpop.f32.mrb[0].mxu0
    %v1221 = vadd.f32 0.0, %v1220
    %v1222 = vpop.f32.mrb[0].mxu0
    %1223 = vmatprep.mubr.f32.mxu0 0.0
    %1224 = vmatmul.mubr.f32.gmra.mrb[0].mxu0 %v986
    %v1225 = vpop.f32.mrb[0].mxu0
    %v1226 = vadd.f32 0.0, %v1225
    %v1227 = vpop.f32.mrb[0].mxu0
    %1228 = vmatprep.mubr.f32.mxu0 0.0
    %1229 = vmatmul.mubr.f32.gmra.mrb[0].mxu0 %v987
    %v1230 = vpop.f32.mrb[0].mxu0
    %v1231 = vadd.f32 0.0, %v1230
    %v1232 = vpop.f32.mrb[0].mxu0
    %1233 = vmatprep.mubr.f32.mxu0 0.0
    %1234 = vmatmul.mubr.f32.gmra.mrb[0].mxu0 %v988
    %v1235 = vpop.f32.mrb[0].mxu0
    %v1236 = vadd.f32 0.0, %v1235
    %v1237 = vpop.f32.mrb[0].mxu0
    %1238 = vmatprep.mubr.f32.mxu0 0.0
    %1239 = vmatmul.mubr.f32.gmra.mrb[0].mxu0 %v989
    %v1240 = vpop.f32.mrb[0].mxu0
    %v1241 = vadd.f32 0.0, %v1240
    %v1242 = vpop.f32.mrb[0].mxu0
    %1243 = vmatprep.mubr.f32.mxu0 0.0
    %1244 = vmatmul.mubr.f32.gmra.mrb[0].mxu0 %v990
    %v1245 = vpop.f32.mrb[0].mxu0
    %v1246 = vadd.f32 0.0, %v1245
    %v1247 = vpop.f32.mrb[0].mxu0
    %1248 = vmatprep.mubr.f32.mxu0 0.0
    %1249 = vmatmul.mubr.f32.gmra.mrb[0].mxu0 %v991
    %v1250 = vpop.f32.mrb[0].mxu0
    %v1251 = vadd.f32 0.0, %v1250
    %v1252 = vpop.f32.mrb[0].mxu0
    %1253 = vmatprep.mubr.f32.mxu0 0.0
    %1254 = vmatmul.mubr.f32.gmra.mrb[0].mxu0 %v992
    %v1255 = vpop.f32.mrb[0].mxu0
    %v1256 = vadd.f32 0.0, %v1255
    %v1257 = vpop.f32.mrb[0].mxu0
    %1258 = vmatprep.mubr.f32.mxu0 0.0
    %1259 = vmatmul.mubr.f32.gmra.mrb[0].mxu0 %v993
    %v1260 = vpop.f32.mrb[0].mxu0
    %v1261 = vadd.f32 0.0, %v1260
    %v1262 = vpop.f32.mrb[0].mxu0
    %1263 = vmatprep.mubr.f32.mxu0 0.0
    %1264 = vmatmul.mubr.f32.gmra.mrb[0].mxu0 %v994
    %v1265 = vpop.f32.mrb[0].mxu0
    %v1266 = vadd.f32 0.0, %v1265
    %v1267 = vpop.f32.mrb[0].mxu0
    %1268 = vmatprep.mubr.f32.mxu0 0.0
    %1269 = vmatmul.mubr.f32.gmra.mrb[0].mxu0 %v995
    %v1270 = vpop.f32.mrb[0].mxu0
    %v1271 = vadd.f32 0.0, %v1270
    %v1272 = vpop.f32.mrb[0].mxu0
    %1273 = vmatprep.mubr.f32.mxu0 0.0
    %1274 = vmatmul.mubr.f32.gmra.mrb[0].mxu0 %v996
    %v1275 = vpop.f32.mrb[0].mxu0
    %v1276 = vadd.f32 0.0, %v1275
    %v1277 = vpop.f32.mrb[0].mxu0
    %1278 = vmatprep.mubr.f32.mxu0 0.0
    %1279 = vmatmul.mubr.f32.gmra.mrb[0].mxu0 %v997
    %v1280 = vpop.f32.mrb[0].mxu0
    %v1281 = vadd.f32 0.0, %v1280
    %v1282 = vpop.f32.mrb[0].mxu0
    %1283 = vmatprep.mubr.f32.mxu0 0.0
    %1284 = vmatmul.mubr.f32.gmra.mrb[0].mxu0 %v998
    %v1285 = vpop.f32.mrb[0].mxu0
    %v1286 = vadd.f32 0.0, %v1285
    %v1287 = vpop.f32.mrb[0].mxu0
    %1288 = vmatprep.mubr.f32.mxu0 0.0
    %1289 = vmatmul.mubr.f32.gmra.mrb[0].mxu0 %v999
    %v1290 = vpop.f32.mrb[0].mxu0
    %v1291 = vadd.f32 0.0, %v1290
    %v1292 = vpop.f32.mrb[0].mxu0
    %1293 = vmatprep.mubr.f32.mxu0 0.0
    %1294 = vmatmul.mubr.f32.gmra.mrb[0].mxu0 %v1000
    %v1295 = vpop.f32.mrb[0].mxu0
    %v1296 = vadd.f32 0.0, %v1295
    %v1297 = vpop.f32.mrb[0].mxu0
    %1298 = vmatprep.mubr.f32.mxu0 0.0
    %1299 = vmatmul.mubr.f32.gmra.mrb[0].mxu0 %v1001
    %v1300 = vpop.f32.mrb[0].mxu0
    %v1301 = vadd.f32 0.0, %v1300
    %v1302 = vpop.f32.mrb[0].mxu0
    %1303 = vmatprep.mubr.f32.mxu0 0.0
    %1304 = vmatmul.mubr.f32.gmra.mrb[0].mxu0 %v1002
    %v1305 = vpop.f32.mrb[0].mxu0
    %v1306 = vadd.f32 0.0, %v1305
    %v1307 = vpop.f32.mrb[0].mxu0
    %1308 = vmatprep.mubr.f32.mxu0 0.0
    %1309 = vmatmul.mubr.f32.gmra.mrb[0].mxu0 %v1003
    %v1310 = vpop.f32.mrb[0].mxu0
    %v1311 = vadd.f32 0.0, %v1310
    %v1312 = vpop.f32.mrb[0].mxu0
    %1313 = vmatprep.mubr.f32.mxu0 0.0
    %1314 = vmatmul.mubr.f32.gmra.mrb[0].mxu0 %v1004
    %v1315 = vpop.f32.mrb[0].mxu0
    %v1316 = vadd.f32 0.0, %v1315
    %v1317 = vpop.f32.mrb[0].mxu0
    %1318 = vmatprep.mubr.f32.mxu0 0.0
    %1319 = vmatmul.mubr.f32.gmra.mrb[0].mxu0 %v1005
    %v1320 = vpop.f32.mrb[0].mxu0
    %v1321 = vadd.f32 0.0, %v1320
    %v1322 = vpop.f32.mrb[0].mxu0
    %1323 = vmatprep.mubr.f32.mxu0 0.0
    %1324 = vmatmul.mubr.f32.gmra.mrb[0].mxu0 %v1006
    %v1325 = vpop.f32.mrb[0].mxu0
    %v1326 = vadd.f32 0.0, %v1325
    %v1327 = vpop.f32.mrb[0].mxu0
    %1328 = vmatprep.mubr.f32.mxu0 0.0
    %1329 = vmatmul.mubr.f32.gmra.mrb[0].mxu0 %v1007
    %v1330 = vpop.f32.mrb[0].mxu0
    %v1331 = vadd.f32 0.0, %v1330
    %v1332 = vpop.f32.mrb[0].mxu0
    %1333 = vmatprep.mubr.f32.mxu0 0.0
    %1334 = vmatmul.mubr.f32.gmra.mrb[0].mxu0 %v1008
    %v1335 = vpop.f32.mrb[0].mxu0
    %v1336 = vadd.f32 0.0, %v1335
    %v1337 = vpop.f32.mrb[0].mxu0
    %1338 = vmatprep.mubr.f32.mxu0 0.0
    %1339 = vmatmul.mubr.f32.gmra.mrb[0].mxu0 %v1009
    %v1340 = vpop.f32.mrb[0].mxu0
    %v1341 = vadd.f32 0.0, %v1340
    %v1342 = vpop.f32.mrb[0].mxu0
    %1343 = vmatprep.mubr.f32.mxu0 0.0
    %1344 = vmatmul.mubr.f32.gmra.mrb[0].mxu0 %v1010
    %v1345 = vpop.f32.mrb[0].mxu0
    %v1346 = vadd.f32 0.0, %v1345
    %v1347 = vpop.f32.mrb[0].mxu0
    %1348 = vmatprep.mubr.f32.mxu0 0.0
    %1349 = vmatmul.mubr.f32.gmra.mrb[0].mxu0 %v1011
    %v1350 = vpop.f32.mrb[0].mxu0
    %v1351 = vadd.f32 0.0, %v1350
    %v1352 = vpop.f32.mrb[0].mxu0
    %1353 = vmatprep.mubr.f32.mxu0 0.0
    %1354 = vmatmul.mubr.f32.gmra.mrb[0].mxu0 %v1012
    %v1355 = vpop.f32.mrb[0].mxu0
    %v1356 = vadd.f32 0.0, %v1355
    %v1357 = vpop.f32.mrb[0].mxu0
    %1358 = vmatprep.mubr.f32.mxu0 0.0
    %1359 = vmatmul.mubr.f32.gmra.mrb[0].mxu0 %v1013
    %v1360 = vpop.f32.mrb[0].mxu0
    %v1361 = vadd.f32 0.0, %v1360
    %v1362 = vpop.f32.mrb[0].mxu0
    %1363 = vmatprep.mubr.f32.mxu0 0.0
    %1364 = vmatmul.mubr.f32.gmra.mrb[0].mxu0 %v1014
    %v1365 = vpop.f32.mrb[0].mxu0
    %v1366 = vadd.f32 0.0, %v1365
    %v1367 = vpop.f32.mrb[0].mxu0
    %1368 = vmatprep.mubr.f32.mxu0 0.0
    %1369 = vmatmul.mubr.f32.gmra.mrb[0].mxu0 %v1015
    %v1370 = vpop.f32.mrb[0].mxu0
    %v1371 = vadd.f32 0.0, %v1370
    %v1372 = vpop.f32.mrb[0].mxu0
    %1373 = vmatprep.mubr.f32.mxu0 0.0
    %1374 = vmatmul.mubr.f32.gmra.mrb[0].mxu0 %v1016
    %v1375 = vpop.f32.mrb[0].mxu0
    %v1376 = vadd.f32 0.0, %v1375
    %v1377 = vpop.f32.mrb[0].mxu0
    %1378 = vmatprep.mubr.f32.mxu0 0.0
    %1379 = vmatmul.mubr.f32.gmra.mrb[0].mxu0 %v1017
    %v1380 = vpop.f32.mrb[0].mxu0
    %v1381 = vadd.f32 0.0, %v1380
    %v1382 = vpop.f32.mrb[0].mxu0
    %1383 = vmatprep.mubr.f32.mxu0 0.0
    %1384 = vmatmul.mubr.f32.gmra.mrb[0].mxu0 %v1018
    %v1385 = vpop.f32.mrb[0].mxu0
    %v1386 = vadd.f32 0.0, %v1385
    %v1387 = vpop.f32.mrb[0].mxu0
    %1388 = vmatprep.mubr.f32.mxu0 0.0
    %1389 = vmatmul.mubr.f32.gmra.mrb[0].mxu0 %v1019
    %v1390 = vpop.f32.mrb[0].mxu0
    %v1391 = vadd.f32 0.0, %v1390
    %v1392 = vpop.f32.mrb[0].mxu0
    %1393 = vmatprep.mubr.f32.mxu0 0.0
    %1394 = vmatmul.mubr.f32.gmra.mrb[0].mxu0 %v1020
    %v1395 = vpop.f32.mrb[0].mxu0
    %v1396 = vadd.f32 0.0, %v1395
    %v1397 = vpop.f32.mrb[0].mxu0
    %1398 = vmatprep.mubr.f32.mxu0 0.0
    %1399 = vmatmul.mubr.f32.gmra.mrb[0].mxu0 %v1021
    %v1400 = vpop.f32.mrb[0].mxu0
    %v1401 = vadd.f32 0.0, %v1400
    %v1402 = vpop.f32.mrb[0].mxu0
    %1403 = vmatprep.mubr.f32.mxu0 0.0
    %1404 = vmatmul.mubr.f32.gmra.mrb[0].mxu0 %v1022
    %v1405 = vpop.f32.mrb[0].mxu0
    %v1406 = vadd.f32 0.0, %v1405
    %v1407 = vpop.f32.mrb[0].mxu0
    %1408 = vmatprep.mubr.f32.mxu0 0.0
    %1409 = vmatmul.mubr.f32.gmra.mrb[0].mxu0 %v1023
    %v1410 = vpop.f32.mrb[0].mxu0
    %v1411 = vadd.f32 0.0, %v1410
    %v1412 = vpop.f32.mrb[0].mxu0
    %1413 = vmatprep.mubr.f32.mxu0 0.0
    %1414 = vmatmul.mubr.f32.gmra.mrb[0].mxu0 %v1024
    %v1415 = vpop.f32.mrb[0].mxu0
    %v1416 = vadd.f32 0.0, %v1415
    %v1417 = vpop.f32.mrb[0].mxu0
    %1418 = vmatprep.mubr.f32.mxu0 0.0
    %1419 = vmatmul.mubr.f32.gmra.mrb[0].mxu0 %v1025
    %v1420 = vpop.f32.mrb[0].mxu0
    %v1421 = vadd.f32 0.0, %v1420
    %v1422 = vpop.f32.mrb[0].mxu0
    %1423 = vmatprep.mubr.f32.mxu0 0.0
    %1424 = vmatmul.mubr.f32.gmra.mrb[0].mxu0 %v1026
    %v1425 = vpop.f32.mrb[0].mxu0
    %v1426 = vadd.f32 0.0, %v1425
    %v1427 = vpop.f32.mrb[0].mxu0
    %1428 = vdwg.mxu0
    %v1429 = vadd.f32 %v645, %v1111
    %v1430 = vadd.f32 %v650, %v1116
    %v1431 = vadd.f32 %v655, %v1121
    %v1432 = vadd.f32 %v660, %v1126
    %v1433 = vadd.f32 %v665, %v1131
    %v1434 = vadd.f32 %v670, %v1136
    %v1435 = vadd.f32 %v675, %v1141
    %v1436 = vadd.f32 %v680, %v1146
    %v1437 = vadd.f32 %v685, %v1151
    %v1438 = vadd.f32 %v690, %v1156
    %v1439 = vadd.f32 %v695, %v1161
    %v1440 = vadd.f32 %v700, %v1166
    %v1441 = vadd.f32 %v705, %v1171
    %v1442 = vadd.f32 %v710, %v1176
    %v1443 = vadd.f32 %v715, %v1181
    %v1444 = vadd.f32 %v720, %v1186
    %v1445 = vadd.f32 %v725, %v1191
    %v1446 = vadd.f32 %v730, %v1196
    %v1447 = vadd.f32 %v735, %v1201
    %v1448 = vadd.f32 %v740, %v1206
    %v1449 = vadd.f32 %v745, %v1211
    %v1450 = vadd.f32 %v750, %v1216
    %v1451 = vadd.f32 %v755, %v1221
    %v1452 = vadd.f32 %v760, %v1226
    %v1453 = vadd.f32 %v765, %v1231
    %v1454 = vadd.f32 %v770, %v1236
    %v1455 = vadd.f32 %v775, %v1241
    %v1456 = vadd.f32 %v780, %v1246
    %v1457 = vadd.f32 %v785, %v1251
    %v1458 = vadd.f32 %v790, %v1256
    %v1459 = vadd.f32 %v795, %v1261
    %v1460 = vadd.f32 %v800, %v1266
    %v1461 = vadd.f32 %v805, %v1271
    %v1462 = vadd.f32 %v810, %v1276
    %v1463 = vadd.f32 %v815, %v1281
    %v1464 = vadd.f32 %v820, %v1286
    %v1465 = vadd.f32 %v825, %v1291
    %v1466 = vadd.f32 %v830, %v1296
    %v1467 = vadd.f32 %v835, %v1301
    %v1468 = vadd.f32 %v840, %v1306
    %v1469 = vadd.f32 %v845, %v1311
    %v1470 = vadd.f32 %v850, %v1316
    %v1471 = vadd.f32 %v855, %v1321
    %v1472 = vadd.f32 %v860, %v1326
    %v1473 = vadd.f32 %v865, %v1331
    %v1474 = vadd.f32 %v870, %v1336
    %v1475 = vadd.f32 %v875, %v1341
    %v1476 = vadd.f32 %v880, %v1346
    %v1477 = vadd.f32 %v885, %v1351
    %v1478 = vadd.f32 %v890, %v1356
    %v1479 = vadd.f32 %v895, %v1361
    %v1480 = vadd.f32 %v900, %v1366
    %v1481 = vadd.f32 %v905, %v1371
    %v1482 = vadd.f32 %v910, %v1376
    %v1483 = vadd.f32 %v915, %v1381
    %v1484 = vadd.f32 %v920, %v1386
    %v1485 = vadd.f32 %v925, %v1391
    %v1486 = vadd.f32 %v930, %v1396
    %v1487 = vadd.f32 %v935, %v1401
    %v1488 = vadd.f32 %v940, %v1406
    %v1489 = vadd.f32 %v945, %v1411
    %v1490 = vadd.f32 %v950, %v1416
    %v1491 = vadd.f32 %v955, %v1421
    %v1492 = vadd.f32 %v960, %v1426
    %s1493 = scalar_lea.vmem %s0, 24
    %v1494 = vld [vmem:[%s1493] sm:$0xff]
    %v1495 = vld [vmem:[%s1493 + $0x8] sm:$0xff]
    %v1496 = vld [vmem:[%s1493 + $0x18] sm:$0xff]
    %v1497 = vld [vmem:[%s1493 + $0x20] sm:$0xff]
    %v1498 = vld [vmem:[%s1493 + $0x30] sm:$0xff]
    %v1499 = vld [vmem:[%s1493 + $0x38] sm:$0xff]
    %v1500 = vld [vmem:[%s1493 + $0x48] sm:$0xff]
    %v1501 = vld [vmem:[%s1493 + $0x50] sm:$0xff]
    %v1502 = vld [vmem:[%s1493 + $0x60] sm:$0xff]
    %v1503 = vld [vmem:[%s1493 + $0x68] sm:$0xff]
    %v1504 = vld [vmem:[%s1493 + $0x78] sm:$0xff]
    %v1505 = vld [vmem:[%s1493 + $0x80] sm:$0xff]
    %v1506 = vld [vmem:[%s1493 + $0x90] sm:$0xff]
    %v1507 = vld [vmem:[%s1493 + $0x98] sm:$0xff]
    %v1508 = vld [vmem:[%s1493 + $0xa8] sm:$0xff]
    %v1509 = vld [vmem:[%s1493 + $0xb0] sm:$0xff]
    %v1510 = vld [vmem:[%s1493 + $0xc0] sm:$0xff]
    %v1511 = vld [vmem:[%s1493 + $0xc8] sm:$0xff]
    %v1512 = vld [vmem:[%s1493 + $0xd8] sm:$0xff]
    %v1513 = vld [vmem:[%s1493 + $0xe0] sm:$0xff]
    %v1514 = vld [vmem:[%s1493 + $0xf0] sm:$0xff]
    %v1515 = vld [vmem:[%s1493 + $0xf8] sm:$0xff]
    %v1516 = vld [vmem:[%s1493 + $0x108] sm:$0xff]
    %v1517 = vld [vmem:[%s1493 + $0x110] sm:$0xff]
    %v1518 = vld [vmem:[%s1493 + $0x120] sm:$0xff]
    %v1519 = vld [vmem:[%s1493 + $0x128] sm:$0xff]
    %v1520 = vld [vmem:[%s1493 + $0x138] sm:$0xff]
    %v1521 = vld [vmem:[%s1493 + $0x140] sm:$0xff]
    %v1522 = vld [vmem:[%s1493 + $0x150] sm:$0xff]
    %v1523 = vld [vmem:[%s1493 + $0x158] sm:$0xff]
    %v1524 = vld [vmem:[%s1493 + $0x168] sm:$0xff]
    %v1525 = vld [vmem:[%s1493 + $0x170] sm:$0xff]
    %v1526 = vld [vmem:[%s1493 + $0x1b0] sm:$0xff]
    %v1527 = vld [vmem:[%s1493 + $0x1b8] sm:$0xff]
    %v1528 = vld [vmem:[%s1493 + $0x1c8] sm:$0xff]
    %v1529 = vld [vmem:[%s1493 + $0x1d0] sm:$0xff]
    %v1530 = vld [vmem:[%s1493 + $0x1e0] sm:$0xff]
    %v1531 = vld [vmem:[%s1493 + $0x1e8] sm:$0xff]
    %v1532 = vld [vmem:[%s1493 + $0x1f8] sm:$0xff]
    %v1533 = vld [vmem:[%s1493 + $0x200] sm:$0xff]
    %v1534 = vld [vmem:[%s1493 + $0x210] sm:$0xff]
    %v1535 = vld [vmem:[%s1493 + $0x218] sm:$0xff]
    %v1536 = vld [vmem:[%s1493 + $0x228] sm:$0xff]
    %v1537 = vld [vmem:[%s1493 + $0x230] sm:$0xff]
    %v1538 = vld [vmem:[%s1493 + $0x240] sm:$0xff]
    %v1539 = vld [vmem:[%s1493 + $0x248] sm:$0xff]
    %v1540 = vld [vmem:[%s1493 + $0x258] sm:$0xff]
    %v1541 = vld [vmem:[%s1493 + $0x260] sm:$0xff]
    %v1542 = vld [vmem:[%s1493 + $0x270] sm:$0xff]
    %v1543 = vld [vmem:[%s1493 + $0x278] sm:$0xff]
    %v1544 = vld [vmem:[%s1493 + $0x288] sm:$0xff]
    %v1545 = vld [vmem:[%s1493 + $0x290] sm:$0xff]
    %v1546 = vld [vmem:[%s1493 + $0x2a0] sm:$0xff]
    %v1547 = vld [vmem:[%s1493 + $0x2a8] sm:$0xff]
    %v1548 = vld [vmem:[%s1493 + $0x2b8] sm:$0xff]
    %v1549 = vld [vmem:[%s1493 + $0x2c0] sm:$0xff]
    %v1550 = vld [vmem:[%s1493 + $0x2d0] sm:$0xff]
    %v1551 = vld [vmem:[%s1493 + $0x2d8] sm:$0xff]
    %v1552 = vld [vmem:[%s1493 + $0x2e8] sm:$0xff]
    %v1553 = vld [vmem:[%s1493 + $0x2f0] sm:$0xff]
    %v1554 = vld [vmem:[%s1493 + $0x300] sm:$0xff]
    %v1555 = vld [vmem:[%s1493 + $0x308] sm:$0xff]
    %v1556 = vld [vmem:[%s1493 + $0x318] sm:$0xff]
    %v1557 = vld [vmem:[%s1493 + $0x320] sm:$0xff]
    %s1558 = scalar_lea.vmem %s1, 384
    %v1559 = vld [vmem:[%s1558] sm:$0xff]
    %v1560 = vld [vmem:[%s1558 + $0x8] sm:$0xff]
    %v1561 = vld [vmem:[%s1558 + $0x10] sm:$0xff]
    %v1562 = vld [vmem:[%s1558 + $0x18] sm:$0xff]
    %v1563 = vld [vmem:[%s1558 + $0x20] sm:$0xff]
    %v1564 = vld [vmem:[%s1558 + $0x28] sm:$0xff]
    %v1565 = vld [vmem:[%s1558 + $0x30] sm:$0xff]
    %v1566 = vld [vmem:[%s1558 + $0x38] sm:$0xff]
    %v1567 = vld [vmem:[%s1558 + $0x40] sm:$0xff]
    %v1568 = vld [vmem:[%s1558 + $0x48] sm:$0xff]
    %v1569 = vld [vmem:[%s1558 + $0x50] sm:$0xff]
    %v1570 = vld [vmem:[%s1558 + $0x58] sm:$0xff]
    %v1571 = vld [vmem:[%s1558 + $0x60] sm:$0xff]
    %v1572 = vld [vmem:[%s1558 + $0x68] sm:$0xff]
    %v1573 = vld [vmem:[%s1558 + $0x70] sm:$0xff]
    %v1574 = vld [vmem:[%s1558 + $0x78] sm:$0xff]
    %1575 = vmatprep.subr.mxu0 0.0
    %1576 = vmatpush1.msra.mxu0 %v1559
    %1577 = vmatprep.subr.mxu0 0.0
    %1578 = vmatpush1.msra.mxu0 %v1560
    %1579 = vmatprep.subr.mxu0 0.0
    %1580 = vmatpush1.msra.mxu0 %v1561
    %1581 = vmatprep.subr.mxu0 0.0
    %1582 = vmatpush1.msra.mxu0 %v1562
    %1583 = vmatprep.subr.mxu0 0.0
    %1584 = vmatpush1.msra.mxu0 %v1563
    %1585 = vmatprep.subr.mxu0 0.0
    %1586 = vmatpush1.msra.mxu0 %v1564
    %1587 = vmatprep.subr.mxu0 0.0
    %1588 = vmatpush1.msra.mxu0 %v1565
    %1589 = vmatprep.subr.mxu0 0.0
    %1590 = vmatpush1.msra.mxu0 %v1566
    %1591 = vmatprep.subr.mxu0 0.0
    %1592 = vmatpush1.msra.mxu0 %v1567
    %1593 = vmatprep.subr.mxu0 0.0
    %1594 = vmatpush1.msra.mxu0 %v1568
    %1595 = vmatprep.subr.mxu0 0.0
    %1596 = vmatpush1.msra.mxu0 %v1569
    %1597 = vmatprep.subr.mxu0 0.0
    %1598 = vmatpush1.msra.mxu0 %v1570
    %1599 = vmatprep.subr.mxu0 0.0
    %1600 = vmatpush1.msra.mxu0 %v1571
    %1601 = vmatprep.subr.mxu0 0.0
    %1602 = vmatpush1.msra.mxu0 %v1572
    %1603 = vmatprep.subr.mxu0 0.0
    %1604 = vmatpush1.msra.mxu0 %v1573
    %1605 = vmatprep.subr.mxu0 0.0
    %1606 = vmatpush1.msra.mxu0 %v1574
    %1607 = vmatprep.subr.mxu0 0.0
    %1608 = vmatpush1.msra.mxu0 0.0
    %1609 = vmatprep.subr.mxu0 0.0
    %1610 = vmatpush1.msra.mxu0 0.0
    %1611 = vmatprep.subr.mxu0 0.0
    %1612 = vmatpush1.msra.mxu0 0.0
    %1613 = vmatprep.subr.mxu0 0.0
    %1614 = vmatpush1.msra.mxu0 0.0
    %1615 = vmatprep.subr.mxu0 0.0
    %1616 = vmatpush1.msra.mxu0 0.0
    %1617 = vmatprep.subr.mxu0 0.0
    %1618 = vmatpush1.msra.mxu0 0.0
    %1619 = vmatprep.subr.mxu0 0.0
    %1620 = vmatpush1.msra.mxu0 0.0
    %1621 = vmatprep.subr.mxu0 0.0
    %1622 = vmatpush1.msra.mxu0 0.0
    %1623 = vmatprep.subr.mxu0 0.0
    %1624 = vmatpush1.msra.mxu0 0.0
    %1625 = vmatprep.subr.mxu0 0.0
    %1626 = vmatpush1.msra.mxu0 0.0
    %1627 = vmatprep.subr.mxu0 0.0
    %1628 = vmatpush1.msra.mxu0 0.0
    %1629 = vmatprep.subr.mxu0 0.0
    %1630 = vmatpush1.msra.mxu0 0.0
    %1631 = vmatprep.subr.mxu0 0.0
    %1632 = vmatpush1.msra.mxu0 0.0
    %1633 = vmatprep.subr.mxu0 0.0
    %1634 = vmatpush1.msra.mxu0 0.0
    %1635 = vmatprep.subr.mxu0 0.0
    %1636 = vmatpush1.msra.mxu0 0.0
    %1637 = vmatprep.subr.mxu0 0.0
    %1638 = vmatpush1.msra.mxu0 0.0
    %1639 = vmatprep.mubr.f32.mxu0 0.0
    %1640 = vmatmul.mubr.f32.gmra.mrb[0].mxu0 %v1494
    %v1641 = vpop.f32.mrb[0].mxu0
    %v1642 = vadd.f32 0.0, %v1641
    %v1643 = vpop.f32.mrb[0].mxu0
    %1644 = vmatprep.mubr.f32.mxu0 0.0
    %1645 = vmatmul.mubr.f32.gmra.mrb[0].mxu0 %v1495
    %v1646 = vpop.f32.mrb[0].mxu0
    %v1647 = vadd.f32 0.0, %v1646
    %v1648 = vpop.f32.mrb[0].mxu0
    %1649 = vmatprep.mubr.f32.mxu0 0.0
    %1650 = vmatmul.mubr.f32.gmra.mrb[0].mxu0 %v1496
    %v1651 = vpop.f32.mrb[0].mxu0
    %v1652 = vadd.f32 0.0, %v1651
    %v1653 = vpop.f32.mrb[0].mxu0
    %1654 = vmatprep.mubr.f32.mxu0 0.0
    %1655 = vmatmul.mubr.f32.gmra.mrb[0].mxu0 %v1497
    %v1656 = vpop.f32.mrb[0].mxu0
    %v1657 = vadd.f32 0.0, %v1656
    %v1658 = vpop.f32.mrb[0].mxu0
    %1659 = vmatprep.mubr.f32.mxu0 0.0
    %1660 = vmatmul.mubr.f32.gmra.mrb[0].mxu0 %v1498
    %v1661 = vpop.f32.mrb[0].mxu0
    %v1662 = vadd.f32 0.0, %v1661
    %v1663 = vpop.f32.mrb[0].mxu0
    %1664 = vmatprep.mubr.f32.mxu0 0.0
    %1665 = vmatmul.mubr.f32.gmra.mrb[0].mxu0 %v1499
    %v1666 = vpop.f32.mrb[0].mxu0
    %v1667 = vadd.f32 0.0, %v1666
    %v1668 = vpop.f32.mrb[0].mxu0
    %1669 = vmatprep.mubr.f32.mxu0 0.0
    %1670 = vmatmul.mubr.f32.gmra.mrb[0].mxu0 %v1500
    %v1671 = vpop.f32.mrb[0].mxu0
    %v1672 = vadd.f32 0.0, %v1671
    %v1673 = vpop.f32.mrb[0].mxu0
    %1674 = vmatprep.mubr.f32.mxu0 0.0
    %1675 = vmatmul.mubr.f32.gmra.mrb[0].mxu0 %v1501
    %v1676 = vpop.f32.mrb[0].mxu0
    %v1677 = vadd.f32 0.0, %v1676
    %v1678 = vpop.f32.mrb[0].mxu0
    %1679 = vmatprep.mubr.f32.mxu0 0.0
    %1680 = vmatmul.mubr.f32.gmra.mrb[0].mxu0 %v1502
    %v1681 = vpop.f32.mrb[0].mxu0
    %v1682 = vadd.f32 0.0, %v1681
    %v1683 = vpop.f32.mrb[0].mxu0
    %1684 = vmatprep.mubr.f32.mxu0 0.0
    %1685 = vmatmul.mubr.f32.gmra.mrb[0].mxu0 %v1503
    %v1686 = vpop.f32.mrb[0].mxu0
    %v1687 = vadd.f32 0.0, %v1686
    %v1688 = vpop.f32.mrb[0].mxu0
    %1689 = vmatprep.mubr.f32.mxu0 0.0
    %1690 = vmatmul.mubr.f32.gmra.mrb[0].mxu0 %v1504
    %v1691 = vpop.f32.mrb[0].mxu0
    %v1692 = vadd.f32 0.0, %v1691
    %v1693 = vpop.f32.mrb[0].mxu0
    %1694 = vmatprep.mubr.f32.mxu0 0.0
    %1695 = vmatmul.mubr.f32.gmra.mrb[0].mxu0 %v1505
    %v1696 = vpop.f32.mrb[0].mxu0
    %v1697 = vadd.f32 0.0, %v1696
    %v1698 = vpop.f32.mrb[0].mxu0
    %1699 = vmatprep.mubr.f32.mxu0 0.0
    %1700 = vmatmul.mubr.f32.gmra.mrb[0].mxu0 %v1506
    %v1701 = vpop.f32.mrb[0].mxu0
    %v1702 = vadd.f32 0.0, %v1701
    %v1703 = vpop.f32.mrb[0].mxu0
    %1704 = vmatprep.mubr.f32.mxu0 0.0
    %1705 = vmatmul.mubr.f32.gmra.mrb[0].mxu0 %v1507
    %v1706 = vpop.f32.mrb[0].mxu0
    %v1707 = vadd.f32 0.0, %v1706
    %v1708 = vpop.f32.mrb[0].mxu0
    %1709 = vmatprep.mubr.f32.mxu0 0.0
    %1710 = vmatmul.mubr.f32.gmra.mrb[0].mxu0 %v1508
    %v1711 = vpop.f32.mrb[0].mxu0
    %v1712 = vadd.f32 0.0, %v1711
    %v1713 = vpop.f32.mrb[0].mxu0
    %1714 = vmatprep.mubr.f32.mxu0 0.0
    %1715 = vmatmul.mubr.f32.gmra.mrb[0].mxu0 %v1509
    %v1716 = vpop.f32.mrb[0].mxu0
    %v1717 = vadd.f32 0.0, %v1716
    %v1718 = vpop.f32.mrb[0].mxu0
    %1719 = vmatprep.mubr.f32.mxu0 0.0
    %1720 = vmatmul.mubr.f32.gmra.mrb[0].mxu0 %v1510
    %v1721 = vpop.f32.mrb[0].mxu0
    %v1722 = vadd.f32 0.0, %v1721
    %v1723 = vpop.f32.mrb[0].mxu0
    %1724 = vmatprep.mubr.f32.mxu0 0.0
    %1725 = vmatmul.mubr.f32.gmra.mrb[0].mxu0 %v1511
    %v1726 = vpop.f32.mrb[0].mxu0
    %v1727 = vadd.f32 0.0, %v1726
    %v1728 = vpop.f32.mrb[0].mxu0
    %1729 = vmatprep.mubr.f32.mxu0 0.0
    %1730 = vmatmul.mubr.f32.gmra.mrb[0].mxu0 %v1512
    %v1731 = vpop.f32.mrb[0].mxu0
    %v1732 = vadd.f32 0.0, %v1731
    %v1733 = vpop.f32.mrb[0].mxu0
    %1734 = vmatprep.mubr.f32.mxu0 0.0
    %1735 = vmatmul.mubr.f32.gmra.mrb[0].mxu0 %v1513
    %v1736 = vpop.f32.mrb[0].mxu0
    %v1737 = vadd.f32 0.0, %v1736
    %v1738 = vpop.f32.mrb[0].mxu0
    %1739 = vmatprep.mubr.f32.mxu0 0.0
    %1740 = vmatmul.mubr.f32.gmra.mrb[0].mxu0 %v1514
    %v1741 = vpop.f32.mrb[0].mxu0
    %v1742 = vadd.f32 0.0, %v1741
    %v1743 = vpop.f32.mrb[0].mxu0
    %1744 = vmatprep.mubr.f32.mxu0 0.0
    %1745 = vmatmul.mubr.f32.gmra.mrb[0].mxu0 %v1515
    %v1746 = vpop.f32.mrb[0].mxu0
    %v1747 = vadd.f32 0.0, %v1746
    %v1748 = vpop.f32.mrb[0].mxu0
    %1749 = vmatprep.mubr.f32.mxu0 0.0
    %1750 = vmatmul.mubr.f32.gmra.mrb[0].mxu0 %v1516
    %v1751 = vpop.f32.mrb[0].mxu0
    %v1752 = vadd.f32 0.0, %v1751
    %v1753 = vpop.f32.mrb[0].mxu0
    %1754 = vmatprep.mubr.f32.mxu0 0.0
    %1755 = vmatmul.mubr.f32.gmra.mrb[0].mxu0 %v1517
    %v1756 = vpop.f32.mrb[0].mxu0
    %v1757 = vadd.f32 0.0, %v1756
    %v1758 = vpop.f32.mrb[0].mxu0
    %1759 = vmatprep.mubr.f32.mxu0 0.0
    %1760 = vmatmul.mubr.f32.gmra.mrb[0].mxu0 %v1518
    %v1761 = vpop.f32.mrb[0].mxu0
    %v1762 = vadd.f32 0.0, %v1761
    %v1763 = vpop.f32.mrb[0].mxu0
    %1764 = vmatprep.mubr.f32.mxu0 0.0
    %1765 = vmatmul.mubr.f32.gmra.mrb[0].mxu0 %v1519
    %v1766 = vpop.f32.mrb[0].mxu0
    %v1767 = vadd.f32 0.0, %v1766
    %v1768 = vpop.f32.mrb[0].mxu0
    %1769 = vmatprep.mubr.f32.mxu0 0.0
    %1770 = vmatmul.mubr.f32.gmra.mrb[0].mxu0 %v1520
    %v1771 = vpop.f32.mrb[0].mxu0
    %v1772 = vadd.f32 0.0, %v1771
    %v1773 = vpop.f32.mrb[0].mxu0
    %1774 = vmatprep.mubr.f32.mxu0 0.0
    %1775 = vmatmul.mubr.f32.gmra.mrb[0].mxu0 %v1521
    %v1776 = vpop.f32.mrb[0].mxu0
    %v1777 = vadd.f32 0.0, %v1776
    %v1778 = vpop.f32.mrb[0].mxu0
    %1779 = vmatprep.mubr.f32.mxu0 0.0
    %1780 = vmatmul.mubr.f32.gmra.mrb[0].mxu0 %v1522
    %v1781 = vpop.f32.mrb[0].mxu0
    %v1782 = vadd.f32 0.0, %v1781
    %v1783 = vpop.f32.mrb[0].mxu0
    %1784 = vmatprep.mubr.f32.mxu0 0.0
    %1785 = vmatmul.mubr.f32.gmra.mrb[0].mxu0 %v1523
    %v1786 = vpop.f32.mrb[0].mxu0
    %v1787 = vadd.f32 0.0, %v1786
    %v1788 = vpop.f32.mrb[0].mxu0
    %1789 = vmatprep.mubr.f32.mxu0 0.0
    %1790 = vmatmul.mubr.f32.gmra.mrb[0].mxu0 %v1524
    %v1791 = vpop.f32.mrb[0].mxu0
    %v1792 = vadd.f32 0.0, %v1791
    %v1793 = vpop.f32.mrb[0].mxu0
    %1794 = vmatprep.mubr.f32.mxu0 0.0
    %1795 = vmatmul.mubr.f32.gmra.mrb[0].mxu0 %v1525
    %v1796 = vpop.f32.mrb[0].mxu0
    %v1797 = vadd.f32 0.0, %v1796
    %v1798 = vpop.f32.mrb[0].mxu0
    %1799 = vmatprep.mubr.f32.mxu0 0.0
    %1800 = vmatmul.mubr.f32.gmra.mrb[0].mxu0 %v1526
    %v1801 = vpop.f32.mrb[0].mxu0
    %v1802 = vadd.f32 0.0, %v1801
    %v1803 = vpop.f32.mrb[0].mxu0
    %1804 = vmatprep.mubr.f32.mxu0 0.0
    %1805 = vmatmul.mubr.f32.gmra.mrb[0].mxu0 %v1527
    %v1806 = vpop.f32.mrb[0].mxu0
    %v1807 = vadd.f32 0.0, %v1806
    %v1808 = vpop.f32.mrb[0].mxu0
    %1809 = vmatprep.mubr.f32.mxu0 0.0
    %1810 = vmatmul.mubr.f32.gmra.mrb[0].mxu0 %v1528
    %v1811 = vpop.f32.mrb[0].mxu0
    %v1812 = vadd.f32 0.0, %v1811
    %v1813 = vpop.f32.mrb[0].mxu0
    %1814 = vmatprep.mubr.f32.mxu0 0.0
    %1815 = vmatmul.mubr.f32.gmra.mrb[0].mxu0 %v1529
    %v1816 = vpop.f32.mrb[0].mxu0
    %v1817 = vadd.f32 0.0, %v1816
    %v1818 = vpop.f32.mrb[0].mxu0
    %1819 = vmatprep.mubr.f32.mxu0 0.0
    %1820 = vmatmul.mubr.f32.gmra.mrb[0].mxu0 %v1530
    %v1821 = vpop.f32.mrb[0].mxu0
    %v1822 = vadd.f32 0.0, %v1821
    %v1823 = vpop.f32.mrb[0].mxu0
    %1824 = vmatprep.mubr.f32.mxu0 0.0
    %1825 = vmatmul.mubr.f32.gmra.mrb[0].mxu0 %v1531
    %v1826 = vpop.f32.mrb[0].mxu0
    %v1827 = vadd.f32 0.0, %v1826
    %v1828 = vpop.f32.mrb[0].mxu0
    %1829 = vmatprep.mubr.f32.mxu0 0.0
    %1830 = vmatmul.mubr.f32.gmra.mrb[0].mxu0 %v1532
    %v1831 = vpop.f32.mrb[0].mxu0
    %v1832 = vadd.f32 0.0, %v1831
    %v1833 = vpop.f32.mrb[0].mxu0
    %1834 = vmatprep.mubr.f32.mxu0 0.0
    %1835 = vmatmul.mubr.f32.gmra.mrb[0].mxu0 %v1533
    %v1836 = vpop.f32.mrb[0].mxu0
    %v1837 = vadd.f32 0.0, %v1836
    %v1838 = vpop.f32.mrb[0].mxu0
    %1839 = vmatprep.mubr.f32.mxu0 0.0
    %1840 = vmatmul.mubr.f32.gmra.mrb[0].mxu0 %v1534
    %v1841 = vpop.f32.mrb[0].mxu0
    %v1842 = vadd.f32 0.0, %v1841
    %v1843 = vpop.f32.mrb[0].mxu0
    %1844 = vmatprep.mubr.f32.mxu0 0.0
    %1845 = vmatmul.mubr.f32.gmra.mrb[0].mxu0 %v1535
    %v1846 = vpop.f32.mrb[0].mxu0
    %v1847 = vadd.f32 0.0, %v1846
    %v1848 = vpop.f32.mrb[0].mxu0
    %1849 = vmatprep.mubr.f32.mxu0 0.0
    %1850 = vmatmul.mubr.f32.gmra.mrb[0].mxu0 %v1536
    %v1851 = vpop.f32.mrb[0].mxu0
    %v1852 = vadd.f32 0.0, %v1851
    %v1853 = vpop.f32.mrb[0].mxu0
    %1854 = vmatprep.mubr.f32.mxu0 0.0
    %1855 = vmatmul.mubr.f32.gmra.mrb[0].mxu0 %v1537
    %v1856 = vpop.f32.mrb[0].mxu0
    %v1857 = vadd.f32 0.0, %v1856
    %v1858 = vpop.f32.mrb[0].mxu0
    %1859 = vmatprep.mubr.f32.mxu0 0.0
    %1860 = vmatmul.mubr.f32.gmra.mrb[0].mxu0 %v1538
    %v1861 = vpop.f32.mrb[0].mxu0
    %v1862 = vadd.f32 0.0, %v1861
    %v1863 = vpop.f32.mrb[0].mxu0
    %1864 = vmatprep.mubr.f32.mxu0 0.0
    %1865 = vmatmul.mubr.f32.gmra.mrb[0].mxu0 %v1539
    %v1866 = vpop.f32.mrb[0].mxu0
    %v1867 = vadd.f32 0.0, %v1866
    %v1868 = vpop.f32.mrb[0].mxu0
    %1869 = vmatprep.mubr.f32.mxu0 0.0
    %1870 = vmatmul.mubr.f32.gmra.mrb[0].mxu0 %v1540
    %v1871 = vpop.f32.mrb[0].mxu0
    %v1872 = vadd.f32 0.0, %v1871
    %v1873 = vpop.f32.mrb[0].mxu0
    %1874 = vmatprep.mubr.f32.mxu0 0.0
    %1875 = vmatmul.mubr.f32.gmra.mrb[0].mxu0 %v1541
    %v1876 = vpop.f32.mrb[0].mxu0
    %v1877 = vadd.f32 0.0, %v1876
    %v1878 = vpop.f32.mrb[0].mxu0
    %1879 = vmatprep.mubr.f32.mxu0 0.0
    %1880 = vmatmul.mubr.f32.gmra.mrb[0].mxu0 %v1542
    %v1881 = vpop.f32.mrb[0].mxu0
    %v1882 = vadd.f32 0.0, %v1881
    %v1883 = vpop.f32.mrb[0].mxu0
    %1884 = vmatprep.mubr.f32.mxu0 0.0
    %1885 = vmatmul.mubr.f32.gmra.mrb[0].mxu0 %v1543
    %v1886 = vpop.f32.mrb[0].mxu0
    %v1887 = vadd.f32 0.0, %v1886
    %v1888 = vpop.f32.mrb[0].mxu0
    %1889 = vmatprep.mubr.f32.mxu0 0.0
    %1890 = vmatmul.mubr.f32.gmra.mrb[0].mxu0 %v1544
    %v1891 = vpop.f32.mrb[0].mxu0
    %v1892 = vadd.f32 0.0, %v1891
    %v1893 = vpop.f32.mrb[0].mxu0
    %1894 = vmatprep.mubr.f32.mxu0 0.0
    %1895 = vmatmul.mubr.f32.gmra.mrb[0].mxu0 %v1545
    %v1896 = vpop.f32.mrb[0].mxu0
    %v1897 = vadd.f32 0.0, %v1896
    %v1898 = vpop.f32.mrb[0].mxu0
    %1899 = vmatprep.mubr.f32.mxu0 0.0
    %1900 = vmatmul.mubr.f32.gmra.mrb[0].mxu0 %v1546
    %v1901 = vpop.f32.mrb[0].mxu0
    %v1902 = vadd.f32 0.0, %v1901
    %v1903 = vpop.f32.mrb[0].mxu0
    %1904 = vmatprep.mubr.f32.mxu0 0.0
    %1905 = vmatmul.mubr.f32.gmra.mrb[0].mxu0 %v1547
    %v1906 = vpop.f32.mrb[0].mxu0
    %v1907 = vadd.f32 0.0, %v1906
    %v1908 = vpop.f32.mrb[0].mxu0
    %1909 = vmatprep.mubr.f32.mxu0 0.0
    %1910 = vmatmul.mubr.f32.gmra.mrb[0].mxu0 %v1548
    %v1911 = vpop.f32.mrb[0].mxu0
    %v1912 = vadd.f32 0.0, %v1911
    %v1913 = vpop.f32.mrb[0].mxu0
    %1914 = vmatprep.mubr.f32.mxu0 0.0
    %1915 = vmatmul.mubr.f32.gmra.mrb[0].mxu0 %v1549
    %v1916 = vpop.f32.mrb[0].mxu0
    %v1917 = vadd.f32 0.0, %v1916
    %v1918 = vpop.f32.mrb[0].mxu0
    %1919 = vmatprep.mubr.f32.mxu0 0.0
    %1920 = vmatmul.mubr.f32.gmra.mrb[0].mxu0 %v1550
    %v1921 = vpop.f32.mrb[0].mxu0
    %v1922 = vadd.f32 0.0, %v1921
    %v1923 = vpop.f32.mrb[0].mxu0
    %1924 = vmatprep.mubr.f32.mxu0 0.0
    %1925 = vmatmul.mubr.f32.gmra.mrb[0].mxu0 %v1551
    %v1926 = vpop.f32.mrb[0].mxu0
    %v1927 = vadd.f32 0.0, %v1926
    %v1928 = vpop.f32.mrb[0].mxu0
    %1929 = vmatprep.mubr.f32.mxu0 0.0
    %1930 = vmatmul.mubr.f32.gmra.mrb[0].mxu0 %v1552
    %v1931 = vpop.f32.mrb[0].mxu0
    %v1932 = vadd.f32 0.0, %v1931
    %v1933 = vpop.f32.mrb[0].mxu0
    %1934 = vmatprep.mubr.f32.mxu0 0.0
    %1935 = vmatmul.mubr.f32.gmra.mrb[0].mxu0 %v1553
    %v1936 = vpop.f32.mrb[0].mxu0
    %v1937 = vadd.f32 0.0, %v1936
    %v1938 = vpop.f32.mrb[0].mxu0
    %1939 = vmatprep.mubr.f32.mxu0 0.0
    %1940 = vmatmul.mubr.f32.gmra.mrb[0].mxu0 %v1554
    %v1941 = vpop.f32.mrb[0].mxu0
    %v1942 = vadd.f32 0.0, %v1941
    %v1943 = vpop.f32.mrb[0].mxu0
    %1944 = vmatprep.mubr.f32.mxu0 0.0
    %1945 = vmatmul.mubr.f32.gmra.mrb[0].mxu0 %v1555
    %v1946 = vpop.f32.mrb[0].mxu0
    %v1947 = vadd.f32 0.0, %v1946
    %v1948 = vpop.f32.mrb[0].mxu0
    %1949 = vmatprep.mubr.f32.mxu0 0.0
    %1950 = vmatmul.mubr.f32.gmra.mrb[0].mxu0 %v1556
    %v1951 = vpop.f32.mrb[0].mxu0
    %v1952 = vadd.f32 0.0, %v1951
    %v1953 = vpop.f32.mrb[0].mxu0
    %1954 = vmatprep.mubr.f32.mxu0 0.0
    %1955 = vmatmul.mubr.f32.gmra.mrb[0].mxu0 %v1557
    %v1956 = vpop.f32.mrb[0].mxu0
    %v1957 = vadd.f32 0.0, %v1956
    %v1958 = vpop.f32.mrb[0].mxu0
    %1959 = vdwg.mxu0
    %v1960 = vadd.f32 %v1429, %v1642
    %v1961 = vadd.f32 %v1430, %v1647
    %v1962 = vadd.f32 %v1431, %v1652
    %v1963 = vadd.f32 %v1432, %v1657
    %v1964 = vadd.f32 %v1433, %v1662
    %v1965 = vadd.f32 %v1434, %v1667
    %v1966 = vadd.f32 %v1435, %v1672
    %v1967 = vadd.f32 %v1436, %v1677
    %v1968 = vadd.f32 %v1437, %v1682
    %v1969 = vadd.f32 %v1438, %v1687
    %v1970 = vadd.f32 %v1439, %v1692
    %v1971 = vadd.f32 %v1440, %v1697
    %v1972 = vadd.f32 %v1441, %v1702
    %v1973 = vadd.f32 %v1442, %v1707
    %v1974 = vadd.f32 %v1443, %v1712
    %v1975 = vadd.f32 %v1444, %v1717
    %v1976 = vadd.f32 %v1445, %v1722
    %v1977 = vadd.f32 %v1446, %v1727
    %v1978 = vadd.f32 %v1447, %v1732
    %v1979 = vadd.f32 %v1448, %v1737
    %v1980 = vadd.f32 %v1449, %v1742
    %v1981 = vadd.f32 %v1450, %v1747
    %v1982 = vadd.f32 %v1451, %v1752
    %v1983 = vadd.f32 %v1452, %v1757
    %v1984 = vadd.f32 %v1453, %v1762
    %v1985 = vadd.f32 %v1454, %v1767
    %v1986 = vadd.f32 %v1455, %v1772
    %v1987 = vadd.f32 %v1456, %v1777
    %v1988 = vadd.f32 %v1457, %v1782
    %v1989 = vadd.f32 %v1458, %v1787
    %v1990 = vadd.f32 %v1459, %v1792
    %v1991 = vadd.f32 %v1460, %v1797
    %v1992 = vadd.f32 %v1461, %v1802
    %v1993 = vadd.f32 %v1462, %v1807
    %v1994 = vadd.f32 %v1463, %v1812
    %v1995 = vadd.f32 %v1464, %v1817
    %v1996 = vadd.f32 %v1465, %v1822
    %v1997 = vadd.f32 %v1466, %v1827
    %v1998 = vadd.f32 %v1467, %v1832
    %v1999 = vadd.f32 %v1468, %v1837
    %v2000 = vadd.f32 %v1469, %v1842
    %v2001 = vadd.f32 %v1470, %v1847
    %v2002 = vadd.f32 %v1471, %v1852
    %v2003 = vadd.f32 %v1472, %v1857
    %v2004 = vadd.f32 %v1473, %v1862
    %v2005 = vadd.f32 %v1474, %v1867
    %v2006 = vadd.f32 %v1475, %v1872
    %v2007 = vadd.f32 %v1476, %v1877
    %v2008 = vadd.f32 %v1477, %v1882
    %v2009 = vadd.f32 %v1478, %v1887
    %v2010 = vadd.f32 %v1479, %v1892
    %v2011 = vadd.f32 %v1480, %v1897
    %v2012 = vadd.f32 %v1481, %v1902
    %v2013 = vadd.f32 %v1482, %v1907
    %v2014 = vadd.f32 %v1483, %v1912
    %v2015 = vadd.f32 %v1484, %v1917
    %v2016 = vadd.f32 %v1485, %v1922
    %v2017 = vadd.f32 %v1486, %v1927
    %v2018 = vadd.f32 %v1487, %v1932
    %v2019 = vadd.f32 %v1488, %v1937
    %v2020 = vadd.f32 %v1489, %v1942
    %v2021 = vadd.f32 %v1490, %v1947
    %v2022 = vadd.f32 %v1491, %v1952
    %v2023 = vadd.f32 %v1492, %v1957
    %v2024 = vld [vmem:[%s1493 + $0x1] sm:$0xff]
    %v2025 = vld [vmem:[%s1493 + $0x9] sm:$0xff]
    %v2026 = vld [vmem:[%s1493 + $0x19] sm:$0xff]
    %v2027 = vld [vmem:[%s1493 + $0x21] sm:$0xff]
    %v2028 = vld [vmem:[%s1493 + $0x31] sm:$0xff]
    %v2029 = vld [vmem:[%s1493 + $0x39] sm:$0xff]
    %v2030 = vld [vmem:[%s1493 + $0x49] sm:$0xff]
    %v2031 = vld [vmem:[%s1493 + $0x51] sm:$0xff]
    %v2032 = vld [vmem:[%s1493 + $0x61] sm:$0xff]
    %v2033 = vld [vmem:[%s1493 + $0x69] sm:$0xff]
    %v2034 = vld [vmem:[%s1493 + $0x79] sm:$0xff]
    %v2035 = vld [vmem:[%s1493 + $0x81] sm:$0xff]
    %v2036 = vld [vmem:[%s1493 + $0x91] sm:$0xff]
    %v2037 = vld [vmem:[%s1493 + $0x99] sm:$0xff]
    %v2038 = vld [vmem:[%s1493 + $0xa9] sm:$0xff]
    %v2039 = vld [vmem:[%s1493 + $0xb1] sm:$0xff]
    %v2040 = vld [vmem:[%s1493 + $0xc1] sm:$0xff]
    %v2041 = vld [vmem:[%s1493 + $0xc9] sm:$0xff]
    %v2042 = vld [vmem:[%s1493 + $0xd9] sm:$0xff]
    %v2043 = vld [vmem:[%s1493 + $0xe1] sm:$0xff]
    %v2044 = vld [vmem:[%s1493 + $0xf1] sm:$0xff]
    %v2045 = vld [vmem:[%s1493 + $0xf9] sm:$0xff]
    %v2046 = vld [vmem:[%s1493 + $0x109] sm:$0xff]
    %v2047 = vld [vmem:[%s1493 + $0x111] sm:$0xff]
    %v2048 = vld [vmem:[%s1493 + $0x121] sm:$0xff]
    %v2049 = vld [vmem:[%s1493 + $0x129] sm:$0xff]
    %v2050 = vld [vmem:[%s1493 + $0x139] sm:$0xff]
    %v2051 = vld [vmem:[%s1493 + $0x141] sm:$0xff]
    %v2052 = vld [vmem:[%s1493 + $0x151] sm:$0xff]
    %v2053 = vld [vmem:[%s1493 + $0x159] sm:$0xff]
    %v2054 = vld [vmem:[%s1493 + $0x169] sm:$0xff]
    %v2055 = vld [vmem:[%s1493 + $0x171] sm:$0xff]
    %v2056 = vld [vmem:[%s1493 + $0x1b1] sm:$0xff]
    %v2057 = vld [vmem:[%s1493 + $0x1b9] sm:$0xff]
    %v2058 = vld [vmem:[%s1493 + $0x1c9] sm:$0xff]
    %v2059 = vld [vmem:[%s1493 + $0x1d1] sm:$0xff]
    %v2060 = vld [vmem:[%s1493 + $0x1e1] sm:$0xff]
    %v2061 = vld [vmem:[%s1493 + $0x1e9] sm:$0xff]
    %v2062 = vld [vmem:[%s1493 + $0x1f9] sm:$0xff]
    %v2063 = vld [vmem:[%s1493 + $0x201] sm:$0xff]
    %v2064 = vld [vmem:[%s1493 + $0x211] sm:$0xff]
    %v2065 = vld [vmem:[%s1493 + $0x219] sm:$0xff]
    %v2066 = vld [vmem:[%s1493 + $0x229] sm:$0xff]
    %v2067 = vld [vmem:[%s1493 + $0x231] sm:$0xff]
    %v2068 = vld [vmem:[%s1493 + $0x241] sm:$0xff]
    %v2069 = vld [vmem:[%s1493 + $0x249] sm:$0xff]
    %v2070 = vld [vmem:[%s1493 + $0x259] sm:$0xff]
    %v2071 = vld [vmem:[%s1493 + $0x261] sm:$0xff]
    %v2072 = vld [vmem:[%s1493 + $0x271] sm:$0xff]
    %v2073 = vld [vmem:[%s1493 + $0x279] sm:$0xff]
    %v2074 = vld [vmem:[%s1493 + $0x289] sm:$0xff]
    %v2075 = vld [vmem:[%s1493 + $0x291] sm:$0xff]
    %v2076 = vld [vmem:[%s1493 + $0x2a1] sm:$0xff]
    %v2077 = vld [vmem:[%s1493 + $0x2a9] sm:$0xff]
    %v2078 = vld [vmem:[%s1493 + $0x2b9] sm:$0xff]
    %v2079 = vld [vmem:[%s1493 + $0x2c1] sm:$0xff]
    %v2080 = vld [vmem:[%s1493 + $0x2d1] sm:$0xff]
    %v2081 = vld [vmem:[%s1493 + $0x2d9] sm:$0xff]
    %v2082 = vld [vmem:[%s1493 + $0x2e9] sm:$0xff]
    %v2083 = vld [vmem:[%s1493 + $0x2f1] sm:$0xff]
    %v2084 = vld [vmem:[%s1493 + $0x301] sm:$0xff]
    %v2085 = vld [vmem:[%s1493 + $0x309] sm:$0xff]
    %v2086 = vld [vmem:[%s1493 + $0x319] sm:$0xff]
    %v2087 = vld [vmem:[%s1493 + $0x321] sm:$0xff]
    %s2088 = scalar_lea.vmem %s1, 512
    %v2089 = vld [vmem:[%s2088] sm:$0xff]
    %v2090 = vld [vmem:[%s2088 + $0x8] sm:$0xff]
    %v2091 = vld [vmem:[%s2088 + $0x10] sm:$0xff]
    %v2092 = vld [vmem:[%s2088 + $0x18] sm:$0xff]
    %v2093 = vld [vmem:[%s2088 + $0x20] sm:$0xff]
    %v2094 = vld [vmem:[%s2088 + $0x28] sm:$0xff]
    %v2095 = vld [vmem:[%s2088 + $0x30] sm:$0xff]
    %v2096 = vld [vmem:[%s2088 + $0x38] sm:$0xff]
    %v2097 = vld [vmem:[%s2088 + $0x40] sm:$0xff]
    %v2098 = vld [vmem:[%s2088 + $0x48] sm:$0xff]
    %v2099 = vld [vmem:[%s2088 + $0x50] sm:$0xff]
    %v2100 = vld [vmem:[%s2088 + $0x58] sm:$0xff]
    %v2101 = vld [vmem:[%s2088 + $0x60] sm:$0xff]
    %v2102 = vld [vmem:[%s2088 + $0x68] sm:$0xff]
    %v2103 = vld [vmem:[%s2088 + $0x70] sm:$0xff]
    %v2104 = vld [vmem:[%s2088 + $0x78] sm:$0xff]
    %2105 = vmatprep.subr.mxu0 0.0
    %2106 = vmatpush1.msra.mxu0 %v2089
    %2107 = vmatprep.subr.mxu0 0.0
    %2108 = vmatpush1.msra.mxu0 %v2090
    %2109 = vmatprep.subr.mxu0 0.0
    %2110 = vmatpush1.msra.mxu0 %v2091
    %2111 = vmatprep.subr.mxu0 0.0
    %2112 = vmatpush1.msra.mxu0 %v2092
    %2113 = vmatprep.subr.mxu0 0.0
    %2114 = vmatpush1.msra.mxu0 %v2093
    %2115 = vmatprep.subr.mxu0 0.0
    %2116 = vmatpush1.msra.mxu0 %v2094
    %2117 = vmatprep.subr.mxu0 0.0
    %2118 = vmatpush1.msra.mxu0 %v2095
    %2119 = vmatprep.subr.mxu0 0.0
    %2120 = vmatpush1.msra.mxu0 %v2096
    %2121 = vmatprep.subr.mxu0 0.0
    %2122 = vmatpush1.msra.mxu0 %v2097
    %2123 = vmatprep.subr.mxu0 0.0
    %2124 = vmatpush1.msra.mxu0 %v2098
    %2125 = vmatprep.subr.mxu0 0.0
    %2126 = vmatpush1.msra.mxu0 %v2099
    %2127 = vmatprep.subr.mxu0 0.0
    %2128 = vmatpush1.msra.mxu0 %v2100
    %2129 = vmatprep.subr.mxu0 0.0
    %2130 = vmatpush1.msra.mxu0 %v2101
    %2131 = vmatprep.subr.mxu0 0.0
    %2132 = vmatpush1.msra.mxu0 %v2102
    %2133 = vmatprep.subr.mxu0 0.0
    %2134 = vmatpush1.msra.mxu0 %v2103
    %2135 = vmatprep.subr.mxu0 0.0
    %2136 = vmatpush1.msra.mxu0 %v2104
    %2137 = vmatprep.subr.mxu0 0.0
    %2138 = vmatpush1.msra.mxu0 0.0
    %2139 = vmatprep.subr.mxu0 0.0
    %2140 = vmatpush1.msra.mxu0 0.0
    %2141 = vmatprep.subr.mxu0 0.0
    %2142 = vmatpush1.msra.mxu0 0.0
    %2143 = vmatprep.subr.mxu0 0.0
    %2144 = vmatpush1.msra.mxu0 0.0
    %2145 = vmatprep.subr.mxu0 0.0
    %2146 = vmatpush1.msra.mxu0 0.0
    %2147 = vmatprep.subr.mxu0 0.0
    %2148 = vmatpush1.msra.mxu0 0.0
    %2149 = vmatprep.subr.mxu0 0.0
    %2150 = vmatpush1.msra.mxu0 0.0
    %2151 = vmatprep.subr.mxu0 0.0
    %2152 = vmatpush1.msra.mxu0 0.0
    %2153 = vmatprep.subr.mxu0 0.0
    %2154 = vmatpush1.msra.mxu0 0.0
    %2155 = vmatprep.subr.mxu0 0.0
    %2156 = vmatpush1.msra.mxu0 0.0
    %2157 = vmatprep.subr.mxu0 0.0
    %2158 = vmatpush1.msra.mxu0 0.0
    %2159 = vmatprep.subr.mxu0 0.0
    %2160 = vmatpush1.msra.mxu0 0.0
    %2161 = vmatprep.subr.mxu0 0.0
    %2162 = vmatpush1.msra.mxu0 0.0
    %2163 = vmatprep.subr.mxu0 0.0
    %2164 = vmatpush1.msra.mxu0 0.0
    %2165 = vmatprep.subr.mxu0 0.0
    %2166 = vmatpush1.msra.mxu0 0.0
    %2167 = vmatprep.subr.mxu0 0.0
    %2168 = vmatpush1.msra.mxu0 0.0
    %2169 = vmatprep.mubr.f32.mxu0 0.0
    %2170 = vmatmul.mubr.f32.gmra.mrb[0].mxu0 %v2024
    %v2171 = vpop.f32.mrb[0].mxu0
    %v2172 = vadd.f32 0.0, %v2171
    %v2173 = vpop.f32.mrb[0].mxu0
    %2174 = vmatprep.mubr.f32.mxu0 0.0
    %2175 = vmatmul.mubr.f32.gmra.mrb[0].mxu0 %v2025
    %v2176 = vpop.f32.mrb[0].mxu0
    %v2177 = vadd.f32 0.0, %v2176
    %v2178 = vpop.f32.mrb[0].mxu0
    %2179 = vmatprep.mubr.f32.mxu0 0.0
    %2180 = vmatmul.mubr.f32.gmra.mrb[0].mxu0 %v2026
    %v2181 = vpop.f32.mrb[0].mxu0
    %v2182 = vadd.f32 0.0, %v2181
    %v2183 = vpop.f32.mrb[0].mxu0
    %2184 = vmatprep.mubr.f32.mxu0 0.0
    %2185 = vmatmul.mubr.f32.gmra.mrb[0].mxu0 %v2027
    %v2186 = vpop.f32.mrb[0].mxu0
    %v2187 = vadd.f32 0.0, %v2186
    %v2188 = vpop.f32.mrb[0].mxu0
    %2189 = vmatprep.mubr.f32.mxu0 0.0
    %2190 = vmatmul.mubr.f32.gmra.mrb[0].mxu0 %v2028
    %v2191 = vpop.f32.mrb[0].mxu0
    %v2192 = vadd.f32 0.0, %v2191
    %v2193 = vpop.f32.mrb[0].mxu0
    %2194 = vmatprep.mubr.f32.mxu0 0.0
    %2195 = vmatmul.mubr.f32.gmra.mrb[0].mxu0 %v2029
    %v2196 = vpop.f32.mrb[0].mxu0
    %v2197 = vadd.f32 0.0, %v2196
    %v2198 = vpop.f32.mrb[0].mxu0
    %2199 = vmatprep.mubr.f32.mxu0 0.0
    %2200 = vmatmul.mubr.f32.gmra.mrb[0].mxu0 %v2030
    %v2201 = vpop.f32.mrb[0].mxu0
    %v2202 = vadd.f32 0.0, %v2201
    %v2203 = vpop.f32.mrb[0].mxu0
    %2204 = vmatprep.mubr.f32.mxu0 0.0
    %2205 = vmatmul.mubr.f32.gmra.mrb[0].mxu0 %v2031
    %v2206 = vpop.f32.mrb[0].mxu0
    %v2207 = vadd.f32 0.0, %v2206
    %v2208 = vpop.f32.mrb[0].mxu0
    %2209 = vmatprep.mubr.f32.mxu0 0.0
    %2210 = vmatmul.mubr.f32.gmra.mrb[0].mxu0 %v2032
    %v2211 = vpop.f32.mrb[0].mxu0
    %v2212 = vadd.f32 0.0, %v2211
    %v2213 = vpop.f32.mrb[0].mxu0
    %2214 = vmatprep.mubr.f32.mxu0 0.0
    %2215 = vmatmul.mubr.f32.gmra.mrb[0].mxu0 %v2033
    %v2216 = vpop.f32.mrb[0].mxu0
    %v2217 = vadd.f32 0.0, %v2216
    %v2218 = vpop.f32.mrb[0].mxu0
    %2219 = vmatprep.mubr.f32.mxu0 0.0
    %2220 = vmatmul.mubr.f32.gmra.mrb[0].mxu0 %v2034
    %v2221 = vpop.f32.mrb[0].mxu0
    %v2222 = vadd.f32 0.0, %v2221
    %v2223 = vpop.f32.mrb[0].mxu0
    %2224 = vmatprep.mubr.f32.mxu0 0.0
    %2225 = vmatmul.mubr.f32.gmra.mrb[0].mxu0 %v2035
    %v2226 = vpop.f32.mrb[0].mxu0
    %v2227 = vadd.f32 0.0, %v2226
    %v2228 = vpop.f32.mrb[0].mxu0
    %2229 = vmatprep.mubr.f32.mxu0 0.0
    %2230 = vmatmul.mubr.f32.gmra.mrb[0].mxu0 %v2036
    %v2231 = vpop.f32.mrb[0].mxu0
    %v2232 = vadd.f32 0.0, %v2231
    %v2233 = vpop.f32.mrb[0].mxu0
    %2234 = vmatprep.mubr.f32.mxu0 0.0
    %2235 = vmatmul.mubr.f32.gmra.mrb[0].mxu0 %v2037
    %v2236 = vpop.f32.mrb[0].mxu0
    %v2237 = vadd.f32 0.0, %v2236
    %v2238 = vpop.f32.mrb[0].mxu0
    %2239 = vmatprep.mubr.f32.mxu0 0.0
    %2240 = vmatmul.mubr.f32.gmra.mrb[0].mxu0 %v2038
    %v2241 = vpop.f32.mrb[0].mxu0
    %v2242 = vadd.f32 0.0, %v2241
    %v2243 = vpop.f32.mrb[0].mxu0
    %2244 = vmatprep.mubr.f32.mxu0 0.0
    %2245 = vmatmul.mubr.f32.gmra.mrb[0].mxu0 %v2039
    %v2246 = vpop.f32.mrb[0].mxu0
    %v2247 = vadd.f32 0.0, %v2246
    %v2248 = vpop.f32.mrb[0].mxu0
    %2249 = vmatprep.mubr.f32.mxu0 0.0
    %2250 = vmatmul.mubr.f32.gmra.mrb[0].mxu0 %v2040
    %v2251 = vpop.f32.mrb[0].mxu0
    %v2252 = vadd.f32 0.0, %v2251
    %v2253 = vpop.f32.mrb[0].mxu0
    %2254 = vmatprep.mubr.f32.mxu0 0.0
    %2255 = vmatmul.mubr.f32.gmra.mrb[0].mxu0 %v2041
    %v2256 = vpop.f32.mrb[0].mxu0
    %v2257 = vadd.f32 0.0, %v2256
    %v2258 = vpop.f32.mrb[0].mxu0
    %2259 = vmatprep.mubr.f32.mxu0 0.0
    %2260 = vmatmul.mubr.f32.gmra.mrb[0].mxu0 %v2042
    %v2261 = vpop.f32.mrb[0].mxu0
    %v2262 = vadd.f32 0.0, %v2261
    %v2263 = vpop.f32.mrb[0].mxu0
    %2264 = vmatprep.mubr.f32.mxu0 0.0
    %2265 = vmatmul.mubr.f32.gmra.mrb[0].mxu0 %v2043
    %v2266 = vpop.f32.mrb[0].mxu0
    %v2267 = vadd.f32 0.0, %v2266
    %v2268 = vpop.f32.mrb[0].mxu0
    %2269 = vmatprep.mubr.f32.mxu0 0.0
    %2270 = vmatmul.mubr.f32.gmra.mrb[0].mxu0 %v2044
    %v2271 = vpop.f32.mrb[0].mxu0
    %v2272 = vadd.f32 0.0, %v2271
    %v2273 = vpop.f32.mrb[0].mxu0
    %2274 = vmatprep.mubr.f32.mxu0 0.0
    %2275 = vmatmul.mubr.f32.gmra.mrb[0].mxu0 %v2045
    %v2276 = vpop.f32.mrb[0].mxu0
    %v2277 = vadd.f32 0.0, %v2276
    %v2278 = vpop.f32.mrb[0].mxu0
    %2279 = vmatprep.mubr.f32.mxu0 0.0
    %2280 = vmatmul.mubr.f32.gmra.mrb[0].mxu0 %v2046
    %v2281 = vpop.f32.mrb[0].mxu0
    %v2282 = vadd.f32 0.0, %v2281
    %v2283 = vpop.f32.mrb[0].mxu0
    %2284 = vmatprep.mubr.f32.mxu0 0.0
    %2285 = vmatmul.mubr.f32.gmra.mrb[0].mxu0 %v2047
    %v2286 = vpop.f32.mrb[0].mxu0
    %v2287 = vadd.f32 0.0, %v2286
    %v2288 = vpop.f32.mrb[0].mxu0
    %2289 = vmatprep.mubr.f32.mxu0 0.0
    %2290 = vmatmul.mubr.f32.gmra.mrb[0].mxu0 %v2048
    %v2291 = vpop.f32.mrb[0].mxu0
    %v2292 = vadd.f32 0.0, %v2291
    %v2293 = vpop.f32.mrb[0].mxu0
    %2294 = vmatprep.mubr.f32.mxu0 0.0
    %2295 = vmatmul.mubr.f32.gmra.mrb[0].mxu0 %v2049
    %v2296 = vpop.f32.mrb[0].mxu0
    %v2297 = vadd.f32 0.0, %v2296
    %v2298 = vpop.f32.mrb[0].mxu0
    %2299 = vmatprep.mubr.f32.mxu0 0.0
    %2300 = vmatmul.mubr.f32.gmra.mrb[0].mxu0 %v2050
    %v2301 = vpop.f32.mrb[0].mxu0
    %v2302 = vadd.f32 0.0, %v2301
    %v2303 = vpop.f32.mrb[0].mxu0
    %2304 = vmatprep.mubr.f32.mxu0 0.0
    %2305 = vmatmul.mubr.f32.gmra.mrb[0].mxu0 %v2051
    %v2306 = vpop.f32.mrb[0].mxu0
    %v2307 = vadd.f32 0.0, %v2306
    %v2308 = vpop.f32.mrb[0].mxu0
    %2309 = vmatprep.mubr.f32.mxu0 0.0
    %2310 = vmatmul.mubr.f32.gmra.mrb[0].mxu0 %v2052
    %v2311 = vpop.f32.mrb[0].mxu0
    %v2312 = vadd.f32 0.0, %v2311
    %v2313 = vpop.f32.mrb[0].mxu0
    %2314 = vmatprep.mubr.f32.mxu0 0.0
    %2315 = vmatmul.mubr.f32.gmra.mrb[0].mxu0 %v2053
    %v2316 = vpop.f32.mrb[0].mxu0
    %v2317 = vadd.f32 0.0, %v2316
    %v2318 = vpop.f32.mrb[0].mxu0
    %2319 = vmatprep.mubr.f32.mxu0 0.0
    %2320 = vmatmul.mubr.f32.gmra.mrb[0].mxu0 %v2054
    %v2321 = vpop.f32.mrb[0].mxu0
    %v2322 = vadd.f32 0.0, %v2321
    %v2323 = vpop.f32.mrb[0].mxu0
    %2324 = vmatprep.mubr.f32.mxu0 0.0
    %2325 = vmatmul.mubr.f32.gmra.mrb[0].mxu0 %v2055
    %v2326 = vpop.f32.mrb[0].mxu0
    %v2327 = vadd.f32 0.0, %v2326
    %v2328 = vpop.f32.mrb[0].mxu0
    %2329 = vmatprep.mubr.f32.mxu0 0.0
    %2330 = vmatmul.mubr.f32.gmra.mrb[0].mxu0 %v2056
    %v2331 = vpop.f32.mrb[0].mxu0
    %v2332 = vadd.f32 0.0, %v2331
    %v2333 = vpop.f32.mrb[0].mxu0
    %2334 = vmatprep.mubr.f32.mxu0 0.0
    %2335 = vmatmul.mubr.f32.gmra.mrb[0].mxu0 %v2057
    %v2336 = vpop.f32.mrb[0].mxu0
    %v2337 = vadd.f32 0.0, %v2336
    %v2338 = vpop.f32.mrb[0].mxu0
    %2339 = vmatprep.mubr.f32.mxu0 0.0
    %2340 = vmatmul.mubr.f32.gmra.mrb[0].mxu0 %v2058
    %v2341 = vpop.f32.mrb[0].mxu0
    %v2342 = vadd.f32 0.0, %v2341
    %v2343 = vpop.f32.mrb[0].mxu0
    %2344 = vmatprep.mubr.f32.mxu0 0.0
    %2345 = vmatmul.mubr.f32.gmra.mrb[0].mxu0 %v2059
    %v2346 = vpop.f32.mrb[0].mxu0
    %v2347 = vadd.f32 0.0, %v2346
    %v2348 = vpop.f32.mrb[0].mxu0
    %2349 = vmatprep.mubr.f32.mxu0 0.0
    %2350 = vmatmul.mubr.f32.gmra.mrb[0].mxu0 %v2060
    %v2351 = vpop.f32.mrb[0].mxu0
    %v2352 = vadd.f32 0.0, %v2351
    %v2353 = vpop.f32.mrb[0].mxu0
    %2354 = vmatprep.mubr.f32.mxu0 0.0
    %2355 = vmatmul.mubr.f32.gmra.mrb[0].mxu0 %v2061
    %v2356 = vpop.f32.mrb[0].mxu0
    %v2357 = vadd.f32 0.0, %v2356
    %v2358 = vpop.f32.mrb[0].mxu0
    %2359 = vmatprep.mubr.f32.mxu0 0.0
    %2360 = vmatmul.mubr.f32.gmra.mrb[0].mxu0 %v2062
    %v2361 = vpop.f32.mrb[0].mxu0
    %v2362 = vadd.f32 0.0, %v2361
    %v2363 = vpop.f32.mrb[0].mxu0
    %2364 = vmatprep.mubr.f32.mxu0 0.0
    %2365 = vmatmul.mubr.f32.gmra.mrb[0].mxu0 %v2063
    %v2366 = vpop.f32.mrb[0].mxu0
    %v2367 = vadd.f32 0.0, %v2366
    %v2368 = vpop.f32.mrb[0].mxu0
    %2369 = vmatprep.mubr.f32.mxu0 0.0
    %2370 = vmatmul.mubr.f32.gmra.mrb[0].mxu0 %v2064
    %v2371 = vpop.f32.mrb[0].mxu0
    %v2372 = vadd.f32 0.0, %v2371
    %v2373 = vpop.f32.mrb[0].mxu0
    %2374 = vmatprep.mubr.f32.mxu0 0.0
    %2375 = vmatmul.mubr.f32.gmra.mrb[0].mxu0 %v2065
    %v2376 = vpop.f32.mrb[0].mxu0
    %v2377 = vadd.f32 0.0, %v2376
    %v2378 = vpop.f32.mrb[0].mxu0
    %2379 = vmatprep.mubr.f32.mxu0 0.0
    %2380 = vmatmul.mubr.f32.gmra.mrb[0].mxu0 %v2066
    %v2381 = vpop.f32.mrb[0].mxu0
    %v2382 = vadd.f32 0.0, %v2381
    %v2383 = vpop.f32.mrb[0].mxu0
    %2384 = vmatprep.mubr.f32.mxu0 0.0
    %2385 = vmatmul.mubr.f32.gmra.mrb[0].mxu0 %v2067
    %v2386 = vpop.f32.mrb[0].mxu0
    %v2387 = vadd.f32 0.0, %v2386
    %v2388 = vpop.f32.mrb[0].mxu0
    %2389 = vmatprep.mubr.f32.mxu0 0.0
    %2390 = vmatmul.mubr.f32.gmra.mrb[0].mxu0 %v2068
    %v2391 = vpop.f32.mrb[0].mxu0
    %v2392 = vadd.f32 0.0, %v2391
    %v2393 = vpop.f32.mrb[0].mxu0
    %2394 = vmatprep.mubr.f32.mxu0 0.0
    %2395 = vmatmul.mubr.f32.gmra.mrb[0].mxu0 %v2069
    %v2396 = vpop.f32.mrb[0].mxu0
    %v2397 = vadd.f32 0.0, %v2396
    %v2398 = vpop.f32.mrb[0].mxu0
    %2399 = vmatprep.mubr.f32.mxu0 0.0
    %2400 = vmatmul.mubr.f32.gmra.mrb[0].mxu0 %v2070
    %v2401 = vpop.f32.mrb[0].mxu0
    %v2402 = vadd.f32 0.0, %v2401
    %v2403 = vpop.f32.mrb[0].mxu0
    %2404 = vmatprep.mubr.f32.mxu0 0.0
    %2405 = vmatmul.mubr.f32.gmra.mrb[0].mxu0 %v2071
    %v2406 = vpop.f32.mrb[0].mxu0
    %v2407 = vadd.f32 0.0, %v2406
    %v2408 = vpop.f32.mrb[0].mxu0
    %2409 = vmatprep.mubr.f32.mxu0 0.0
    %2410 = vmatmul.mubr.f32.gmra.mrb[0].mxu0 %v2072
    %v2411 = vpop.f32.mrb[0].mxu0
    %v2412 = vadd.f32 0.0, %v2411
    %v2413 = vpop.f32.mrb[0].mxu0
    %2414 = vmatprep.mubr.f32.mxu0 0.0
    %2415 = vmatmul.mubr.f32.gmra.mrb[0].mxu0 %v2073
    %v2416 = vpop.f32.mrb[0].mxu0
    %v2417 = vadd.f32 0.0, %v2416
    %v2418 = vpop.f32.mrb[0].mxu0
    %2419 = vmatprep.mubr.f32.mxu0 0.0
    %2420 = vmatmul.mubr.f32.gmra.mrb[0].mxu0 %v2074
    %v2421 = vpop.f32.mrb[0].mxu0
    %v2422 = vadd.f32 0.0, %v2421
    %v2423 = vpop.f32.mrb[0].mxu0
    %2424 = vmatprep.mubr.f32.mxu0 0.0
    %2425 = vmatmul.mubr.f32.gmra.mrb[0].mxu0 %v2075
    %v2426 = vpop.f32.mrb[0].mxu0
    %v2427 = vadd.f32 0.0, %v2426
    %v2428 = vpop.f32.mrb[0].mxu0
    %2429 = vmatprep.mubr.f32.mxu0 0.0
    %2430 = vmatmul.mubr.f32.gmra.mrb[0].mxu0 %v2076
    %v2431 = vpop.f32.mrb[0].mxu0
    %v2432 = vadd.f32 0.0, %v2431
    %v2433 = vpop.f32.mrb[0].mxu0
    %2434 = vmatprep.mubr.f32.mxu0 0.0
    %2435 = vmatmul.mubr.f32.gmra.mrb[0].mxu0 %v2077
    %v2436 = vpop.f32.mrb[0].mxu0
    %v2437 = vadd.f32 0.0, %v2436
    %v2438 = vpop.f32.mrb[0].mxu0
    %2439 = vmatprep.mubr.f32.mxu0 0.0
    %2440 = vmatmul.mubr.f32.gmra.mrb[0].mxu0 %v2078
    %v2441 = vpop.f32.mrb[0].mxu0
    %v2442 = vadd.f32 0.0, %v2441
    %v2443 = vpop.f32.mrb[0].mxu0
    %2444 = vmatprep.mubr.f32.mxu0 0.0
    %2445 = vmatmul.mubr.f32.gmra.mrb[0].mxu0 %v2079
    %v2446 = vpop.f32.mrb[0].mxu0
    %v2447 = vadd.f32 0.0, %v2446
    %v2448 = vpop.f32.mrb[0].mxu0
    %2449 = vmatprep.mubr.f32.mxu0 0.0
    %2450 = vmatmul.mubr.f32.gmra.mrb[0].mxu0 %v2080
    %v2451 = vpop.f32.mrb[0].mxu0
    %v2452 = vadd.f32 0.0, %v2451
    %v2453 = vpop.f32.mrb[0].mxu0
    %2454 = vmatprep.mubr.f32.mxu0 0.0
    %2455 = vmatmul.mubr.f32.gmra.mrb[0].mxu0 %v2081
    %v2456 = vpop.f32.mrb[0].mxu0
    %v2457 = vadd.f32 0.0, %v2456
    %v2458 = vpop.f32.mrb[0].mxu0
    %2459 = vmatprep.mubr.f32.mxu0 0.0
    %2460 = vmatmul.mubr.f32.gmra.mrb[0].mxu0 %v2082
    %v2461 = vpop.f32.mrb[0].mxu0
    %v2462 = vadd.f32 0.0, %v2461
    %v2463 = vpop.f32.mrb[0].mxu0
    %2464 = vmatprep.mubr.f32.mxu0 0.0
    %2465 = vmatmul.mubr.f32.gmra.mrb[0].mxu0 %v2083
    %v2466 = vpop.f32.mrb[0].mxu0
    %v2467 = vadd.f32 0.0, %v2466
    %v2468 = vpop.f32.mrb[0].mxu0
    %2469 = vmatprep.mubr.f32.mxu0 0.0
    %2470 = vmatmul.mubr.f32.gmra.mrb[0].mxu0 %v2084
    %v2471 = vpop.f32.mrb[0].mxu0
    %v2472 = vadd.f32 0.0, %v2471
    %v2473 = vpop.f32.mrb[0].mxu0
    %2474 = vmatprep.mubr.f32.mxu0 0.0
    %2475 = vmatmul.mubr.f32.gmra.mrb[0].mxu0 %v2085
    %v2476 = vpop.f32.mrb[0].mxu0
    %v2477 = vadd.f32 0.0, %v2476
    %v2478 = vpop.f32.mrb[0].mxu0
    %2479 = vmatprep.mubr.f32.mxu0 0.0
    %2480 = vmatmul.mubr.f32.gmra.mrb[0].mxu0 %v2086
    %v2481 = vpop.f32.mrb[0].mxu0
    %v2482 = vadd.f32 0.0, %v2481
    %v2483 = vpop.f32.mrb[0].mxu0
    %2484 = vmatprep.mubr.f32.mxu0 0.0
    %2485 = vmatmul.mubr.f32.gmra.mrb[0].mxu0 %v2087
    %v2486 = vpop.f32.mrb[0].mxu0
    %v2487 = vadd.f32 0.0, %v2486
    %v2488 = vpop.f32.mrb[0].mxu0
    %2489 = vdwg.mxu0
    %v2490 = vadd.f32 %v1960, %v2172
    %v2491 = vadd.f32 %v1961, %v2177
    %v2492 = vadd.f32 %v1962, %v2182
    %v2493 = vadd.f32 %v1963, %v2187
    %v2494 = vadd.f32 %v1964, %v2192
    %v2495 = vadd.f32 %v1965, %v2197
    %v2496 = vadd.f32 %v1966, %v2202
    %v2497 = vadd.f32 %v1967, %v2207
    %v2498 = vadd.f32 %v1968, %v2212
    %v2499 = vadd.f32 %v1969, %v2217
    %v2500 = vadd.f32 %v1970, %v2222
    %v2501 = vadd.f32 %v1971, %v2227
    %v2502 = vadd.f32 %v1972, %v2232
    %v2503 = vadd.f32 %v1973, %v2237
    %v2504 = vadd.f32 %v1974, %v2242
    %v2505 = vadd.f32 %v1975, %v2247
    %v2506 = vadd.f32 %v1976, %v2252
    %v2507 = vadd.f32 %v1977, %v2257
    %v2508 = vadd.f32 %v1978, %v2262
    %v2509 = vadd.f32 %v1979, %v2267
    %v2510 = vadd.f32 %v1980, %v2272
    %v2511 = vadd.f32 %v1981, %v2277
    %v2512 = vadd.f32 %v1982, %v2282
    %v2513 = vadd.f32 %v1983, %v2287
    %v2514 = vadd.f32 %v1984, %v2292
    %v2515 = vadd.f32 %v1985, %v2297
    %v2516 = vadd.f32 %v1986, %v2302
    %v2517 = vadd.f32 %v1987, %v2307
    %v2518 = vadd.f32 %v1988, %v2312
    %v2519 = vadd.f32 %v1989, %v2317
    %v2520 = vadd.f32 %v1990, %v2322
    %v2521 = vadd.f32 %v1991, %v2327
    %v2522 = vadd.f32 %v1992, %v2332
    %v2523 = vadd.f32 %v1993, %v2337
    %v2524 = vadd.f32 %v1994, %v2342
    %v2525 = vadd.f32 %v1995, %v2347
    %v2526 = vadd.f32 %v1996, %v2352
    %v2527 = vadd.f32 %v1997, %v2357
    %v2528 = vadd.f32 %v1998, %v2362
    %v2529 = vadd.f32 %v1999, %v2367
    %v2530 = vadd.f32 %v2000, %v2372
    %v2531 = vadd.f32 %v2001, %v2377
    %v2532 = vadd.f32 %v2002, %v2382
    %v2533 = vadd.f32 %v2003, %v2387
    %v2534 = vadd.f32 %v2004, %v2392
    %v2535 = vadd.f32 %v2005, %v2397
    %v2536 = vadd.f32 %v2006, %v2402
    %v2537 = vadd.f32 %v2007, %v2407
    %v2538 = vadd.f32 %v2008, %v2412
    %v2539 = vadd.f32 %v2009, %v2417
    %v2540 = vadd.f32 %v2010, %v2422
    %v2541 = vadd.f32 %v2011, %v2427
    %v2542 = vadd.f32 %v2012, %v2432
    %v2543 = vadd.f32 %v2013, %v2437
    %v2544 = vadd.f32 %v2014, %v2442
    %v2545 = vadd.f32 %v2015, %v2447
    %v2546 = vadd.f32 %v2016, %v2452
    %v2547 = vadd.f32 %v2017, %v2457
    %v2548 = vadd.f32 %v2018, %v2462
    %v2549 = vadd.f32 %v2019, %v2467
    %v2550 = vadd.f32 %v2020, %v2472
    %v2551 = vadd.f32 %v2021, %v2477
    %v2552 = vadd.f32 %v2022, %v2482
    %v2553 = vadd.f32 %v2023, %v2487
    %v2554 = vld [vmem:[%s1493 + $0x2] sm:$0xff]
    %v2555 = vld [vmem:[%s1493 + $0xa] sm:$0xff]
    %v2556 = vld [vmem:[%s1493 + $0x1a] sm:$0xff]
    %v2557 = vld [vmem:[%s1493 + $0x22] sm:$0xff]
    %v2558 = vld [vmem:[%s1493 + $0x32] sm:$0xff]
    %v2559 = vld [vmem:[%s1493 + $0x3a] sm:$0xff]
    %v2560 = vld [vmem:[%s1493 + $0x4a] sm:$0xff]
    %v2561 = vld [vmem:[%s1493 + $0x52] sm:$0xff]
    %v2562 = vld [vmem:[%s1493 + $0x62] sm:$0xff]
    %v2563 = vld [vmem:[%s1493 + $0x6a] sm:$0xff]
    %v2564 = vld [vmem:[%s1493 + $0x7a] sm:$0xff]
    %v2565 = vld [vmem:[%s1493 + $0x82] sm:$0xff]
    %v2566 = vld [vmem:[%s1493 + $0x92] sm:$0xff]
    %v2567 = vld [vmem:[%s1493 + $0x9a] sm:$0xff]
    %v2568 = vld [vmem:[%s1493 + $0xaa] sm:$0xff]
    %v2569 = vld [vmem:[%s1493 + $0xb2] sm:$0xff]
    %v2570 = vld [vmem:[%s1493 + $0xc2] sm:$0xff]
    %v2571 = vld [vmem:[%s1493 + $0xca] sm:$0xff]
    %v2572 = vld [vmem:[%s1493 + $0xda] sm:$0xff]
    %v2573 = vld [vmem:[%s1493 + $0xe2] sm:$0xff]
    %v2574 = vld [vmem:[%s1493 + $0xf2] sm:$0xff]
    %v2575 = vld [vmem:[%s1493 + $0xfa] sm:$0xff]
    %v2576 = vld [vmem:[%s1493 + $0x10a] sm:$0xff]
    %v2577 = vld [vmem:[%s1493 + $0x112] sm:$0xff]
    %v2578 = vld [vmem:[%s1493 + $0x122] sm:$0xff]
    %v2579 = vld [vmem:[%s1493 + $0x12a] sm:$0xff]
    %v2580 = vld [vmem:[%s1493 + $0x13a] sm:$0xff]
    %v2581 = vld [vmem:[%s1493 + $0x142] sm:$0xff]
    %v2582 = vld [vmem:[%s1493 + $0x152] sm:$0xff]
    %v2583 = vld [vmem:[%s1493 + $0x15a] sm:$0xff]
    %v2584 = vld [vmem:[%s1493 + $0x16a] sm:$0xff]
    %v2585 = vld [vmem:[%s1493 + $0x172] sm:$0xff]
    %v2586 = vld [vmem:[%s1493 + $0x1b2] sm:$0xff]
    %v2587 = vld [vmem:[%s1493 + $0x1ba] sm:$0xff]
    %v2588 = vld [vmem:[%s1493 + $0x1ca] sm:$0xff]
    %v2589 = vld [vmem:[%s1493 + $0x1d2] sm:$0xff]
    %v2590 = vld [vmem:[%s1493 + $0x1e2] sm:$0xff]
    %v2591 = vld [vmem:[%s1493 + $0x1ea] sm:$0xff]
    %v2592 = vld [vmem:[%s1493 + $0x1fa] sm:$0xff]
    %v2593 = vld [vmem:[%s1493 + $0x202] sm:$0xff]
    %v2594 = vld [vmem:[%s1493 + $0x212] sm:$0xff]
    %v2595 = vld [vmem:[%s1493 + $0x21a] sm:$0xff]
    %v2596 = vld [vmem:[%s1493 + $0x22a] sm:$0xff]
    %v2597 = vld [vmem:[%s1493 + $0x232] sm:$0xff]
    %v2598 = vld [vmem:[%s1493 + $0x242] sm:$0xff]
    %v2599 = vld [vmem:[%s1493 + $0x24a] sm:$0xff]
    %v2600 = vld [vmem:[%s1493 + $0x25a] sm:$0xff]
    %v2601 = vld [vmem:[%s1493 + $0x262] sm:$0xff]
    %v2602 = vld [vmem:[%s1493 + $0x272] sm:$0xff]
    %v2603 = vld [vmem:[%s1493 + $0x27a] sm:$0xff]
    %v2604 = vld [vmem:[%s1493 + $0x28a] sm:$0xff]
    %v2605 = vld [vmem:[%s1493 + $0x292] sm:$0xff]
    %v2606 = vld [vmem:[%s1493 + $0x2a2] sm:$0xff]
    %v2607 = vld [vmem:[%s1493 + $0x2aa] sm:$0xff]
    %v2608 = vld [vmem:[%s1493 + $0x2ba] sm:$0xff]
    %v2609 = vld [vmem:[%s1493 + $0x2c2] sm:$0xff]
    %v2610 = vld [vmem:[%s1493 + $0x2d2] sm:$0xff]
    %v2611 = vld [vmem:[%s1493 + $0x2da] sm:$0xff]
    %v2612 = vld [vmem:[%s1493 + $0x2ea] sm:$0xff]
    %v2613 = vld [vmem:[%s1493 + $0x2f2] sm:$0xff]
    %v2614 = vld [vmem:[%s1493 + $0x302] sm:$0xff]
    %v2615 = vld [vmem:[%s1493 + $0x30a] sm:$0xff]
    %v2616 = vld [vmem:[%s1493 + $0x31a] sm:$0xff]
    %v2617 = vld [vmem:[%s1493 + $0x322] sm:$0xff]
    %s2618 = scalar_lea.vmem %s1, 640
    %v2619 = vld [vmem:[%s2618] sm:$0xff]
    %v2620 = vld [vmem:[%s2618 + $0x8] sm:$0xff]
    %v2621 = vld [vmem:[%s2618 + $0x10] sm:$0xff]
    %v2622 = vld [vmem:[%s2618 + $0x18] sm:$0xff]
    %v2623 = vld [vmem:[%s2618 + $0x20] sm:$0xff]
    %v2624 = vld [vmem:[%s2618 + $0x28] sm:$0xff]
    %v2625 = vld [vmem:[%s2618 + $0x30] sm:$0xff]
    %v2626 = vld [vmem:[%s2618 + $0x38] sm:$0xff]
    %v2627 = vld [vmem:[%s2618 + $0x40] sm:$0xff]
    %v2628 = vld [vmem:[%s2618 + $0x48] sm:$0xff]
    %v2629 = vld [vmem:[%s2618 + $0x50] sm:$0xff]
    %v2630 = vld [vmem:[%s2618 + $0x58] sm:$0xff]
    %v2631 = vld [vmem:[%s2618 + $0x60] sm:$0xff]
    %v2632 = vld [vmem:[%s2618 + $0x68] sm:$0xff]
    %v2633 = vld [vmem:[%s2618 + $0x70] sm:$0xff]
    %v2634 = vld [vmem:[%s2618 + $0x78] sm:$0xff]
    %2635 = vmatprep.subr.mxu0 0.0
    %2636 = vmatpush1.msra.mxu0 %v2619
    %2637 = vmatprep.subr.mxu0 0.0
    %2638 = vmatpush1.msra.mxu0 %v2620
    %2639 = vmatprep.subr.mxu0 0.0
    %2640 = vmatpush1.msra.mxu0 %v2621
    %2641 = vmatprep.subr.mxu0 0.0
    %2642 = vmatpush1.msra.mxu0 %v2622
    %2643 = vmatprep.subr.mxu0 0.0
    %2644 = vmatpush1.msra.mxu0 %v2623
    %2645 = vmatprep.subr.mxu0 0.0
    %2646 = vmatpush1.msra.mxu0 %v2624
    %2647 = vmatprep.subr.mxu0 0.0
    %2648 = vmatpush1.msra.mxu0 %v2625
    %2649 = vmatprep.subr.mxu0 0.0
    %2650 = vmatpush1.msra.mxu0 %v2626
    %2651 = vmatprep.subr.mxu0 0.0
    %2652 = vmatpush1.msra.mxu0 %v2627
    %2653 = vmatprep.subr.mxu0 0.0
    %2654 = vmatpush1.msra.mxu0 %v2628
    %2655 = vmatprep.subr.mxu0 0.0
    %2656 = vmatpush1.msra.mxu0 %v2629
    %2657 = vmatprep.subr.mxu0 0.0
    %2658 = vmatpush1.msra.mxu0 %v2630
    %2659 = vmatprep.subr.mxu0 0.0
    %2660 = vmatpush1.msra.mxu0 %v2631
    %2661 = vmatprep.subr.mxu0 0.0
    %2662 = vmatpush1.msra.mxu0 %v2632
    %2663 = vmatprep.subr.mxu0 0.0
    %2664 = vmatpush1.msra.mxu0 %v2633
    %2665 = vmatprep.subr.mxu0 0.0
    %2666 = vmatpush1.msra.mxu0 %v2634
    %2667 = vmatprep.subr.mxu0 0.0
    %2668 = vmatpush1.msra.mxu0 0.0
    %2669 = vmatprep.subr.mxu0 0.0
    %2670 = vmatpush1.msra.mxu0 0.0
    %2671 = vmatprep.subr.mxu0 0.0
    %2672 = vmatpush1.msra.mxu0 0.0
    %2673 = vmatprep.subr.mxu0 0.0
    %2674 = vmatpush1.msra.mxu0 0.0
    %2675 = vmatprep.subr.mxu0 0.0
    %2676 = vmatpush1.msra.mxu0 0.0
    %2677 = vmatprep.subr.mxu0 0.0
    %2678 = vmatpush1.msra.mxu0 0.0
    %2679 = vmatprep.subr.mxu0 0.0
    %2680 = vmatpush1.msra.mxu0 0.0
    %2681 = vmatprep.subr.mxu0 0.0
    %2682 = vmatpush1.msra.mxu0 0.0
    %2683 = vmatprep.subr.mxu0 0.0
    %2684 = vmatpush1.msra.mxu0 0.0
    %2685 = vmatprep.subr.mxu0 0.0
    %2686 = vmatpush1.msra.mxu0 0.0
    %2687 = vmatprep.subr.mxu0 0.0
    %2688 = vmatpush1.msra.mxu0 0.0
    %2689 = vmatprep.subr.mxu0 0.0
    %2690 = vmatpush1.msra.mxu0 0.0
    %2691 = vmatprep.subr.mxu0 0.0
    %2692 = vmatpush1.msra.mxu0 0.0
    %2693 = vmatprep.subr.mxu0 0.0
    %2694 = vmatpush1.msra.mxu0 0.0
    %2695 = vmatprep.subr.mxu0 0.0
    %2696 = vmatpush1.msra.mxu0 0.0
    %2697 = vmatprep.subr.mxu0 0.0
    %2698 = vmatpush1.msra.mxu0 0.0
    %2699 = vmatprep.mubr.f32.mxu0 0.0
    %2700 = vmatmul.mubr.f32.gmra.mrb[0].mxu0 %v2554
    %v2701 = vpop.f32.mrb[0].mxu0
    %v2702 = vadd.f32 0.0, %v2701
    %v2703 = vpop.f32.mrb[0].mxu0
    %2704 = vmatprep.mubr.f32.mxu0 0.0
    %2705 = vmatmul.mubr.f32.gmra.mrb[0].mxu0 %v2555
    %v2706 = vpop.f32.mrb[0].mxu0
    %v2707 = vadd.f32 0.0, %v2706
    %v2708 = vpop.f32.mrb[0].mxu0
    %2709 = vmatprep.mubr.f32.mxu0 0.0
    %2710 = vmatmul.mubr.f32.gmra.mrb[0].mxu0 %v2556
    %v2711 = vpop.f32.mrb[0].mxu0
    %v2712 = vadd.f32 0.0, %v2711
    %v2713 = vpop.f32.mrb[0].mxu0
    %2714 = vmatprep.mubr.f32.mxu0 0.0
    %2715 = vmatmul.mubr.f32.gmra.mrb[0].mxu0 %v2557
    %v2716 = vpop.f32.mrb[0].mxu0
    %v2717 = vadd.f32 0.0, %v2716
    %v2718 = vpop.f32.mrb[0].mxu0
    %2719 = vmatprep.mubr.f32.mxu0 0.0
    %2720 = vmatmul.mubr.f32.gmra.mrb[0].mxu0 %v2558
    %v2721 = vpop.f32.mrb[0].mxu0
    %v2722 = vadd.f32 0.0, %v2721
    %v2723 = vpop.f32.mrb[0].mxu0
    %2724 = vmatprep.mubr.f32.mxu0 0.0
    %2725 = vmatmul.mubr.f32.gmra.mrb[0].mxu0 %v2559
    %v2726 = vpop.f32.mrb[0].mxu0
    %v2727 = vadd.f32 0.0, %v2726
    %v2728 = vpop.f32.mrb[0].mxu0
    %2729 = vmatprep.mubr.f32.mxu0 0.0
    %2730 = vmatmul.mubr.f32.gmra.mrb[0].mxu0 %v2560
    %v2731 = vpop.f32.mrb[0].mxu0
    %v2732 = vadd.f32 0.0, %v2731
    %v2733 = vpop.f32.mrb[0].mxu0
    %2734 = vmatprep.mubr.f32.mxu0 0.0
    %2735 = vmatmul.mubr.f32.gmra.mrb[0].mxu0 %v2561
    %v2736 = vpop.f32.mrb[0].mxu0
    %v2737 = vadd.f32 0.0, %v2736
    %v2738 = vpop.f32.mrb[0].mxu0
    %2739 = vmatprep.mubr.f32.mxu0 0.0
    %2740 = vmatmul.mubr.f32.gmra.mrb[0].mxu0 %v2562
    %v2741 = vpop.f32.mrb[0].mxu0
    %v2742 = vadd.f32 0.0, %v2741
    %v2743 = vpop.f32.mrb[0].mxu0
    %2744 = vmatprep.mubr.f32.mxu0 0.0
    %2745 = vmatmul.mubr.f32.gmra.mrb[0].mxu0 %v2563
    %v2746 = vpop.f32.mrb[0].mxu0
    %v2747 = vadd.f32 0.0, %v2746
    %v2748 = vpop.f32.mrb[0].mxu0
    %2749 = vmatprep.mubr.f32.mxu0 0.0
    %2750 = vmatmul.mubr.f32.gmra.mrb[0].mxu0 %v2564
    %v2751 = vpop.f32.mrb[0].mxu0
    %v2752 = vadd.f32 0.0, %v2751
    %v2753 = vpop.f32.mrb[0].mxu0
    %2754 = vmatprep.mubr.f32.mxu0 0.0
    %2755 = vmatmul.mubr.f32.gmra.mrb[0].mxu0 %v2565
    %v2756 = vpop.f32.mrb[0].mxu0
    %v2757 = vadd.f32 0.0, %v2756
    %v2758 = vpop.f32.mrb[0].mxu0
    %2759 = vmatprep.mubr.f32.mxu0 0.0
    %2760 = vmatmul.mubr.f32.gmra.mrb[0].mxu0 %v2566
    %v2761 = vpop.f32.mrb[0].mxu0
    %v2762 = vadd.f32 0.0, %v2761
    %v2763 = vpop.f32.mrb[0].mxu0
    %2764 = vmatprep.mubr.f32.mxu0 0.0
    %2765 = vmatmul.mubr.f32.gmra.mrb[0].mxu0 %v2567
    %v2766 = vpop.f32.mrb[0].mxu0
    %v2767 = vadd.f32 0.0, %v2766
    %v2768 = vpop.f32.mrb[0].mxu0
    %2769 = vmatprep.mubr.f32.mxu0 0.0
    %2770 = vmatmul.mubr.f32.gmra.mrb[0].mxu0 %v2568
    %v2771 = vpop.f32.mrb[0].mxu0
    %v2772 = vadd.f32 0.0, %v2771
    %v2773 = vpop.f32.mrb[0].mxu0
    %2774 = vmatprep.mubr.f32.mxu0 0.0
    %2775 = vmatmul.mubr.f32.gmra.mrb[0].mxu0 %v2569
    %v2776 = vpop.f32.mrb[0].mxu0
    %v2777 = vadd.f32 0.0, %v2776
    %v2778 = vpop.f32.mrb[0].mxu0
    %2779 = vmatprep.mubr.f32.mxu0 0.0
    %2780 = vmatmul.mubr.f32.gmra.mrb[0].mxu0 %v2570
    %v2781 = vpop.f32.mrb[0].mxu0
    %v2782 = vadd.f32 0.0, %v2781
    %v2783 = vpop.f32.mrb[0].mxu0
    %2784 = vmatprep.mubr.f32.mxu0 0.0
    %2785 = vmatmul.mubr.f32.gmra.mrb[0].mxu0 %v2571
    %v2786 = vpop.f32.mrb[0].mxu0
    %v2787 = vadd.f32 0.0, %v2786
    %v2788 = vpop.f32.mrb[0].mxu0
    %2789 = vmatprep.mubr.f32.mxu0 0.0
    %2790 = vmatmul.mubr.f32.gmra.mrb[0].mxu0 %v2572
    %v2791 = vpop.f32.mrb[0].mxu0
    %v2792 = vadd.f32 0.0, %v2791
    %v2793 = vpop.f32.mrb[0].mxu0
    %2794 = vmatprep.mubr.f32.mxu0 0.0
    %2795 = vmatmul.mubr.f32.gmra.mrb[0].mxu0 %v2573
    %v2796 = vpop.f32.mrb[0].mxu0
    %v2797 = vadd.f32 0.0, %v2796
    %v2798 = vpop.f32.mrb[0].mxu0
    %2799 = vmatprep.mubr.f32.mxu0 0.0
    %2800 = vmatmul.mubr.f32.gmra.mrb[0].mxu0 %v2574
    %v2801 = vpop.f32.mrb[0].mxu0
    %v2802 = vadd.f32 0.0, %v2801
    %v2803 = vpop.f32.mrb[0].mxu0
    %2804 = vmatprep.mubr.f32.mxu0 0.0
    %2805 = vmatmul.mubr.f32.gmra.mrb[0].mxu0 %v2575
    %v2806 = vpop.f32.mrb[0].mxu0
    %v2807 = vadd.f32 0.0, %v2806
    %v2808 = vpop.f32.mrb[0].mxu0
    %2809 = vmatprep.mubr.f32.mxu0 0.0
    %2810 = vmatmul.mubr.f32.gmra.mrb[0].mxu0 %v2576
    %v2811 = vpop.f32.mrb[0].mxu0
    %v2812 = vadd.f32 0.0, %v2811
    %v2813 = vpop.f32.mrb[0].mxu0
    %2814 = vmatprep.mubr.f32.mxu0 0.0
    %2815 = vmatmul.mubr.f32.gmra.mrb[0].mxu0 %v2577
    %v2816 = vpop.f32.mrb[0].mxu0
    %v2817 = vadd.f32 0.0, %v2816
    %v2818 = vpop.f32.mrb[0].mxu0
    %2819 = vmatprep.mubr.f32.mxu0 0.0
    %2820 = vmatmul.mubr.f32.gmra.mrb[0].mxu0 %v2578
    %v2821 = vpop.f32.mrb[0].mxu0
    %v2822 = vadd.f32 0.0, %v2821
    %v2823 = vpop.f32.mrb[0].mxu0
    %2824 = vmatprep.mubr.f32.mxu0 0.0
    %2825 = vmatmul.mubr.f32.gmra.mrb[0].mxu0 %v2579
    %v2826 = vpop.f32.mrb[0].mxu0
    %v2827 = vadd.f32 0.0, %v2826
    %v2828 = vpop.f32.mrb[0].mxu0
    %2829 = vmatprep.mubr.f32.mxu0 0.0
    %2830 = vmatmul.mubr.f32.gmra.mrb[0].mxu0 %v2580
    %v2831 = vpop.f32.mrb[0].mxu0
    %v2832 = vadd.f32 0.0, %v2831
    %v2833 = vpop.f32.mrb[0].mxu0
    %2834 = vmatprep.mubr.f32.mxu0 0.0
    %2835 = vmatmul.mubr.f32.gmra.mrb[0].mxu0 %v2581
    %v2836 = vpop.f32.mrb[0].mxu0
    %v2837 = vadd.f32 0.0, %v2836
    %v2838 = vpop.f32.mrb[0].mxu0
    %2839 = vmatprep.mubr.f32.mxu0 0.0
    %2840 = vmatmul.mubr.f32.gmra.mrb[0].mxu0 %v2582
    %v2841 = vpop.f32.mrb[0].mxu0
    %v2842 = vadd.f32 0.0, %v2841
    %v2843 = vpop.f32.mrb[0].mxu0
    %2844 = vmatprep.mubr.f32.mxu0 0.0
    %2845 = vmatmul.mubr.f32.gmra.mrb[0].mxu0 %v2583
    %v2846 = vpop.f32.mrb[0].mxu0
    %v2847 = vadd.f32 0.0, %v2846
    %v2848 = vpop.f32.mrb[0].mxu0
    %2849 = vmatprep.mubr.f32.mxu0 0.0
    %2850 = vmatmul.mubr.f32.gmra.mrb[0].mxu0 %v2584
    %v2851 = vpop.f32.mrb[0].mxu0
    %v2852 = vadd.f32 0.0, %v2851
    %v2853 = vpop.f32.mrb[0].mxu0
    %2854 = vmatprep.mubr.f32.mxu0 0.0
    %2855 = vmatmul.mubr.f32.gmra.mrb[0].mxu0 %v2585
    %v2856 = vpop.f32.mrb[0].mxu0
    %v2857 = vadd.f32 0.0, %v2856
    %v2858 = vpop.f32.mrb[0].mxu0
    %2859 = vmatprep.mubr.f32.mxu0 0.0
    %2860 = vmatmul.mubr.f32.gmra.mrb[0].mxu0 %v2586
    %v2861 = vpop.f32.mrb[0].mxu0
    %v2862 = vadd.f32 0.0, %v2861
    %v2863 = vpop.f32.mrb[0].mxu0
    %2864 = vmatprep.mubr.f32.mxu0 0.0
    %2865 = vmatmul.mubr.f32.gmra.mrb[0].mxu0 %v2587
    %v2866 = vpop.f32.mrb[0].mxu0
    %v2867 = vadd.f32 0.0, %v2866
    %v2868 = vpop.f32.mrb[0].mxu0
    %2869 = vmatprep.mubr.f32.mxu0 0.0
    %2870 = vmatmul.mubr.f32.gmra.mrb[0].mxu0 %v2588
    %v2871 = vpop.f32.mrb[0].mxu0
    %v2872 = vadd.f32 0.0, %v2871
    %v2873 = vpop.f32.mrb[0].mxu0
    %2874 = vmatprep.mubr.f32.mxu0 0.0
    %2875 = vmatmul.mubr.f32.gmra.mrb[0].mxu0 %v2589
    %v2876 = vpop.f32.mrb[0].mxu0
    %v2877 = vadd.f32 0.0, %v2876
    %v2878 = vpop.f32.mrb[0].mxu0
    %2879 = vmatprep.mubr.f32.mxu0 0.0
    %2880 = vmatmul.mubr.f32.gmra.mrb[0].mxu0 %v2590
    %v2881 = vpop.f32.mrb[0].mxu0
    %v2882 = vadd.f32 0.0, %v2881
    %v2883 = vpop.f32.mrb[0].mxu0
    %2884 = vmatprep.mubr.f32.mxu0 0.0
    %2885 = vmatmul.mubr.f32.gmra.mrb[0].mxu0 %v2591
    %v2886 = vpop.f32.mrb[0].mxu0
    %v2887 = vadd.f32 0.0, %v2886
    %v2888 = vpop.f32.mrb[0].mxu0
    %2889 = vmatprep.mubr.f32.mxu0 0.0
    %2890 = vmatmul.mubr.f32.gmra.mrb[0].mxu0 %v2592
    %v2891 = vpop.f32.mrb[0].mxu0
    %v2892 = vadd.f32 0.0, %v2891
    %v2893 = vpop.f32.mrb[0].mxu0
    %2894 = vmatprep.mubr.f32.mxu0 0.0
    %2895 = vmatmul.mubr.f32.gmra.mrb[0].mxu0 %v2593
    %v2896 = vpop.f32.mrb[0].mxu0
    %v2897 = vadd.f32 0.0, %v2896
    %v2898 = vpop.f32.mrb[0].mxu0
    %2899 = vmatprep.mubr.f32.mxu0 0.0
    %2900 = vmatmul.mubr.f32.gmra.mrb[0].mxu0 %v2594
    %v2901 = vpop.f32.mrb[0].mxu0
    %v2902 = vadd.f32 0.0, %v2901
    %v2903 = vpop.f32.mrb[0].mxu0
    %2904 = vmatprep.mubr.f32.mxu0 0.0
    %2905 = vmatmul.mubr.f32.gmra.mrb[0].mxu0 %v2595
    %v2906 = vpop.f32.mrb[0].mxu0
    %v2907 = vadd.f32 0.0, %v2906
    %v2908 = vpop.f32.mrb[0].mxu0
    %2909 = vmatprep.mubr.f32.mxu0 0.0
    %2910 = vmatmul.mubr.f32.gmra.mrb[0].mxu0 %v2596
    %v2911 = vpop.f32.mrb[0].mxu0
    %v2912 = vadd.f32 0.0, %v2911
    %v2913 = vpop.f32.mrb[0].mxu0
    %2914 = vmatprep.mubr.f32.mxu0 0.0
    %2915 = vmatmul.mubr.f32.gmra.mrb[0].mxu0 %v2597
    %v2916 = vpop.f32.mrb[0].mxu0
    %v2917 = vadd.f32 0.0, %v2916
    %v2918 = vpop.f32.mrb[0].mxu0
    %2919 = vmatprep.mubr.f32.mxu0 0.0
    %2920 = vmatmul.mubr.f32.gmra.mrb[0].mxu0 %v2598
    %v2921 = vpop.f32.mrb[0].mxu0
    %v2922 = vadd.f32 0.0, %v2921
    %v2923 = vpop.f32.mrb[0].mxu0
    %2924 = vmatprep.mubr.f32.mxu0 0.0
    %2925 = vmatmul.mubr.f32.gmra.mrb[0].mxu0 %v2599
    %v2926 = vpop.f32.mrb[0].mxu0
    %v2927 = vadd.f32 0.0, %v2926
    %v2928 = vpop.f32.mrb[0].mxu0
    %2929 = vmatprep.mubr.f32.mxu0 0.0
    %2930 = vmatmul.mubr.f32.gmra.mrb[0].mxu0 %v2600
    %v2931 = vpop.f32.mrb[0].mxu0
    %v2932 = vadd.f32 0.0, %v2931
    %v2933 = vpop.f32.mrb[0].mxu0
    %2934 = vmatprep.mubr.f32.mxu0 0.0
    %2935 = vmatmul.mubr.f32.gmra.mrb[0].mxu0 %v2601
    %v2936 = vpop.f32.mrb[0].mxu0
    %v2937 = vadd.f32 0.0, %v2936
    %v2938 = vpop.f32.mrb[0].mxu0
    %2939 = vmatprep.mubr.f32.mxu0 0.0
    %2940 = vmatmul.mubr.f32.gmra.mrb[0].mxu0 %v2602
    %v2941 = vpop.f32.mrb[0].mxu0
    %v2942 = vadd.f32 0.0, %v2941
    %v2943 = vpop.f32.mrb[0].mxu0
    %2944 = vmatprep.mubr.f32.mxu0 0.0
    %2945 = vmatmul.mubr.f32.gmra.mrb[0].mxu0 %v2603
    %v2946 = vpop.f32.mrb[0].mxu0
    %v2947 = vadd.f32 0.0, %v2946
    %v2948 = vpop.f32.mrb[0].mxu0
    %2949 = vmatprep.mubr.f32.mxu0 0.0
    %2950 = vmatmul.mubr.f32.gmra.mrb[0].mxu0 %v2604
    %v2951 = vpop.f32.mrb[0].mxu0
    %v2952 = vadd.f32 0.0, %v2951
    %v2953 = vpop.f32.mrb[0].mxu0
    %2954 = vmatprep.mubr.f32.mxu0 0.0
    %2955 = vmatmul.mubr.f32.gmra.mrb[0].mxu0 %v2605
    %v2956 = vpop.f32.mrb[0].mxu0
    %v2957 = vadd.f32 0.0, %v2956
    %v2958 = vpop.f32.mrb[0].mxu0
    %2959 = vmatprep.mubr.f32.mxu0 0.0
    %2960 = vmatmul.mubr.f32.gmra.mrb[0].mxu0 %v2606
    %v2961 = vpop.f32.mrb[0].mxu0
    %v2962 = vadd.f32 0.0, %v2961
    %v2963 = vpop.f32.mrb[0].mxu0
    %2964 = vmatprep.mubr.f32.mxu0 0.0
    %2965 = vmatmul.mubr.f32.gmra.mrb[0].mxu0 %v2607
    %v2966 = vpop.f32.mrb[0].mxu0
    %v2967 = vadd.f32 0.0, %v2966
    %v2968 = vpop.f32.mrb[0].mxu0
    %2969 = vmatprep.mubr.f32.mxu0 0.0
    %2970 = vmatmul.mubr.f32.gmra.mrb[0].mxu0 %v2608
    %v2971 = vpop.f32.mrb[0].mxu0
    %v2972 = vadd.f32 0.0, %v2971
    %v2973 = vpop.f32.mrb[0].mxu0
    %2974 = vmatprep.mubr.f32.mxu0 0.0
    %2975 = vmatmul.mubr.f32.gmra.mrb[0].mxu0 %v2609
    %v2976 = vpop.f32.mrb[0].mxu0
    %v2977 = vadd.f32 0.0, %v2976
    %v2978 = vpop.f32.mrb[0].mxu0
    %2979 = vmatprep.mubr.f32.mxu0 0.0
    %2980 = vmatmul.mubr.f32.gmra.mrb[0].mxu0 %v2610
    %v2981 = vpop.f32.mrb[0].mxu0
    %v2982 = vadd.f32 0.0, %v2981
    %v2983 = vpop.f32.mrb[0].mxu0
    %2984 = vmatprep.mubr.f32.mxu0 0.0
    %2985 = vmatmul.mubr.f32.gmra.mrb[0].mxu0 %v2611
    %v2986 = vpop.f32.mrb[0].mxu0
    %v2987 = vadd.f32 0.0, %v2986
    %v2988 = vpop.f32.mrb[0].mxu0
    %2989 = vmatprep.mubr.f32.mxu0 0.0
    %2990 = vmatmul.mubr.f32.gmra.mrb[0].mxu0 %v2612
    %v2991 = vpop.f32.mrb[0].mxu0
    %v2992 = vadd.f32 0.0, %v2991
    %v2993 = vpop.f32.mrb[0].mxu0
    %2994 = vmatprep.mubr.f32.mxu0 0.0
    %2995 = vmatmul.mubr.f32.gmra.mrb[0].mxu0 %v2613
    %v2996 = vpop.f32.mrb[0].mxu0
    %v2997 = vadd.f32 0.0, %v2996
    %v2998 = vpop.f32.mrb[0].mxu0
    %2999 = vmatprep.mubr.f32.mxu0 0.0
    %3000 = vmatmul.mubr.f32.gmra.mrb[0].mxu0 %v2614
    %v3001 = vpop.f32.mrb[0].mxu0
    %v3002 = vadd.f32 0.0, %v3001
    %v3003 = vpop.f32.mrb[0].mxu0
    %3004 = vmatprep.mubr.f32.mxu0 0.0
    %3005 = vmatmul.mubr.f32.gmra.mrb[0].mxu0 %v2615
    %v3006 = vpop.f32.mrb[0].mxu0
    %v3007 = vadd.f32 0.0, %v3006
    %v3008 = vpop.f32.mrb[0].mxu0
    %3009 = vmatprep.mubr.f32.mxu0 0.0
    %3010 = vmatmul.mubr.f32.gmra.mrb[0].mxu0 %v2616
    %v3011 = vpop.f32.mrb[0].mxu0
    %v3012 = vadd.f32 0.0, %v3011
    %v3013 = vpop.f32.mrb[0].mxu0
    %3014 = vmatprep.mubr.f32.mxu0 0.0
    %3015 = vmatmul.mubr.f32.gmra.mrb[0].mxu0 %v2617
    %v3016 = vpop.f32.mrb[0].mxu0
    %v3017 = vadd.f32 0.0, %v3016
    %v3018 = vpop.f32.mrb[0].mxu0
    %3019 = vdwg.mxu0
    %v3020 = vadd.f32 %v2490, %v2702
    %v3021 = vadd.f32 %v2491, %v2707
    %v3022 = vadd.f32 %v2492, %v2712
    %v3023 = vadd.f32 %v2493, %v2717
    %v3024 = vadd.f32 %v2494, %v2722
    %v3025 = vadd.f32 %v2495, %v2727
    %v3026 = vadd.f32 %v2496, %v2732
    %v3027 = vadd.f32 %v2497, %v2737
    %v3028 = vadd.f32 %v2498, %v2742
    %v3029 = vadd.f32 %v2499, %v2747
    %v3030 = vadd.f32 %v2500, %v2752
    %v3031 = vadd.f32 %v2501, %v2757
    %v3032 = vadd.f32 %v2502, %v2762
    %v3033 = vadd.f32 %v2503, %v2767
    %v3034 = vadd.f32 %v2504, %v2772
    %v3035 = vadd.f32 %v2505, %v2777
    %v3036 = vadd.f32 %v2506, %v2782
    %v3037 = vadd.f32 %v2507, %v2787
    %v3038 = vadd.f32 %v2508, %v2792
    %v3039 = vadd.f32 %v2509, %v2797
    %v3040 = vadd.f32 %v2510, %v2802
    %v3041 = vadd.f32 %v2511, %v2807
    %v3042 = vadd.f32 %v2512, %v2812
    %v3043 = vadd.f32 %v2513, %v2817
    %v3044 = vadd.f32 %v2514, %v2822
    %v3045 = vadd.f32 %v2515, %v2827
    %v3046 = vadd.f32 %v2516, %v2832
    %v3047 = vadd.f32 %v2517, %v2837
    %v3048 = vadd.f32 %v2518, %v2842
    %v3049 = vadd.f32 %v2519, %v2847
    %v3050 = vadd.f32 %v2520, %v2852
    %v3051 = vadd.f32 %v2521, %v2857
    %v3052 = vadd.f32 %v2522, %v2862
    %v3053 = vadd.f32 %v2523, %v2867
    %v3054 = vadd.f32 %v2524, %v2872
    %v3055 = vadd.f32 %v2525, %v2877
    %v3056 = vadd.f32 %v2526, %v2882
    %v3057 = vadd.f32 %v2527, %v2887
    %v3058 = vadd.f32 %v2528, %v2892
    %v3059 = vadd.f32 %v2529, %v2897
    %v3060 = vadd.f32 %v2530, %v2902
    %v3061 = vadd.f32 %v2531, %v2907
    %v3062 = vadd.f32 %v2532, %v2912
    %v3063 = vadd.f32 %v2533, %v2917
    %v3064 = vadd.f32 %v2534, %v2922
    %v3065 = vadd.f32 %v2535, %v2927
    %v3066 = vadd.f32 %v2536, %v2932
    %v3067 = vadd.f32 %v2537, %v2937
    %v3068 = vadd.f32 %v2538, %v2942
    %v3069 = vadd.f32 %v2539, %v2947
    %v3070 = vadd.f32 %v2540, %v2952
    %v3071 = vadd.f32 %v2541, %v2957
    %v3072 = vadd.f32 %v2542, %v2962
    %v3073 = vadd.f32 %v2543, %v2967
    %v3074 = vadd.f32 %v2544, %v2972
    %v3075 = vadd.f32 %v2545, %v2977
    %v3076 = vadd.f32 %v2546, %v2982
    %v3077 = vadd.f32 %v2547, %v2987
    %v3078 = vadd.f32 %v2548, %v2992
    %v3079 = vadd.f32 %v2549, %v2997
    %v3080 = vadd.f32 %v2550, %v3002
    %v3081 = vadd.f32 %v2551, %v3007
    %v3082 = vadd.f32 %v2552, %v3012
    %v3083 = vadd.f32 %v2553, %v3017
    %s3084 = scalar_lea.vmem %s0, 48
    %v3085 = vld [vmem:[%s3084] sm:$0xff]
    %v3086 = vld [vmem:[%s3084 + $0x8] sm:$0xff]
    %v3087 = vld [vmem:[%s3084 + $0x18] sm:$0xff]
    %v3088 = vld [vmem:[%s3084 + $0x20] sm:$0xff]
    %v3089 = vld [vmem:[%s3084 + $0x30] sm:$0xff]
    %v3090 = vld [vmem:[%s3084 + $0x38] sm:$0xff]
    %v3091 = vld [vmem:[%s3084 + $0x48] sm:$0xff]
    %v3092 = vld [vmem:[%s3084 + $0x50] sm:$0xff]
    %v3093 = vld [vmem:[%s3084 + $0x60] sm:$0xff]
    %v3094 = vld [vmem:[%s3084 + $0x68] sm:$0xff]
    %v3095 = vld [vmem:[%s3084 + $0x78] sm:$0xff]
    %v3096 = vld [vmem:[%s3084 + $0x80] sm:$0xff]
    %v3097 = vld [vmem:[%s3084 + $0x90] sm:$0xff]
    %v3098 = vld [vmem:[%s3084 + $0x98] sm:$0xff]
    %v3099 = vld [vmem:[%s3084 + $0xa8] sm:$0xff]
    %v3100 = vld [vmem:[%s3084 + $0xb0] sm:$0xff]
    %v3101 = vld [vmem:[%s3084 + $0xc0] sm:$0xff]
    %v3102 = vld [vmem:[%s3084 + $0xc8] sm:$0xff]
    %v3103 = vld [vmem:[%s3084 + $0xd8] sm:$0xff]
    %v3104 = vld [vmem:[%s3084 + $0xe0] sm:$0xff]
    %v3105 = vld [vmem:[%s3084 + $0xf0] sm:$0xff]
    %v3106 = vld [vmem:[%s3084 + $0xf8] sm:$0xff]
    %v3107 = vld [vmem:[%s3084 + $0x108] sm:$0xff]
    %v3108 = vld [vmem:[%s3084 + $0x110] sm:$0xff]
    %v3109 = vld [vmem:[%s3084 + $0x120] sm:$0xff]
    %v3110 = vld [vmem:[%s3084 + $0x128] sm:$0xff]
    %v3111 = vld [vmem:[%s3084 + $0x138] sm:$0xff]
    %v3112 = vld [vmem:[%s3084 + $0x140] sm:$0xff]
    %v3113 = vld [vmem:[%s3084 + $0x150] sm:$0xff]
    %v3114 = vld [vmem:[%s3084 + $0x158] sm:$0xff]
    %v3115 = vld [vmem:[%s3084 + $0x168] sm:$0xff]
    %v3116 = vld [vmem:[%s3084 + $0x170] sm:$0xff]
    %v3117 = vld [vmem:[%s3084 + $0x1b0] sm:$0xff]
    %v3118 = vld [vmem:[%s3084 + $0x1b8] sm:$0xff]
    %v3119 = vld [vmem:[%s3084 + $0x1c8] sm:$0xff]
    %v3120 = vld [vmem:[%s3084 + $0x1d0] sm:$0xff]
    %v3121 = vld [vmem:[%s3084 + $0x1e0] sm:$0xff]
    %v3122 = vld [vmem:[%s3084 + $0x1e8] sm:$0xff]
    %v3123 = vld [vmem:[%s3084 + $0x1f8] sm:$0xff]
    %v3124 = vld [vmem:[%s3084 + $0x200] sm:$0xff]
    %v3125 = vld [vmem:[%s3084 + $0x210] sm:$0xff]
    %v3126 = vld [vmem:[%s3084 + $0x218] sm:$0xff]
    %v3127 = vld [vmem:[%s3084 + $0x228] sm:$0xff]
    %v3128 = vld [vmem:[%s3084 + $0x230] sm:$0xff]
    %v3129 = vld [vmem:[%s3084 + $0x240] sm:$0xff]
    %v3130 = vld [vmem:[%s3084 + $0x248] sm:$0xff]
    %v3131 = vld [vmem:[%s3084 + $0x258] sm:$0xff]
    %v3132 = vld [vmem:[%s3084 + $0x260] sm:$0xff]
    %v3133 = vld [vmem:[%s3084 + $0x270] sm:$0xff]
    %v3134 = vld [vmem:[%s3084 + $0x278] sm:$0xff]
    %v3135 = vld [vmem:[%s3084 + $0x288] sm:$0xff]
    %v3136 = vld [vmem:[%s3084 + $0x290] sm:$0xff]
    %v3137 = vld [vmem:[%s3084 + $0x2a0] sm:$0xff]
    %v3138 = vld [vmem:[%s3084 + $0x2a8] sm:$0xff]
    %v3139 = vld [vmem:[%s3084 + $0x2b8] sm:$0xff]
    %v3140 = vld [vmem:[%s3084 + $0x2c0] sm:$0xff]
    %v3141 = vld [vmem:[%s3084 + $0x2d0] sm:$0xff]
    %v3142 = vld [vmem:[%s3084 + $0x2d8] sm:$0xff]
    %v3143 = vld [vmem:[%s3084 + $0x2e8] sm:$0xff]
    %v3144 = vld [vmem:[%s3084 + $0x2f0] sm:$0xff]
    %v3145 = vld [vmem:[%s3084 + $0x300] sm:$0xff]
    %v3146 = vld [vmem:[%s3084 + $0x308] sm:$0xff]
    %v3147 = vld [vmem:[%s3084 + $0x318] sm:$0xff]
    %v3148 = vld [vmem:[%s3084 + $0x320] sm:$0xff]
    %s3149 = scalar_lea.vmem %s1, 768
    %v3150 = vld [vmem:[%s3149] sm:$0xff]
    %v3151 = vld [vmem:[%s3149 + $0x8] sm:$0xff]
    %v3152 = vld [vmem:[%s3149 + $0x10] sm:$0xff]
    %v3153 = vld [vmem:[%s3149 + $0x18] sm:$0xff]
    %v3154 = vld [vmem:[%s3149 + $0x20] sm:$0xff]
    %v3155 = vld [vmem:[%s3149 + $0x28] sm:$0xff]
    %v3156 = vld [vmem:[%s3149 + $0x30] sm:$0xff]
    %v3157 = vld [vmem:[%s3149 + $0x38] sm:$0xff]
    %v3158 = vld [vmem:[%s3149 + $0x40] sm:$0xff]
    %v3159 = vld [vmem:[%s3149 + $0x48] sm:$0xff]
    %v3160 = vld [vmem:[%s3149 + $0x50] sm:$0xff]
    %v3161 = vld [vmem:[%s3149 + $0x58] sm:$0xff]
    %v3162 = vld [vmem:[%s3149 + $0x60] sm:$0xff]
    %v3163 = vld [vmem:[%s3149 + $0x68] sm:$0xff]
    %v3164 = vld [vmem:[%s3149 + $0x70] sm:$0xff]
    %v3165 = vld [vmem:[%s3149 + $0x78] sm:$0xff]
    %3166 = vmatprep.subr.mxu0 0.0
    %3167 = vmatpush1.msra.mxu0 %v3150
    %3168 = vmatprep.subr.mxu0 0.0
    %3169 = vmatpush1.msra.mxu0 %v3151
    %3170 = vmatprep.subr.mxu0 0.0
    %3171 = vmatpush1.msra.mxu0 %v3152
    %3172 = vmatprep.subr.mxu0 0.0
    %3173 = vmatpush1.msra.mxu0 %v3153
    %3174 = vmatprep.subr.mxu0 0.0
    %3175 = vmatpush1.msra.mxu0 %v3154
    %3176 = vmatprep.subr.mxu0 0.0
    %3177 = vmatpush1.msra.mxu0 %v3155
    %3178 = vmatprep.subr.mxu0 0.0
    %3179 = vmatpush1.msra.mxu0 %v3156
    %3180 = vmatprep.subr.mxu0 0.0
    %3181 = vmatpush1.msra.mxu0 %v3157
    %3182 = vmatprep.subr.mxu0 0.0
    %3183 = vmatpush1.msra.mxu0 %v3158
    %3184 = vmatprep.subr.mxu0 0.0
    %3185 = vmatpush1.msra.mxu0 %v3159
    %3186 = vmatprep.subr.mxu0 0.0
    %3187 = vmatpush1.msra.mxu0 %v3160
    %3188 = vmatprep.subr.mxu0 0.0
    %3189 = vmatpush1.msra.mxu0 %v3161
    %3190 = vmatprep.subr.mxu0 0.0
    %3191 = vmatpush1.msra.mxu0 %v3162
    %3192 = vmatprep.subr.mxu0 0.0
    %3193 = vmatpush1.msra.mxu0 %v3163
    %3194 = vmatprep.subr.mxu0 0.0
    %3195 = vmatpush1.msra.mxu0 %v3164
    %3196 = vmatprep.subr.mxu0 0.0
    %3197 = vmatpush1.msra.mxu0 %v3165
    %3198 = vmatprep.subr.mxu0 0.0
    %3199 = vmatpush1.msra.mxu0 0.0
    %3200 = vmatprep.subr.mxu0 0.0
    %3201 = vmatpush1.msra.mxu0 0.0
    %3202 = vmatprep.subr.mxu0 0.0
    %3203 = vmatpush1.msra.mxu0 0.0
    %3204 = vmatprep.subr.mxu0 0.0
    %3205 = vmatpush1.msra.mxu0 0.0
    %3206 = vmatprep.subr.mxu0 0.0
    %3207 = vmatpush1.msra.mxu0 0.0
    %3208 = vmatprep.subr.mxu0 0.0
    %3209 = vmatpush1.msra.mxu0 0.0
    %3210 = vmatprep.subr.mxu0 0.0
    %3211 = vmatpush1.msra.mxu0 0.0
    %3212 = vmatprep.subr.mxu0 0.0
    %3213 = vmatpush1.msra.mxu0 0.0
    %3214 = vmatprep.subr.mxu0 0.0
    %3215 = vmatpush1.msra.mxu0 0.0
    %3216 = vmatprep.subr.mxu0 0.0
    %3217 = vmatpush1.msra.mxu0 0.0
    %3218 = vmatprep.subr.mxu0 0.0
    %3219 = vmatpush1.msra.mxu0 0.0
    %3220 = vmatprep.subr.mxu0 0.0
    %3221 = vmatpush1.msra.mxu0 0.0
    %3222 = vmatprep.subr.mxu0 0.0
    %3223 = vmatpush1.msra.mxu0 0.0
    %3224 = vmatprep.subr.mxu0 0.0
    %3225 = vmatpush1.msra.mxu0 0.0
    %3226 = vmatprep.subr.mxu0 0.0
    %3227 = vmatpush1.msra.mxu0 0.0
    %3228 = vmatprep.subr.mxu0 0.0
    %3229 = vmatpush1.msra.mxu0 0.0
    %3230 = vmatprep.mubr.f32.mxu0 0.0
    %3231 = vmatmul.mubr.f32.gmra.mrb[0].mxu0 %v3085
    %v3232 = vpop.f32.mrb[0].mxu0
    %v3233 = vadd.f32 0.0, %v3232
    %v3234 = vpop.f32.mrb[0].mxu0
    %3235 = vmatprep.mubr.f32.mxu0 0.0
    %3236 = vmatmul.mubr.f32.gmra.mrb[0].mxu0 %v3086
    %v3237 = vpop.f32.mrb[0].mxu0
    %v3238 = vadd.f32 0.0, %v3237
    %v3239 = vpop.f32.mrb[0].mxu0
    %3240 = vmatprep.mubr.f32.mxu0 0.0
    %3241 = vmatmul.mubr.f32.gmra.mrb[0].mxu0 %v3087
    %v3242 = vpop.f32.mrb[0].mxu0
    %v3243 = vadd.f32 0.0, %v3242
    %v3244 = vpop.f32.mrb[0].mxu0
    %3245 = vmatprep.mubr.f32.mxu0 0.0
    %3246 = vmatmul.mubr.f32.gmra.mrb[0].mxu0 %v3088
    %v3247 = vpop.f32.mrb[0].mxu0
    %v3248 = vadd.f32 0.0, %v3247
    %v3249 = vpop.f32.mrb[0].mxu0
    %3250 = vmatprep.mubr.f32.mxu0 0.0
    %3251 = vmatmul.mubr.f32.gmra.mrb[0].mxu0 %v3089
    %v3252 = vpop.f32.mrb[0].mxu0
    %v3253 = vadd.f32 0.0, %v3252
    %v3254 = vpop.f32.mrb[0].mxu0
    %3255 = vmatprep.mubr.f32.mxu0 0.0
    %3256 = vmatmul.mubr.f32.gmra.mrb[0].mxu0 %v3090
    %v3257 = vpop.f32.mrb[0].mxu0
    %v3258 = vadd.f32 0.0, %v3257
    %v3259 = vpop.f32.mrb[0].mxu0
    %3260 = vmatprep.mubr.f32.mxu0 0.0
    %3261 = vmatmul.mubr.f32.gmra.mrb[0].mxu0 %v3091
    %v3262 = vpop.f32.mrb[0].mxu0
    %v3263 = vadd.f32 0.0, %v3262
    %v3264 = vpop.f32.mrb[0].mxu0
    %3265 = vmatprep.mubr.f32.mxu0 0.0
    %3266 = vmatmul.mubr.f32.gmra.mrb[0].mxu0 %v3092
    %v3267 = vpop.f32.mrb[0].mxu0
    %v3268 = vadd.f32 0.0, %v3267
    %v3269 = vpop.f32.mrb[0].mxu0
    %3270 = vmatprep.mubr.f32.mxu0 0.0
    %3271 = vmatmul.mubr.f32.gmra.mrb[0].mxu0 %v3093
    %v3272 = vpop.f32.mrb[0].mxu0
    %v3273 = vadd.f32 0.0, %v3272
    %v3274 = vpop.f32.mrb[0].mxu0
    %3275 = vmatprep.mubr.f32.mxu0 0.0
    %3276 = vmatmul.mubr.f32.gmra.mrb[0].mxu0 %v3094
    %v3277 = vpop.f32.mrb[0].mxu0
    %v3278 = vadd.f32 0.0, %v3277
    %v3279 = vpop.f32.mrb[0].mxu0
    %3280 = vmatprep.mubr.f32.mxu0 0.0
    %3281 = vmatmul.mubr.f32.gmra.mrb[0].mxu0 %v3095
    %v3282 = vpop.f32.mrb[0].mxu0
    %v3283 = vadd.f32 0.0, %v3282
    %v3284 = vpop.f32.mrb[0].mxu0
    %3285 = vmatprep.mubr.f32.mxu0 0.0
    %3286 = vmatmul.mubr.f32.gmra.mrb[0].mxu0 %v3096
    %v3287 = vpop.f32.mrb[0].mxu0
    %v3288 = vadd.f32 0.0, %v3287
    %v3289 = vpop.f32.mrb[0].mxu0
    %3290 = vmatprep.mubr.f32.mxu0 0.0
    %3291 = vmatmul.mubr.f32.gmra.mrb[0].mxu0 %v3097
    %v3292 = vpop.f32.mrb[0].mxu0
    %v3293 = vadd.f32 0.0, %v3292
    %v3294 = vpop.f32.mrb[0].mxu0
    %3295 = vmatprep.mubr.f32.mxu0 0.0
    %3296 = vmatmul.mubr.f32.gmra.mrb[0].mxu0 %v3098
    %v3297 = vpop.f32.mrb[0].mxu0
    %v3298 = vadd.f32 0.0, %v3297
    %v3299 = vpop.f32.mrb[0].mxu0
    %3300 = vmatprep.mubr.f32.mxu0 0.0
    %3301 = vmatmul.mubr.f32.gmra.mrb[0].mxu0 %v3099
    %v3302 = vpop.f32.mrb[0].mxu0
    %v3303 = vadd.f32 0.0, %v3302
    %v3304 = vpop.f32.mrb[0].mxu0
    %3305 = vmatprep.mubr.f32.mxu0 0.0
    %3306 = vmatmul.mubr.f32.gmra.mrb[0].mxu0 %v3100
    %v3307 = vpop.f32.mrb[0].mxu0
    %v3308 = vadd.f32 0.0, %v3307
    %v3309 = vpop.f32.mrb[0].mxu0
    %3310 = vmatprep.mubr.f32.mxu0 0.0
    %3311 = vmatmul.mubr.f32.gmra.mrb[0].mxu0 %v3101
    %v3312 = vpop.f32.mrb[0].mxu0
    %v3313 = vadd.f32 0.0, %v3312
    %v3314 = vpop.f32.mrb[0].mxu0
    %3315 = vmatprep.mubr.f32.mxu0 0.0
    %3316 = vmatmul.mubr.f32.gmra.mrb[0].mxu0 %v3102
    %v3317 = vpop.f32.mrb[0].mxu0
    %v3318 = vadd.f32 0.0, %v3317
    %v3319 = vpop.f32.mrb[0].mxu0
    %3320 = vmatprep.mubr.f32.mxu0 0.0
    %3321 = vmatmul.mubr.f32.gmra.mrb[0].mxu0 %v3103
    %v3322 = vpop.f32.mrb[0].mxu0
    %v3323 = vadd.f32 0.0, %v3322
    %v3324 = vpop.f32.mrb[0].mxu0
    %3325 = vmatprep.mubr.f32.mxu0 0.0
    %3326 = vmatmul.mubr.f32.gmra.mrb[0].mxu0 %v3104
    %v3327 = vpop.f32.mrb[0].mxu0
    %v3328 = vadd.f32 0.0, %v3327
    %v3329 = vpop.f32.mrb[0].mxu0
    %3330 = vmatprep.mubr.f32.mxu0 0.0
    %3331 = vmatmul.mubr.f32.gmra.mrb[0].mxu0 %v3105
    %v3332 = vpop.f32.mrb[0].mxu0
    %v3333 = vadd.f32 0.0, %v3332
    %v3334 = vpop.f32.mrb[0].mxu0
    %3335 = vmatprep.mubr.f32.mxu0 0.0
    %3336 = vmatmul.mubr.f32.gmra.mrb[0].mxu0 %v3106
    %v3337 = vpop.f32.mrb[0].mxu0
    %v3338 = vadd.f32 0.0, %v3337
    %v3339 = vpop.f32.mrb[0].mxu0
    %3340 = vmatprep.mubr.f32.mxu0 0.0
    %3341 = vmatmul.mubr.f32.gmra.mrb[0].mxu0 %v3107
    %v3342 = vpop.f32.mrb[0].mxu0
    %v3343 = vadd.f32 0.0, %v3342
    %v3344 = vpop.f32.mrb[0].mxu0
    %3345 = vmatprep.mubr.f32.mxu0 0.0
    %3346 = vmatmul.mubr.f32.gmra.mrb[0].mxu0 %v3108
    %v3347 = vpop.f32.mrb[0].mxu0
    %v3348 = vadd.f32 0.0, %v3347
    %v3349 = vpop.f32.mrb[0].mxu0
    %3350 = vmatprep.mubr.f32.mxu0 0.0
    %3351 = vmatmul.mubr.f32.gmra.mrb[0].mxu0 %v3109
    %v3352 = vpop.f32.mrb[0].mxu0
    %v3353 = vadd.f32 0.0, %v3352
    %v3354 = vpop.f32.mrb[0].mxu0
    %3355 = vmatprep.mubr.f32.mxu0 0.0
    %3356 = vmatmul.mubr.f32.gmra.mrb[0].mxu0 %v3110
    %v3357 = vpop.f32.mrb[0].mxu0
    %v3358 = vadd.f32 0.0, %v3357
    %v3359 = vpop.f32.mrb[0].mxu0
    %3360 = vmatprep.mubr.f32.mxu0 0.0
    %3361 = vmatmul.mubr.f32.gmra.mrb[0].mxu0 %v3111
    %v3362 = vpop.f32.mrb[0].mxu0
    %v3363 = vadd.f32 0.0, %v3362
    %v3364 = vpop.f32.mrb[0].mxu0
    %3365 = vmatprep.mubr.f32.mxu0 0.0
    %3366 = vmatmul.mubr.f32.gmra.mrb[0].mxu0 %v3112
    %v3367 = vpop.f32.mrb[0].mxu0
    %v3368 = vadd.f32 0.0, %v3367
    %v3369 = vpop.f32.mrb[0].mxu0
    %3370 = vmatprep.mubr.f32.mxu0 0.0
    %3371 = vmatmul.mubr.f32.gmra.mrb[0].mxu0 %v3113
    %v3372 = vpop.f32.mrb[0].mxu0
    %v3373 = vadd.f32 0.0, %v3372
    %v3374 = vpop.f32.mrb[0].mxu0
    %3375 = vmatprep.mubr.f32.mxu0 0.0
    %3376 = vmatmul.mubr.f32.gmra.mrb[0].mxu0 %v3114
    %v3377 = vpop.f32.mrb[0].mxu0
    %v3378 = vadd.f32 0.0, %v3377
    %v3379 = vpop.f32.mrb[0].mxu0
    %3380 = vmatprep.mubr.f32.mxu0 0.0
    %3381 = vmatmul.mubr.f32.gmra.mrb[0].mxu0 %v3115
    %v3382 = vpop.f32.mrb[0].mxu0
    %v3383 = vadd.f32 0.0, %v3382
    %v3384 = vpop.f32.mrb[0].mxu0
    %3385 = vmatprep.mubr.f32.mxu0 0.0
    %3386 = vmatmul.mubr.f32.gmra.mrb[0].mxu0 %v3116
    %v3387 = vpop.f32.mrb[0].mxu0
    %v3388 = vadd.f32 0.0, %v3387
    %v3389 = vpop.f32.mrb[0].mxu0
    %3390 = vmatprep.mubr.f32.mxu0 0.0
    %3391 = vmatmul.mubr.f32.gmra.mrb[0].mxu0 %v3117
    %v3392 = vpop.f32.mrb[0].mxu0
    %v3393 = vadd.f32 0.0, %v3392
    %v3394 = vpop.f32.mrb[0].mxu0
    %3395 = vmatprep.mubr.f32.mxu0 0.0
    %3396 = vmatmul.mubr.f32.gmra.mrb[0].mxu0 %v3118
    %v3397 = vpop.f32.mrb[0].mxu0
    %v3398 = vadd.f32 0.0, %v3397
    %v3399 = vpop.f32.mrb[0].mxu0
    %3400 = vmatprep.mubr.f32.mxu0 0.0
    %3401 = vmatmul.mubr.f32.gmra.mrb[0].mxu0 %v3119
    %v3402 = vpop.f32.mrb[0].mxu0
    %v3403 = vadd.f32 0.0, %v3402
    %v3404 = vpop.f32.mrb[0].mxu0
    %3405 = vmatprep.mubr.f32.mxu0 0.0
    %3406 = vmatmul.mubr.f32.gmra.mrb[0].mxu0 %v3120
    %v3407 = vpop.f32.mrb[0].mxu0
    %v3408 = vadd.f32 0.0, %v3407
    %v3409 = vpop.f32.mrb[0].mxu0
    %3410 = vmatprep.mubr.f32.mxu0 0.0
    %3411 = vmatmul.mubr.f32.gmra.mrb[0].mxu0 %v3121
    %v3412 = vpop.f32.mrb[0].mxu0
    %v3413 = vadd.f32 0.0, %v3412
    %v3414 = vpop.f32.mrb[0].mxu0
    %3415 = vmatprep.mubr.f32.mxu0 0.0
    %3416 = vmatmul.mubr.f32.gmra.mrb[0].mxu0 %v3122
    %v3417 = vpop.f32.mrb[0].mxu0
    %v3418 = vadd.f32 0.0, %v3417
    %v3419 = vpop.f32.mrb[0].mxu0
    %3420 = vmatprep.mubr.f32.mxu0 0.0
    %3421 = vmatmul.mubr.f32.gmra.mrb[0].mxu0 %v3123
    %v3422 = vpop.f32.mrb[0].mxu0
    %v3423 = vadd.f32 0.0, %v3422
    %v3424 = vpop.f32.mrb[0].mxu0
    %3425 = vmatprep.mubr.f32.mxu0 0.0
    %3426 = vmatmul.mubr.f32.gmra.mrb[0].mxu0 %v3124
    %v3427 = vpop.f32.mrb[0].mxu0
    %v3428 = vadd.f32 0.0, %v3427
    %v3429 = vpop.f32.mrb[0].mxu0
    %3430 = vmatprep.mubr.f32.mxu0 0.0
    %3431 = vmatmul.mubr.f32.gmra.mrb[0].mxu0 %v3125
    %v3432 = vpop.f32.mrb[0].mxu0
    %v3433 = vadd.f32 0.0, %v3432
    %v3434 = vpop.f32.mrb[0].mxu0
    %3435 = vmatprep.mubr.f32.mxu0 0.0
    %3436 = vmatmul.mubr.f32.gmra.mrb[0].mxu0 %v3126
    %v3437 = vpop.f32.mrb[0].mxu0
    %v3438 = vadd.f32 0.0, %v3437
    %v3439 = vpop.f32.mrb[0].mxu0
    %3440 = vmatprep.mubr.f32.mxu0 0.0
    %3441 = vmatmul.mubr.f32.gmra.mrb[0].mxu0 %v3127
    %v3442 = vpop.f32.mrb[0].mxu0
    %v3443 = vadd.f32 0.0, %v3442
    %v3444 = vpop.f32.mrb[0].mxu0
    %3445 = vmatprep.mubr.f32.mxu0 0.0
    %3446 = vmatmul.mubr.f32.gmra.mrb[0].mxu0 %v3128
    %v3447 = vpop.f32.mrb[0].mxu0
    %v3448 = vadd.f32 0.0, %v3447
    %v3449 = vpop.f32.mrb[0].mxu0
    %3450 = vmatprep.mubr.f32.mxu0 0.0
    %3451 = vmatmul.mubr.f32.gmra.mrb[0].mxu0 %v3129
    %v3452 = vpop.f32.mrb[0].mxu0
    %v3453 = vadd.f32 0.0, %v3452
    %v3454 = vpop.f32.mrb[0].mxu0
    %3455 = vmatprep.mubr.f32.mxu0 0.0
    %3456 = vmatmul.mubr.f32.gmra.mrb[0].mxu0 %v3130
    %v3457 = vpop.f32.mrb[0].mxu0
    %v3458 = vadd.f32 0.0, %v3457
    %v3459 = vpop.f32.mrb[0].mxu0
    %3460 = vmatprep.mubr.f32.mxu0 0.0
    %3461 = vmatmul.mubr.f32.gmra.mrb[0].mxu0 %v3131
    %v3462 = vpop.f32.mrb[0].mxu0
    %v3463 = vadd.f32 0.0, %v3462
    %v3464 = vpop.f32.mrb[0].mxu0
    %3465 = vmatprep.mubr.f32.mxu0 0.0
    %3466 = vmatmul.mubr.f32.gmra.mrb[0].mxu0 %v3132
    %v3467 = vpop.f32.mrb[0].mxu0
    %v3468 = vadd.f32 0.0, %v3467
    %v3469 = vpop.f32.mrb[0].mxu0
    %3470 = vmatprep.mubr.f32.mxu0 0.0
    %3471 = vmatmul.mubr.f32.gmra.mrb[0].mxu0 %v3133
    %v3472 = vpop.f32.mrb[0].mxu0
    %v3473 = vadd.f32 0.0, %v3472
    %v3474 = vpop.f32.mrb[0].mxu0
    %3475 = vmatprep.mubr.f32.mxu0 0.0
    %3476 = vmatmul.mubr.f32.gmra.mrb[0].mxu0 %v3134
    %v3477 = vpop.f32.mrb[0].mxu0
    %v3478 = vadd.f32 0.0, %v3477
    %v3479 = vpop.f32.mrb[0].mxu0
    %3480 = vmatprep.mubr.f32.mxu0 0.0
    %3481 = vmatmul.mubr.f32.gmra.mrb[0].mxu0 %v3135
    %v3482 = vpop.f32.mrb[0].mxu0
    %v3483 = vadd.f32 0.0, %v3482
    %v3484 = vpop.f32.mrb[0].mxu0
    %3485 = vmatprep.mubr.f32.mxu0 0.0
    %3486 = vmatmul.mubr.f32.gmra.mrb[0].mxu0 %v3136
    %v3487 = vpop.f32.mrb[0].mxu0
    %v3488 = vadd.f32 0.0, %v3487
    %v3489 = vpop.f32.mrb[0].mxu0
    %3490 = vmatprep.mubr.f32.mxu0 0.0
    %3491 = vmatmul.mubr.f32.gmra.mrb[0].mxu0 %v3137
    %v3492 = vpop.f32.mrb[0].mxu0
    %v3493 = vadd.f32 0.0, %v3492
    %v3494 = vpop.f32.mrb[0].mxu0
    %3495 = vmatprep.mubr.f32.mxu0 0.0
    %3496 = vmatmul.mubr.f32.gmra.mrb[0].mxu0 %v3138
    %v3497 = vpop.f32.mrb[0].mxu0
    %v3498 = vadd.f32 0.0, %v3497
    %v3499 = vpop.f32.mrb[0].mxu0
    %3500 = vmatprep.mubr.f32.mxu0 0.0
    %3501 = vmatmul.mubr.f32.gmra.mrb[0].mxu0 %v3139
    %v3502 = vpop.f32.mrb[0].mxu0
    %v3503 = vadd.f32 0.0, %v3502
    %v3504 = vpop.f32.mrb[0].mxu0
    %3505 = vmatprep.mubr.f32.mxu0 0.0
    %3506 = vmatmul.mubr.f32.gmra.mrb[0].mxu0 %v3140
    %v3507 = vpop.f32.mrb[0].mxu0
    %v3508 = vadd.f32 0.0, %v3507
    %v3509 = vpop.f32.mrb[0].mxu0
    %3510 = vmatprep.mubr.f32.mxu0 0.0
    %3511 = vmatmul.mubr.f32.gmra.mrb[0].mxu0 %v3141
    %v3512 = vpop.f32.mrb[0].mxu0
    %v3513 = vadd.f32 0.0, %v3512
    %v3514 = vpop.f32.mrb[0].mxu0
    %3515 = vmatprep.mubr.f32.mxu0 0.0
    %3516 = vmatmul.mubr.f32.gmra.mrb[0].mxu0 %v3142
    %v3517 = vpop.f32.mrb[0].mxu0
    %v3518 = vadd.f32 0.0, %v3517
    %v3519 = vpop.f32.mrb[0].mxu0
    %3520 = vmatprep.mubr.f32.mxu0 0.0
    %3521 = vmatmul.mubr.f32.gmra.mrb[0].mxu0 %v3143
    %v3522 = vpop.f32.mrb[0].mxu0
    %v3523 = vadd.f32 0.0, %v3522
    %v3524 = vpop.f32.mrb[0].mxu0
    %3525 = vmatprep.mubr.f32.mxu0 0.0
    %3526 = vmatmul.mubr.f32.gmra.mrb[0].mxu0 %v3144
    %v3527 = vpop.f32.mrb[0].mxu0
    %v3528 = vadd.f32 0.0, %v3527
    %v3529 = vpop.f32.mrb[0].mxu0
    %3530 = vmatprep.mubr.f32.mxu0 0.0
    %3531 = vmatmul.mubr.f32.gmra.mrb[0].mxu0 %v3145
    %v3532 = vpop.f32.mrb[0].mxu0
    %v3533 = vadd.f32 0.0, %v3532
    %v3534 = vpop.f32.mrb[0].mxu0
    %3535 = vmatprep.mubr.f32.mxu0 0.0
    %3536 = vmatmul.mubr.f32.gmra.mrb[0].mxu0 %v3146
    %v3537 = vpop.f32.mrb[0].mxu0
    %v3538 = vadd.f32 0.0, %v3537
    %v3539 = vpop.f32.mrb[0].mxu0
    %3540 = vmatprep.mubr.f32.mxu0 0.0
    %3541 = vmatmul.mubr.f32.gmra.mrb[0].mxu0 %v3147
    %v3542 = vpop.f32.mrb[0].mxu0
    %v3543 = vadd.f32 0.0, %v3542
    %v3544 = vpop.f32.mrb[0].mxu0
    %3545 = vmatprep.mubr.f32.mxu0 0.0
    %3546 = vmatmul.mubr.f32.gmra.mrb[0].mxu0 %v3148
    %v3547 = vpop.f32.mrb[0].mxu0
    %v3548 = vadd.f32 0.0, %v3547
    %v3549 = vpop.f32.mrb[0].mxu0
    %3550 = vdwg.mxu0
    %v3551 = vadd.f32 %v3020, %v3233
    %v3552 = vadd.f32 %v3021, %v3238
    %v3553 = vadd.f32 %v3022, %v3243
    %v3554 = vadd.f32 %v3023, %v3248
    %v3555 = vadd.f32 %v3024, %v3253
    %v3556 = vadd.f32 %v3025, %v3258
    %v3557 = vadd.f32 %v3026, %v3263
    %v3558 = vadd.f32 %v3027, %v3268
    %v3559 = vadd.f32 %v3028, %v3273
    %v3560 = vadd.f32 %v3029, %v3278
    %v3561 = vadd.f32 %v3030, %v3283
    %v3562 = vadd.f32 %v3031, %v3288
    %v3563 = vadd.f32 %v3032, %v3293
    %v3564 = vadd.f32 %v3033, %v3298
    %v3565 = vadd.f32 %v3034, %v3303
    %v3566 = vadd.f32 %v3035, %v3308
    %v3567 = vadd.f32 %v3036, %v3313
    %v3568 = vadd.f32 %v3037, %v3318
    %v3569 = vadd.f32 %v3038, %v3323
    %v3570 = vadd.f32 %v3039, %v3328
    %v3571 = vadd.f32 %v3040, %v3333
    %v3572 = vadd.f32 %v3041, %v3338
    %v3573 = vadd.f32 %v3042, %v3343
    %v3574 = vadd.f32 %v3043, %v3348
    %v3575 = vadd.f32 %v3044, %v3353
    %v3576 = vadd.f32 %v3045, %v3358
    %v3577 = vadd.f32 %v3046, %v3363
    %v3578 = vadd.f32 %v3047, %v3368
    %v3579 = vadd.f32 %v3048, %v3373
    %v3580 = vadd.f32 %v3049, %v3378
    %v3581 = vadd.f32 %v3050, %v3383
    %v3582 = vadd.f32 %v3051, %v3388
    %v3583 = vadd.f32 %v3052, %v3393
    %v3584 = vadd.f32 %v3053, %v3398
    %v3585 = vadd.f32 %v3054, %v3403
    %v3586 = vadd.f32 %v3055, %v3408
    %v3587 = vadd.f32 %v3056, %v3413
    %v3588 = vadd.f32 %v3057, %v3418
    %v3589 = vadd.f32 %v3058, %v3423
    %v3590 = vadd.f32 %v3059, %v3428
    %v3591 = vadd.f32 %v3060, %v3433
    %v3592 = vadd.f32 %v3061, %v3438
    %v3593 = vadd.f32 %v3062, %v3443
    %v3594 = vadd.f32 %v3063, %v3448
    %v3595 = vadd.f32 %v3064, %v3453
    %v3596 = vadd.f32 %v3065, %v3458
    %v3597 = vadd.f32 %v3066, %v3463
    %v3598 = vadd.f32 %v3067, %v3468
    %v3599 = vadd.f32 %v3068, %v3473
    %v3600 = vadd.f32 %v3069, %v3478
    %v3601 = vadd.f32 %v3070, %v3483
    %v3602 = vadd.f32 %v3071, %v3488
    %v3603 = vadd.f32 %v3072, %v3493
    %v3604 = vadd.f32 %v3073, %v3498
    %v3605 = vadd.f32 %v3074, %v3503
    %v3606 = vadd.f32 %v3075, %v3508
    %v3607 = vadd.f32 %v3076, %v3513
    %v3608 = vadd.f32 %v3077, %v3518
    %v3609 = vadd.f32 %v3078, %v3523
    %v3610 = vadd.f32 %v3079, %v3528
    %v3611 = vadd.f32 %v3080, %v3533
    %v3612 = vadd.f32 %v3081, %v3538
    %v3613 = vadd.f32 %v3082, %v3543
    %v3614 = vadd.f32 %v3083, %v3548
    %v3615 = vld [vmem:[%s3084 + $0x1] sm:$0xff]
    %v3616 = vld [vmem:[%s3084 + $0x9] sm:$0xff]
    %v3617 = vld [vmem:[%s3084 + $0x19] sm:$0xff]
    %v3618 = vld [vmem:[%s3084 + $0x21] sm:$0xff]
    %v3619 = vld [vmem:[%s3084 + $0x31] sm:$0xff]
    %v3620 = vld [vmem:[%s3084 + $0x39] sm:$0xff]
    %v3621 = vld [vmem:[%s3084 + $0x49] sm:$0xff]
    %v3622 = vld [vmem:[%s3084 + $0x51] sm:$0xff]
    %v3623 = vld [vmem:[%s3084 + $0x61] sm:$0xff]
    %v3624 = vld [vmem:[%s3084 + $0x69] sm:$0xff]
    %v3625 = vld [vmem:[%s3084 + $0x79] sm:$0xff]
    %v3626 = vld [vmem:[%s3084 + $0x81] sm:$0xff]
    %v3627 = vld [vmem:[%s3084 + $0x91] sm:$0xff]
    %v3628 = vld [vmem:[%s3084 + $0x99] sm:$0xff]
    %v3629 = vld [vmem:[%s3084 + $0xa9] sm:$0xff]
    %v3630 = vld [vmem:[%s3084 + $0xb1] sm:$0xff]
    %v3631 = vld [vmem:[%s3084 + $0xc1] sm:$0xff]
    %v3632 = vld [vmem:[%s3084 + $0xc9] sm:$0xff]
    %v3633 = vld [vmem:[%s3084 + $0xd9] sm:$0xff]
    %v3634 = vld [vmem:[%s3084 + $0xe1] sm:$0xff]
    %v3635 = vld [vmem:[%s3084 + $0xf1] sm:$0xff]
    %v3636 = vld [vmem:[%s3084 + $0xf9] sm:$0xff]
    %v3637 = vld [vmem:[%s3084 + $0x109] sm:$0xff]
    %v3638 = vld [vmem:[%s3084 + $0x111] sm:$0xff]
    %v3639 = vld [vmem:[%s3084 + $0x121] sm:$0xff]
    %v3640 = vld [vmem:[%s3084 + $0x129] sm:$0xff]
    %v3641 = vld [vmem:[%s3084 + $0x139] sm:$0xff]
    %v3642 = vld [vmem:[%s3084 + $0x141] sm:$0xff]
    %v3643 = vld [vmem:[%s3084 + $0x151] sm:$0xff]
    %v3644 = vld [vmem:[%s3084 + $0x159] sm:$0xff]
    %v3645 = vld [vmem:[%s3084 + $0x169] sm:$0xff]
    %v3646 = vld [vmem:[%s3084 + $0x171] sm:$0xff]
    %v3647 = vld [vmem:[%s3084 + $0x1b1] sm:$0xff]
    %v3648 = vld [vmem:[%s3084 + $0x1b9] sm:$0xff]
    %v3649 = vld [vmem:[%s3084 + $0x1c9] sm:$0xff]
    %v3650 = vld [vmem:[%s3084 + $0x1d1] sm:$0xff]
    %v3651 = vld [vmem:[%s3084 + $0x1e1] sm:$0xff]
    %v3652 = vld [vmem:[%s3084 + $0x1e9] sm:$0xff]
    %v3653 = vld [vmem:[%s3084 + $0x1f9] sm:$0xff]
    %v3654 = vld [vmem:[%s3084 + $0x201] sm:$0xff]
    %v3655 = vld [vmem:[%s3084 + $0x211] sm:$0xff]
    %v3656 = vld [vmem:[%s3084 + $0x219] sm:$0xff]
    %v3657 = vld [vmem:[%s3084 + $0x229] sm:$0xff]
    %v3658 = vld [vmem:[%s3084 + $0x231] sm:$0xff]
    %v3659 = vld [vmem:[%s3084 + $0x241] sm:$0xff]
    %v3660 = vld [vmem:[%s3084 + $0x249] sm:$0xff]
    %v3661 = vld [vmem:[%s3084 + $0x259] sm:$0xff]
    %v3662 = vld [vmem:[%s3084 + $0x261] sm:$0xff]
    %v3663 = vld [vmem:[%s3084 + $0x271] sm:$0xff]
    %v3664 = vld [vmem:[%s3084 + $0x279] sm:$0xff]
    %v3665 = vld [vmem:[%s3084 + $0x289] sm:$0xff]
    %v3666 = vld [vmem:[%s3084 + $0x291] sm:$0xff]
    %v3667 = vld [vmem:[%s3084 + $0x2a1] sm:$0xff]
    %v3668 = vld [vmem:[%s3084 + $0x2a9] sm:$0xff]
    %v3669 = vld [vmem:[%s3084 + $0x2b9] sm:$0xff]
    %v3670 = vld [vmem:[%s3084 + $0x2c1] sm:$0xff]
    %v3671 = vld [vmem:[%s3084 + $0x2d1] sm:$0xff]
    %v3672 = vld [vmem:[%s3084 + $0x2d9] sm:$0xff]
    %v3673 = vld [vmem:[%s3084 + $0x2e9] sm:$0xff]
    %v3674 = vld [vmem:[%s3084 + $0x2f1] sm:$0xff]
    %v3675 = vld [vmem:[%s3084 + $0x301] sm:$0xff]
    %v3676 = vld [vmem:[%s3084 + $0x309] sm:$0xff]
    %v3677 = vld [vmem:[%s3084 + $0x319] sm:$0xff]
    %v3678 = vld [vmem:[%s3084 + $0x321] sm:$0xff]
    %s3679 = scalar_lea.vmem %s1, 896
    %v3680 = vld [vmem:[%s3679] sm:$0xff]
    %v3681 = vld [vmem:[%s3679 + $0x8] sm:$0xff]
    %v3682 = vld [vmem:[%s3679 + $0x10] sm:$0xff]
    %v3683 = vld [vmem:[%s3679 + $0x18] sm:$0xff]
    %v3684 = vld [vmem:[%s3679 + $0x20] sm:$0xff]
    %v3685 = vld [vmem:[%s3679 + $0x28] sm:$0xff]
    %v3686 = vld [vmem:[%s3679 + $0x30] sm:$0xff]
    %v3687 = vld [vmem:[%s3679 + $0x38] sm:$0xff]
    %v3688 = vld [vmem:[%s3679 + $0x40] sm:$0xff]
    %v3689 = vld [vmem:[%s3679 + $0x48] sm:$0xff]
    %v3690 = vld [vmem:[%s3679 + $0x50] sm:$0xff]
    %v3691 = vld [vmem:[%s3679 + $0x58] sm:$0xff]
    %v3692 = vld [vmem:[%s3679 + $0x60] sm:$0xff]
    %v3693 = vld [vmem:[%s3679 + $0x68] sm:$0xff]
    %v3694 = vld [vmem:[%s3679 + $0x70] sm:$0xff]
    %v3695 = vld [vmem:[%s3679 + $0x78] sm:$0xff]
    %3696 = vmatprep.subr.mxu0 0.0
    %3697 = vmatpush1.msra.mxu0 %v3680
    %3698 = vmatprep.subr.mxu0 0.0
    %3699 = vmatpush1.msra.mxu0 %v3681
    %3700 = vmatprep.subr.mxu0 0.0
    %3701 = vmatpush1.msra.mxu0 %v3682
    %3702 = vmatprep.subr.mxu0 0.0
    %3703 = vmatpush1.msra.mxu0 %v3683
    %3704 = vmatprep.subr.mxu0 0.0
    %3705 = vmatpush1.msra.mxu0 %v3684
    %3706 = vmatprep.subr.mxu0 0.0
    %3707 = vmatpush1.msra.mxu0 %v3685
    %3708 = vmatprep.subr.mxu0 0.0
    %3709 = vmatpush1.msra.mxu0 %v3686
    %3710 = vmatprep.subr.mxu0 0.0
    %3711 = vmatpush1.msra.mxu0 %v3687
    %3712 = vmatprep.subr.mxu0 0.0
    %3713 = vmatpush1.msra.mxu0 %v3688
    %3714 = vmatprep.subr.mxu0 0.0
    %3715 = vmatpush1.msra.mxu0 %v3689
    %3716 = vmatprep.subr.mxu0 0.0
    %3717 = vmatpush1.msra.mxu0 %v3690
    %3718 = vmatprep.subr.mxu0 0.0
    %3719 = vmatpush1.msra.mxu0 %v3691
    %3720 = vmatprep.subr.mxu0 0.0
    %3721 = vmatpush1.msra.mxu0 %v3692
    %3722 = vmatprep.subr.mxu0 0.0
    %3723 = vmatpush1.msra.mxu0 %v3693
    %3724 = vmatprep.subr.mxu0 0.0
    %3725 = vmatpush1.msra.mxu0 %v3694
    %3726 = vmatprep.subr.mxu0 0.0
    %3727 = vmatpush1.msra.mxu0 %v3695
    %3728 = vmatprep.subr.mxu0 0.0
    %3729 = vmatpush1.msra.mxu0 0.0
    %3730 = vmatprep.subr.mxu0 0.0
    %3731 = vmatpush1.msra.mxu0 0.0
    %3732 = vmatprep.subr.mxu0 0.0
    %3733 = vmatpush1.msra.mxu0 0.0
    %3734 = vmatprep.subr.mxu0 0.0
    %3735 = vmatpush1.msra.mxu0 0.0
    %3736 = vmatprep.subr.mxu0 0.0
    %3737 = vmatpush1.msra.mxu0 0.0
    %3738 = vmatprep.subr.mxu0 0.0
    %3739 = vmatpush1.msra.mxu0 0.0
    %3740 = vmatprep.subr.mxu0 0.0
    %3741 = vmatpush1.msra.mxu0 0.0
    %3742 = vmatprep.subr.mxu0 0.0
    %3743 = vmatpush1.msra.mxu0 0.0
    %3744 = vmatprep.subr.mxu0 0.0
    %3745 = vmatpush1.msra.mxu0 0.0
    %3746 = vmatprep.subr.mxu0 0.0
    %3747 = vmatpush1.msra.mxu0 0.0
    %3748 = vmatprep.subr.mxu0 0.0
    %3749 = vmatpush1.msra.mxu0 0.0
    %3750 = vmatprep.subr.mxu0 0.0
    %3751 = vmatpush1.msra.mxu0 0.0
    %3752 = vmatprep.subr.mxu0 0.0
    %3753 = vmatpush1.msra.mxu0 0.0
    %3754 = vmatprep.subr.mxu0 0.0
    %3755 = vmatpush1.msra.mxu0 0.0
    %3756 = vmatprep.subr.mxu0 0.0
    %3757 = vmatpush1.msra.mxu0 0.0
    %3758 = vmatprep.subr.mxu0 0.0
    %3759 = vmatpush1.msra.mxu0 0.0
    %3760 = vmatprep.mubr.f32.mxu0 0.0
    %3761 = vmatmul.mubr.f32.gmra.mrb[0].mxu0 %v3615
    %v3762 = vpop.f32.mrb[0].mxu0
    %v3763 = vadd.f32 0.0, %v3762
    %v3764 = vpop.f32.mrb[0].mxu0
    %3765 = vmatprep.mubr.f32.mxu0 0.0
    %3766 = vmatmul.mubr.f32.gmra.mrb[0].mxu0 %v3616
    %v3767 = vpop.f32.mrb[0].mxu0
    %v3768 = vadd.f32 0.0, %v3767
    %v3769 = vpop.f32.mrb[0].mxu0
    %3770 = vmatprep.mubr.f32.mxu0 0.0
    %3771 = vmatmul.mubr.f32.gmra.mrb[0].mxu0 %v3617
    %v3772 = vpop.f32.mrb[0].mxu0
    %v3773 = vadd.f32 0.0, %v3772
    %v3774 = vpop.f32.mrb[0].mxu0
    %3775 = vmatprep.mubr.f32.mxu0 0.0
    %3776 = vmatmul.mubr.f32.gmra.mrb[0].mxu0 %v3618
    %v3777 = vpop.f32.mrb[0].mxu0
    %v3778 = vadd.f32 0.0, %v3777
    %v3779 = vpop.f32.mrb[0].mxu0
    %3780 = vmatprep.mubr.f32.mxu0 0.0
    %3781 = vmatmul.mubr.f32.gmra.mrb[0].mxu0 %v3619
    %v3782 = vpop.f32.mrb[0].mxu0
    %v3783 = vadd.f32 0.0, %v3782
    %v3784 = vpop.f32.mrb[0].mxu0
    %3785 = vmatprep.mubr.f32.mxu0 0.0
    %3786 = vmatmul.mubr.f32.gmra.mrb[0].mxu0 %v3620
    %v3787 = vpop.f32.mrb[0].mxu0
    %v3788 = vadd.f32 0.0, %v3787
    %v3789 = vpop.f32.mrb[0].mxu0
    %3790 = vmatprep.mubr.f32.mxu0 0.0
    %3791 = vmatmul.mubr.f32.gmra.mrb[0].mxu0 %v3621
    %v3792 = vpop.f32.mrb[0].mxu0
    %v3793 = vadd.f32 0.0, %v3792
    %v3794 = vpop.f32.mrb[0].mxu0
    %3795 = vmatprep.mubr.f32.mxu0 0.0
    %3796 = vmatmul.mubr.f32.gmra.mrb[0].mxu0 %v3622
    %v3797 = vpop.f32.mrb[0].mxu0
    %v3798 = vadd.f32 0.0, %v3797
    %v3799 = vpop.f32.mrb[0].mxu0
    %3800 = vmatprep.mubr.f32.mxu0 0.0
    %3801 = vmatmul.mubr.f32.gmra.mrb[0].mxu0 %v3623
    %v3802 = vpop.f32.mrb[0].mxu0
    %v3803 = vadd.f32 0.0, %v3802
    %v3804 = vpop.f32.mrb[0].mxu0
    %3805 = vmatprep.mubr.f32.mxu0 0.0
    %3806 = vmatmul.mubr.f32.gmra.mrb[0].mxu0 %v3624
    %v3807 = vpop.f32.mrb[0].mxu0
    %v3808 = vadd.f32 0.0, %v3807
    %v3809 = vpop.f32.mrb[0].mxu0
    %3810 = vmatprep.mubr.f32.mxu0 0.0
    %3811 = vmatmul.mubr.f32.gmra.mrb[0].mxu0 %v3625
    %v3812 = vpop.f32.mrb[0].mxu0
    %v3813 = vadd.f32 0.0, %v3812
    %v3814 = vpop.f32.mrb[0].mxu0
    %3815 = vmatprep.mubr.f32.mxu0 0.0
    %3816 = vmatmul.mubr.f32.gmra.mrb[0].mxu0 %v3626
    %v3817 = vpop.f32.mrb[0].mxu0
    %v3818 = vadd.f32 0.0, %v3817
    %v3819 = vpop.f32.mrb[0].mxu0
    %3820 = vmatprep.mubr.f32.mxu0 0.0
    %3821 = vmatmul.mubr.f32.gmra.mrb[0].mxu0 %v3627
    %v3822 = vpop.f32.mrb[0].mxu0
    %v3823 = vadd.f32 0.0, %v3822
    %v3824 = vpop.f32.mrb[0].mxu0
    %3825 = vmatprep.mubr.f32.mxu0 0.0
    %3826 = vmatmul.mubr.f32.gmra.mrb[0].mxu0 %v3628
    %v3827 = vpop.f32.mrb[0].mxu0
    %v3828 = vadd.f32 0.0, %v3827
    %v3829 = vpop.f32.mrb[0].mxu0
    %3830 = vmatprep.mubr.f32.mxu0 0.0
    %3831 = vmatmul.mubr.f32.gmra.mrb[0].mxu0 %v3629
    %v3832 = vpop.f32.mrb[0].mxu0
    %v3833 = vadd.f32 0.0, %v3832
    %v3834 = vpop.f32.mrb[0].mxu0
    %3835 = vmatprep.mubr.f32.mxu0 0.0
    %3836 = vmatmul.mubr.f32.gmra.mrb[0].mxu0 %v3630
    %v3837 = vpop.f32.mrb[0].mxu0
    %v3838 = vadd.f32 0.0, %v3837
    %v3839 = vpop.f32.mrb[0].mxu0
    %3840 = vmatprep.mubr.f32.mxu0 0.0
    %3841 = vmatmul.mubr.f32.gmra.mrb[0].mxu0 %v3631
    %v3842 = vpop.f32.mrb[0].mxu0
    %v3843 = vadd.f32 0.0, %v3842
    %v3844 = vpop.f32.mrb[0].mxu0
    %3845 = vmatprep.mubr.f32.mxu0 0.0
    %3846 = vmatmul.mubr.f32.gmra.mrb[0].mxu0 %v3632
    %v3847 = vpop.f32.mrb[0].mxu0
    %v3848 = vadd.f32 0.0, %v3847
    %v3849 = vpop.f32.mrb[0].mxu0
    %3850 = vmatprep.mubr.f32.mxu0 0.0
    %3851 = vmatmul.mubr.f32.gmra.mrb[0].mxu0 %v3633
    %v3852 = vpop.f32.mrb[0].mxu0
    %v3853 = vadd.f32 0.0, %v3852
    %v3854 = vpop.f32.mrb[0].mxu0
    %3855 = vmatprep.mubr.f32.mxu0 0.0
    %3856 = vmatmul.mubr.f32.gmra.mrb[0].mxu0 %v3634
    %v3857 = vpop.f32.mrb[0].mxu0
    %v3858 = vadd.f32 0.0, %v3857
    %v3859 = vpop.f32.mrb[0].mxu0
    %3860 = vmatprep.mubr.f32.mxu0 0.0
    %3861 = vmatmul.mubr.f32.gmra.mrb[0].mxu0 %v3635
    %v3862 = vpop.f32.mrb[0].mxu0
    %v3863 = vadd.f32 0.0, %v3862
    %v3864 = vpop.f32.mrb[0].mxu0
    %3865 = vmatprep.mubr.f32.mxu0 0.0
    %3866 = vmatmul.mubr.f32.gmra.mrb[0].mxu0 %v3636
    %v3867 = vpop.f32.mrb[0].mxu0
    %v3868 = vadd.f32 0.0, %v3867
    %v3869 = vpop.f32.mrb[0].mxu0
    %3870 = vmatprep.mubr.f32.mxu0 0.0
    %3871 = vmatmul.mubr.f32.gmra.mrb[0].mxu0 %v3637
    %v3872 = vpop.f32.mrb[0].mxu0
    %v3873 = vadd.f32 0.0, %v3872
    %v3874 = vpop.f32.mrb[0].mxu0
    %3875 = vmatprep.mubr.f32.mxu0 0.0
    %3876 = vmatmul.mubr.f32.gmra.mrb[0].mxu0 %v3638
    %v3877 = vpop.f32.mrb[0].mxu0
    %v3878 = vadd.f32 0.0, %v3877
    %v3879 = vpop.f32.mrb[0].mxu0
    %3880 = vmatprep.mubr.f32.mxu0 0.0
    %3881 = vmatmul.mubr.f32.gmra.mrb[0].mxu0 %v3639
    %v3882 = vpop.f32.mrb[0].mxu0
    %v3883 = vadd.f32 0.0, %v3882
    %v3884 = vpop.f32.mrb[0].mxu0
    %3885 = vmatprep.mubr.f32.mxu0 0.0
    %3886 = vmatmul.mubr.f32.gmra.mrb[0].mxu0 %v3640
    %v3887 = vpop.f32.mrb[0].mxu0
    %v3888 = vadd.f32 0.0, %v3887
    %v3889 = vpop.f32.mrb[0].mxu0
    %3890 = vmatprep.mubr.f32.mxu0 0.0
    %3891 = vmatmul.mubr.f32.gmra.mrb[0].mxu0 %v3641
    %v3892 = vpop.f32.mrb[0].mxu0
    %v3893 = vadd.f32 0.0, %v3892
    %v3894 = vpop.f32.mrb[0].mxu0
    %3895 = vmatprep.mubr.f32.mxu0 0.0
    %3896 = vmatmul.mubr.f32.gmra.mrb[0].mxu0 %v3642
    %v3897 = vpop.f32.mrb[0].mxu0
    %v3898 = vadd.f32 0.0, %v3897
    %v3899 = vpop.f32.mrb[0].mxu0
    %3900 = vmatprep.mubr.f32.mxu0 0.0
    %3901 = vmatmul.mubr.f32.gmra.mrb[0].mxu0 %v3643
    %v3902 = vpop.f32.mrb[0].mxu0
    %v3903 = vadd.f32 0.0, %v3902
    %v3904 = vpop.f32.mrb[0].mxu0
    %3905 = vmatprep.mubr.f32.mxu0 0.0
    %3906 = vmatmul.mubr.f32.gmra.mrb[0].mxu0 %v3644
    %v3907 = vpop.f32.mrb[0].mxu0
    %v3908 = vadd.f32 0.0, %v3907
    %v3909 = vpop.f32.mrb[0].mxu0
    %3910 = vmatprep.mubr.f32.mxu0 0.0
    %3911 = vmatmul.mubr.f32.gmra.mrb[0].mxu0 %v3645
    %v3912 = vpop.f32.mrb[0].mxu0
    %v3913 = vadd.f32 0.0, %v3912
    %v3914 = vpop.f32.mrb[0].mxu0
    %3915 = vmatprep.mubr.f32.mxu0 0.0
    %3916 = vmatmul.mubr.f32.gmra.mrb[0].mxu0 %v3646
    %v3917 = vpop.f32.mrb[0].mxu0
    %v3918 = vadd.f32 0.0, %v3917
    %v3919 = vpop.f32.mrb[0].mxu0
    %3920 = vmatprep.mubr.f32.mxu0 0.0
    %3921 = vmatmul.mubr.f32.gmra.mrb[0].mxu0 %v3647
    %v3922 = vpop.f32.mrb[0].mxu0
    %v3923 = vadd.f32 0.0, %v3922
    %v3924 = vpop.f32.mrb[0].mxu0
    %3925 = vmatprep.mubr.f32.mxu0 0.0
    %3926 = vmatmul.mubr.f32.gmra.mrb[0].mxu0 %v3648
    %v3927 = vpop.f32.mrb[0].mxu0
    %v3928 = vadd.f32 0.0, %v3927
    %v3929 = vpop.f32.mrb[0].mxu0
    %3930 = vmatprep.mubr.f32.mxu0 0.0
    %3931 = vmatmul.mubr.f32.gmra.mrb[0].mxu0 %v3649
    %v3932 = vpop.f32.mrb[0].mxu0
    %v3933 = vadd.f32 0.0, %v3932
    %v3934 = vpop.f32.mrb[0].mxu0
    %3935 = vmatprep.mubr.f32.mxu0 0.0
    %3936 = vmatmul.mubr.f32.gmra.mrb[0].mxu0 %v3650
    %v3937 = vpop.f32.mrb[0].mxu0
    %v3938 = vadd.f32 0.0, %v3937
    %v3939 = vpop.f32.mrb[0].mxu0
    %3940 = vmatprep.mubr.f32.mxu0 0.0
    %3941 = vmatmul.mubr.f32.gmra.mrb[0].mxu0 %v3651
    %v3942 = vpop.f32.mrb[0].mxu0
    %v3943 = vadd.f32 0.0, %v3942
    %v3944 = vpop.f32.mrb[0].mxu0
    %3945 = vmatprep.mubr.f32.mxu0 0.0
    %3946 = vmatmul.mubr.f32.gmra.mrb[0].mxu0 %v3652
    %v3947 = vpop.f32.mrb[0].mxu0
    %v3948 = vadd.f32 0.0, %v3947
    %v3949 = vpop.f32.mrb[0].mxu0
    %3950 = vmatprep.mubr.f32.mxu0 0.0
    %3951 = vmatmul.mubr.f32.gmra.mrb[0].mxu0 %v3653
    %v3952 = vpop.f32.mrb[0].mxu0
    %v3953 = vadd.f32 0.0, %v3952
    %v3954 = vpop.f32.mrb[0].mxu0
    %3955 = vmatprep.mubr.f32.mxu0 0.0
    %3956 = vmatmul.mubr.f32.gmra.mrb[0].mxu0 %v3654
    %v3957 = vpop.f32.mrb[0].mxu0
    %v3958 = vadd.f32 0.0, %v3957
    %v3959 = vpop.f32.mrb[0].mxu0
    %3960 = vmatprep.mubr.f32.mxu0 0.0
    %3961 = vmatmul.mubr.f32.gmra.mrb[0].mxu0 %v3655
    %v3962 = vpop.f32.mrb[0].mxu0
    %v3963 = vadd.f32 0.0, %v3962
    %v3964 = vpop.f32.mrb[0].mxu0
    %3965 = vmatprep.mubr.f32.mxu0 0.0
    %3966 = vmatmul.mubr.f32.gmra.mrb[0].mxu0 %v3656
    %v3967 = vpop.f32.mrb[0].mxu0
    %v3968 = vadd.f32 0.0, %v3967
    %v3969 = vpop.f32.mrb[0].mxu0
    %3970 = vmatprep.mubr.f32.mxu0 0.0
    %3971 = vmatmul.mubr.f32.gmra.mrb[0].mxu0 %v3657
    %v3972 = vpop.f32.mrb[0].mxu0
    %v3973 = vadd.f32 0.0, %v3972
    %v3974 = vpop.f32.mrb[0].mxu0
    %3975 = vmatprep.mubr.f32.mxu0 0.0
    %3976 = vmatmul.mubr.f32.gmra.mrb[0].mxu0 %v3658
    %v3977 = vpop.f32.mrb[0].mxu0
    %v3978 = vadd.f32 0.0, %v3977
    %v3979 = vpop.f32.mrb[0].mxu0
    %3980 = vmatprep.mubr.f32.mxu0 0.0
    %3981 = vmatmul.mubr.f32.gmra.mrb[0].mxu0 %v3659
    %v3982 = vpop.f32.mrb[0].mxu0
    %v3983 = vadd.f32 0.0, %v3982
    %v3984 = vpop.f32.mrb[0].mxu0
    %3985 = vmatprep.mubr.f32.mxu0 0.0
    %3986 = vmatmul.mubr.f32.gmra.mrb[0].mxu0 %v3660
    %v3987 = vpop.f32.mrb[0].mxu0
    %v3988 = vadd.f32 0.0, %v3987
    %v3989 = vpop.f32.mrb[0].mxu0
    %3990 = vmatprep.mubr.f32.mxu0 0.0
    %3991 = vmatmul.mubr.f32.gmra.mrb[0].mxu0 %v3661
    %v3992 = vpop.f32.mrb[0].mxu0
    %v3993 = vadd.f32 0.0, %v3992
    %v3994 = vpop.f32.mrb[0].mxu0
    %3995 = vmatprep.mubr.f32.mxu0 0.0
    %3996 = vmatmul.mubr.f32.gmra.mrb[0].mxu0 %v3662
    %v3997 = vpop.f32.mrb[0].mxu0
    %v3998 = vadd.f32 0.0, %v3997
    %v3999 = vpop.f32.mrb[0].mxu0
    %4000 = vmatprep.mubr.f32.mxu0 0.0
    %4001 = vmatmul.mubr.f32.gmra.mrb[0].mxu0 %v3663
    %v4002 = vpop.f32.mrb[0].mxu0
    %v4003 = vadd.f32 0.0, %v4002
    %v4004 = vpop.f32.mrb[0].mxu0
    %4005 = vmatprep.mubr.f32.mxu0 0.0
    %4006 = vmatmul.mubr.f32.gmra.mrb[0].mxu0 %v3664
    %v4007 = vpop.f32.mrb[0].mxu0
    %v4008 = vadd.f32 0.0, %v4007
    %v4009 = vpop.f32.mrb[0].mxu0
    %4010 = vmatprep.mubr.f32.mxu0 0.0
    %4011 = vmatmul.mubr.f32.gmra.mrb[0].mxu0 %v3665
    %v4012 = vpop.f32.mrb[0].mxu0
    %v4013 = vadd.f32 0.0, %v4012
    %v4014 = vpop.f32.mrb[0].mxu0
    %4015 = vmatprep.mubr.f32.mxu0 0.0
    %4016 = vmatmul.mubr.f32.gmra.mrb[0].mxu0 %v3666
    %v4017 = vpop.f32.mrb[0].mxu0
    %v4018 = vadd.f32 0.0, %v4017
    %v4019 = vpop.f32.mrb[0].mxu0
    %4020 = vmatprep.mubr.f32.mxu0 0.0
    %4021 = vmatmul.mubr.f32.gmra.mrb[0].mxu0 %v3667
    %v4022 = vpop.f32.mrb[0].mxu0
    %v4023 = vadd.f32 0.0, %v4022
    %v4024 = vpop.f32.mrb[0].mxu0
    %4025 = vmatprep.mubr.f32.mxu0 0.0
    %4026 = vmatmul.mubr.f32.gmra.mrb[0].mxu0 %v3668
    %v4027 = vpop.f32.mrb[0].mxu0
    %v4028 = vadd.f32 0.0, %v4027
    %v4029 = vpop.f32.mrb[0].mxu0
    %4030 = vmatprep.mubr.f32.mxu0 0.0
    %4031 = vmatmul.mubr.f32.gmra.mrb[0].mxu0 %v3669
    %v4032 = vpop.f32.mrb[0].mxu0
    %v4033 = vadd.f32 0.0, %v4032
    %v4034 = vpop.f32.mrb[0].mxu0
    %4035 = vmatprep.mubr.f32.mxu0 0.0
    %4036 = vmatmul.mubr.f32.gmra.mrb[0].mxu0 %v3670
    %v4037 = vpop.f32.mrb[0].mxu0
    %v4038 = vadd.f32 0.0, %v4037
    %v4039 = vpop.f32.mrb[0].mxu0
    %4040 = vmatprep.mubr.f32.mxu0 0.0
    %4041 = vmatmul.mubr.f32.gmra.mrb[0].mxu0 %v3671
    %v4042 = vpop.f32.mrb[0].mxu0
    %v4043 = vadd.f32 0.0, %v4042
    %v4044 = vpop.f32.mrb[0].mxu0
    %4045 = vmatprep.mubr.f32.mxu0 0.0
    %4046 = vmatmul.mubr.f32.gmra.mrb[0].mxu0 %v3672
    %v4047 = vpop.f32.mrb[0].mxu0
    %v4048 = vadd.f32 0.0, %v4047
    %v4049 = vpop.f32.mrb[0].mxu0
    %4050 = vmatprep.mubr.f32.mxu0 0.0
    %4051 = vmatmul.mubr.f32.gmra.mrb[0].mxu0 %v3673
    %v4052 = vpop.f32.mrb[0].mxu0
    %v4053 = vadd.f32 0.0, %v4052
    %v4054 = vpop.f32.mrb[0].mxu0
    %4055 = vmatprep.mubr.f32.mxu0 0.0
    %4056 = vmatmul.mubr.f32.gmra.mrb[0].mxu0 %v3674
    %v4057 = vpop.f32.mrb[0].mxu0
    %v4058 = vadd.f32 0.0, %v4057
    %v4059 = vpop.f32.mrb[0].mxu0
    %4060 = vmatprep.mubr.f32.mxu0 0.0
    %4061 = vmatmul.mubr.f32.gmra.mrb[0].mxu0 %v3675
    %v4062 = vpop.f32.mrb[0].mxu0
    %v4063 = vadd.f32 0.0, %v4062
    %v4064 = vpop.f32.mrb[0].mxu0
    %4065 = vmatprep.mubr.f32.mxu0 0.0
    %4066 = vmatmul.mubr.f32.gmra.mrb[0].mxu0 %v3676
    %v4067 = vpop.f32.mrb[0].mxu0
    %v4068 = vadd.f32 0.0, %v4067
    %v4069 = vpop.f32.mrb[0].mxu0
    %4070 = vmatprep.mubr.f32.mxu0 0.0
    %4071 = vmatmul.mubr.f32.gmra.mrb[0].mxu0 %v3677
    %v4072 = vpop.f32.mrb[0].mxu0
    %v4073 = vadd.f32 0.0, %v4072
    %v4074 = vpop.f32.mrb[0].mxu0
    %4075 = vmatprep.mubr.f32.mxu0 0.0
    %4076 = vmatmul.mubr.f32.gmra.mrb[0].mxu0 %v3678
    %v4077 = vpop.f32.mrb[0].mxu0
    %v4078 = vadd.f32 0.0, %v4077
    %v4079 = vpop.f32.mrb[0].mxu0
    %4080 = vdwg.mxu0
    %v4081 = vadd.f32 %v3551, %v3763
    %v4082 = vadd.f32 %v3552, %v3768
    %v4083 = vadd.f32 %v3553, %v3773
    %v4084 = vadd.f32 %v3554, %v3778
    %v4085 = vadd.f32 %v3555, %v3783
    %v4086 = vadd.f32 %v3556, %v3788
    %v4087 = vadd.f32 %v3557, %v3793
    %v4088 = vadd.f32 %v3558, %v3798
    %v4089 = vadd.f32 %v3559, %v3803
    %v4090 = vadd.f32 %v3560, %v3808
    %v4091 = vadd.f32 %v3561, %v3813
    %v4092 = vadd.f32 %v3562, %v3818
    %v4093 = vadd.f32 %v3563, %v3823
    %v4094 = vadd.f32 %v3564, %v3828
    %v4095 = vadd.f32 %v3565, %v3833
    %v4096 = vadd.f32 %v3566, %v3838
    %v4097 = vadd.f32 %v3567, %v3843
    %v4098 = vadd.f32 %v3568, %v3848
    %v4099 = vadd.f32 %v3569, %v3853
    %v4100 = vadd.f32 %v3570, %v3858
    %v4101 = vadd.f32 %v3571, %v3863
    %v4102 = vadd.f32 %v3572, %v3868
    %v4103 = vadd.f32 %v3573, %v3873
    %v4104 = vadd.f32 %v3574, %v3878
    %v4105 = vadd.f32 %v3575, %v3883
    %v4106 = vadd.f32 %v3576, %v3888
    %v4107 = vadd.f32 %v3577, %v3893
    %v4108 = vadd.f32 %v3578, %v3898
    %v4109 = vadd.f32 %v3579, %v3903
    %v4110 = vadd.f32 %v3580, %v3908
    %v4111 = vadd.f32 %v3581, %v3913
    %v4112 = vadd.f32 %v3582, %v3918
    %v4113 = vadd.f32 %v3583, %v3923
    %v4114 = vadd.f32 %v3584, %v3928
    %v4115 = vadd.f32 %v3585, %v3933
    %v4116 = vadd.f32 %v3586, %v3938
    %v4117 = vadd.f32 %v3587, %v3943
    %v4118 = vadd.f32 %v3588, %v3948
    %v4119 = vadd.f32 %v3589, %v3953
    %v4120 = vadd.f32 %v3590, %v3958
    %v4121 = vadd.f32 %v3591, %v3963
    %v4122 = vadd.f32 %v3592, %v3968
    %v4123 = vadd.f32 %v3593, %v3973
    %v4124 = vadd.f32 %v3594, %v3978
    %v4125 = vadd.f32 %v3595, %v3983
    %v4126 = vadd.f32 %v3596, %v3988
    %v4127 = vadd.f32 %v3597, %v3993
    %v4128 = vadd.f32 %v3598, %v3998
    %v4129 = vadd.f32 %v3599, %v4003
    %v4130 = vadd.f32 %v3600, %v4008
    %v4131 = vadd.f32 %v3601, %v4013
    %v4132 = vadd.f32 %v3602, %v4018
    %v4133 = vadd.f32 %v3603, %v4023
    %v4134 = vadd.f32 %v3604, %v4028
    %v4135 = vadd.f32 %v3605, %v4033
    %v4136 = vadd.f32 %v3606, %v4038
    %v4137 = vadd.f32 %v3607, %v4043
    %v4138 = vadd.f32 %v3608, %v4048
    %v4139 = vadd.f32 %v3609, %v4053
    %v4140 = vadd.f32 %v3610, %v4058
    %v4141 = vadd.f32 %v3611, %v4063
    %v4142 = vadd.f32 %v3612, %v4068
    %v4143 = vadd.f32 %v3613, %v4073
    %v4144 = vadd.f32 %v3614, %v4078
    %v4145 = vld [vmem:[%s3084 + $0x2] sm:$0xff]
    %v4146 = vld [vmem:[%s3084 + $0xa] sm:$0xff]
    %v4147 = vld [vmem:[%s3084 + $0x1a] sm:$0xff]
    %v4148 = vld [vmem:[%s3084 + $0x22] sm:$0xff]
    %v4149 = vld [vmem:[%s3084 + $0x32] sm:$0xff]
    %v4150 = vld [vmem:[%s3084 + $0x3a] sm:$0xff]
    %v4151 = vld [vmem:[%s3084 + $0x4a] sm:$0xff]
    %v4152 = vld [vmem:[%s3084 + $0x52] sm:$0xff]
    %v4153 = vld [vmem:[%s3084 + $0x62] sm:$0xff]
    %v4154 = vld [vmem:[%s3084 + $0x6a] sm:$0xff]
    %v4155 = vld [vmem:[%s3084 + $0x7a] sm:$0xff]
    %v4156 = vld [vmem:[%s3084 + $0x82] sm:$0xff]
    %v4157 = vld [vmem:[%s3084 + $0x92] sm:$0xff]
    %v4158 = vld [vmem:[%s3084 + $0x9a] sm:$0xff]
    %v4159 = vld [vmem:[%s3084 + $0xaa] sm:$0xff]
    %v4160 = vld [vmem:[%s3084 + $0xb2] sm:$0xff]
    %v4161 = vld [vmem:[%s3084 + $0xc2] sm:$0xff]
    %v4162 = vld [vmem:[%s3084 + $0xca] sm:$0xff]
    %v4163 = vld [vmem:[%s3084 + $0xda] sm:$0xff]
    %v4164 = vld [vmem:[%s3084 + $0xe2] sm:$0xff]
    %v4165 = vld [vmem:[%s3084 + $0xf2] sm:$0xff]
    %v4166 = vld [vmem:[%s3084 + $0xfa] sm:$0xff]
    %v4167 = vld [vmem:[%s3084 + $0x10a] sm:$0xff]
    %v4168 = vld [vmem:[%s3084 + $0x112] sm:$0xff]
    %v4169 = vld [vmem:[%s3084 + $0x122] sm:$0xff]
    %v4170 = vld [vmem:[%s3084 + $0x12a] sm:$0xff]
    %v4171 = vld [vmem:[%s3084 + $0x13a] sm:$0xff]
    %v4172 = vld [vmem:[%s3084 + $0x142] sm:$0xff]
    %v4173 = vld [vmem:[%s3084 + $0x152] sm:$0xff]
    %v4174 = vld [vmem:[%s3084 + $0x15a] sm:$0xff]
    %v4175 = vld [vmem:[%s3084 + $0x16a] sm:$0xff]
    %v4176 = vld [vmem:[%s3084 + $0x172] sm:$0xff]
    %v4177 = vld [vmem:[%s3084 + $0x1b2] sm:$0xff]
    %v4178 = vld [vmem:[%s3084 + $0x1ba] sm:$0xff]
    %v4179 = vld [vmem:[%s3084 + $0x1ca] sm:$0xff]
    %v4180 = vld [vmem:[%s3084 + $0x1d2] sm:$0xff]
    %v4181 = vld [vmem:[%s3084 + $0x1e2] sm:$0xff]
    %v4182 = vld [vmem:[%s3084 + $0x1ea] sm:$0xff]
    %v4183 = vld [vmem:[%s3084 + $0x1fa] sm:$0xff]
    %v4184 = vld [vmem:[%s3084 + $0x202] sm:$0xff]
    %v4185 = vld [vmem:[%s3084 + $0x212] sm:$0xff]
    %v4186 = vld [vmem:[%s3084 + $0x21a] sm:$0xff]
    %v4187 = vld [vmem:[%s3084 + $0x22a] sm:$0xff]
    %v4188 = vld [vmem:[%s3084 + $0x232] sm:$0xff]
    %v4189 = vld [vmem:[%s3084 + $0x242] sm:$0xff]
    %v4190 = vld [vmem:[%s3084 + $0x24a] sm:$0xff]
    %v4191 = vld [vmem:[%s3084 + $0x25a] sm:$0xff]
    %v4192 = vld [vmem:[%s3084 + $0x262] sm:$0xff]
    %v4193 = vld [vmem:[%s3084 + $0x272] sm:$0xff]
    %v4194 = vld [vmem:[%s3084 + $0x27a] sm:$0xff]
    %v4195 = vld [vmem:[%s3084 + $0x28a] sm:$0xff]
    %v4196 = vld [vmem:[%s3084 + $0x292] sm:$0xff]
    %v4197 = vld [vmem:[%s3084 + $0x2a2] sm:$0xff]
    %v4198 = vld [vmem:[%s3084 + $0x2aa] sm:$0xff]
    %v4199 = vld [vmem:[%s3084 + $0x2ba] sm:$0xff]
    %v4200 = vld [vmem:[%s3084 + $0x2c2] sm:$0xff]
    %v4201 = vld [vmem:[%s3084 + $0x2d2] sm:$0xff]
    %v4202 = vld [vmem:[%s3084 + $0x2da] sm:$0xff]
    %v4203 = vld [vmem:[%s3084 + $0x2ea] sm:$0xff]
    %v4204 = vld [vmem:[%s3084 + $0x2f2] sm:$0xff]
    %v4205 = vld [vmem:[%s3084 + $0x302] sm:$0xff]
    %v4206 = vld [vmem:[%s3084 + $0x30a] sm:$0xff]
    %v4207 = vld [vmem:[%s3084 + $0x31a] sm:$0xff]
    %v4208 = vld [vmem:[%s3084 + $0x322] sm:$0xff]
    %s4209 = scalar_lea.vmem %s1, 1024
    %v4210 = vld [vmem:[%s4209] sm:$0xff]
    %v4211 = vld [vmem:[%s4209 + $0x8] sm:$0xff]
    %v4212 = vld [vmem:[%s4209 + $0x10] sm:$0xff]
    %v4213 = vld [vmem:[%s4209 + $0x18] sm:$0xff]
    %v4214 = vld [vmem:[%s4209 + $0x20] sm:$0xff]
    %v4215 = vld [vmem:[%s4209 + $0x28] sm:$0xff]
    %v4216 = vld [vmem:[%s4209 + $0x30] sm:$0xff]
    %v4217 = vld [vmem:[%s4209 + $0x38] sm:$0xff]
    %v4218 = vld [vmem:[%s4209 + $0x40] sm:$0xff]
    %v4219 = vld [vmem:[%s4209 + $0x48] sm:$0xff]
    %v4220 = vld [vmem:[%s4209 + $0x50] sm:$0xff]
    %v4221 = vld [vmem:[%s4209 + $0x58] sm:$0xff]
    %v4222 = vld [vmem:[%s4209 + $0x60] sm:$0xff]
    %v4223 = vld [vmem:[%s4209 + $0x68] sm:$0xff]
    %v4224 = vld [vmem:[%s4209 + $0x70] sm:$0xff]
    %v4225 = vld [vmem:[%s4209 + $0x78] sm:$0xff]
    %4226 = vmatprep.subr.mxu0 0.0
    %4227 = vmatpush1.msra.mxu0 %v4210
    %4228 = vmatprep.subr.mxu0 0.0
    %4229 = vmatpush1.msra.mxu0 %v4211
    %4230 = vmatprep.subr.mxu0 0.0
    %4231 = vmatpush1.msra.mxu0 %v4212
    %4232 = vmatprep.subr.mxu0 0.0
    %4233 = vmatpush1.msra.mxu0 %v4213
    %4234 = vmatprep.subr.mxu0 0.0
    %4235 = vmatpush1.msra.mxu0 %v4214
    %4236 = vmatprep.subr.mxu0 0.0
    %4237 = vmatpush1.msra.mxu0 %v4215
    %4238 = vmatprep.subr.mxu0 0.0
    %4239 = vmatpush1.msra.mxu0 %v4216
    %4240 = vmatprep.subr.mxu0 0.0
    %4241 = vmatpush1.msra.mxu0 %v4217
    %4242 = vmatprep.subr.mxu0 0.0
    %4243 = vmatpush1.msra.mxu0 %v4218
    %4244 = vmatprep.subr.mxu0 0.0
    %4245 = vmatpush1.msra.mxu0 %v4219
    %4246 = vmatprep.subr.mxu0 0.0
    %4247 = vmatpush1.msra.mxu0 %v4220
    %4248 = vmatprep.subr.mxu0 0.0
    %4249 = vmatpush1.msra.mxu0 %v4221
    %4250 = vmatprep.subr.mxu0 0.0
    %4251 = vmatpush1.msra.mxu0 %v4222
    %4252 = vmatprep.subr.mxu0 0.0
    %4253 = vmatpush1.msra.mxu0 %v4223
    %4254 = vmatprep.subr.mxu0 0.0
    %4255 = vmatpush1.msra.mxu0 %v4224
    %4256 = vmatprep.subr.mxu0 0.0
    %4257 = vmatpush1.msra.mxu0 %v4225
    %4258 = vmatprep.subr.mxu0 0.0
    %4259 = vmatpush1.msra.mxu0 0.0
    %4260 = vmatprep.subr.mxu0 0.0
    %4261 = vmatpush1.msra.mxu0 0.0
    %4262 = vmatprep.subr.mxu0 0.0
    %4263 = vmatpush1.msra.mxu0 0.0
    %4264 = vmatprep.subr.mxu0 0.0
    %4265 = vmatpush1.msra.mxu0 0.0
    %4266 = vmatprep.subr.mxu0 0.0
    %4267 = vmatpush1.msra.mxu0 0.0
    %4268 = vmatprep.subr.mxu0 0.0
    %4269 = vmatpush1.msra.mxu0 0.0
    %4270 = vmatprep.subr.mxu0 0.0
    %4271 = vmatpush1.msra.mxu0 0.0
    %4272 = vmatprep.subr.mxu0 0.0
    %4273 = vmatpush1.msra.mxu0 0.0
    %4274 = vmatprep.subr.mxu0 0.0
    %4275 = vmatpush1.msra.mxu0 0.0
    %4276 = vmatprep.subr.mxu0 0.0
    %4277 = vmatpush1.msra.mxu0 0.0
    %4278 = vmatprep.subr.mxu0 0.0
    %4279 = vmatpush1.msra.mxu0 0.0
    %4280 = vmatprep.subr.mxu0 0.0
    %4281 = vmatpush1.msra.mxu0 0.0
    %4282 = vmatprep.subr.mxu0 0.0
    %4283 = vmatpush1.msra.mxu0 0.0
    %4284 = vmatprep.subr.mxu0 0.0
    %4285 = vmatpush1.msra.mxu0 0.0
    %4286 = vmatprep.subr.mxu0 0.0
    %4287 = vmatpush1.msra.mxu0 0.0
    %4288 = vmatprep.subr.mxu0 0.0
    %4289 = vmatpush1.msra.mxu0 0.0
    %4290 = vmatprep.mubr.f32.mxu0 0.0
    %4291 = vmatmul.mubr.f32.gmra.mrb[0].mxu0 %v4145
    %v4292 = vpop.f32.mrb[0].mxu0
    %v4293 = vadd.f32 0.0, %v4292
    %v4294 = vpop.f32.mrb[0].mxu0
    %4295 = vmatprep.mubr.f32.mxu0 0.0
    %4296 = vmatmul.mubr.f32.gmra.mrb[0].mxu0 %v4146
    %v4297 = vpop.f32.mrb[0].mxu0
    %v4298 = vadd.f32 0.0, %v4297
    %v4299 = vpop.f32.mrb[0].mxu0
    %4300 = vmatprep.mubr.f32.mxu0 0.0
    %4301 = vmatmul.mubr.f32.gmra.mrb[0].mxu0 %v4147
    %v4302 = vpop.f32.mrb[0].mxu0
    %v4303 = vadd.f32 0.0, %v4302
    %v4304 = vpop.f32.mrb[0].mxu0
    %4305 = vmatprep.mubr.f32.mxu0 0.0
    %4306 = vmatmul.mubr.f32.gmra.mrb[0].mxu0 %v4148
    %v4307 = vpop.f32.mrb[0].mxu0
    %v4308 = vadd.f32 0.0, %v4307
    %v4309 = vpop.f32.mrb[0].mxu0
    %4310 = vmatprep.mubr.f32.mxu0 0.0
    %4311 = vmatmul.mubr.f32.gmra.mrb[0].mxu0 %v4149
    %v4312 = vpop.f32.mrb[0].mxu0
    %v4313 = vadd.f32 0.0, %v4312
    %v4314 = vpop.f32.mrb[0].mxu0
    %4315 = vmatprep.mubr.f32.mxu0 0.0
    %4316 = vmatmul.mubr.f32.gmra.mrb[0].mxu0 %v4150
    %v4317 = vpop.f32.mrb[0].mxu0
    %v4318 = vadd.f32 0.0, %v4317
    %v4319 = vpop.f32.mrb[0].mxu0
    %4320 = vmatprep.mubr.f32.mxu0 0.0
    %4321 = vmatmul.mubr.f32.gmra.mrb[0].mxu0 %v4151
    %v4322 = vpop.f32.mrb[0].mxu0
    %v4323 = vadd.f32 0.0, %v4322
    %v4324 = vpop.f32.mrb[0].mxu0
    %4325 = vmatprep.mubr.f32.mxu0 0.0
    %4326 = vmatmul.mubr.f32.gmra.mrb[0].mxu0 %v4152
    %v4327 = vpop.f32.mrb[0].mxu0
    %v4328 = vadd.f32 0.0, %v4327
    %v4329 = vpop.f32.mrb[0].mxu0
    %4330 = vmatprep.mubr.f32.mxu0 0.0
    %4331 = vmatmul.mubr.f32.gmra.mrb[0].mxu0 %v4153
    %v4332 = vpop.f32.mrb[0].mxu0
    %v4333 = vadd.f32 0.0, %v4332
    %v4334 = vpop.f32.mrb[0].mxu0
    %4335 = vmatprep.mubr.f32.mxu0 0.0
    %4336 = vmatmul.mubr.f32.gmra.mrb[0].mxu0 %v4154
    %v4337 = vpop.f32.mrb[0].mxu0
    %v4338 = vadd.f32 0.0, %v4337
    %v4339 = vpop.f32.mrb[0].mxu0
    %4340 = vmatprep.mubr.f32.mxu0 0.0
    %4341 = vmatmul.mubr.f32.gmra.mrb[0].mxu0 %v4155
    %v4342 = vpop.f32.mrb[0].mxu0
    %v4343 = vadd.f32 0.0, %v4342
    %v4344 = vpop.f32.mrb[0].mxu0
    %4345 = vmatprep.mubr.f32.mxu0 0.0
    %4346 = vmatmul.mubr.f32.gmra.mrb[0].mxu0 %v4156
    %v4347 = vpop.f32.mrb[0].mxu0
    %v4348 = vadd.f32 0.0, %v4347
    %v4349 = vpop.f32.mrb[0].mxu0
    %4350 = vmatprep.mubr.f32.mxu0 0.0
    %4351 = vmatmul.mubr.f32.gmra.mrb[0].mxu0 %v4157
    %v4352 = vpop.f32.mrb[0].mxu0
    %v4353 = vadd.f32 0.0, %v4352
    %v4354 = vpop.f32.mrb[0].mxu0
    %4355 = vmatprep.mubr.f32.mxu0 0.0
    %4356 = vmatmul.mubr.f32.gmra.mrb[0].mxu0 %v4158
    %v4357 = vpop.f32.mrb[0].mxu0
    %v4358 = vadd.f32 0.0, %v4357
    %v4359 = vpop.f32.mrb[0].mxu0
    %4360 = vmatprep.mubr.f32.mxu0 0.0
    %4361 = vmatmul.mubr.f32.gmra.mrb[0].mxu0 %v4159
    %v4362 = vpop.f32.mrb[0].mxu0
    %v4363 = vadd.f32 0.0, %v4362
    %v4364 = vpop.f32.mrb[0].mxu0
    %4365 = vmatprep.mubr.f32.mxu0 0.0
    %4366 = vmatmul.mubr.f32.gmra.mrb[0].mxu0 %v4160
    %v4367 = vpop.f32.mrb[0].mxu0
    %v4368 = vadd.f32 0.0, %v4367
    %v4369 = vpop.f32.mrb[0].mxu0
    %4370 = vmatprep.mubr.f32.mxu0 0.0
    %4371 = vmatmul.mubr.f32.gmra.mrb[0].mxu0 %v4161
    %v4372 = vpop.f32.mrb[0].mxu0
    %v4373 = vadd.f32 0.0, %v4372
    %v4374 = vpop.f32.mrb[0].mxu0
    %4375 = vmatprep.mubr.f32.mxu0 0.0
    %4376 = vmatmul.mubr.f32.gmra.mrb[0].mxu0 %v4162
    %v4377 = vpop.f32.mrb[0].mxu0
    %v4378 = vadd.f32 0.0, %v4377
    %v4379 = vpop.f32.mrb[0].mxu0
    %4380 = vmatprep.mubr.f32.mxu0 0.0
    %4381 = vmatmul.mubr.f32.gmra.mrb[0].mxu0 %v4163
    %v4382 = vpop.f32.mrb[0].mxu0
    %v4383 = vadd.f32 0.0, %v4382
    %v4384 = vpop.f32.mrb[0].mxu0
    %4385 = vmatprep.mubr.f32.mxu0 0.0
    %4386 = vmatmul.mubr.f32.gmra.mrb[0].mxu0 %v4164
    %v4387 = vpop.f32.mrb[0].mxu0
    %v4388 = vadd.f32 0.0, %v4387
    %v4389 = vpop.f32.mrb[0].mxu0
    %4390 = vmatprep.mubr.f32.mxu0 0.0
    %4391 = vmatmul.mubr.f32.gmra.mrb[0].mxu0 %v4165
    %v4392 = vpop.f32.mrb[0].mxu0
    %v4393 = vadd.f32 0.0, %v4392
    %v4394 = vpop.f32.mrb[0].mxu0
    %4395 = vmatprep.mubr.f32.mxu0 0.0
    %4396 = vmatmul.mubr.f32.gmra.mrb[0].mxu0 %v4166
    %v4397 = vpop.f32.mrb[0].mxu0
    %v4398 = vadd.f32 0.0, %v4397
    %v4399 = vpop.f32.mrb[0].mxu0
    %4400 = vmatprep.mubr.f32.mxu0 0.0
    %4401 = vmatmul.mubr.f32.gmra.mrb[0].mxu0 %v4167
    %v4402 = vpop.f32.mrb[0].mxu0
    %v4403 = vadd.f32 0.0, %v4402
    %v4404 = vpop.f32.mrb[0].mxu0
    %4405 = vmatprep.mubr.f32.mxu0 0.0
    %4406 = vmatmul.mubr.f32.gmra.mrb[0].mxu0 %v4168
    %v4407 = vpop.f32.mrb[0].mxu0
    %v4408 = vadd.f32 0.0, %v4407
    %v4409 = vpop.f32.mrb[0].mxu0
    %4410 = vmatprep.mubr.f32.mxu0 0.0
    %4411 = vmatmul.mubr.f32.gmra.mrb[0].mxu0 %v4169
    %v4412 = vpop.f32.mrb[0].mxu0
    %v4413 = vadd.f32 0.0, %v4412
    %v4414 = vpop.f32.mrb[0].mxu0
    %4415 = vmatprep.mubr.f32.mxu0 0.0
    %4416 = vmatmul.mubr.f32.gmra.mrb[0].mxu0 %v4170
    %v4417 = vpop.f32.mrb[0].mxu0
    %v4418 = vadd.f32 0.0, %v4417
    %v4419 = vpop.f32.mrb[0].mxu0
    %4420 = vmatprep.mubr.f32.mxu0 0.0
    %4421 = vmatmul.mubr.f32.gmra.mrb[0].mxu0 %v4171
    %v4422 = vpop.f32.mrb[0].mxu0
    %v4423 = vadd.f32 0.0, %v4422
    %v4424 = vpop.f32.mrb[0].mxu0
    %4425 = vmatprep.mubr.f32.mxu0 0.0
    %4426 = vmatmul.mubr.f32.gmra.mrb[0].mxu0 %v4172
    %v4427 = vpop.f32.mrb[0].mxu0
    %v4428 = vadd.f32 0.0, %v4427
    %v4429 = vpop.f32.mrb[0].mxu0
    %4430 = vmatprep.mubr.f32.mxu0 0.0
    %4431 = vmatmul.mubr.f32.gmra.mrb[0].mxu0 %v4173
    %v4432 = vpop.f32.mrb[0].mxu0
    %v4433 = vadd.f32 0.0, %v4432
    %v4434 = vpop.f32.mrb[0].mxu0
    %4435 = vmatprep.mubr.f32.mxu0 0.0
    %4436 = vmatmul.mubr.f32.gmra.mrb[0].mxu0 %v4174
    %v4437 = vpop.f32.mrb[0].mxu0
    %v4438 = vadd.f32 0.0, %v4437
    %v4439 = vpop.f32.mrb[0].mxu0
    %4440 = vmatprep.mubr.f32.mxu0 0.0
    %4441 = vmatmul.mubr.f32.gmra.mrb[0].mxu0 %v4175
    %v4442 = vpop.f32.mrb[0].mxu0
    %v4443 = vadd.f32 0.0, %v4442
    %v4444 = vpop.f32.mrb[0].mxu0
    %4445 = vmatprep.mubr.f32.mxu0 0.0
    %4446 = vmatmul.mubr.f32.gmra.mrb[0].mxu0 %v4176
    %v4447 = vpop.f32.mrb[0].mxu0
    %v4448 = vadd.f32 0.0, %v4447
    %v4449 = vpop.f32.mrb[0].mxu0
    %4450 = vmatprep.mubr.f32.mxu0 0.0
    %4451 = vmatmul.mubr.f32.gmra.mrb[0].mxu0 %v4177
    %v4452 = vpop.f32.mrb[0].mxu0
    %v4453 = vadd.f32 0.0, %v4452
    %v4454 = vpop.f32.mrb[0].mxu0
    %4455 = vmatprep.mubr.f32.mxu0 0.0
    %4456 = vmatmul.mubr.f32.gmra.mrb[0].mxu0 %v4178
    %v4457 = vpop.f32.mrb[0].mxu0
    %v4458 = vadd.f32 0.0, %v4457
    %v4459 = vpop.f32.mrb[0].mxu0
    %4460 = vmatprep.mubr.f32.mxu0 0.0
    %4461 = vmatmul.mubr.f32.gmra.mrb[0].mxu0 %v4179
    %v4462 = vpop.f32.mrb[0].mxu0
    %v4463 = vadd.f32 0.0, %v4462
    %v4464 = vpop.f32.mrb[0].mxu0
    %4465 = vmatprep.mubr.f32.mxu0 0.0
    %4466 = vmatmul.mubr.f32.gmra.mrb[0].mxu0 %v4180
    %v4467 = vpop.f32.mrb[0].mxu0
    %v4468 = vadd.f32 0.0, %v4467
    %v4469 = vpop.f32.mrb[0].mxu0
    %4470 = vmatprep.mubr.f32.mxu0 0.0
    %4471 = vmatmul.mubr.f32.gmra.mrb[0].mxu0 %v4181
    %v4472 = vpop.f32.mrb[0].mxu0
    %v4473 = vadd.f32 0.0, %v4472
    %v4474 = vpop.f32.mrb[0].mxu0
    %4475 = vmatprep.mubr.f32.mxu0 0.0
    %4476 = vmatmul.mubr.f32.gmra.mrb[0].mxu0 %v4182
    %v4477 = vpop.f32.mrb[0].mxu0
    %v4478 = vadd.f32 0.0, %v4477
    %v4479 = vpop.f32.mrb[0].mxu0
    %4480 = vmatprep.mubr.f32.mxu0 0.0
    %4481 = vmatmul.mubr.f32.gmra.mrb[0].mxu0 %v4183
    %v4482 = vpop.f32.mrb[0].mxu0
    %v4483 = vadd.f32 0.0, %v4482
    %v4484 = vpop.f32.mrb[0].mxu0
    %4485 = vmatprep.mubr.f32.mxu0 0.0
    %4486 = vmatmul.mubr.f32.gmra.mrb[0].mxu0 %v4184
    %v4487 = vpop.f32.mrb[0].mxu0
    %v4488 = vadd.f32 0.0, %v4487
    %v4489 = vpop.f32.mrb[0].mxu0
    %4490 = vmatprep.mubr.f32.mxu0 0.0
    %4491 = vmatmul.mubr.f32.gmra.mrb[0].mxu0 %v4185
    %v4492 = vpop.f32.mrb[0].mxu0
    %v4493 = vadd.f32 0.0, %v4492
    %v4494 = vpop.f32.mrb[0].mxu0
    %4495 = vmatprep.mubr.f32.mxu0 0.0
    %4496 = vmatmul.mubr.f32.gmra.mrb[0].mxu0 %v4186
    %v4497 = vpop.f32.mrb[0].mxu0
    %v4498 = vadd.f32 0.0, %v4497
    %v4499 = vpop.f32.mrb[0].mxu0
    %4500 = vmatprep.mubr.f32.mxu0 0.0
    %4501 = vmatmul.mubr.f32.gmra.mrb[0].mxu0 %v4187
    %v4502 = vpop.f32.mrb[0].mxu0
    %v4503 = vadd.f32 0.0, %v4502
    %v4504 = vpop.f32.mrb[0].mxu0
    %4505 = vmatprep.mubr.f32.mxu0 0.0
    %4506 = vmatmul.mubr.f32.gmra.mrb[0].mxu0 %v4188
    %v4507 = vpop.f32.mrb[0].mxu0
    %v4508 = vadd.f32 0.0, %v4507
    %v4509 = vpop.f32.mrb[0].mxu0
    %4510 = vmatprep.mubr.f32.mxu0 0.0
    %4511 = vmatmul.mubr.f32.gmra.mrb[0].mxu0 %v4189
    %v4512 = vpop.f32.mrb[0].mxu0
    %v4513 = vadd.f32 0.0, %v4512
    %v4514 = vpop.f32.mrb[0].mxu0
    %4515 = vmatprep.mubr.f32.mxu0 0.0
    %4516 = vmatmul.mubr.f32.gmra.mrb[0].mxu0 %v4190
    %v4517 = vpop.f32.mrb[0].mxu0
    %v4518 = vadd.f32 0.0, %v4517
    %v4519 = vpop.f32.mrb[0].mxu0
    %4520 = vmatprep.mubr.f32.mxu0 0.0
    %4521 = vmatmul.mubr.f32.gmra.mrb[0].mxu0 %v4191
    %v4522 = vpop.f32.mrb[0].mxu0
    %v4523 = vadd.f32 0.0, %v4522
    %v4524 = vpop.f32.mrb[0].mxu0
    %4525 = vmatprep.mubr.f32.mxu0 0.0
    %4526 = vmatmul.mubr.f32.gmra.mrb[0].mxu0 %v4192
    %v4527 = vpop.f32.mrb[0].mxu0
    %v4528 = vadd.f32 0.0, %v4527
    %v4529 = vpop.f32.mrb[0].mxu0
    %4530 = vmatprep.mubr.f32.mxu0 0.0
    %4531 = vmatmul.mubr.f32.gmra.mrb[0].mxu0 %v4193
    %v4532 = vpop.f32.mrb[0].mxu0
    %v4533 = vadd.f32 0.0, %v4532
    %v4534 = vpop.f32.mrb[0].mxu0
    %4535 = vmatprep.mubr.f32.mxu0 0.0
    %4536 = vmatmul.mubr.f32.gmra.mrb[0].mxu0 %v4194
    %v4537 = vpop.f32.mrb[0].mxu0
    %v4538 = vadd.f32 0.0, %v4537
    %v4539 = vpop.f32.mrb[0].mxu0
    %4540 = vmatprep.mubr.f32.mxu0 0.0
    %4541 = vmatmul.mubr.f32.gmra.mrb[0].mxu0 %v4195
    %v4542 = vpop.f32.mrb[0].mxu0
    %v4543 = vadd.f32 0.0, %v4542
    %v4544 = vpop.f32.mrb[0].mxu0
    %4545 = vmatprep.mubr.f32.mxu0 0.0
    %4546 = vmatmul.mubr.f32.gmra.mrb[0].mxu0 %v4196
    %v4547 = vpop.f32.mrb[0].mxu0
    %v4548 = vadd.f32 0.0, %v4547
    %v4549 = vpop.f32.mrb[0].mxu0
    %4550 = vmatprep.mubr.f32.mxu0 0.0
    %4551 = vmatmul.mubr.f32.gmra.mrb[0].mxu0 %v4197
    %v4552 = vpop.f32.mrb[0].mxu0
    %v4553 = vadd.f32 0.0, %v4552
    %v4554 = vpop.f32.mrb[0].mxu0
    %4555 = vmatprep.mubr.f32.mxu0 0.0
    %4556 = vmatmul.mubr.f32.gmra.mrb[0].mxu0 %v4198
    %v4557 = vpop.f32.mrb[0].mxu0
    %v4558 = vadd.f32 0.0, %v4557
    %v4559 = vpop.f32.mrb[0].mxu0
    %4560 = vmatprep.mubr.f32.mxu0 0.0
    %4561 = vmatmul.mubr.f32.gmra.mrb[0].mxu0 %v4199
    %v4562 = vpop.f32.mrb[0].mxu0
    %v4563 = vadd.f32 0.0, %v4562
    %v4564 = vpop.f32.mrb[0].mxu0
    %4565 = vmatprep.mubr.f32.mxu0 0.0
    %4566 = vmatmul.mubr.f32.gmra.mrb[0].mxu0 %v4200
    %v4567 = vpop.f32.mrb[0].mxu0
    %v4568 = vadd.f32 0.0, %v4567
    %v4569 = vpop.f32.mrb[0].mxu0
    %4570 = vmatprep.mubr.f32.mxu0 0.0
    %4571 = vmatmul.mubr.f32.gmra.mrb[0].mxu0 %v4201
    %v4572 = vpop.f32.mrb[0].mxu0
    %v4573 = vadd.f32 0.0, %v4572
    %v4574 = vpop.f32.mrb[0].mxu0
    %4575 = vmatprep.mubr.f32.mxu0 0.0
    %4576 = vmatmul.mubr.f32.gmra.mrb[0].mxu0 %v4202
    %v4577 = vpop.f32.mrb[0].mxu0
    %v4578 = vadd.f32 0.0, %v4577
    %v4579 = vpop.f32.mrb[0].mxu0
    %4580 = vmatprep.mubr.f32.mxu0 0.0
    %4581 = vmatmul.mubr.f32.gmra.mrb[0].mxu0 %v4203
    %v4582 = vpop.f32.mrb[0].mxu0
    %v4583 = vadd.f32 0.0, %v4582
    %v4584 = vpop.f32.mrb[0].mxu0
    %4585 = vmatprep.mubr.f32.mxu0 0.0
    %4586 = vmatmul.mubr.f32.gmra.mrb[0].mxu0 %v4204
    %v4587 = vpop.f32.mrb[0].mxu0
    %v4588 = vadd.f32 0.0, %v4587
    %v4589 = vpop.f32.mrb[0].mxu0
    %4590 = vmatprep.mubr.f32.mxu0 0.0
    %4591 = vmatmul.mubr.f32.gmra.mrb[0].mxu0 %v4205
    %v4592 = vpop.f32.mrb[0].mxu0
    %v4593 = vadd.f32 0.0, %v4592
    %v4594 = vpop.f32.mrb[0].mxu0
    %4595 = vmatprep.mubr.f32.mxu0 0.0
    %4596 = vmatmul.mubr.f32.gmra.mrb[0].mxu0 %v4206
    %v4597 = vpop.f32.mrb[0].mxu0
    %v4598 = vadd.f32 0.0, %v4597
    %v4599 = vpop.f32.mrb[0].mxu0
    %4600 = vmatprep.mubr.f32.mxu0 0.0
    %4601 = vmatmul.mubr.f32.gmra.mrb[0].mxu0 %v4207
    %v4602 = vpop.f32.mrb[0].mxu0
    %v4603 = vadd.f32 0.0, %v4602
    %v4604 = vpop.f32.mrb[0].mxu0
    %4605 = vmatprep.mubr.f32.mxu0 0.0
    %4606 = vmatmul.mubr.f32.gmra.mrb[0].mxu0 %v4208
    %v4607 = vpop.f32.mrb[0].mxu0
    %v4608 = vadd.f32 0.0, %v4607
    %v4609 = vpop.f32.mrb[0].mxu0
    %4610 = vdwg.mxu0
    %v4611 = vadd.f32 %v4081, %v4293
    %v4612 = vadd.f32 %v4082, %v4298
    %v4613 = vadd.f32 %v4083, %v4303
    %v4614 = vadd.f32 %v4084, %v4308
    %v4615 = vadd.f32 %v4085, %v4313
    %v4616 = vadd.f32 %v4086, %v4318
    %v4617 = vadd.f32 %v4087, %v4323
    %v4618 = vadd.f32 %v4088, %v4328
    %v4619 = vadd.f32 %v4089, %v4333
    %v4620 = vadd.f32 %v4090, %v4338
    %v4621 = vadd.f32 %v4091, %v4343
    %v4622 = vadd.f32 %v4092, %v4348
    %v4623 = vadd.f32 %v4093, %v4353
    %v4624 = vadd.f32 %v4094, %v4358
    %v4625 = vadd.f32 %v4095, %v4363
    %v4626 = vadd.f32 %v4096, %v4368
    %v4627 = vadd.f32 %v4097, %v4373
    %v4628 = vadd.f32 %v4098, %v4378
    %v4629 = vadd.f32 %v4099, %v4383
    %v4630 = vadd.f32 %v4100, %v4388
    %v4631 = vadd.f32 %v4101, %v4393
    %v4632 = vadd.f32 %v4102, %v4398
    %v4633 = vadd.f32 %v4103, %v4403
    %v4634 = vadd.f32 %v4104, %v4408
    %v4635 = vadd.f32 %v4105, %v4413
    %v4636 = vadd.f32 %v4106, %v4418
    %v4637 = vadd.f32 %v4107, %v4423
    %v4638 = vadd.f32 %v4108, %v4428
    %v4639 = vadd.f32 %v4109, %v4433
    %v4640 = vadd.f32 %v4110, %v4438
    %v4641 = vadd.f32 %v4111, %v4443
    %v4642 = vadd.f32 %v4112, %v4448
    %v4643 = vadd.f32 %v4113, %v4453
    %v4644 = vadd.f32 %v4114, %v4458
    %v4645 = vadd.f32 %v4115, %v4463
    %v4646 = vadd.f32 %v4116, %v4468
    %v4647 = vadd.f32 %v4117, %v4473
    %v4648 = vadd.f32 %v4118, %v4478
    %v4649 = vadd.f32 %v4119, %v4483
    %v4650 = vadd.f32 %v4120, %v4488
    %v4651 = vadd.f32 %v4121, %v4493
    %v4652 = vadd.f32 %v4122, %v4498
    %v4653 = vadd.f32 %v4123, %v4503
    %v4654 = vadd.f32 %v4124, %v4508
    %v4655 = vadd.f32 %v4125, %v4513
    %v4656 = vadd.f32 %v4126, %v4518
    %v4657 = vadd.f32 %v4127, %v4523
    %v4658 = vadd.f32 %v4128, %v4528
    %v4659 = vadd.f32 %v4129, %v4533
    %v4660 = vadd.f32 %v4130, %v4538
    %v4661 = vadd.f32 %v4131, %v4543
    %v4662 = vadd.f32 %v4132, %v4548
    %v4663 = vadd.f32 %v4133, %v4553
    %v4664 = vadd.f32 %v4134, %v4558
    %v4665 = vadd.f32 %v4135, %v4563
    %v4666 = vadd.f32 %v4136, %v4568
    %v4667 = vadd.f32 %v4137, %v4573
    %v4668 = vadd.f32 %v4138, %v4578
    %v4669 = vadd.f32 %v4139, %v4583
    %v4670 = vadd.f32 %v4140, %v4588
    %v4671 = vadd.f32 %v4141, %v4593
    %v4672 = vadd.f32 %v4142, %v4598
    %v4673 = vadd.f32 %v4143, %v4603
    %v4674 = vadd.f32 %v4144, %v4608
    %v4675 = vld [vmem:[%s3] sm:$0x1]
    %v4676 = vlaneseq
    %v4677 = vshrl.u32 %v4676, 7
    %v4678 = vsub.s32 0, %v4677
    %v4679 = vrot.slane %v4675, %v4678
    %v4680 = vmul.f32 %v4611, %v4679
    %v4681 = vmul.f32 %v4612, %v4679
    %v4682 = vmul.f32 %v4613, %v4679
    %v4683 = vmul.f32 %v4614, %v4679
    %v4684 = vmul.f32 %v4615, %v4679
    %v4685 = vmul.f32 %v4616, %v4679
    %v4686 = vmul.f32 %v4617, %v4679
    %v4687 = vmul.f32 %v4618, %v4679
    %v4688 = vmul.f32 %v4619, %v4679
    %v4689 = vmul.f32 %v4620, %v4679
    %v4690 = vmul.f32 %v4621, %v4679
    %v4691 = vmul.f32 %v4622, %v4679
    %v4692 = vmul.f32 %v4623, %v4679
    %v4693 = vmul.f32 %v4624, %v4679
    %v4694 = vmul.f32 %v4625, %v4679
    %v4695 = vmul.f32 %v4626, %v4679
    %v4696 = vmul.f32 %v4627, %v4679
    %v4697 = vmul.f32 %v4628, %v4679
    %v4698 = vmul.f32 %v4629, %v4679
    %v4699 = vmul.f32 %v4630, %v4679
    %v4700 = vmul.f32 %v4631, %v4679
    %v4701 = vmul.f32 %v4632, %v4679
    %v4702 = vmul.f32 %v4633, %v4679
    %v4703 = vmul.f32 %v4634, %v4679
    %v4704 = vmul.f32 %v4635, %v4679
    %v4705 = vmul.f32 %v4636, %v4679
    %v4706 = vmul.f32 %v4637, %v4679
    %v4707 = vmul.f32 %v4638, %v4679
    %v4708 = vmul.f32 %v4639, %v4679
    %v4709 = vmul.f32 %v4640, %v4679
    %v4710 = vmul.f32 %v4641, %v4679
    %v4711 = vmul.f32 %v4642, %v4679
    %v4712 = vmul.f32 %v4643, %v4679
    %v4713 = vmul.f32 %v4644, %v4679
    %v4714 = vmul.f32 %v4645, %v4679
    %v4715 = vmul.f32 %v4646, %v4679
    %v4716 = vmul.f32 %v4647, %v4679
    %v4717 = vmul.f32 %v4648, %v4679
    %v4718 = vmul.f32 %v4649, %v4679
    %v4719 = vmul.f32 %v4650, %v4679
    %v4720 = vmul.f32 %v4651, %v4679
    %v4721 = vmul.f32 %v4652, %v4679
    %v4722 = vmul.f32 %v4653, %v4679
    %v4723 = vmul.f32 %v4654, %v4679
    %v4724 = vmul.f32 %v4655, %v4679
    %v4725 = vmul.f32 %v4656, %v4679
    %v4726 = vmul.f32 %v4657, %v4679
    %v4727 = vmul.f32 %v4658, %v4679
    %v4728 = vmul.f32 %v4659, %v4679
    %v4729 = vmul.f32 %v4660, %v4679
    %v4730 = vmul.f32 %v4661, %v4679
    %v4731 = vmul.f32 %v4662, %v4679
    %v4732 = vmul.f32 %v4663, %v4679
    %v4733 = vmul.f32 %v4664, %v4679
    %v4734 = vmul.f32 %v4665, %v4679
    %v4735 = vmul.f32 %v4666, %v4679
    %v4736 = vmul.f32 %v4667, %v4679
    %v4737 = vmul.f32 %v4668, %v4679
    %v4738 = vmul.f32 %v4669, %v4679
    %v4739 = vmul.f32 %v4670, %v4679
    %v4740 = vmul.f32 %v4671, %v4679
    %v4741 = vmul.f32 %v4672, %v4679
    %v4742 = vmul.f32 %v4673, %v4679
    %v4743 = vmul.f32 %v4674, %v4679
    %v4744 = vld [vmem:[%s3 + $0x1] sm:$0x1]
    %v4745 = vlaneseq
    %v4746 = vshrl.u32 %v4745, 7
    %v4747 = vsub.s32 0, %v4746
    %v4748 = vrot.slane %v4744, %v4747
    %v4749 = vadd.f32 %v4680, %v4748
    %v4750 = vadd.f32 %v4681, %v4748
    %v4751 = vadd.f32 %v4682, %v4748
    %v4752 = vadd.f32 %v4683, %v4748
    %v4753 = vadd.f32 %v4684, %v4748
    %v4754 = vadd.f32 %v4685, %v4748
    %v4755 = vadd.f32 %v4686, %v4748
    %v4756 = vadd.f32 %v4687, %v4748
    %v4757 = vadd.f32 %v4688, %v4748
    %v4758 = vadd.f32 %v4689, %v4748
    %v4759 = vadd.f32 %v4690, %v4748
    %v4760 = vadd.f32 %v4691, %v4748
    %v4761 = vadd.f32 %v4692, %v4748
    %v4762 = vadd.f32 %v4693, %v4748
    %v4763 = vadd.f32 %v4694, %v4748
    %v4764 = vadd.f32 %v4695, %v4748
    %v4765 = vadd.f32 %v4696, %v4748
    %v4766 = vadd.f32 %v4697, %v4748
    %v4767 = vadd.f32 %v4698, %v4748
    %v4768 = vadd.f32 %v4699, %v4748
    %v4769 = vadd.f32 %v4700, %v4748
    %v4770 = vadd.f32 %v4701, %v4748
    %v4771 = vadd.f32 %v4702, %v4748
    %v4772 = vadd.f32 %v4703, %v4748
    %v4773 = vadd.f32 %v4704, %v4748
    %v4774 = vadd.f32 %v4705, %v4748
    %v4775 = vadd.f32 %v4706, %v4748
    %v4776 = vadd.f32 %v4707, %v4748
    %v4777 = vadd.f32 %v4708, %v4748
    %v4778 = vadd.f32 %v4709, %v4748
    %v4779 = vadd.f32 %v4710, %v4748
    %v4780 = vadd.f32 %v4711, %v4748
    %v4781 = vadd.f32 %v4712, %v4748
    %v4782 = vadd.f32 %v4713, %v4748
    %v4783 = vadd.f32 %v4714, %v4748
    %v4784 = vadd.f32 %v4715, %v4748
    %v4785 = vadd.f32 %v4716, %v4748
    %v4786 = vadd.f32 %v4717, %v4748
    %v4787 = vadd.f32 %v4718, %v4748
    %v4788 = vadd.f32 %v4719, %v4748
    %v4789 = vadd.f32 %v4720, %v4748
    %v4790 = vadd.f32 %v4721, %v4748
    %v4791 = vadd.f32 %v4722, %v4748
    %v4792 = vadd.f32 %v4723, %v4748
    %v4793 = vadd.f32 %v4724, %v4748
    %v4794 = vadd.f32 %v4725, %v4748
    %v4795 = vadd.f32 %v4726, %v4748
    %v4796 = vadd.f32 %v4727, %v4748
    %v4797 = vadd.f32 %v4728, %v4748
    %v4798 = vadd.f32 %v4729, %v4748
    %v4799 = vadd.f32 %v4730, %v4748
    %v4800 = vadd.f32 %v4731, %v4748
    %v4801 = vadd.f32 %v4732, %v4748
    %v4802 = vadd.f32 %v4733, %v4748
    %v4803 = vadd.f32 %v4734, %v4748
    %v4804 = vadd.f32 %v4735, %v4748
    %v4805 = vadd.f32 %v4736, %v4748
    %v4806 = vadd.f32 %v4737, %v4748
    %v4807 = vadd.f32 %v4738, %v4748
    %v4808 = vadd.f32 %v4739, %v4748
    %v4809 = vadd.f32 %v4740, %v4748
    %v4810 = vadd.f32 %v4741, %v4748
    %v4811 = vadd.f32 %v4742, %v4748
    %v4812 = vadd.f32 %v4743, %v4748
    %v4813 = vmax.f32 %v4749, 0.0
    %v4814 = vmax.f32 %v4750, 0.0
    %v4815 = vmax.f32 %v4751, 0.0
    %v4816 = vmax.f32 %v4752, 0.0
    %v4817 = vmax.f32 %v4753, 0.0
    %v4818 = vmax.f32 %v4754, 0.0
    %v4819 = vmax.f32 %v4755, 0.0
    %v4820 = vmax.f32 %v4756, 0.0
    %v4821 = vmax.f32 %v4757, 0.0
    %v4822 = vmax.f32 %v4758, 0.0
    %v4823 = vmax.f32 %v4759, 0.0
    %v4824 = vmax.f32 %v4760, 0.0
    %v4825 = vmax.f32 %v4761, 0.0
    %v4826 = vmax.f32 %v4762, 0.0
    %v4827 = vmax.f32 %v4763, 0.0
    %v4828 = vmax.f32 %v4764, 0.0
    %v4829 = vmax.f32 %v4765, 0.0
    %v4830 = vmax.f32 %v4766, 0.0
    %v4831 = vmax.f32 %v4767, 0.0
    %v4832 = vmax.f32 %v4768, 0.0
    %v4833 = vmax.f32 %v4769, 0.0
    %v4834 = vmax.f32 %v4770, 0.0
    %v4835 = vmax.f32 %v4771, 0.0
    %v4836 = vmax.f32 %v4772, 0.0
    %v4837 = vmax.f32 %v4773, 0.0
    %v4838 = vmax.f32 %v4774, 0.0
    %v4839 = vmax.f32 %v4775, 0.0
    %v4840 = vmax.f32 %v4776, 0.0
    %v4841 = vmax.f32 %v4777, 0.0
    %v4842 = vmax.f32 %v4778, 0.0
    %v4843 = vmax.f32 %v4779, 0.0
    %v4844 = vmax.f32 %v4780, 0.0
    %v4845 = vmax.f32 %v4781, 0.0
    %v4846 = vmax.f32 %v4782, 0.0
    %v4847 = vmax.f32 %v4783, 0.0
    %v4848 = vmax.f32 %v4784, 0.0
    %v4849 = vmax.f32 %v4785, 0.0
    %v4850 = vmax.f32 %v4786, 0.0
    %v4851 = vmax.f32 %v4787, 0.0
    %v4852 = vmax.f32 %v4788, 0.0
    %v4853 = vmax.f32 %v4789, 0.0
    %v4854 = vmax.f32 %v4790, 0.0
    %v4855 = vmax.f32 %v4791, 0.0
    %v4856 = vmax.f32 %v4792, 0.0
    %v4857 = vmax.f32 %v4793, 0.0
    %v4858 = vmax.f32 %v4794, 0.0
    %v4859 = vmax.f32 %v4795, 0.0
    %v4860 = vmax.f32 %v4796, 0.0
    %v4861 = vmax.f32 %v4797, 0.0
    %v4862 = vmax.f32 %v4798, 0.0
    %v4863 = vmax.f32 %v4799, 0.0
    %v4864 = vmax.f32 %v4800, 0.0
    %v4865 = vmax.f32 %v4801, 0.0
    %v4866 = vmax.f32 %v4802, 0.0
    %v4867 = vmax.f32 %v4803, 0.0
    %v4868 = vmax.f32 %v4804, 0.0
    %v4869 = vmax.f32 %v4805, 0.0
    %v4870 = vmax.f32 %v4806, 0.0
    %v4871 = vmax.f32 %v4807, 0.0
    %v4872 = vmax.f32 %v4808, 0.0
    %v4873 = vmax.f32 %v4809, 0.0
    %v4874 = vmax.f32 %v4810, 0.0
    %v4875 = vmax.f32 %v4811, 0.0
    %v4876 = vmax.f32 %v4812, 0.0
    %4877 = vst [vmem:[#allocation2] sm:$0xff] 0.0
    %4878 = vst [vmem:[#allocation2 + $0x8] sm:$0xff] 0.0
    %4879 = vst [vmem:[#allocation2 + $0x10] sm:$0x3] 0.0
    %4880 = vst [vmem:[#allocation2 + $0x1b0] sm:$0xff] 0.0
    %4881 = vst [vmem:[#allocation2 + $0x1b8] sm:$0xff] 0.0
    %4882 = vst [vmem:[#allocation2 + $0x1c0] sm:$0x3] 0.0
    %s4883 = scalar_lea.vmem [#allocation2], 408
    %4884 = vst [vmem:[%s4883] sm:$0xff] 0.0
    %4885 = vst [vmem:[%s4883 + $0x8] sm:$0xff] 0.0
    %4886 = vst [vmem:[%s4883 + $0x10] sm:$0x3] 0.0
    %4887 = vst [vmem:[%s4883 + $0x1b0] sm:$0xff] 0.0
    %4888 = vst [vmem:[%s4883 + $0x1b8] sm:$0xff] 0.0
    %4889 = vst [vmem:[%s4883 + $0x1c0] sm:$0x3] 0.0
    %4890 = vst [vmem:[#allocation2] sm:$0x1] 0.0
    %4891 = vst [vmem:[#allocation2 + $0x18] sm:$0x1] 0.0
    %4892 = vst [vmem:[#allocation2 + $0x30] sm:$0x1] 0.0
    %4893 = vst [vmem:[#allocation2 + $0x48] sm:$0x1] 0.0
    %4894 = vst [vmem:[#allocation2 + $0x60] sm:$0x1] 0.0
    %4895 = vst [vmem:[#allocation2 + $0x78] sm:$0x1] 0.0
    %4896 = vst [vmem:[#allocation2 + $0x90] sm:$0x1] 0.0
    %4897 = vst [vmem:[#allocation2 + $0xa8] sm:$0x1] 0.0
    %4898 = vst [vmem:[#allocation2 + $0xc0] sm:$0x1] 0.0
    %4899 = vst [vmem:[#allocation2 + $0xd8] sm:$0x1] 0.0
    %4900 = vst [vmem:[#allocation2 + $0xf0] sm:$0x1] 0.0
    %4901 = vst [vmem:[#allocation2 + $0x108] sm:$0x1] 0.0
    %4902 = vst [vmem:[#allocation2 + $0x120] sm:$0x1] 0.0
    %4903 = vst [vmem:[#allocation2 + $0x138] sm:$0x1] 0.0
    %4904 = vst [vmem:[#allocation2 + $0x150] sm:$0x1] 0.0
    %4905 = vst [vmem:[#allocation2 + $0x168] sm:$0x1] 0.0
    %4906 = vst [vmem:[#allocation2 + $0x180] sm:$0x1] 0.0
    %4907 = vst [vmem:[#allocation2 + $0x198] sm:$0x1] 0.0
    %4908 = vst [vmem:[#allocation2 + $0x1b0] sm:$0x1] 0.0
    %4909 = vst [vmem:[#allocation2 + $0x1c8] sm:$0x1] 0.0
    %4910 = vst [vmem:[#allocation2 + $0x1e0] sm:$0x1] 0.0
    %4911 = vst [vmem:[#allocation2 + $0x1f8] sm:$0x1] 0.0
    %4912 = vst [vmem:[#allocation2 + $0x210] sm:$0x1] 0.0
    %4913 = vst [vmem:[#allocation2 + $0x228] sm:$0x1] 0.0
    %4914 = vst [vmem:[#allocation2 + $0x240] sm:$0x1] 0.0
    %4915 = vst [vmem:[#allocation2 + $0x258] sm:$0x1] 0.0
    %4916 = vst [vmem:[#allocation2 + $0x270] sm:$0x1] 0.0
    %4917 = vst [vmem:[#allocation2 + $0x288] sm:$0x1] 0.0
    %4918 = vst [vmem:[#allocation2 + $0x2a0] sm:$0x1] 0.0
    %4919 = vst [vmem:[#allocation2 + $0x2b8] sm:$0x1] 0.0
    %4920 = vst [vmem:[#allocation2 + $0x2d0] sm:$0x1] 0.0
    %4921 = vst [vmem:[#allocation2 + $0x2e8] sm:$0x1] 0.0
    %4922 = vst [vmem:[#allocation2 + $0x300] sm:$0x1] 0.0
    %4923 = vst [vmem:[#allocation2 + $0x318] sm:$0x1] 0.0
    %4924 = vst [vmem:[#allocation2 + $0x330] sm:$0x1] 0.0
    %4925 = vst [vmem:[#allocation2 + $0x348] sm:$0x1] 0.0
    %4926 = vst [vmem:[#allocation2 + $0x11] sm:$0x1] 0.0
    %4927 = vst [vmem:[#allocation2 + $0x29] sm:$0x1] 0.0
    %4928 = vst [vmem:[#allocation2 + $0x41] sm:$0x1] 0.0
    %4929 = vst [vmem:[#allocation2 + $0x59] sm:$0x1] 0.0
    %4930 = vst [vmem:[#allocation2 + $0x71] sm:$0x1] 0.0
    %4931 = vst [vmem:[#allocation2 + $0x89] sm:$0x1] 0.0
    %4932 = vst [vmem:[#allocation2 + $0xa1] sm:$0x1] 0.0
    %4933 = vst [vmem:[#allocation2 + $0xb9] sm:$0x1] 0.0
    %4934 = vst [vmem:[#allocation2 + $0xd1] sm:$0x1] 0.0
    %4935 = vst [vmem:[#allocation2 + $0xe9] sm:$0x1] 0.0
    %4936 = vst [vmem:[#allocation2 + $0x101] sm:$0x1] 0.0
    %4937 = vst [vmem:[#allocation2 + $0x119] sm:$0x1] 0.0
    %4938 = vst [vmem:[#allocation2 + $0x131] sm:$0x1] 0.0
    %4939 = vst [vmem:[#allocation2 + $0x149] sm:$0x1] 0.0
    %4940 = vst [vmem:[#allocation2 + $0x161] sm:$0x1] 0.0
    %4941 = vst [vmem:[#allocation2 + $0x179] sm:$0x1] 0.0
    %4942 = vst [vmem:[#allocation2 + $0x191] sm:$0x1] 0.0
    %4943 = vst [vmem:[#allocation2 + $0x1a9] sm:$0x1] 0.0
    %4944 = vst [vmem:[#allocation2 + $0x1c1] sm:$0x1] 0.0
    %4945 = vst [vmem:[#allocation2 + $0x1d9] sm:$0x1] 0.0
    %4946 = vst [vmem:[#allocation2 + $0x1f1] sm:$0x1] 0.0
    %4947 = vst [vmem:[#allocation2 + $0x209] sm:$0x1] 0.0
    %4948 = vst [vmem:[#allocation2 + $0x221] sm:$0x1] 0.0
    %4949 = vst [vmem:[#allocation2 + $0x239] sm:$0x1] 0.0
    %4950 = vst [vmem:[#allocation2 + $0x251] sm:$0x1] 0.0
    %4951 = vst [vmem:[#allocation2 + $0x269] sm:$0x1] 0.0
    %4952 = vst [vmem:[#allocation2 + $0x281] sm:$0x1] 0.0
    %4953 = vst [vmem:[#allocation2 + $0x299] sm:$0x1] 0.0
    %4954 = vst [vmem:[#allocation2 + $0x2b1] sm:$0x1] 0.0
    %4955 = vst [vmem:[#allocation2 + $0x2c9] sm:$0x1] 0.0
    %4956 = vst [vmem:[#allocation2 + $0x2e1] sm:$0x1] 0.0
    %4957 = vst [vmem:[#allocation2 + $0x2f9] sm:$0x1] 0.0
    %4958 = vst [vmem:[#allocation2 + $0x311] sm:$0x1] 0.0
    %4959 = vst [vmem:[#allocation2 + $0x329] sm:$0x1] 0.0
    %4960 = vst [vmem:[#allocation2 + $0x341] sm:$0x1] 0.0
    %4961 = vst [vmem:[#allocation2 + $0x359] sm:$0x1] 0.0
    %s4962 = scalar_lea.vmem [#allocation2], 24
    %4963 = vst [vmem:[%s4962 + $0x1] sm:$0xff] %v4813
    %4964 = vst [vmem:[%s4962 + $0x9] sm:$0xff] %v4814
    %4965 = vst [vmem:[%s4962 + $0x19] sm:$0xff] %v4815
    %4966 = vst [vmem:[%s4962 + $0x21] sm:$0xff] %v4816
    %4967 = vst [vmem:[%s4962 + $0x31] sm:$0xff] %v4817
    %4968 = vst [vmem:[%s4962 + $0x39] sm:$0xff] %v4818
    %4969 = vst [vmem:[%s4962 + $0x49] sm:$0xff] %v4819
    %4970 = vst [vmem:[%s4962 + $0x51] sm:$0xff] %v4820
    %4971 = vst [vmem:[%s4962 + $0x61] sm:$0xff] %v4821
    %4972 = vst [vmem:[%s4962 + $0x69] sm:$0xff] %v4822
    %4973 = vst [vmem:[%s4962 + $0x79] sm:$0xff] %v4823
    %4974 = vst [vmem:[%s4962 + $0x81] sm:$0xff] %v4824
    %4975 = vst [vmem:[%s4962 + $0x91] sm:$0xff] %v4825
    %4976 = vst [vmem:[%s4962 + $0x99] sm:$0xff] %v4826
    %4977 = vst [vmem:[%s4962 + $0xa9] sm:$0xff] %v4827
    %4978 = vst [vmem:[%s4962 + $0xb1] sm:$0xff] %v4828
    %4979 = vst [vmem:[%s4962 + $0xc1] sm:$0xff] %v4829
    %4980 = vst [vmem:[%s4962 + $0xc9] sm:$0xff] %v4830
    %4981 = vst [vmem:[%s4962 + $0xd9] sm:$0xff] %v4831
    %4982 = vst [vmem:[%s4962 + $0xe1] sm:$0xff] %v4832
    %4983 = vst [vmem:[%s4962 + $0xf1] sm:$0xff] %v4833
    %4984 = vst [vmem:[%s4962 + $0xf9] sm:$0xff] %v4834
    %4985 = vst [vmem:[%s4962 + $0x109] sm:$0xff] %v4835
    %4986 = vst [vmem:[%s4962 + $0x111] sm:$0xff] %v4836
    %4987 = vst [vmem:[%s4962 + $0x121] sm:$0xff] %v4837
    %4988 = vst [vmem:[%s4962 + $0x129] sm:$0xff] %v4838
    %4989 = vst [vmem:[%s4962 + $0x139] sm:$0xff] %v4839
    %4990 = vst [vmem:[%s4962 + $0x141] sm:$0xff] %v4840
    %4991 = vst [vmem:[%s4962 + $0x151] sm:$0xff] %v4841
    %4992 = vst [vmem:[%s4962 + $0x159] sm:$0xff] %v4842
    %4993 = vst [vmem:[%s4962 + $0x169] sm:$0xff] %v4843
    %4994 = vst [vmem:[%s4962 + $0x171] sm:$0xff] %v4844
    %4995 = vst [vmem:[%s4962 + $0x1b1] sm:$0xff] %v4845
    %4996 = vst [vmem:[%s4962 + $0x1b9] sm:$0xff] %v4846
    %4997 = vst [vmem:[%s4962 + $0x1c9] sm:$0xff] %v4847
    %4998 = vst [vmem:[%s4962 + $0x1d1] sm:$0xff] %v4848
    %4999 = vst [vmem:[%s4962 + $0x1e1] sm:$0xff] %v4849
    %5000 = vst [vmem:[%s4962 + $0x1e9] sm:$0xff] %v4850
    %5001 = vst [vmem:[%s4962 + $0x1f9] sm:$0xff] %v4851
    %5002 = vst [vmem:[%s4962 + $0x201] sm:$0xff] %v4852
    %5003 = vst [vmem:[%s4962 + $0x211] sm:$0xff] %v4853
    %5004 = vst [vmem:[%s4962 + $0x219] sm:$0xff] %v4854
    %5005 = vst [vmem:[%s4962 + $0x229] sm:$0xff] %v4855
    %5006 = vst [vmem:[%s4962 + $0x231] sm:$0xff] %v4856
    %5007 = vst [vmem:[%s4962 + $0x241] sm:$0xff] %v4857
    %5008 = vst [vmem:[%s4962 + $0x249] sm:$0xff] %v4858
    %5009 = vst [vmem:[%s4962 + $0x259] sm:$0xff] %v4859
    %5010 = vst [vmem:[%s4962 + $0x261] sm:$0xff] %v4860
    %5011 = vst [vmem:[%s4962 + $0x271] sm:$0xff] %v4861
    %5012 = vst [vmem:[%s4962 + $0x279] sm:$0xff] %v4862
    %5013 = vst [vmem:[%s4962 + $0x289] sm:$0xff] %v4863
    %5014 = vst [vmem:[%s4962 + $0x291] sm:$0xff] %v4864
    %5015 = vst [vmem:[%s4962 + $0x2a1] sm:$0xff] %v4865
    %5016 = vst [vmem:[%s4962 + $0x2a9] sm:$0xff] %v4866
    %5017 = vst [vmem:[%s4962 + $0x2b9] sm:$0xff] %v4867
    %5018 = vst [vmem:[%s4962 + $0x2c1] sm:$0xff] %v4868
    %5019 = vst [vmem:[%s4962 + $0x2d1] sm:$0xff] %v4869
    %5020 = vst [vmem:[%s4962 + $0x2d9] sm:$0xff] %v4870
    %5021 = vst [vmem:[%s4962 + $0x2e9] sm:$0xff] %v4871
    %5022 = vst [vmem:[%s4962 + $0x2f1] sm:$0xff] %v4872
    %5023 = vst [vmem:[%s4962 + $0x301] sm:$0xff] %v4873
    %5024 = vst [vmem:[%s4962 + $0x309] sm:$0xff] %v4874
    %5025 = vst [vmem:[%s4962 + $0x319] sm:$0xff] %v4875
    %5026 = vst [vmem:[%s4962 + $0x321] sm:$0xff] %v4876
    %v5027 = vld [vmem:[#allocation2] sm:$0xff]
    %v5028 = vld [vmem:[#allocation2 + $0x8] sm:$0xff]
    %v5029 = vld [vmem:[#allocation2 + $0x18] sm:$0xff]
    %v5030 = vld [vmem:[#allocation2 + $0x20] sm:$0xff]
    %v5031 = vld [vmem:[#allocation2 + $0x30] sm:$0xff]
    %v5032 = vld [vmem:[#allocation2 + $0x38] sm:$0xff]
    %v5033 = vld [vmem:[#allocation2 + $0x48] sm:$0xff]
    %v5034 = vld [vmem:[#allocation2 + $0x50] sm:$0xff]
    %v5035 = vld [vmem:[#allocation2 + $0x60] sm:$0xff]
    %v5036 = vld [vmem:[#allocation2 + $0x68] sm:$0xff]
    %v5037 = vld [vmem:[#allocation2 + $0x78] sm:$0xff]
    %v5038 = vld [vmem:[#allocation2 + $0x80] sm:$0xff]
    %v5039 = vld [vmem:[#allocation2 + $0x90] sm:$0xff]
    %v5040 = vld [vmem:[#allocation2 + $0x98] sm:$0xff]
    %v5041 = vld [vmem:[#allocation2 + $0xa8] sm:$0xff]
    %v5042 = vld [vmem:[#allocation2 + $0xb0] sm:$0xff]
    %v5043 = vld [vmem:[#allocation2 + $0xc0] sm:$0xff]
    %v5044 = vld [vmem:[#allocation2 + $0xc8] sm:$0xff]
    %v5045 = vld [vmem:[#allocation2 + $0xd8] sm:$0xff]
    %v5046 = vld [vmem:[#allocation2 + $0xe0] sm:$0xff]
    %v5047 = vld [vmem:[#allocation2 + $0xf0] sm:$0xff]
    %v5048 = vld [vmem:[#allocation2 + $0xf8] sm:$0xff]
    %v5049 = vld [vmem:[#allocation2 + $0x108] sm:$0xff]
    %v5050 = vld [vmem:[#allocation2 + $0x110] sm:$0xff]
    %v5051 = vld [vmem:[#allocation2 + $0x120] sm:$0xff]
    %v5052 = vld [vmem:[#allocation2 + $0x128] sm:$0xff]
    %v5053 = vld [vmem:[#allocation2 + $0x138] sm:$0xff]
    %v5054 = vld [vmem:[#allocation2 + $0x140] sm:$0xff]
    %v5055 = vld [vmem:[#allocation2 + $0x150] sm:$0xff]
    %v5056 = vld [vmem:[#allocation2 + $0x158] sm:$0xff]
    %v5057 = vld [vmem:[#allocation2 + $0x168] sm:$0xff]
    %v5058 = vld [vmem:[#allocation2 + $0x170] sm:$0xff]
    %v5059 = vld [vmem:[#allocation2 + $0x1b0] sm:$0xff]
    %v5060 = vld [vmem:[#allocation2 + $0x1b8] sm:$0xff]
    %v5061 = vld [vmem:[#allocation2 + $0x1c8] sm:$0xff]
    %v5062 = vld [vmem:[#allocation2 + $0x1d0] sm:$0xff]
    %v5063 = vld [vmem:[#allocation2 + $0x1e0] sm:$0xff]
    %v5064 = vld [vmem:[#allocation2 + $0x1e8] sm:$0xff]
    %v5065 = vld [vmem:[#allocation2 + $0x1f8] sm:$0xff]
    %v5066 = vld [vmem:[#allocation2 + $0x200] sm:$0xff]
    %v5067 = vld [vmem:[#allocation2 + $0x210] sm:$0xff]
    %v5068 = vld [vmem:[#allocation2 + $0x218] sm:$0xff]
    %v5069 = vld [vmem:[#allocation2 + $0x228] sm:$0xff]
    %v5070 = vld [vmem:[#allocation2 + $0x230] sm:$0xff]
    %v5071 = vld [vmem:[#allocation2 + $0x240] sm:$0xff]
    %v5072 = vld [vmem:[#allocation2 + $0x248] sm:$0xff]
    %v5073 = vld [vmem:[#allocation2 + $0x258] sm:$0xff]
    %v5074 = vld [vmem:[#allocation2 + $0x260] sm:$0xff]
    %v5075 = vld [vmem:[#allocation2 + $0x270] sm:$0xff]
    %v5076 = vld [vmem:[#allocation2 + $0x278] sm:$0xff]
    %v5077 = vld [vmem:[#allocation2 + $0x288] sm:$0xff]
    %v5078 = vld [vmem:[#allocation2 + $0x290] sm:$0xff]
    %v5079 = vld [vmem:[#allocation2 + $0x2a0] sm:$0xff]
    %v5080 = vld [vmem:[#allocation2 + $0x2a8] sm:$0xff]
    %v5081 = vld [vmem:[#allocation2 + $0x2b8] sm:$0xff]
    %v5082 = vld [vmem:[#allocation2 + $0x2c0] sm:$0xff]
    %v5083 = vld [vmem:[#allocation2 + $0x2d0] sm:$0xff]
    %v5084 = vld [vmem:[#allocation2 + $0x2d8] sm:$0xff]
    %v5085 = vld [vmem:[#allocation2 + $0x2e8] sm:$0xff]
    %v5086 = vld [vmem:[#allocation2 + $0x2f0] sm:$0xff]
    %v5087 = vld [vmem:[#allocation2 + $0x300] sm:$0xff]
    %v5088 = vld [vmem:[#allocation2 + $0x308] sm:$0xff]
    %v5089 = vld [vmem:[#allocation2 + $0x318] sm:$0xff]
    %v5090 = vld [vmem:[#allocation2 + $0x320] sm:$0xff]
    %v5091 = vld [vmem:[#allocation3] sm:$0xff]
    %v5092 = vld [vmem:[#allocation3 + $0x8] sm:$0xff]
    %v5093 = vld [vmem:[#allocation3 + $0x10] sm:$0xff]
    %v5094 = vld [vmem:[#allocation3 + $0x18] sm:$0xff]
    %v5095 = vld [vmem:[#allocation3 + $0x20] sm:$0xff]
    %v5096 = vld [vmem:[#allocation3 + $0x28] sm:$0xff]
    %v5097 = vld [vmem:[#allocation3 + $0x30] sm:$0xff]
    %v5098 = vld [vmem:[#allocation3 + $0x38] sm:$0xff]
    %v5099 = vld [vmem:[#allocation3 + $0x40] sm:$0xff]
    %v5100 = vld [vmem:[#allocation3 + $0x48] sm:$0xff]
    %v5101 = vld [vmem:[#allocation3 + $0x50] sm:$0xff]
    %v5102 = vld [vmem:[#allocation3 + $0x58] sm:$0xff]
    %v5103 = vld [vmem:[#allocation3 + $0x60] sm:$0xff]
    %v5104 = vld [vmem:[#allocation3 + $0x68] sm:$0xff]
    %v5105 = vld [vmem:[#allocation3 + $0x70] sm:$0xff]
    %v5106 = vld [vmem:[#allocation3 + $0x78] sm:$0xff]
    %v5107 = vld [vmem:[#allocation2 + $0x1] sm:$0xff]
    %v5108 = vld [vmem:[#allocation2 + $0x9] sm:$0xff]
    %v5109 = vld [vmem:[#allocation2 + $0x19] sm:$0xff]
    %v5110 = vld [vmem:[#allocation2 + $0x21] sm:$0xff]
    %v5111 = vld [vmem:[#allocation2 + $0x31] sm:$0xff]
    %v5112 = vld [vmem:[#allocation2 + $0x39] sm:$0xff]
    %v5113 = vld [vmem:[#allocation2 + $0x49] sm:$0xff]
    %v5114 = vld [vmem:[#allocation2 + $0x51] sm:$0xff]
    %v5115 = vld [vmem:[#allocation2 + $0x61] sm:$0xff]
    %v5116 = vld [vmem:[#allocation2 + $0x69] sm:$0xff]
    %v5117 = vld [vmem:[#allocation2 + $0x79] sm:$0xff]
    %v5118 = vld [vmem:[#allocation2 + $0x81] sm:$0xff]
    %v5119 = vld [vmem:[#allocation2 + $0x91] sm:$0xff]
    %v5120 = vld [vmem:[#allocation2 + $0x99] sm:$0xff]
    %v5121 = vld [vmem:[#allocation2 + $0xa9] sm:$0xff]
    %v5122 = vld [vmem:[#allocation2 + $0xb1] sm:$0xff]
    %v5123 = vld [vmem:[#allocation2 + $0xc1] sm:$0xff]
    %v5124 = vld [vmem:[#allocation2 + $0xc9] sm:$0xff]
    %v5125 = vld [vmem:[#allocation2 + $0xd9] sm:$0xff]
    %v5126 = vld [vmem:[#allocation2 + $0xe1] sm:$0xff]
    %v5127 = vld [vmem:[#allocation2 + $0xf1] sm:$0xff]
    %v5128 = vld [vmem:[#allocation2 + $0xf9] sm:$0xff]
    %v5129 = vld [vmem:[#allocation2 + $0x109] sm:$0xff]
    %v5130 = vld [vmem:[#allocation2 + $0x111] sm:$0xff]
    %v5131 = vld [vmem:[#allocation2 + $0x121] sm:$0xff]
    %v5132 = vld [vmem:[#allocation2 + $0x129] sm:$0xff]
    %v5133 = vld [vmem:[#allocation2 + $0x139] sm:$0xff]
    %v5134 = vld [vmem:[#allocation2 + $0x141] sm:$0xff]
    %v5135 = vld [vmem:[#allocation2 + $0x151] sm:$0xff]
    %v5136 = vld [vmem:[#allocation2 + $0x159] sm:$0xff]
    %v5137 = vld [vmem:[#allocation2 + $0x169] sm:$0xff]
    %v5138 = vld [vmem:[#allocation2 + $0x171] sm:$0xff]
    %v5139 = vld [vmem:[#allocation2 + $0x1b1] sm:$0xff]
    %v5140 = vld [vmem:[#allocation2 + $0x1b9] sm:$0xff]
    %v5141 = vld [vmem:[#allocation2 + $0x1c9] sm:$0xff]
    %v5142 = vld [vmem:[#allocation2 + $0x1d1] sm:$0xff]
    %v5143 = vld [vmem:[#allocation2 + $0x1e1] sm:$0xff]
    %v5144 = vld [vmem:[#allocation2 + $0x1e9] sm:$0xff]
    %v5145 = vld [vmem:[#allocation2 + $0x1f9] sm:$0xff]
    %v5146 = vld [vmem:[#allocation2 + $0x201] sm:$0xff]
    %v5147 = vld [vmem:[#allocation2 + $0x211] sm:$0xff]
    %v5148 = vld [vmem:[#allocation2 + $0x219] sm:$0xff]
    %v5149 = vld [vmem:[#allocation2 + $0x229] sm:$0xff]
    %v5150 = vld [vmem:[#allocation2 + $0x231] sm:$0xff]
    %v5151 = vld [vmem:[#allocation2 + $0x241] sm:$0xff]
    %v5152 = vld [vmem:[#allocation2 + $0x249] sm:$0xff]
    %v5153 = vld [vmem:[#allocation2 + $0x259] sm:$0xff]
    %v5154 = vld [vmem:[#allocation2 + $0x261] sm:$0xff]
    %v5155 = vld [vmem:[#allocation2 + $0x271] sm:$0xff]
    %v5156 = vld [vmem:[#allocation2 + $0x279] sm:$0xff]
    %v5157 = vld [vmem:[#allocation2 + $0x289] sm:$0xff]
    %v5158 = vld [vmem:[#allocation2 + $0x291] sm:$0xff]
    %v5159 = vld [vmem:[#allocation2 + $0x2a1] sm:$0xff]
    %v5160 = vld [vmem:[#allocation2 + $0x2a9] sm:$0xff]
    %v5161 = vld [vmem:[#allocation2 + $0x2b9] sm:$0xff]
    %v5162 = vld [vmem:[#allocation2 + $0x2c1] sm:$0xff]
    %v5163 = vld [vmem:[#allocation2 + $0x2d1] sm:$0xff]
    %v5164 = vld [vmem:[#allocation2 + $0x2d9] sm:$0xff]
    %v5165 = vld [vmem:[#allocation2 + $0x2e9] sm:$0xff]
    %v5166 = vld [vmem:[#allocation2 + $0x2f1] sm:$0xff]
    %v5167 = vld [vmem:[#allocation2 + $0x301] sm:$0xff]
    %v5168 = vld [vmem:[#allocation2 + $0x309] sm:$0xff]
    %v5169 = vld [vmem:[#allocation2 + $0x319] sm:$0xff]
    %v5170 = vld [vmem:[#allocation2 + $0x321] sm:$0xff]
    %s5171 = scalar_lea.vmem [#allocation3], 128
    %v5172 = vld [vmem:[%s5171] sm:$0xff]
    %v5173 = vld [vmem:[%s5171 + $0x8] sm:$0xff]
    %v5174 = vld [vmem:[%s5171 + $0x10] sm:$0xff]
    %v5175 = vld [vmem:[%s5171 + $0x18] sm:$0xff]
    %v5176 = vld [vmem:[%s5171 + $0x20] sm:$0xff]
    %v5177 = vld [vmem:[%s5171 + $0x28] sm:$0xff]
    %v5178 = vld [vmem:[%s5171 + $0x30] sm:$0xff]
    %v5179 = vld [vmem:[%s5171 + $0x38] sm:$0xff]
    %v5180 = vld [vmem:[%s5171 + $0x40] sm:$0xff]
    %v5181 = vld [vmem:[%s5171 + $0x48] sm:$0xff]
    %v5182 = vld [vmem:[%s5171 + $0x50] sm:$0xff]
    %v5183 = vld [vmem:[%s5171 + $0x58] sm:$0xff]
    %v5184 = vld [vmem:[%s5171 + $0x60] sm:$0xff]
    %v5185 = vld [vmem:[%s5171 + $0x68] sm:$0xff]
    %v5186 = vld [vmem:[%s5171 + $0x70] sm:$0xff]
    %v5187 = vld [vmem:[%s5171 + $0x78] sm:$0xff]
    %5188 = vmatprep.subr.mxu0 0.0
    %5189 = vmatpush1.msra.mxu0 %v5172
    %5190 = vmatprep.subr.mxu0 0.0
    %5191 = vmatpush1.msra.mxu0 %v5173
    %5192 = vmatprep.subr.mxu0 0.0
    %5193 = vmatpush1.msra.mxu0 %v5174
    %5194 = vmatprep.subr.mxu0 0.0
    %5195 = vmatpush1.msra.mxu0 %v5175
    %5196 = vmatprep.subr.mxu0 0.0
    %5197 = vmatpush1.msra.mxu0 %v5176
    %5198 = vmatprep.subr.mxu0 0.0
    %5199 = vmatpush1.msra.mxu0 %v5177
    %5200 = vmatprep.subr.mxu0 0.0
    %5201 = vmatpush1.msra.mxu0 %v5178
    %5202 = vmatprep.subr.mxu0 0.0
    %5203 = vmatpush1.msra.mxu0 %v5179
    %5204 = vmatprep.subr.mxu0 0.0
    %5205 = vmatpush1.msra.mxu0 %v5180
    %5206 = vmatprep.subr.mxu0 0.0
    %5207 = vmatpush1.msra.mxu0 %v5181
    %5208 = vmatprep.subr.mxu0 0.0
    %5209 = vmatpush1.msra.mxu0 %v5182
    %5210 = vmatprep.subr.mxu0 0.0
    %5211 = vmatpush1.msra.mxu0 %v5183
    %5212 = vmatprep.subr.mxu0 0.0
    %5213 = vmatpush1.msra.mxu0 %v5184
    %5214 = vmatprep.subr.mxu0 0.0
    %5215 = vmatpush1.msra.mxu0 %v5185
    %5216 = vmatprep.subr.mxu0 0.0
    %5217 = vmatpush1.msra.mxu0 %v5186
    %5218 = vmatprep.subr.mxu0 0.0
    %5219 = vmatpush1.msra.mxu0 %v5187
    %5220 = vmatprep.subr.mxu0 0.0
    %5221 = vmatpush1.msra.mxu0 0.0
    %5222 = vmatprep.subr.mxu0 0.0
    %5223 = vmatpush1.msra.mxu0 0.0
    %5224 = vmatprep.subr.mxu0 0.0
    %5225 = vmatpush1.msra.mxu0 0.0
    %5226 = vmatprep.subr.mxu0 0.0
    %5227 = vmatpush1.msra.mxu0 0.0
    %5228 = vmatprep.subr.mxu0 0.0
    %5229 = vmatpush1.msra.mxu0 0.0
    %5230 = vmatprep.subr.mxu0 0.0
    %5231 = vmatpush1.msra.mxu0 0.0
    %5232 = vmatprep.subr.mxu0 0.0
    %5233 = vmatpush1.msra.mxu0 0.0
    %5234 = vmatprep.subr.mxu0 0.0
    %5235 = vmatpush1.msra.mxu0 0.0
    %5236 = vmatprep.subr.mxu0 0.0
    %5237 = vmatpush1.msra.mxu0 0.0
    %5238 = vmatprep.subr.mxu0 0.0
    %5239 = vmatpush1.msra.mxu0 0.0
    %5240 = vmatprep.subr.mxu0 0.0
    %5241 = vmatpush1.msra.mxu0 0.0
    %5242 = vmatprep.subr.mxu0 0.0
    %5243 = vmatpush1.msra.mxu0 0.0
    %5244 = vmatprep.subr.mxu0 0.0
    %5245 = vmatpush1.msra.mxu0 0.0
    %5246 = vmatprep.subr.mxu0 0.0
    %5247 = vmatpush1.msra.mxu0 0.0
    %5248 = vmatprep.subr.mxu0 0.0
    %5249 = vmatpush1.msra.mxu0 0.0
    %5250 = vmatprep.subr.mxu0 0.0
    %5251 = vmatpush1.msra.mxu0 0.0
    %5252 = vmatprep.mubr.f32.mxu0 0.0
    %5253 = vmatmul.mubr.f32.gmra.mrb[0].mxu0 %v5107
    %v5254 = vpop.f32.mrb[0].mxu0
    %v5255 = vadd.f32 0.0, %v5254
    %v5256 = vpop.f32.mrb[0].mxu0
    %5257 = vmatprep.mubr.f32.mxu0 0.0
    %5258 = vmatmul.mubr.f32.gmra.mrb[0].mxu0 %v5108
    %v5259 = vpop.f32.mrb[0].mxu0
    %v5260 = vadd.f32 0.0, %v5259
    %v5261 = vpop.f32.mrb[0].mxu0
    %5262 = vmatprep.mubr.f32.mxu0 0.0
    %5263 = vmatmul.mubr.f32.gmra.mrb[0].mxu0 %v5109
    %v5264 = vpop.f32.mrb[0].mxu0
    %v5265 = vadd.f32 0.0, %v5264
    %v5266 = vpop.f32.mrb[0].mxu0
    %5267 = vmatprep.mubr.f32.mxu0 0.0
    %5268 = vmatmul.mubr.f32.gmra.mrb[0].mxu0 %v5110
    %v5269 = vpop.f32.mrb[0].mxu0
    %v5270 = vadd.f32 0.0, %v5269
    %v5271 = vpop.f32.mrb[0].mxu0
    %5272 = vmatprep.mubr.f32.mxu0 0.0
    %5273 = vmatmul.mubr.f32.gmra.mrb[0].mxu0 %v5111
    %v5274 = vpop.f32.mrb[0].mxu0
    %v5275 = vadd.f32 0.0, %v5274
    %v5276 = vpop.f32.mrb[0].mxu0
    %5277 = vmatprep.mubr.f32.mxu0 0.0
    %5278 = vmatmul.mubr.f32.gmra.mrb[0].mxu0 %v5112
    %v5279 = vpop.f32.mrb[0].mxu0
    %v5280 = vadd.f32 0.0, %v5279
    %v5281 = vpop.f32.mrb[0].mxu0
    %5282 = vmatprep.mubr.f32.mxu0 0.0
    %5283 = vmatmul.mubr.f32.gmra.mrb[0].mxu0 %v5113
    %v5284 = vpop.f32.mrb[0].mxu0
    %v5285 = vadd.f32 0.0, %v5284
    %v5286 = vpop.f32.mrb[0].mxu0
    %5287 = vmatprep.mubr.f32.mxu0 0.0
    %5288 = vmatmul.mubr.f32.gmra.mrb[0].mxu0 %v5114
    %v5289 = vpop.f32.mrb[0].mxu0
    %v5290 = vadd.f32 0.0, %v5289
    %v5291 = vpop.f32.mrb[0].mxu0
    %5292 = vmatprep.mubr.f32.mxu0 0.0
    %5293 = vmatmul.mubr.f32.gmra.mrb[0].mxu0 %v5115
    %v5294 = vpop.f32.mrb[0].mxu0
    %v5295 = vadd.f32 0.0, %v5294
    %v5296 = vpop.f32.mrb[0].mxu0
    %5297 = vmatprep.mubr.f32.mxu0 0.0
    %5298 = vmatmul.mubr.f32.gmra.mrb[0].mxu0 %v5116
    %v5299 = vpop.f32.mrb[0].mxu0
    %v5300 = vadd.f32 0.0, %v5299
    %v5301 = vpop.f32.mrb[0].mxu0
    %5302 = vmatprep.mubr.f32.mxu0 0.0
    %5303 = vmatmul.mubr.f32.gmra.mrb[0].mxu0 %v5117
    %v5304 = vpop.f32.mrb[0].mxu0
    %v5305 = vadd.f32 0.0, %v5304
    %v5306 = vpop.f32.mrb[0].mxu0
    %5307 = vmatprep.mubr.f32.mxu0 0.0
    %5308 = vmatmul.mubr.f32.gmra.mrb[0].mxu0 %v5118
    %v5309 = vpop.f32.mrb[0].mxu0
    %v5310 = vadd.f32 0.0, %v5309
    %v5311 = vpop.f32.mrb[0].mxu0
    %5312 = vmatprep.mubr.f32.mxu0 0.0
    %5313 = vmatmul.mubr.f32.gmra.mrb[0].mxu0 %v5119
    %v5314 = vpop.f32.mrb[0].mxu0
    %v5315 = vadd.f32 0.0, %v5314
    %v5316 = vpop.f32.mrb[0].mxu0
    %5317 = vmatprep.mubr.f32.mxu0 0.0
    %5318 = vmatmul.mubr.f32.gmra.mrb[0].mxu0 %v5120
    %v5319 = vpop.f32.mrb[0].mxu0
    %v5320 = vadd.f32 0.0, %v5319
    %v5321 = vpop.f32.mrb[0].mxu0
    %5322 = vmatprep.mubr.f32.mxu0 0.0
    %5323 = vmatmul.mubr.f32.gmra.mrb[0].mxu0 %v5121
    %v5324 = vpop.f32.mrb[0].mxu0
    %v5325 = vadd.f32 0.0, %v5324
    %v5326 = vpop.f32.mrb[0].mxu0
    %5327 = vmatprep.mubr.f32.mxu0 0.0
    %5328 = vmatmul.mubr.f32.gmra.mrb[0].mxu0 %v5122
    %v5329 = vpop.f32.mrb[0].mxu0
    %v5330 = vadd.f32 0.0, %v5329
    %v5331 = vpop.f32.mrb[0].mxu0
    %5332 = vmatprep.mubr.f32.mxu0 0.0
    %5333 = vmatmul.mubr.f32.gmra.mrb[0].mxu0 %v5123
    %v5334 = vpop.f32.mrb[0].mxu0
    %v5335 = vadd.f32 0.0, %v5334
    %v5336 = vpop.f32.mrb[0].mxu0
    %5337 = vmatprep.mubr.f32.mxu0 0.0
    %5338 = vmatmul.mubr.f32.gmra.mrb[0].mxu0 %v5124
    %v5339 = vpop.f32.mrb[0].mxu0
    %v5340 = vadd.f32 0.0, %v5339
    %v5341 = vpop.f32.mrb[0].mxu0
    %5342 = vmatprep.mubr.f32.mxu0 0.0
    %5343 = vmatmul.mubr.f32.gmra.mrb[0].mxu0 %v5125
    %v5344 = vpop.f32.mrb[0].mxu0
    %v5345 = vadd.f32 0.0, %v5344
    %v5346 = vpop.f32.mrb[0].mxu0
    %5347 = vmatprep.mubr.f32.mxu0 0.0
    %5348 = vmatmul.mubr.f32.gmra.mrb[0].mxu0 %v5126
    %v5349 = vpop.f32.mrb[0].mxu0
    %v5350 = vadd.f32 0.0, %v5349
    %v5351 = vpop.f32.mrb[0].mxu0
    %5352 = vmatprep.mubr.f32.mxu0 0.0
    %5353 = vmatmul.mubr.f32.gmra.mrb[0].mxu0 %v5127
    %v5354 = vpop.f32.mrb[0].mxu0
    %v5355 = vadd.f32 0.0, %v5354
    %v5356 = vpop.f32.mrb[0].mxu0
    %5357 = vmatprep.mubr.f32.mxu0 0.0
    %5358 = vmatmul.mubr.f32.gmra.mrb[0].mxu0 %v5128
    %v5359 = vpop.f32.mrb[0].mxu0
    %v5360 = vadd.f32 0.0, %v5359
    %v5361 = vpop.f32.mrb[0].mxu0
    %5362 = vmatprep.mubr.f32.mxu0 0.0
    %5363 = vmatmul.mubr.f32.gmra.mrb[0].mxu0 %v5129
    %v5364 = vpop.f32.mrb[0].mxu0
    %v5365 = vadd.f32 0.0, %v5364
    %v5366 = vpop.f32.mrb[0].mxu0
    %5367 = vmatprep.mubr.f32.mxu0 0.0
    %5368 = vmatmul.mubr.f32.gmra.mrb[0].mxu0 %v5130
    %v5369 = vpop.f32.mrb[0].mxu0
    %v5370 = vadd.f32 0.0, %v5369
    %v5371 = vpop.f32.mrb[0].mxu0
    %5372 = vmatprep.mubr.f32.mxu0 0.0
    %5373 = vmatmul.mubr.f32.gmra.mrb[0].mxu0 %v5131
    %v5374 = vpop.f32.mrb[0].mxu0
    %v5375 = vadd.f32 0.0, %v5374
    %v5376 = vpop.f32.mrb[0].mxu0
    %5377 = vmatprep.mubr.f32.mxu0 0.0
    %5378 = vmatmul.mubr.f32.gmra.mrb[0].mxu0 %v5132
    %v5379 = vpop.f32.mrb[0].mxu0
    %v5380 = vadd.f32 0.0, %v5379
    %v5381 = vpop.f32.mrb[0].mxu0
    %5382 = vmatprep.mubr.f32.mxu0 0.0
    %5383 = vmatmul.mubr.f32.gmra.mrb[0].mxu0 %v5133
    %v5384 = vpop.f32.mrb[0].mxu0
    %v5385 = vadd.f32 0.0, %v5384
    %v5386 = vpop.f32.mrb[0].mxu0
    %5387 = vmatprep.mubr.f32.mxu0 0.0
    %5388 = vmatmul.mubr.f32.gmra.mrb[0].mxu0 %v5134
    %v5389 = vpop.f32.mrb[0].mxu0
    %v5390 = vadd.f32 0.0, %v5389
    %v5391 = vpop.f32.mrb[0].mxu0
    %5392 = vmatprep.mubr.f32.mxu0 0.0
    %5393 = vmatmul.mubr.f32.gmra.mrb[0].mxu0 %v5135
    %v5394 = vpop.f32.mrb[0].mxu0
    %v5395 = vadd.f32 0.0, %v5394
    %v5396 = vpop.f32.mrb[0].mxu0
    %5397 = vmatprep.mubr.f32.mxu0 0.0
    %5398 = vmatmul.mubr.f32.gmra.mrb[0].mxu0 %v5136
    %v5399 = vpop.f32.mrb[0].mxu0
    %v5400 = vadd.f32 0.0, %v5399
    %v5401 = vpop.f32.mrb[0].mxu0
    %5402 = vmatprep.mubr.f32.mxu0 0.0
    %5403 = vmatmul.mubr.f32.gmra.mrb[0].mxu0 %v5137
    %v5404 = vpop.f32.mrb[0].mxu0
    %v5405 = vadd.f32 0.0, %v5404
    %v5406 = vpop.f32.mrb[0].mxu0
    %5407 = vmatprep.mubr.f32.mxu0 0.0
    %5408 = vmatmul.mubr.f32.gmra.mrb[0].mxu0 %v5138
    %v5409 = vpop.f32.mrb[0].mxu0
    %v5410 = vadd.f32 0.0, %v5409
    %v5411 = vpop.f32.mrb[0].mxu0
    %5412 = vmatprep.mubr.f32.mxu0 0.0
    %5413 = vmatmul.mubr.f32.gmra.mrb[0].mxu0 %v5139
    %v5414 = vpop.f32.mrb[0].mxu0
    %v5415 = vadd.f32 0.0, %v5414
    %v5416 = vpop.f32.mrb[0].mxu0
    %5417 = vmatprep.mubr.f32.mxu0 0.0
    %5418 = vmatmul.mubr.f32.gmra.mrb[0].mxu0 %v5140
    %v5419 = vpop.f32.mrb[0].mxu0
    %v5420 = vadd.f32 0.0, %v5419
    %v5421 = vpop.f32.mrb[0].mxu0
    %5422 = vmatprep.mubr.f32.mxu0 0.0
    %5423 = vmatmul.mubr.f32.gmra.mrb[0].mxu0 %v5141
    %v5424 = vpop.f32.mrb[0].mxu0
    %v5425 = vadd.f32 0.0, %v5424
    %v5426 = vpop.f32.mrb[0].mxu0
    %5427 = vmatprep.mubr.f32.mxu0 0.0
    %5428 = vmatmul.mubr.f32.gmra.mrb[0].mxu0 %v5142
    %v5429 = vpop.f32.mrb[0].mxu0
    %v5430 = vadd.f32 0.0, %v5429
    %v5431 = vpop.f32.mrb[0].mxu0
    %5432 = vmatprep.mubr.f32.mxu0 0.0
    %5433 = vmatmul.mubr.f32.gmra.mrb[0].mxu0 %v5143
    %v5434 = vpop.f32.mrb[0].mxu0
    %v5435 = vadd.f32 0.0, %v5434
    %v5436 = vpop.f32.mrb[0].mxu0
    %5437 = vmatprep.mubr.f32.mxu0 0.0
    %5438 = vmatmul.mubr.f32.gmra.mrb[0].mxu0 %v5144
    %v5439 = vpop.f32.mrb[0].mxu0
    %v5440 = vadd.f32 0.0, %v5439
    %v5441 = vpop.f32.mrb[0].mxu0
    %5442 = vmatprep.mubr.f32.mxu0 0.0
    %5443 = vmatmul.mubr.f32.gmra.mrb[0].mxu0 %v5145
    %v5444 = vpop.f32.mrb[0].mxu0
    %v5445 = vadd.f32 0.0, %v5444
    %v5446 = vpop.f32.mrb[0].mxu0
    %5447 = vmatprep.mubr.f32.mxu0 0.0
    %5448 = vmatmul.mubr.f32.gmra.mrb[0].mxu0 %v5146
    %v5449 = vpop.f32.mrb[0].mxu0
    %v5450 = vadd.f32 0.0, %v5449
    %v5451 = vpop.f32.mrb[0].mxu0
    %5452 = vmatprep.mubr.f32.mxu0 0.0
    %5453 = vmatmul.mubr.f32.gmra.mrb[0].mxu0 %v5147
    %v5454 = vpop.f32.mrb[0].mxu0
    %v5455 = vadd.f32 0.0, %v5454
    %v5456 = vpop.f32.mrb[0].mxu0
    %5457 = vmatprep.mubr.f32.mxu0 0.0
    %5458 = vmatmul.mubr.f32.gmra.mrb[0].mxu0 %v5148
    %v5459 = vpop.f32.mrb[0].mxu0
    %v5460 = vadd.f32 0.0, %v5459
    %v5461 = vpop.f32.mrb[0].mxu0
    %5462 = vmatprep.mubr.f32.mxu0 0.0
    %5463 = vmatmul.mubr.f32.gmra.mrb[0].mxu0 %v5149
    %v5464 = vpop.f32.mrb[0].mxu0
    %v5465 = vadd.f32 0.0, %v5464
    %v5466 = vpop.f32.mrb[0].mxu0
    %5467 = vmatprep.mubr.f32.mxu0 0.0
    %5468 = vmatmul.mubr.f32.gmra.mrb[0].mxu0 %v5150
    %v5469 = vpop.f32.mrb[0].mxu0
    %v5470 = vadd.f32 0.0, %v5469
    %v5471 = vpop.f32.mrb[0].mxu0
    %5472 = vmatprep.mubr.f32.mxu0 0.0
    %5473 = vmatmul.mubr.f32.gmra.mrb[0].mxu0 %v5151
    %v5474 = vpop.f32.mrb[0].mxu0
    %v5475 = vadd.f32 0.0, %v5474
    %v5476 = vpop.f32.mrb[0].mxu0
    %5477 = vmatprep.mubr.f32.mxu0 0.0
    %5478 = vmatmul.mubr.f32.gmra.mrb[0].mxu0 %v5152
    %v5479 = vpop.f32.mrb[0].mxu0
    %v5480 = vadd.f32 0.0, %v5479
    %v5481 = vpop.f32.mrb[0].mxu0
    %5482 = vmatprep.mubr.f32.mxu0 0.0
    %5483 = vmatmul.mubr.f32.gmra.mrb[0].mxu0 %v5153
    %v5484 = vpop.f32.mrb[0].mxu0
    %v5485 = vadd.f32 0.0, %v5484
    %v5486 = vpop.f32.mrb[0].mxu0
    %5487 = vmatprep.mubr.f32.mxu0 0.0
    %5488 = vmatmul.mubr.f32.gmra.mrb[0].mxu0 %v5154
    %v5489 = vpop.f32.mrb[0].mxu0
    %v5490 = vadd.f32 0.0, %v5489
    %v5491 = vpop.f32.mrb[0].mxu0
    %5492 = vmatprep.mubr.f32.mxu0 0.0
    %5493 = vmatmul.mubr.f32.gmra.mrb[0].mxu0 %v5155
    %v5494 = vpop.f32.mrb[0].mxu0
    %v5495 = vadd.f32 0.0, %v5494
    %v5496 = vpop.f32.mrb[0].mxu0
    %5497 = vmatprep.mubr.f32.mxu0 0.0
    %5498 = vmatmul.mubr.f32.gmra.mrb[0].mxu0 %v5156
    %v5499 = vpop.f32.mrb[0].mxu0
    %v5500 = vadd.f32 0.0, %v5499
    %v5501 = vpop.f32.mrb[0].mxu0
    %5502 = vmatprep.mubr.f32.mxu0 0.0
    %5503 = vmatmul.mubr.f32.gmra.mrb[0].mxu0 %v5157
    %v5504 = vpop.f32.mrb[0].mxu0
    %v5505 = vadd.f32 0.0, %v5504
    %v5506 = vpop.f32.mrb[0].mxu0
    %5507 = vmatprep.mubr.f32.mxu0 0.0
    %5508 = vmatmul.mubr.f32.gmra.mrb[0].mxu0 %v5158
    %v5509 = vpop.f32.mrb[0].mxu0
    %v5510 = vadd.f32 0.0, %v5509
    %v5511 = vpop.f32.mrb[0].mxu0
    %5512 = vmatprep.mubr.f32.mxu0 0.0
    %5513 = vmatmul.mubr.f32.gmra.mrb[0].mxu0 %v5159
    %v5514 = vpop.f32.mrb[0].mxu0
    %v5515 = vadd.f32 0.0, %v5514
    %v5516 = vpop.f32.mrb[0].mxu0
    %5517 = vmatprep.mubr.f32.mxu0 0.0
    %5518 = vmatmul.mubr.f32.gmra.mrb[0].mxu0 %v5160
    %v5519 = vpop.f32.mrb[0].mxu0
    %v5520 = vadd.f32 0.0, %v5519
    %v5521 = vpop.f32.mrb[0].mxu0
    %5522 = vmatprep.mubr.f32.mxu0 0.0
    %5523 = vmatmul.mubr.f32.gmra.mrb[0].mxu0 %v5161
    %v5524 = vpop.f32.mrb[0].mxu0
    %v5525 = vadd.f32 0.0, %v5524
    %v5526 = vpop.f32.mrb[0].mxu0
    %5527 = vmatprep.mubr.f32.mxu0 0.0
    %5528 = vmatmul.mubr.f32.gmra.mrb[0].mxu0 %v5162
    %v5529 = vpop.f32.mrb[0].mxu0
    %v5530 = vadd.f32 0.0, %v5529
    %v5531 = vpop.f32.mrb[0].mxu0
    %5532 = vmatprep.mubr.f32.mxu0 0.0
    %5533 = vmatmul.mubr.f32.gmra.mrb[0].mxu0 %v5163
    %v5534 = vpop.f32.mrb[0].mxu0
    %v5535 = vadd.f32 0.0, %v5534
    %v5536 = vpop.f32.mrb[0].mxu0
    %5537 = vmatprep.mubr.f32.mxu0 0.0
    %5538 = vmatmul.mubr.f32.gmra.mrb[0].mxu0 %v5164
    %v5539 = vpop.f32.mrb[0].mxu0
    %v5540 = vadd.f32 0.0, %v5539
    %v5541 = vpop.f32.mrb[0].mxu0
    %5542 = vmatprep.mubr.f32.mxu0 0.0
    %5543 = vmatmul.mubr.f32.gmra.mrb[0].mxu0 %v5165
    %v5544 = vpop.f32.mrb[0].mxu0
    %v5545 = vadd.f32 0.0, %v5544
    %v5546 = vpop.f32.mrb[0].mxu0
    %5547 = vmatprep.mubr.f32.mxu0 0.0
    %5548 = vmatmul.mubr.f32.gmra.mrb[0].mxu0 %v5166
    %v5549 = vpop.f32.mrb[0].mxu0
    %v5550 = vadd.f32 0.0, %v5549
    %v5551 = vpop.f32.mrb[0].mxu0
    %5552 = vmatprep.mubr.f32.mxu0 0.0
    %5553 = vmatmul.mubr.f32.gmra.mrb[0].mxu0 %v5167
    %v5554 = vpop.f32.mrb[0].mxu0
    %v5555 = vadd.f32 0.0, %v5554
    %v5556 = vpop.f32.mrb[0].mxu0
    %5557 = vmatprep.mubr.f32.mxu0 0.0
    %5558 = vmatmul.mubr.f32.gmra.mrb[0].mxu0 %v5168
    %v5559 = vpop.f32.mrb[0].mxu0
    %v5560 = vadd.f32 0.0, %v5559
    %v5561 = vpop.f32.mrb[0].mxu0
    %5562 = vmatprep.mubr.f32.mxu0 0.0
    %5563 = vmatmul.mubr.f32.gmra.mrb[0].mxu0 %v5169
    %v5564 = vpop.f32.mrb[0].mxu0
    %v5565 = vadd.f32 0.0, %v5564
    %v5566 = vpop.f32.mrb[0].mxu0
    %5567 = vmatprep.mubr.f32.mxu0 0.0
    %5568 = vmatmul.mubr.f32.gmra.mrb[0].mxu0 %v5170
    %v5569 = vpop.f32.mrb[0].mxu0
    %v5570 = vadd.f32 0.0, %v5569
    %v5571 = vpop.f32.mrb[0].mxu0
    %5572 = vdwg.mxu0
    %5573 = vmatprep.subr.mxu0 0.0
    %5574 = vmatpush1.msra.mxu0 %v5091
    %5575 = vmatprep.subr.mxu0 0.0
    %5576 = vmatpush1.msra.mxu0 %v5092
    %5577 = vmatprep.subr.mxu0 0.0
    %5578 = vmatpush1.msra.mxu0 %v5093
    %5579 = vmatprep.subr.mxu0 0.0
    %5580 = vmatpush1.msra.mxu0 %v5094
    %5581 = vmatprep.subr.mxu0 0.0
    %5582 = vmatpush1.msra.mxu0 %v5095
    %5583 = vmatprep.subr.mxu0 0.0
    %5584 = vmatpush1.msra.mxu0 %v5096
    %5585 = vmatprep.subr.mxu0 0.0
    %5586 = vmatpush1.msra.mxu0 %v5097
    %5587 = vmatprep.subr.mxu0 0.0
    %5588 = vmatpush1.msra.mxu0 %v5098
    %5589 = vmatprep.subr.mxu0 0.0
    %5590 = vmatpush1.msra.mxu0 %v5099
    %5591 = vmatprep.subr.mxu0 0.0
    %5592 = vmatpush1.msra.mxu0 %v5100
    %5593 = vmatprep.subr.mxu0 0.0
    %5594 = vmatpush1.msra.mxu0 %v5101
    %5595 = vmatprep.subr.mxu0 0.0
    %5596 = vmatpush1.msra.mxu0 %v5102
    %5597 = vmatprep.subr.mxu0 0.0
    %5598 = vmatpush1.msra.mxu0 %v5103
    %5599 = vmatprep.subr.mxu0 0.0
    %5600 = vmatpush1.msra.mxu0 %v5104
    %5601 = vmatprep.subr.mxu0 0.0
    %5602 = vmatpush1.msra.mxu0 %v5105
    %5603 = vmatprep.subr.mxu0 0.0
    %5604 = vmatpush1.msra.mxu0 %v5106
    %5605 = vmatprep.subr.mxu0 0.0
    %5606 = vmatpush1.msra.mxu0 0.0
    %5607 = vmatprep.subr.mxu0 0.0
    %5608 = vmatpush1.msra.mxu0 0.0
    %5609 = vmatprep.subr.mxu0 0.0
    %5610 = vmatpush1.msra.mxu0 0.0
    %5611 = vmatprep.subr.mxu0 0.0
    %5612 = vmatpush1.msra.mxu0 0.0
    %5613 = vmatprep.subr.mxu0 0.0
    %5614 = vmatpush1.msra.mxu0 0.0
    %5615 = vmatprep.subr.mxu0 0.0
    %5616 = vmatpush1.msra.mxu0 0.0
    %5617 = vmatprep.subr.mxu0 0.0
    %5618 = vmatpush1.msra.mxu0 0.0
    %5619 = vmatprep.subr.mxu0 0.0
    %5620 = vmatpush1.msra.mxu0 0.0
    %5621 = vmatprep.subr.mxu0 0.0
    %5622 = vmatpush1.msra.mxu0 0.0
    %5623 = vmatprep.subr.mxu0 0.0
    %5624 = vmatpush1.msra.mxu0 0.0
    %5625 = vmatprep.subr.mxu0 0.0
    %5626 = vmatpush1.msra.mxu0 0.0
    %5627 = vmatprep.subr.mxu0 0.0
    %5628 = vmatpush1.msra.mxu0 0.0
    %5629 = vmatprep.subr.mxu0 0.0
    %5630 = vmatpush1.msra.mxu0 0.0
    %5631 = vmatprep.subr.mxu0 0.0
    %5632 = vmatpush1.msra.mxu0 0.0
    %5633 = vmatprep.subr.mxu0 0.0
    %5634 = vmatpush1.msra.mxu0 0.0
    %5635 = vmatprep.subr.mxu0 0.0
    %5636 = vmatpush1.msra.mxu0 0.0
    %5637 = vmatprep.mubr.f32.mxu0 0.0
    %5638 = vmatmul.mubr.f32.gmra.mrb[0].mxu0 %v5027
    %v5639 = vpop.f32.mrb[0].mxu0
    %v5640 = vadd.f32 %v5255, %v5639
    %v5641 = vpop.f32.mrb[0].mxu0
    %5642 = vmatprep.mubr.f32.mxu0 0.0
    %5643 = vmatmul.mubr.f32.gmra.mrb[0].mxu0 %v5028
    %v5644 = vpop.f32.mrb[0].mxu0
    %v5645 = vadd.f32 %v5260, %v5644
    %v5646 = vpop.f32.mrb[0].mxu0
    %5647 = vmatprep.mubr.f32.mxu0 0.0
    %5648 = vmatmul.mubr.f32.gmra.mrb[0].mxu0 %v5029
    %v5649 = vpop.f32.mrb[0].mxu0
    %v5650 = vadd.f32 %v5265, %v5649
    %v5651 = vpop.f32.mrb[0].mxu0
    %5652 = vmatprep.mubr.f32.mxu0 0.0
    %5653 = vmatmul.mubr.f32.gmra.mrb[0].mxu0 %v5030
    %v5654 = vpop.f32.mrb[0].mxu0
    %v5655 = vadd.f32 %v5270, %v5654
    %v5656 = vpop.f32.mrb[0].mxu0
    %5657 = vmatprep.mubr.f32.mxu0 0.0
    %5658 = vmatmul.mubr.f32.gmra.mrb[0].mxu0 %v5031
    %v5659 = vpop.f32.mrb[0].mxu0
    %v5660 = vadd.f32 %v5275, %v5659
    %v5661 = vpop.f32.mrb[0].mxu0
    %5662 = vmatprep.mubr.f32.mxu0 0.0
    %5663 = vmatmul.mubr.f32.gmra.mrb[0].mxu0 %v5032
    %v5664 = vpop.f32.mrb[0].mxu0
    %v5665 = vadd.f32 %v5280, %v5664
    %v5666 = vpop.f32.mrb[0].mxu0
    %5667 = vmatprep.mubr.f32.mxu0 0.0
    %5668 = vmatmul.mubr.f32.gmra.mrb[0].mxu0 %v5033
    %v5669 = vpop.f32.mrb[0].mxu0
    %v5670 = vadd.f32 %v5285, %v5669
    %v5671 = vpop.f32.mrb[0].mxu0
    %5672 = vmatprep.mubr.f32.mxu0 0.0
    %5673 = vmatmul.mubr.f32.gmra.mrb[0].mxu0 %v5034
    %v5674 = vpop.f32.mrb[0].mxu0
    %v5675 = vadd.f32 %v5290, %v5674
    %v5676 = vpop.f32.mrb[0].mxu0
    %5677 = vmatprep.mubr.f32.mxu0 0.0
    %5678 = vmatmul.mubr.f32.gmra.mrb[0].mxu0 %v5035
    %v5679 = vpop.f32.mrb[0].mxu0
    %v5680 = vadd.f32 %v5295, %v5679
    %v5681 = vpop.f32.mrb[0].mxu0
    %5682 = vmatprep.mubr.f32.mxu0 0.0
    %5683 = vmatmul.mubr.f32.gmra.mrb[0].mxu0 %v5036
    %v5684 = vpop.f32.mrb[0].mxu0
    %v5685 = vadd.f32 %v5300, %v5684
    %v5686 = vpop.f32.mrb[0].mxu0
    %5687 = vmatprep.mubr.f32.mxu0 0.0
    %5688 = vmatmul.mubr.f32.gmra.mrb[0].mxu0 %v5037
    %v5689 = vpop.f32.mrb[0].mxu0
    %v5690 = vadd.f32 %v5305, %v5689
    %v5691 = vpop.f32.mrb[0].mxu0
    %5692 = vmatprep.mubr.f32.mxu0 0.0
    %5693 = vmatmul.mubr.f32.gmra.mrb[0].mxu0 %v5038
    %v5694 = vpop.f32.mrb[0].mxu0
    %v5695 = vadd.f32 %v5310, %v5694
    %v5696 = vpop.f32.mrb[0].mxu0
    %5697 = vmatprep.mubr.f32.mxu0 0.0
    %5698 = vmatmul.mubr.f32.gmra.mrb[0].mxu0 %v5039
    %v5699 = vpop.f32.mrb[0].mxu0
    %v5700 = vadd.f32 %v5315, %v5699
    %v5701 = vpop.f32.mrb[0].mxu0
    %5702 = vmatprep.mubr.f32.mxu0 0.0
    %5703 = vmatmul.mubr.f32.gmra.mrb[0].mxu0 %v5040
    %v5704 = vpop.f32.mrb[0].mxu0
    %v5705 = vadd.f32 %v5320, %v5704
    %v5706 = vpop.f32.mrb[0].mxu0
    %5707 = vmatprep.mubr.f32.mxu0 0.0
    %5708 = vmatmul.mubr.f32.gmra.mrb[0].mxu0 %v5041
    %v5709 = vpop.f32.mrb[0].mxu0
    %v5710 = vadd.f32 %v5325, %v5709
    %v5711 = vpop.f32.mrb[0].mxu0
    %5712 = vmatprep.mubr.f32.mxu0 0.0
    %5713 = vmatmul.mubr.f32.gmra.mrb[0].mxu0 %v5042
    %v5714 = vpop.f32.mrb[0].mxu0
    %v5715 = vadd.f32 %v5330, %v5714
    %v5716 = vpop.f32.mrb[0].mxu0
    %5717 = vmatprep.mubr.f32.mxu0 0.0
    %5718 = vmatmul.mubr.f32.gmra.mrb[0].mxu0 %v5043
    %v5719 = vpop.f32.mrb[0].mxu0
    %v5720 = vadd.f32 %v5335, %v5719
    %v5721 = vpop.f32.mrb[0].mxu0
    %5722 = vmatprep.mubr.f32.mxu0 0.0
    %5723 = vmatmul.mubr.f32.gmra.mrb[0].mxu0 %v5044
    %v5724 = vpop.f32.mrb[0].mxu0
    %v5725 = vadd.f32 %v5340, %v5724
    %v5726 = vpop.f32.mrb[0].mxu0
    %5727 = vmatprep.mubr.f32.mxu0 0.0
    %5728 = vmatmul.mubr.f32.gmra.mrb[0].mxu0 %v5045
    %v5729 = vpop.f32.mrb[0].mxu0
    %v5730 = vadd.f32 %v5345, %v5729
    %v5731 = vpop.f32.mrb[0].mxu0
    %5732 = vmatprep.mubr.f32.mxu0 0.0
    %5733 = vmatmul.mubr.f32.gmra.mrb[0].mxu0 %v5046
    %v5734 = vpop.f32.mrb[0].mxu0
    %v5735 = vadd.f32 %v5350, %v5734
    %v5736 = vpop.f32.mrb[0].mxu0
    %5737 = vmatprep.mubr.f32.mxu0 0.0
    %5738 = vmatmul.mubr.f32.gmra.mrb[0].mxu0 %v5047
    %v5739 = vpop.f32.mrb[0].mxu0
    %v5740 = vadd.f32 %v5355, %v5739
    %v5741 = vpop.f32.mrb[0].mxu0
    %5742 = vmatprep.mubr.f32.mxu0 0.0
    %5743 = vmatmul.mubr.f32.gmra.mrb[0].mxu0 %v5048
    %v5744 = vpop.f32.mrb[0].mxu0
    %v5745 = vadd.f32 %v5360, %v5744
    %v5746 = vpop.f32.mrb[0].mxu0
    %5747 = vmatprep.mubr.f32.mxu0 0.0
    %5748 = vmatmul.mubr.f32.gmra.mrb[0].mxu0 %v5049
    %v5749 = vpop.f32.mrb[0].mxu0
    %v5750 = vadd.f32 %v5365, %v5749
    %v5751 = vpop.f32.mrb[0].mxu0
    %5752 = vmatprep.mubr.f32.mxu0 0.0
    %5753 = vmatmul.mubr.f32.gmra.mrb[0].mxu0 %v5050
    %v5754 = vpop.f32.mrb[0].mxu0
    %v5755 = vadd.f32 %v5370, %v5754
    %v5756 = vpop.f32.mrb[0].mxu0
    %5757 = vmatprep.mubr.f32.mxu0 0.0
    %5758 = vmatmul.mubr.f32.gmra.mrb[0].mxu0 %v5051
    %v5759 = vpop.f32.mrb[0].mxu0
    %v5760 = vadd.f32 %v5375, %v5759
    %v5761 = vpop.f32.mrb[0].mxu0
    %5762 = vmatprep.mubr.f32.mxu0 0.0
    %5763 = vmatmul.mubr.f32.gmra.mrb[0].mxu0 %v5052
    %v5764 = vpop.f32.mrb[0].mxu0
    %v5765 = vadd.f32 %v5380, %v5764
    %v5766 = vpop.f32.mrb[0].mxu0
    %5767 = vmatprep.mubr.f32.mxu0 0.0
    %5768 = vmatmul.mubr.f32.gmra.mrb[0].mxu0 %v5053
    %v5769 = vpop.f32.mrb[0].mxu0
    %v5770 = vadd.f32 %v5385, %v5769
    %v5771 = vpop.f32.mrb[0].mxu0
    %5772 = vmatprep.mubr.f32.mxu0 0.0
    %5773 = vmatmul.mubr.f32.gmra.mrb[0].mxu0 %v5054
    %v5774 = vpop.f32.mrb[0].mxu0
    %v5775 = vadd.f32 %v5390, %v5774
    %v5776 = vpop.f32.mrb[0].mxu0
    %5777 = vmatprep.mubr.f32.mxu0 0.0
    %5778 = vmatmul.mubr.f32.gmra.mrb[0].mxu0 %v5055
    %v5779 = vpop.f32.mrb[0].mxu0
    %v5780 = vadd.f32 %v5395, %v5779
    %v5781 = vpop.f32.mrb[0].mxu0
    %5782 = vmatprep.mubr.f32.mxu0 0.0
    %5783 = vmatmul.mubr.f32.gmra.mrb[0].mxu0 %v5056
    %v5784 = vpop.f32.mrb[0].mxu0
    %v5785 = vadd.f32 %v5400, %v5784
    %v5786 = vpop.f32.mrb[0].mxu0
    %5787 = vmatprep.mubr.f32.mxu0 0.0
    %5788 = vmatmul.mubr.f32.gmra.mrb[0].mxu0 %v5057
    %v5789 = vpop.f32.mrb[0].mxu0
    %v5790 = vadd.f32 %v5405, %v5789
    %v5791 = vpop.f32.mrb[0].mxu0
    %5792 = vmatprep.mubr.f32.mxu0 0.0
    %5793 = vmatmul.mubr.f32.gmra.mrb[0].mxu0 %v5058
    %v5794 = vpop.f32.mrb[0].mxu0
    %v5795 = vadd.f32 %v5410, %v5794
    %v5796 = vpop.f32.mrb[0].mxu0
    %5797 = vmatprep.mubr.f32.mxu0 0.0
    %5798 = vmatmul.mubr.f32.gmra.mrb[0].mxu0 %v5059
    %v5799 = vpop.f32.mrb[0].mxu0
    %v5800 = vadd.f32 %v5415, %v5799
    %v5801 = vpop.f32.mrb[0].mxu0
    %5802 = vmatprep.mubr.f32.mxu0 0.0
    %5803 = vmatmul.mubr.f32.gmra.mrb[0].mxu0 %v5060
    %v5804 = vpop.f32.mrb[0].mxu0
    %v5805 = vadd.f32 %v5420, %v5804
    %v5806 = vpop.f32.mrb[0].mxu0
    %5807 = vmatprep.mubr.f32.mxu0 0.0
    %5808 = vmatmul.mubr.f32.gmra.mrb[0].mxu0 %v5061
    %v5809 = vpop.f32.mrb[0].mxu0
    %v5810 = vadd.f32 %v5425, %v5809
    %v5811 = vpop.f32.mrb[0].mxu0
    %5812 = vmatprep.mubr.f32.mxu0 0.0
    %5813 = vmatmul.mubr.f32.gmra.mrb[0].mxu0 %v5062
    %v5814 = vpop.f32.mrb[0].mxu0
    %v5815 = vadd.f32 %v5430, %v5814
    %v5816 = vpop.f32.mrb[0].mxu0
    %5817 = vmatprep.mubr.f32.mxu0 0.0
    %5818 = vmatmul.mubr.f32.gmra.mrb[0].mxu0 %v5063
    %v5819 = vpop.f32.mrb[0].mxu0
    %v5820 = vadd.f32 %v5435, %v5819
    %v5821 = vpop.f32.mrb[0].mxu0
    %5822 = vmatprep.mubr.f32.mxu0 0.0
    %5823 = vmatmul.mubr.f32.gmra.mrb[0].mxu0 %v5064
    %v5824 = vpop.f32.mrb[0].mxu0
    %v5825 = vadd.f32 %v5440, %v5824
    %v5826 = vpop.f32.mrb[0].mxu0
    %5827 = vmatprep.mubr.f32.mxu0 0.0
    %5828 = vmatmul.mubr.f32.gmra.mrb[0].mxu0 %v5065
    %v5829 = vpop.f32.mrb[0].mxu0
    %v5830 = vadd.f32 %v5445, %v5829
    %v5831 = vpop.f32.mrb[0].mxu0
    %5832 = vmatprep.mubr.f32.mxu0 0.0
    %5833 = vmatmul.mubr.f32.gmra.mrb[0].mxu0 %v5066
    %v5834 = vpop.f32.mrb[0].mxu0
    %v5835 = vadd.f32 %v5450, %v5834
    %v5836 = vpop.f32.mrb[0].mxu0
    %5837 = vmatprep.mubr.f32.mxu0 0.0
    %5838 = vmatmul.mubr.f32.gmra.mrb[0].mxu0 %v5067
    %v5839 = vpop.f32.mrb[0].mxu0
    %v5840 = vadd.f32 %v5455, %v5839
    %v5841 = vpop.f32.mrb[0].mxu0
    %5842 = vmatprep.mubr.f32.mxu0 0.0
    %5843 = vmatmul.mubr.f32.gmra.mrb[0].mxu0 %v5068
    %v5844 = vpop.f32.mrb[0].mxu0
    %v5845 = vadd.f32 %v5460, %v5844
    %v5846 = vpop.f32.mrb[0].mxu0
    %5847 = vmatprep.mubr.f32.mxu0 0.0
    %5848 = vmatmul.mubr.f32.gmra.mrb[0].mxu0 %v5069
    %v5849 = vpop.f32.mrb[0].mxu0
    %v5850 = vadd.f32 %v5465, %v5849
    %v5851 = vpop.f32.mrb[0].mxu0
    %5852 = vmatprep.mubr.f32.mxu0 0.0
    %5853 = vmatmul.mubr.f32.gmra.mrb[0].mxu0 %v5070
    %v5854 = vpop.f32.mrb[0].mxu0
    %v5855 = vadd.f32 %v5470, %v5854
    %v5856 = vpop.f32.mrb[0].mxu0
    %5857 = vmatprep.mubr.f32.mxu0 0.0
    %5858 = vmatmul.mubr.f32.gmra.mrb[0].mxu0 %v5071
    %v5859 = vpop.f32.mrb[0].mxu0
    %v5860 = vadd.f32 %v5475, %v5859
    %v5861 = vpop.f32.mrb[0].mxu0
    %5862 = vmatprep.mubr.f32.mxu0 0.0
    %5863 = vmatmul.mubr.f32.gmra.mrb[0].mxu0 %v5072
    %v5864 = vpop.f32.mrb[0].mxu0
    %v5865 = vadd.f32 %v5480, %v5864
    %v5866 = vpop.f32.mrb[0].mxu0
    %5867 = vmatprep.mubr.f32.mxu0 0.0
    %5868 = vmatmul.mubr.f32.gmra.mrb[0].mxu0 %v5073
    %v5869 = vpop.f32.mrb[0].mxu0
    %v5870 = vadd.f32 %v5485, %v5869
    %v5871 = vpop.f32.mrb[0].mxu0
    %5872 = vmatprep.mubr.f32.mxu0 0.0
    %5873 = vmatmul.mubr.f32.gmra.mrb[0].mxu0 %v5074
    %v5874 = vpop.f32.mrb[0].mxu0
    %v5875 = vadd.f32 %v5490, %v5874
    %v5876 = vpop.f32.mrb[0].mxu0
    %5877 = vmatprep.mubr.f32.mxu0 0.0
    %5878 = vmatmul.mubr.f32.gmra.mrb[0].mxu0 %v5075
    %v5879 = vpop.f32.mrb[0].mxu0
    %v5880 = vadd.f32 %v5495, %v5879
    %v5881 = vpop.f32.mrb[0].mxu0
    %5882 = vmatprep.mubr.f32.mxu0 0.0
    %5883 = vmatmul.mubr.f32.gmra.mrb[0].mxu0 %v5076
    %v5884 = vpop.f32.mrb[0].mxu0
    %v5885 = vadd.f32 %v5500, %v5884
    %v5886 = vpop.f32.mrb[0].mxu0
    %5887 = vmatprep.mubr.f32.mxu0 0.0
    %5888 = vmatmul.mubr.f32.gmra.mrb[0].mxu0 %v5077
    %v5889 = vpop.f32.mrb[0].mxu0
    %v5890 = vadd.f32 %v5505, %v5889
    %v5891 = vpop.f32.mrb[0].mxu0
    %5892 = vmatprep.mubr.f32.mxu0 0.0
    %5893 = vmatmul.mubr.f32.gmra.mrb[0].mxu0 %v5078
    %v5894 = vpop.f32.mrb[0].mxu0
    %v5895 = vadd.f32 %v5510, %v5894
    %v5896 = vpop.f32.mrb[0].mxu0
    %5897 = vmatprep.mubr.f32.mxu0 0.0
    %5898 = vmatmul.mubr.f32.gmra.mrb[0].mxu0 %v5079
    %v5899 = vpop.f32.mrb[0].mxu0
    %v5900 = vadd.f32 %v5515, %v5899
    %v5901 = vpop.f32.mrb[0].mxu0
    %5902 = vmatprep.mubr.f32.mxu0 0.0
    %5903 = vmatmul.mubr.f32.gmra.mrb[0].mxu0 %v5080
    %v5904 = vpop.f32.mrb[0].mxu0
    %v5905 = vadd.f32 %v5520, %v5904
    %v5906 = vpop.f32.mrb[0].mxu0
    %5907 = vmatprep.mubr.f32.mxu0 0.0
    %5908 = vmatmul.mubr.f32.gmra.mrb[0].mxu0 %v5081
    %v5909 = vpop.f32.mrb[0].mxu0
    %v5910 = vadd.f32 %v5525, %v5909
    %v5911 = vpop.f32.mrb[0].mxu0
    %5912 = vmatprep.mubr.f32.mxu0 0.0
    %5913 = vmatmul.mubr.f32.gmra.mrb[0].mxu0 %v5082
    %v5914 = vpop.f32.mrb[0].mxu0
    %v5915 = vadd.f32 %v5530, %v5914
    %v5916 = vpop.f32.mrb[0].mxu0
    %5917 = vmatprep.mubr.f32.mxu0 0.0
    %5918 = vmatmul.mubr.f32.gmra.mrb[0].mxu0 %v5083
    %v5919 = vpop.f32.mrb[0].mxu0
    %v5920 = vadd.f32 %v5535, %v5919
    %v5921 = vpop.f32.mrb[0].mxu0
    %5922 = vmatprep.mubr.f32.mxu0 0.0
    %5923 = vmatmul.mubr.f32.gmra.mrb[0].mxu0 %v5084
    %v5924 = vpop.f32.mrb[0].mxu0
    %v5925 = vadd.f32 %v5540, %v5924
    %v5926 = vpop.f32.mrb[0].mxu0
    %5927 = vmatprep.mubr.f32.mxu0 0.0
    %5928 = vmatmul.mubr.f32.gmra.mrb[0].mxu0 %v5085
    %v5929 = vpop.f32.mrb[0].mxu0
    %v5930 = vadd.f32 %v5545, %v5929
    %v5931 = vpop.f32.mrb[0].mxu0
    %5932 = vmatprep.mubr.f32.mxu0 0.0
    %5933 = vmatmul.mubr.f32.gmra.mrb[0].mxu0 %v5086
    %v5934 = vpop.f32.mrb[0].mxu0
    %v5935 = vadd.f32 %v5550, %v5934
    %v5936 = vpop.f32.mrb[0].mxu0
    %5937 = vmatprep.mubr.f32.mxu0 0.0
    %5938 = vmatmul.mubr.f32.gmra.mrb[0].mxu0 %v5087
    %v5939 = vpop.f32.mrb[0].mxu0
    %v5940 = vadd.f32 %v5555, %v5939
    %v5941 = vpop.f32.mrb[0].mxu0
    %5942 = vmatprep.mubr.f32.mxu0 0.0
    %5943 = vmatmul.mubr.f32.gmra.mrb[0].mxu0 %v5088
    %v5944 = vpop.f32.mrb[0].mxu0
    %v5945 = vadd.f32 %v5560, %v5944
    %v5946 = vpop.f32.mrb[0].mxu0
    %5947 = vmatprep.mubr.f32.mxu0 0.0
    %5948 = vmatmul.mubr.f32.gmra.mrb[0].mxu0 %v5089
    %v5949 = vpop.f32.mrb[0].mxu0
    %v5950 = vadd.f32 %v5565, %v5949
    %v5951 = vpop.f32.mrb[0].mxu0
    %5952 = vmatprep.mubr.f32.mxu0 0.0
    %5953 = vmatmul.mubr.f32.gmra.mrb[0].mxu0 %v5090
    %v5954 = vpop.f32.mrb[0].mxu0
    %v5955 = vadd.f32 %v5570, %v5954
    %v5956 = vpop.f32.mrb[0].mxu0
    %5957 = vdwg.mxu0
    %v5958 = vld [vmem:[#allocation2 + $0x2] sm:$0xff]
    %v5959 = vld [vmem:[#allocation2 + $0xa] sm:$0xff]
    %v5960 = vld [vmem:[#allocation2 + $0x1a] sm:$0xff]
    %v5961 = vld [vmem:[#allocation2 + $0x22] sm:$0xff]
    %v5962 = vld [vmem:[#allocation2 + $0x32] sm:$0xff]
    %v5963 = vld [vmem:[#allocation2 + $0x3a] sm:$0xff]
    %v5964 = vld [vmem:[#allocation2 + $0x4a] sm:$0xff]
    %v5965 = vld [vmem:[#allocation2 + $0x52] sm:$0xff]
    %v5966 = vld [vmem:[#allocation2 + $0x62] sm:$0xff]
    %v5967 = vld [vmem:[#allocation2 + $0x6a] sm:$0xff]
    %v5968 = vld [vmem:[#allocation2 + $0x7a] sm:$0xff]
    %v5969 = vld [vmem:[#allocation2 + $0x82] sm:$0xff]
    %v5970 = vld [vmem:[#allocation2 + $0x92] sm:$0xff]
    %v5971 = vld [vmem:[#allocation2 + $0x9a] sm:$0xff]
    %v5972 = vld [vmem:[#allocation2 + $0xaa] sm:$0xff]
    %v5973 = vld [vmem:[#allocation2 + $0xb2] sm:$0xff]
    %v5974 = vld [vmem:[#allocation2 + $0xc2] sm:$0xff]
    %v5975 = vld [vmem:[#allocation2 + $0xca] sm:$0xff]
    %v5976 = vld [vmem:[#allocation2 + $0xda] sm:$0xff]
    %v5977 = vld [vmem:[#allocation2 + $0xe2] sm:$0xff]
    %v5978 = vld [vmem:[#allocation2 + $0xf2] sm:$0xff]
    %v5979 = vld [vmem:[#allocation2 + $0xfa] sm:$0xff]
    %v5980 = vld [vmem:[#allocation2 + $0x10a] sm:$0xff]
    %v5981 = vld [vmem:[#allocation2 + $0x112] sm:$0xff]
    %v5982 = vld [vmem:[#allocation2 + $0x122] sm:$0xff]
    %v5983 = vld [vmem:[#allocation2 + $0x12a] sm:$0xff]
    %v5984 = vld [vmem:[#allocation2 + $0x13a] sm:$0xff]
    %v5985 = vld [vmem:[#allocation2 + $0x142] sm:$0xff]
    %v5986 = vld [vmem:[#allocation2 + $0x152] sm:$0xff]
    %v5987 = vld [vmem:[#allocation2 + $0x15a] sm:$0xff]
    %v5988 = vld [vmem:[#allocation2 + $0x16a] sm:$0xff]
    %v5989 = vld [vmem:[#allocation2 + $0x172] sm:$0xff]
    %v5990 = vld [vmem:[#allocation2 + $0x1b2] sm:$0xff]
    %v5991 = vld [vmem:[#allocation2 + $0x1ba] sm:$0xff]
    %v5992 = vld [vmem:[#allocation2 + $0x1ca] sm:$0xff]
    %v5993 = vld [vmem:[#allocation2 + $0x1d2] sm:$0xff]
    %v5994 = vld [vmem:[#allocation2 + $0x1e2] sm:$0xff]
    %v5995 = vld [vmem:[#allocation2 + $0x1ea] sm:$0xff]
    %v5996 = vld [vmem:[#allocation2 + $0x1fa] sm:$0xff]
    %v5997 = vld [vmem:[#allocation2 + $0x202] sm:$0xff]
    %v5998 = vld [vmem:[#allocation2 + $0x212] sm:$0xff]
    %v5999 = vld [vmem:[#allocation2 + $0x21a] sm:$0xff]
    %v6000 = vld [vmem:[#allocation2 + $0x22a] sm:$0xff]
    %v6001 = vld [vmem:[#allocation2 + $0x232] sm:$0xff]
    %v6002 = vld [vmem:[#allocation2 + $0x242] sm:$0xff]
    %v6003 = vld [vmem:[#allocation2 + $0x24a] sm:$0xff]
    %v6004 = vld [vmem:[#allocation2 + $0x25a] sm:$0xff]
    %v6005 = vld [vmem:[#allocation2 + $0x262] sm:$0xff]
    %v6006 = vld [vmem:[#allocation2 + $0x272] sm:$0xff]
    %v6007 = vld [vmem:[#allocation2 + $0x27a] sm:$0xff]
    %v6008 = vld [vmem:[#allocation2 + $0x28a] sm:$0xff]
    %v6009 = vld [vmem:[#allocation2 + $0x292] sm:$0xff]
    %v6010 = vld [vmem:[#allocation2 + $0x2a2] sm:$0xff]
    %v6011 = vld [vmem:[#allocation2 + $0x2aa] sm:$0xff]
    %v6012 = vld [vmem:[#allocation2 + $0x2ba] sm:$0xff]
    %v6013 = vld [vmem:[#allocation2 + $0x2c2] sm:$0xff]
    %v6014 = vld [vmem:[#allocation2 + $0x2d2] sm:$0xff]
    %v6015 = vld [vmem:[#allocation2 + $0x2da] sm:$0xff]
    %v6016 = vld [vmem:[#allocation2 + $0x2ea] sm:$0xff]
    %v6017 = vld [vmem:[#allocation2 + $0x2f2] sm:$0xff]
    %v6018 = vld [vmem:[#allocation2 + $0x302] sm:$0xff]
    %v6019 = vld [vmem:[#allocation2 + $0x30a] sm:$0xff]
    %v6020 = vld [vmem:[#allocation2 + $0x31a] sm:$0xff]
    %v6021 = vld [vmem:[#allocation2 + $0x322] sm:$0xff]
    %s6022 = scalar_lea.vmem [#allocation3], 256
    %v6023 = vld [vmem:[%s6022] sm:$0xff]
    %v6024 = vld [vmem:[%s6022 + $0x8] sm:$0xff]
    %v6025 = vld [vmem:[%s6022 + $0x10] sm:$0xff]
    %v6026 = vld [vmem:[%s6022 + $0x18] sm:$0xff]
    %v6027 = vld [vmem:[%s6022 + $0x20] sm:$0xff]
    %v6028 = vld [vmem:[%s6022 + $0x28] sm:$0xff]
    %v6029 = vld [vmem:[%s6022 + $0x30] sm:$0xff]
    %v6030 = vld [vmem:[%s6022 + $0x38] sm:$0xff]
    %v6031 = vld [vmem:[%s6022 + $0x40] sm:$0xff]
    %v6032 = vld [vmem:[%s6022 + $0x48] sm:$0xff]
    %v6033 = vld [vmem:[%s6022 + $0x50] sm:$0xff]
    %v6034 = vld [vmem:[%s6022 + $0x58] sm:$0xff]
    %v6035 = vld [vmem:[%s6022 + $0x60] sm:$0xff]
    %v6036 = vld [vmem:[%s6022 + $0x68] sm:$0xff]
    %v6037 = vld [vmem:[%s6022 + $0x70] sm:$0xff]
    %v6038 = vld [vmem:[%s6022 + $0x78] sm:$0xff]
    %6039 = vmatprep.subr.mxu0 0.0
    %6040 = vmatpush1.msra.mxu0 %v6023
    %6041 = vmatprep.subr.mxu0 0.0
    %6042 = vmatpush1.msra.mxu0 %v6024
    %6043 = vmatprep.subr.mxu0 0.0
    %6044 = vmatpush1.msra.mxu0 %v6025
    %6045 = vmatprep.subr.mxu0 0.0
    %6046 = vmatpush1.msra.mxu0 %v6026
    %6047 = vmatprep.subr.mxu0 0.0
    %6048 = vmatpush1.msra.mxu0 %v6027
    %6049 = vmatprep.subr.mxu0 0.0
    %6050 = vmatpush1.msra.mxu0 %v6028
    %6051 = vmatprep.subr.mxu0 0.0
    %6052 = vmatpush1.msra.mxu0 %v6029
    %6053 = vmatprep.subr.mxu0 0.0
    %6054 = vmatpush1.msra.mxu0 %v6030
    %6055 = vmatprep.subr.mxu0 0.0
    %6056 = vmatpush1.msra.mxu0 %v6031
    %6057 = vmatprep.subr.mxu0 0.0
    %6058 = vmatpush1.msra.mxu0 %v6032
    %6059 = vmatprep.subr.mxu0 0.0
    %6060 = vmatpush1.msra.mxu0 %v6033
    %6061 = vmatprep.subr.mxu0 0.0
    %6062 = vmatpush1.msra.mxu0 %v6034
    %6063 = vmatprep.subr.mxu0 0.0
    %6064 = vmatpush1.msra.mxu0 %v6035
    %6065 = vmatprep.subr.mxu0 0.0
    %6066 = vmatpush1.msra.mxu0 %v6036
    %6067 = vmatprep.subr.mxu0 0.0
    %6068 = vmatpush1.msra.mxu0 %v6037
    %6069 = vmatprep.subr.mxu0 0.0
    %6070 = vmatpush1.msra.mxu0 %v6038
    %6071 = vmatprep.subr.mxu0 0.0
    %6072 = vmatpush1.msra.mxu0 0.0
    %6073 = vmatprep.subr.mxu0 0.0
    %6074 = vmatpush1.msra.mxu0 0.0
    %6075 = vmatprep.subr.mxu0 0.0
    %6076 = vmatpush1.msra.mxu0 0.0
    %6077 = vmatprep.subr.mxu0 0.0
    %6078 = vmatpush1.msra.mxu0 0.0
    %6079 = vmatprep.subr.mxu0 0.0
    %6080 = vmatpush1.msra.mxu0 0.0
    %6081 = vmatprep.subr.mxu0 0.0
    %6082 = vmatpush1.msra.mxu0 0.0
    %6083 = vmatprep.subr.mxu0 0.0
    %6084 = vmatpush1.msra.mxu0 0.0
    %6085 = vmatprep.subr.mxu0 0.0
    %6086 = vmatpush1.msra.mxu0 0.0
    %6087 = vmatprep.subr.mxu0 0.0
    %6088 = vmatpush1.msra.mxu0 0.0
    %6089 = vmatprep.subr.mxu0 0.0
    %6090 = vmatpush1.msra.mxu0 0.0
    %6091 = vmatprep.subr.mxu0 0.0
    %6092 = vmatpush1.msra.mxu0 0.0
    %6093 = vmatprep.subr.mxu0 0.0
    %6094 = vmatpush1.msra.mxu0 0.0
    %6095 = vmatprep.subr.mxu0 0.0
    %6096 = vmatpush1.msra.mxu0 0.0
    %6097 = vmatprep.subr.mxu0 0.0
    %6098 = vmatpush1.msra.mxu0 0.0
    %6099 = vmatprep.subr.mxu0 0.0
    %6100 = vmatpush1.msra.mxu0 0.0
    %6101 = vmatprep.subr.mxu0 0.0
    %6102 = vmatpush1.msra.mxu0 0.0
    %6103 = vmatprep.mubr.f32.mxu0 0.0
    %6104 = vmatmul.mubr.f32.gmra.mrb[0].mxu0 %v5958
    %v6105 = vpop.f32.mrb[0].mxu0
    %v6106 = vadd.f32 0.0, %v6105
    %v6107 = vpop.f32.mrb[0].mxu0
    %6108 = vmatprep.mubr.f32.mxu0 0.0
    %6109 = vmatmul.mubr.f32.gmra.mrb[0].mxu0 %v5959
    %v6110 = vpop.f32.mrb[0].mxu0
    %v6111 = vadd.f32 0.0, %v6110
    %v6112 = vpop.f32.mrb[0].mxu0
    %6113 = vmatprep.mubr.f32.mxu0 0.0
    %6114 = vmatmul.mubr.f32.gmra.mrb[0].mxu0 %v5960
    %v6115 = vpop.f32.mrb[0].mxu0
    %v6116 = vadd.f32 0.0, %v6115
    %v6117 = vpop.f32.mrb[0].mxu0
    %6118 = vmatprep.mubr.f32.mxu0 0.0
    %6119 = vmatmul.mubr.f32.gmra.mrb[0].mxu0 %v5961
    %v6120 = vpop.f32.mrb[0].mxu0
    %v6121 = vadd.f32 0.0, %v6120
    %v6122 = vpop.f32.mrb[0].mxu0
    %6123 = vmatprep.mubr.f32.mxu0 0.0
    %6124 = vmatmul.mubr.f32.gmra.mrb[0].mxu0 %v5962
    %v6125 = vpop.f32.mrb[0].mxu0
    %v6126 = vadd.f32 0.0, %v6125
    %v6127 = vpop.f32.mrb[0].mxu0
    %6128 = vmatprep.mubr.f32.mxu0 0.0
    %6129 = vmatmul.mubr.f32.gmra.mrb[0].mxu0 %v5963
    %v6130 = vpop.f32.mrb[0].mxu0
    %v6131 = vadd.f32 0.0, %v6130
    %v6132 = vpop.f32.mrb[0].mxu0
    %6133 = vmatprep.mubr.f32.mxu0 0.0
    %6134 = vmatmul.mubr.f32.gmra.mrb[0].mxu0 %v5964
    %v6135 = vpop.f32.mrb[0].mxu0
    %v6136 = vadd.f32 0.0, %v6135
    %v6137 = vpop.f32.mrb[0].mxu0
    %6138 = vmatprep.mubr.f32.mxu0 0.0
    %6139 = vmatmul.mubr.f32.gmra.mrb[0].mxu0 %v5965
    %v6140 = vpop.f32.mrb[0].mxu0
    %v6141 = vadd.f32 0.0, %v6140
    %v6142 = vpop.f32.mrb[0].mxu0
    %6143 = vmatprep.mubr.f32.mxu0 0.0
    %6144 = vmatmul.mubr.f32.gmra.mrb[0].mxu0 %v5966
    %v6145 = vpop.f32.mrb[0].mxu0
    %v6146 = vadd.f32 0.0, %v6145
    %v6147 = vpop.f32.mrb[0].mxu0
    %6148 = vmatprep.mubr.f32.mxu0 0.0
    %6149 = vmatmul.mubr.f32.gmra.mrb[0].mxu0 %v5967
    %v6150 = vpop.f32.mrb[0].mxu0
    %v6151 = vadd.f32 0.0, %v6150
    %v6152 = vpop.f32.mrb[0].mxu0
    %6153 = vmatprep.mubr.f32.mxu0 0.0
    %6154 = vmatmul.mubr.f32.gmra.mrb[0].mxu0 %v5968
    %v6155 = vpop.f32.mrb[0].mxu0
    %v6156 = vadd.f32 0.0, %v6155
    %v6157 = vpop.f32.mrb[0].mxu0
    %6158 = vmatprep.mubr.f32.mxu0 0.0
    %6159 = vmatmul.mubr.f32.gmra.mrb[0].mxu0 %v5969
    %v6160 = vpop.f32.mrb[0].mxu0
    %v6161 = vadd.f32 0.0, %v6160
    %v6162 = vpop.f32.mrb[0].mxu0
    %6163 = vmatprep.mubr.f32.mxu0 0.0
    %6164 = vmatmul.mubr.f32.gmra.mrb[0].mxu0 %v5970
    %v6165 = vpop.f32.mrb[0].mxu0
    %v6166 = vadd.f32 0.0, %v6165
    %v6167 = vpop.f32.mrb[0].mxu0
    %6168 = vmatprep.mubr.f32.mxu0 0.0
    %6169 = vmatmul.mubr.f32.gmra.mrb[0].mxu0 %v5971
    %v6170 = vpop.f32.mrb[0].mxu0
    %v6171 = vadd.f32 0.0, %v6170
    %v6172 = vpop.f32.mrb[0].mxu0
    %6173 = vmatprep.mubr.f32.mxu0 0.0
    %6174 = vmatmul.mubr.f32.gmra.mrb[0].mxu0 %v5972
    %v6175 = vpop.f32.mrb[0].mxu0
    %v6176 = vadd.f32 0.0, %v6175
    %v6177 = vpop.f32.mrb[0].mxu0
    %6178 = vmatprep.mubr.f32.mxu0 0.0
    %6179 = vmatmul.mubr.f32.gmra.mrb[0].mxu0 %v5973
    %v6180 = vpop.f32.mrb[0].mxu0
    %v6181 = vadd.f32 0.0, %v6180
    %v6182 = vpop.f32.mrb[0].mxu0
    %6183 = vmatprep.mubr.f32.mxu0 0.0
    %6184 = vmatmul.mubr.f32.gmra.mrb[0].mxu0 %v5974
    %v6185 = vpop.f32.mrb[0].mxu0
    %v6186 = vadd.f32 0.0, %v6185
    %v6187 = vpop.f32.mrb[0].mxu0
    %6188 = vmatprep.mubr.f32.mxu0 0.0
    %6189 = vmatmul.mubr.f32.gmra.mrb[0].mxu0 %v5975
    %v6190 = vpop.f32.mrb[0].mxu0
    %v6191 = vadd.f32 0.0, %v6190
    %v6192 = vpop.f32.mrb[0].mxu0
    %6193 = vmatprep.mubr.f32.mxu0 0.0
    %6194 = vmatmul.mubr.f32.gmra.mrb[0].mxu0 %v5976
    %v6195 = vpop.f32.mrb[0].mxu0
    %v6196 = vadd.f32 0.0, %v6195
    %v6197 = vpop.f32.mrb[0].mxu0
    %6198 = vmatprep.mubr.f32.mxu0 0.0
    %6199 = vmatmul.mubr.f32.gmra.mrb[0].mxu0 %v5977
    %v6200 = vpop.f32.mrb[0].mxu0
    %v6201 = vadd.f32 0.0, %v6200
    %v6202 = vpop.f32.mrb[0].mxu0
    %6203 = vmatprep.mubr.f32.mxu0 0.0
    %6204 = vmatmul.mubr.f32.gmra.mrb[0].mxu0 %v5978
    %v6205 = vpop.f32.mrb[0].mxu0
    %v6206 = vadd.f32 0.0, %v6205
    %v6207 = vpop.f32.mrb[0].mxu0
    %6208 = vmatprep.mubr.f32.mxu0 0.0
    %6209 = vmatmul.mubr.f32.gmra.mrb[0].mxu0 %v5979
    %v6210 = vpop.f32.mrb[0].mxu0
    %v6211 = vadd.f32 0.0, %v6210
    %v6212 = vpop.f32.mrb[0].mxu0
    %6213 = vmatprep.mubr.f32.mxu0 0.0
    %6214 = vmatmul.mubr.f32.gmra.mrb[0].mxu0 %v5980
    %v6215 = vpop.f32.mrb[0].mxu0
    %v6216 = vadd.f32 0.0, %v6215
    %v6217 = vpop.f32.mrb[0].mxu0
    %6218 = vmatprep.mubr.f32.mxu0 0.0
    %6219 = vmatmul.mubr.f32.gmra.mrb[0].mxu0 %v5981
    %v6220 = vpop.f32.mrb[0].mxu0
    %v6221 = vadd.f32 0.0, %v6220
    %v6222 = vpop.f32.mrb[0].mxu0
    %6223 = vmatprep.mubr.f32.mxu0 0.0
    %6224 = vmatmul.mubr.f32.gmra.mrb[0].mxu0 %v5982
    %v6225 = vpop.f32.mrb[0].mxu0
    %v6226 = vadd.f32 0.0, %v6225
    %v6227 = vpop.f32.mrb[0].mxu0
    %6228 = vmatprep.mubr.f32.mxu0 0.0
    %6229 = vmatmul.mubr.f32.gmra.mrb[0].mxu0 %v5983
    %v6230 = vpop.f32.mrb[0].mxu0
    %v6231 = vadd.f32 0.0, %v6230
    %v6232 = vpop.f32.mrb[0].mxu0
    %6233 = vmatprep.mubr.f32.mxu0 0.0
    %6234 = vmatmul.mubr.f32.gmra.mrb[0].mxu0 %v5984
    %v6235 = vpop.f32.mrb[0].mxu0
    %v6236 = vadd.f32 0.0, %v6235
    %v6237 = vpop.f32.mrb[0].mxu0
    %6238 = vmatprep.mubr.f32.mxu0 0.0
    %6239 = vmatmul.mubr.f32.gmra.mrb[0].mxu0 %v5985
    %v6240 = vpop.f32.mrb[0].mxu0
    %v6241 = vadd.f32 0.0, %v6240
    %v6242 = vpop.f32.mrb[0].mxu0
    %6243 = vmatprep.mubr.f32.mxu0 0.0
    %6244 = vmatmul.mubr.f32.gmra.mrb[0].mxu0 %v5986
    %v6245 = vpop.f32.mrb[0].mxu0
    %v6246 = vadd.f32 0.0, %v6245
    %v6247 = vpop.f32.mrb[0].mxu0
    %6248 = vmatprep.mubr.f32.mxu0 0.0
    %6249 = vmatmul.mubr.f32.gmra.mrb[0].mxu0 %v5987
    %v6250 = vpop.f32.mrb[0].mxu0
    %v6251 = vadd.f32 0.0, %v6250
    %v6252 = vpop.f32.mrb[0].mxu0
    %6253 = vmatprep.mubr.f32.mxu0 0.0
    %6254 = vmatmul.mubr.f32.gmra.mrb[0].mxu0 %v5988
    %v6255 = vpop.f32.mrb[0].mxu0
    %v6256 = vadd.f32 0.0, %v6255
    %v6257 = vpop.f32.mrb[0].mxu0
    %6258 = vmatprep.mubr.f32.mxu0 0.0
    %6259 = vmatmul.mubr.f32.gmra.mrb[0].mxu0 %v5989
    %v6260 = vpop.f32.mrb[0].mxu0
    %v6261 = vadd.f32 0.0, %v6260
    %v6262 = vpop.f32.mrb[0].mxu0
    %6263 = vmatprep.mubr.f32.mxu0 0.0
    %6264 = vmatmul.mubr.f32.gmra.mrb[0].mxu0 %v5990
    %v6265 = vpop.f32.mrb[0].mxu0
    %v6266 = vadd.f32 0.0, %v6265
    %v6267 = vpop.f32.mrb[0].mxu0
    %6268 = vmatprep.mubr.f32.mxu0 0.0
    %6269 = vmatmul.mubr.f32.gmra.mrb[0].mxu0 %v5991
    %v6270 = vpop.f32.mrb[0].mxu0
    %v6271 = vadd.f32 0.0, %v6270
    %v6272 = vpop.f32.mrb[0].mxu0
    %6273 = vmatprep.mubr.f32.mxu0 0.0
    %6274 = vmatmul.mubr.f32.gmra.mrb[0].mxu0 %v5992
    %v6275 = vpop.f32.mrb[0].mxu0
    %v6276 = vadd.f32 0.0, %v6275
    %v6277 = vpop.f32.mrb[0].mxu0
    %6278 = vmatprep.mubr.f32.mxu0 0.0
    %6279 = vmatmul.mubr.f32.gmra.mrb[0].mxu0 %v5993
    %v6280 = vpop.f32.mrb[0].mxu0
    %v6281 = vadd.f32 0.0, %v6280
    %v6282 = vpop.f32.mrb[0].mxu0
    %6283 = vmatprep.mubr.f32.mxu0 0.0
    %6284 = vmatmul.mubr.f32.gmra.mrb[0].mxu0 %v5994
    %v6285 = vpop.f32.mrb[0].mxu0
    %v6286 = vadd.f32 0.0, %v6285
    %v6287 = vpop.f32.mrb[0].mxu0
    %6288 = vmatprep.mubr.f32.mxu0 0.0
    %6289 = vmatmul.mubr.f32.gmra.mrb[0].mxu0 %v5995
    %v6290 = vpop.f32.mrb[0].mxu0
    %v6291 = vadd.f32 0.0, %v6290
    %v6292 = vpop.f32.mrb[0].mxu0
    %6293 = vmatprep.mubr.f32.mxu0 0.0
    %6294 = vmatmul.mubr.f32.gmra.mrb[0].mxu0 %v5996
    %v6295 = vpop.f32.mrb[0].mxu0
    %v6296 = vadd.f32 0.0, %v6295
    %v6297 = vpop.f32.mrb[0].mxu0
    %6298 = vmatprep.mubr.f32.mxu0 0.0
    %6299 = vmatmul.mubr.f32.gmra.mrb[0].mxu0 %v5997
    %v6300 = vpop.f32.mrb[0].mxu0
    %v6301 = vadd.f32 0.0, %v6300
    %v6302 = vpop.f32.mrb[0].mxu0
    %6303 = vmatprep.mubr.f32.mxu0 0.0
    %6304 = vmatmul.mubr.f32.gmra.mrb[0].mxu0 %v5998
    %v6305 = vpop.f32.mrb[0].mxu0
    %v6306 = vadd.f32 0.0, %v6305
    %v6307 = vpop.f32.mrb[0].mxu0
    %6308 = vmatprep.mubr.f32.mxu0 0.0
    %6309 = vmatmul.mubr.f32.gmra.mrb[0].mxu0 %v5999
    %v6310 = vpop.f32.mrb[0].mxu0
    %v6311 = vadd.f32 0.0, %v6310
    %v6312 = vpop.f32.mrb[0].mxu0
    %6313 = vmatprep.mubr.f32.mxu0 0.0
    %6314 = vmatmul.mubr.f32.gmra.mrb[0].mxu0 %v6000
    %v6315 = vpop.f32.mrb[0].mxu0
    %v6316 = vadd.f32 0.0, %v6315
    %v6317 = vpop.f32.mrb[0].mxu0
    %6318 = vmatprep.mubr.f32.mxu0 0.0
    %6319 = vmatmul.mubr.f32.gmra.mrb[0].mxu0 %v6001
    %v6320 = vpop.f32.mrb[0].mxu0
    %v6321 = vadd.f32 0.0, %v6320
    %v6322 = vpop.f32.mrb[0].mxu0
    %6323 = vmatprep.mubr.f32.mxu0 0.0
    %6324 = vmatmul.mubr.f32.gmra.mrb[0].mxu0 %v6002
    %v6325 = vpop.f32.mrb[0].mxu0
    %v6326 = vadd.f32 0.0, %v6325
    %v6327 = vpop.f32.mrb[0].mxu0
    %6328 = vmatprep.mubr.f32.mxu0 0.0
    %6329 = vmatmul.mubr.f32.gmra.mrb[0].mxu0 %v6003
    %v6330 = vpop.f32.mrb[0].mxu0
    %v6331 = vadd.f32 0.0, %v6330
    %v6332 = vpop.f32.mrb[0].mxu0
    %6333 = vmatprep.mubr.f32.mxu0 0.0
    %6334 = vmatmul.mubr.f32.gmra.mrb[0].mxu0 %v6004
    %v6335 = vpop.f32.mrb[0].mxu0
    %v6336 = vadd.f32 0.0, %v6335
    %v6337 = vpop.f32.mrb[0].mxu0
    %6338 = vmatprep.mubr.f32.mxu0 0.0
    %6339 = vmatmul.mubr.f32.gmra.mrb[0].mxu0 %v6005
    %v6340 = vpop.f32.mrb[0].mxu0
    %v6341 = vadd.f32 0.0, %v6340
    %v6342 = vpop.f32.mrb[0].mxu0
    %6343 = vmatprep.mubr.f32.mxu0 0.0
    %6344 = vmatmul.mubr.f32.gmra.mrb[0].mxu0 %v6006
    %v6345 = vpop.f32.mrb[0].mxu0
    %v6346 = vadd.f32 0.0, %v6345
    %v6347 = vpop.f32.mrb[0].mxu0
    %6348 = vmatprep.mubr.f32.mxu0 0.0
    %6349 = vmatmul.mubr.f32.gmra.mrb[0].mxu0 %v6007
    %v6350 = vpop.f32.mrb[0].mxu0
    %v6351 = vadd.f32 0.0, %v6350
    %v6352 = vpop.f32.mrb[0].mxu0
    %6353 = vmatprep.mubr.f32.mxu0 0.0
    %6354 = vmatmul.mubr.f32.gmra.mrb[0].mxu0 %v6008
    %v6355 = vpop.f32.mrb[0].mxu0
    %v6356 = vadd.f32 0.0, %v6355
    %v6357 = vpop.f32.mrb[0].mxu0
    %6358 = vmatprep.mubr.f32.mxu0 0.0
    %6359 = vmatmul.mubr.f32.gmra.mrb[0].mxu0 %v6009
    %v6360 = vpop.f32.mrb[0].mxu0
    %v6361 = vadd.f32 0.0, %v6360
    %v6362 = vpop.f32.mrb[0].mxu0
    %6363 = vmatprep.mubr.f32.mxu0 0.0
    %6364 = vmatmul.mubr.f32.gmra.mrb[0].mxu0 %v6010
    %v6365 = vpop.f32.mrb[0].mxu0
    %v6366 = vadd.f32 0.0, %v6365
    %v6367 = vpop.f32.mrb[0].mxu0
    %6368 = vmatprep.mubr.f32.mxu0 0.0
    %6369 = vmatmul.mubr.f32.gmra.mrb[0].mxu0 %v6011
    %v6370 = vpop.f32.mrb[0].mxu0
    %v6371 = vadd.f32 0.0, %v6370
    %v6372 = vpop.f32.mrb[0].mxu0
    %6373 = vmatprep.mubr.f32.mxu0 0.0
    %6374 = vmatmul.mubr.f32.gmra.mrb[0].mxu0 %v6012
    %v6375 = vpop.f32.mrb[0].mxu0
    %v6376 = vadd.f32 0.0, %v6375
    %v6377 = vpop.f32.mrb[0].mxu0
    %6378 = vmatprep.mubr.f32.mxu0 0.0
    %6379 = vmatmul.mubr.f32.gmra.mrb[0].mxu0 %v6013
    %v6380 = vpop.f32.mrb[0].mxu0
    %v6381 = vadd.f32 0.0, %v6380
    %v6382 = vpop.f32.mrb[0].mxu0
    %6383 = vmatprep.mubr.f32.mxu0 0.0
    %6384 = vmatmul.mubr.f32.gmra.mrb[0].mxu0 %v6014
    %v6385 = vpop.f32.mrb[0].mxu0
    %v6386 = vadd.f32 0.0, %v6385
    %v6387 = vpop.f32.mrb[0].mxu0
    %6388 = vmatprep.mubr.f32.mxu0 0.0
    %6389 = vmatmul.mubr.f32.gmra.mrb[0].mxu0 %v6015
    %v6390 = vpop.f32.mrb[0].mxu0
    %v6391 = vadd.f32 0.0, %v6390
    %v6392 = vpop.f32.mrb[0].mxu0
    %6393 = vmatprep.mubr.f32.mxu0 0.0
    %6394 = vmatmul.mubr.f32.gmra.mrb[0].mxu0 %v6016
    %v6395 = vpop.f32.mrb[0].mxu0
    %v6396 = vadd.f32 0.0, %v6395
    %v6397 = vpop.f32.mrb[0].mxu0
    %6398 = vmatprep.mubr.f32.mxu0 0.0
    %6399 = vmatmul.mubr.f32.gmra.mrb[0].mxu0 %v6017
    %v6400 = vpop.f32.mrb[0].mxu0
    %v6401 = vadd.f32 0.0, %v6400
    %v6402 = vpop.f32.mrb[0].mxu0
    %6403 = vmatprep.mubr.f32.mxu0 0.0
    %6404 = vmatmul.mubr.f32.gmra.mrb[0].mxu0 %v6018
    %v6405 = vpop.f32.mrb[0].mxu0
    %v6406 = vadd.f32 0.0, %v6405
    %v6407 = vpop.f32.mrb[0].mxu0
    %6408 = vmatprep.mubr.f32.mxu0 0.0
    %6409 = vmatmul.mubr.f32.gmra.mrb[0].mxu0 %v6019
    %v6410 = vpop.f32.mrb[0].mxu0
    %v6411 = vadd.f32 0.0, %v6410
    %v6412 = vpop.f32.mrb[0].mxu0
    %6413 = vmatprep.mubr.f32.mxu0 0.0
    %6414 = vmatmul.mubr.f32.gmra.mrb[0].mxu0 %v6020
    %v6415 = vpop.f32.mrb[0].mxu0
    %v6416 = vadd.f32 0.0, %v6415
    %v6417 = vpop.f32.mrb[0].mxu0
    %6418 = vmatprep.mubr.f32.mxu0 0.0
    %6419 = vmatmul.mubr.f32.gmra.mrb[0].mxu0 %v6021
    %v6420 = vpop.f32.mrb[0].mxu0
    %v6421 = vadd.f32 0.0, %v6420
    %v6422 = vpop.f32.mrb[0].mxu0
    %6423 = vdwg.mxu0
    %v6424 = vadd.f32 %v5640, %v6106
    %v6425 = vadd.f32 %v5645, %v6111
    %v6426 = vadd.f32 %v5650, %v6116
    %v6427 = vadd.f32 %v5655, %v6121
    %v6428 = vadd.f32 %v5660, %v6126
    %v6429 = vadd.f32 %v5665, %v6131
    %v6430 = vadd.f32 %v5670, %v6136
    %v6431 = vadd.f32 %v5675, %v6141
    %v6432 = vadd.f32 %v5680, %v6146
    %v6433 = vadd.f32 %v5685, %v6151
    %v6434 = vadd.f32 %v5690, %v6156
    %v6435 = vadd.f32 %v5695, %v6161
    %v6436 = vadd.f32 %v5700, %v6166
    %v6437 = vadd.f32 %v5705, %v6171
    %v6438 = vadd.f32 %v5710, %v6176
    %v6439 = vadd.f32 %v5715, %v6181
    %v6440 = vadd.f32 %v5720, %v6186
    %v6441 = vadd.f32 %v5725, %v6191
    %v6442 = vadd.f32 %v5730, %v6196
    %v6443 = vadd.f32 %v5735, %v6201
    %v6444 = vadd.f32 %v5740, %v6206
    %v6445 = vadd.f32 %v5745, %v6211
    %v6446 = vadd.f32 %v5750, %v6216
    %v6447 = vadd.f32 %v5755, %v6221
    %v6448 = vadd.f32 %v5760, %v6226
    %v6449 = vadd.f32 %v5765, %v6231
    %v6450 = vadd.f32 %v5770, %v6236
    %v6451 = vadd.f32 %v5775, %v6241
    %v6452 = vadd.f32 %v5780, %v6246
    %v6453 = vadd.f32 %v5785, %v6251
    %v6454 = vadd.f32 %v5790, %v6256
    %v6455 = vadd.f32 %v5795, %v6261
    %v6456 = vadd.f32 %v5800, %v6266
    %v6457 = vadd.f32 %v5805, %v6271
    %v6458 = vadd.f32 %v5810, %v6276
    %v6459 = vadd.f32 %v5815, %v6281
    %v6460 = vadd.f32 %v5820, %v6286
    %v6461 = vadd.f32 %v5825, %v6291
    %v6462 = vadd.f32 %v5830, %v6296
    %v6463 = vadd.f32 %v5835, %v6301
    %v6464 = vadd.f32 %v5840, %v6306
    %v6465 = vadd.f32 %v5845, %v6311
    %v6466 = vadd.f32 %v5850, %v6316
    %v6467 = vadd.f32 %v5855, %v6321
    %v6468 = vadd.f32 %v5860, %v6326
    %v6469 = vadd.f32 %v5865, %v6331
    %v6470 = vadd.f32 %v5870, %v6336
    %v6471 = vadd.f32 %v5875, %v6341
    %v6472 = vadd.f32 %v5880, %v6346
    %v6473 = vadd.f32 %v5885, %v6351
    %v6474 = vadd.f32 %v5890, %v6356
    %v6475 = vadd.f32 %v5895, %v6361
    %v6476 = vadd.f32 %v5900, %v6366
    %v6477 = vadd.f32 %v5905, %v6371
    %v6478 = vadd.f32 %v5910, %v6376
    %v6479 = vadd.f32 %v5915, %v6381
    %v6480 = vadd.f32 %v5920, %v6386
    %v6481 = vadd.f32 %v5925, %v6391
    %v6482 = vadd.f32 %v5930, %v6396
    %v6483 = vadd.f32 %v5935, %v6401
    %v6484 = vadd.f32 %v5940, %v6406
    %v6485 = vadd.f32 %v5945, %v6411
    %v6486 = vadd.f32 %v5950, %v6416
    %v6487 = vadd.f32 %v5955, %v6421
    %v6488 = vld [vmem:[%s4962] sm:$0xff]
    %v6489 = vld [vmem:[%s4962 + $0x8] sm:$0xff]
    %v6490 = vld [vmem:[%s4962 + $0x18] sm:$0xff]
    %v6491 = vld [vmem:[%s4962 + $0x20] sm:$0xff]
    %v6492 = vld [vmem:[%s4962 + $0x30] sm:$0xff]
    %v6493 = vld [vmem:[%s4962 + $0x38] sm:$0xff]
    %v6494 = vld [vmem:[%s4962 + $0x48] sm:$0xff]
    %v6495 = vld [vmem:[%s4962 + $0x50] sm:$0xff]
    %v6496 = vld [vmem:[%s4962 + $0x60] sm:$0xff]
    %v6497 = vld [vmem:[%s4962 + $0x68] sm:$0xff]
    %v6498 = vld [vmem:[%s4962 + $0x78] sm:$0xff]
    %v6499 = vld [vmem:[%s4962 + $0x80] sm:$0xff]
    %v6500 = vld [vmem:[%s4962 + $0x90] sm:$0xff]
    %v6501 = vld [vmem:[%s4962 + $0x98] sm:$0xff]
    %v6502 = vld [vmem:[%s4962 + $0xa8] sm:$0xff]
    %v6503 = vld [vmem:[%s4962 + $0xb0] sm:$0xff]
    %v6504 = vld [vmem:[%s4962 + $0xc0] sm:$0xff]
    %v6505 = vld [vmem:[%s4962 + $0xc8] sm:$0xff]
    %v6506 = vld [vmem:[%s4962 + $0xd8] sm:$0xff]
    %v6507 = vld [vmem:[%s4962 + $0xe0] sm:$0xff]
    %v6508 = vld [vmem:[%s4962 + $0xf0] sm:$0xff]
    %v6509 = vld [vmem:[%s4962 + $0xf8] sm:$0xff]
    %v6510 = vld [vmem:[%s4962 + $0x108] sm:$0xff]
    %v6511 = vld [vmem:[%s4962 + $0x110] sm:$0xff]
    %v6512 = vld [vmem:[%s4962 + $0x120] sm:$0xff]
    %v6513 = vld [vmem:[%s4962 + $0x128] sm:$0xff]
    %v6514 = vld [vmem:[%s4962 + $0x138] sm:$0xff]
    %v6515 = vld [vmem:[%s4962 + $0x140] sm:$0xff]
    %v6516 = vld [vmem:[%s4962 + $0x150] sm:$0xff]
    %v6517 = vld [vmem:[%s4962 + $0x158] sm:$0xff]
    %v6518 = vld [vmem:[%s4962 + $0x168] sm:$0xff]
    %v6519 = vld [vmem:[%s4962 + $0x170] sm:$0xff]
    %v6520 = vld [vmem:[%s4962 + $0x1b0] sm:$0xff]
    %v6521 = vld [vmem:[%s4962 + $0x1b8] sm:$0xff]
    %v6522 = vld [vmem:[%s4962 + $0x1c8] sm:$0xff]
    %v6523 = vld [vmem:[%s4962 + $0x1d0] sm:$0xff]
    %v6524 = vld [vmem:[%s4962 + $0x1e0] sm:$0xff]
    %v6525 = vld [vmem:[%s4962 + $0x1e8] sm:$0xff]
    %v6526 = vld [vmem:[%s4962 + $0x1f8] sm:$0xff]
    %v6527 = vld [vmem:[%s4962 + $0x200] sm:$0xff]
    %v6528 = vld [vmem:[%s4962 + $0x210] sm:$0xff]
    %v6529 = vld [vmem:[%s4962 + $0x218] sm:$0xff]
    %v6530 = vld [vmem:[%s4962 + $0x228] sm:$0xff]
    %v6531 = vld [vmem:[%s4962 + $0x230] sm:$0xff]
    %v6532 = vld [vmem:[%s4962 + $0x240] sm:$0xff]
    %v6533 = vld [vmem:[%s4962 + $0x248] sm:$0xff]
    %v6534 = vld [vmem:[%s4962 + $0x258] sm:$0xff]
    %v6535 = vld [vmem:[%s4962 + $0x260] sm:$0xff]
    %v6536 = vld [vmem:[%s4962 + $0x270] sm:$0xff]
    %v6537 = vld [vmem:[%s4962 + $0x278] sm:$0xff]
    %v6538 = vld [vmem:[%s4962 + $0x288] sm:$0xff]
    %v6539 = vld [vmem:[%s4962 + $0x290] sm:$0xff]
    %v6540 = vld [vmem:[%s4962 + $0x2a0] sm:$0xff]
    %v6541 = vld [vmem:[%s4962 + $0x2a8] sm:$0xff]
    %v6542 = vld [vmem:[%s4962 + $0x2b8] sm:$0xff]
    %v6543 = vld [vmem:[%s4962 + $0x2c0] sm:$0xff]
    %v6544 = vld [vmem:[%s4962 + $0x2d0] sm:$0xff]
    %v6545 = vld [vmem:[%s4962 + $0x2d8] sm:$0xff]
    %v6546 = vld [vmem:[%s4962 + $0x2e8] sm:$0xff]
    %v6547 = vld [vmem:[%s4962 + $0x2f0] sm:$0xff]
    %v6548 = vld [vmem:[%s4962 + $0x300] sm:$0xff]
    %v6549 = vld [vmem:[%s4962 + $0x308] sm:$0xff]
    %v6550 = vld [vmem:[%s4962 + $0x318] sm:$0xff]
    %v6551 = vld [vmem:[%s4962 + $0x320] sm:$0xff]
    %s6552 = scalar_lea.vmem [#allocation3], 384
    %v6553 = vld [vmem:[%s6552] sm:$0xff]
    %v6554 = vld [vmem:[%s6552 + $0x8] sm:$0xff]
    %v6555 = vld [vmem:[%s6552 + $0x10] sm:$0xff]
    %v6556 = vld [vmem:[%s6552 + $0x18] sm:$0xff]
    %v6557 = vld [vmem:[%s6552 + $0x20] sm:$0xff]
    %v6558 = vld [vmem:[%s6552 + $0x28] sm:$0xff]
    %v6559 = vld [vmem:[%s6552 + $0x30] sm:$0xff]
    %v6560 = vld [vmem:[%s6552 + $0x38] sm:$0xff]
    %v6561 = vld [vmem:[%s6552 + $0x40] sm:$0xff]
    %v6562 = vld [vmem:[%s6552 + $0x48] sm:$0xff]
    %v6563 = vld [vmem:[%s6552 + $0x50] sm:$0xff]
    %v6564 = vld [vmem:[%s6552 + $0x58] sm:$0xff]
    %v6565 = vld [vmem:[%s6552 + $0x60] sm:$0xff]
    %v6566 = vld [vmem:[%s6552 + $0x68] sm:$0xff]
    %v6567 = vld [vmem:[%s6552 + $0x70] sm:$0xff]
    %v6568 = vld [vmem:[%s6552 + $0x78] sm:$0xff]
    %6569 = vmatprep.subr.mxu0 0.0
    %6570 = vmatpush1.msra.mxu0 %v6553
    %6571 = vmatprep.subr.mxu0 0.0
    %6572 = vmatpush1.msra.mxu0 %v6554
    %6573 = vmatprep.subr.mxu0 0.0
    %6574 = vmatpush1.msra.mxu0 %v6555
    %6575 = vmatprep.subr.mxu0 0.0
    %6576 = vmatpush1.msra.mxu0 %v6556
    %6577 = vmatprep.subr.mxu0 0.0
    %6578 = vmatpush1.msra.mxu0 %v6557
    %6579 = vmatprep.subr.mxu0 0.0
    %6580 = vmatpush1.msra.mxu0 %v6558
    %6581 = vmatprep.subr.mxu0 0.0
    %6582 = vmatpush1.msra.mxu0 %v6559
    %6583 = vmatprep.subr.mxu0 0.0
    %6584 = vmatpush1.msra.mxu0 %v6560
    %6585 = vmatprep.subr.mxu0 0.0
    %6586 = vmatpush1.msra.mxu0 %v6561
    %6587 = vmatprep.subr.mxu0 0.0
    %6588 = vmatpush1.msra.mxu0 %v6562
    %6589 = vmatprep.subr.mxu0 0.0
    %6590 = vmatpush1.msra.mxu0 %v6563
    %6591 = vmatprep.subr.mxu0 0.0
    %6592 = vmatpush1.msra.mxu0 %v6564
    %6593 = vmatprep.subr.mxu0 0.0
    %6594 = vmatpush1.msra.mxu0 %v6565
    %6595 = vmatprep.subr.mxu0 0.0
    %6596 = vmatpush1.msra.mxu0 %v6566
    %6597 = vmatprep.subr.mxu0 0.0
    %6598 = vmatpush1.msra.mxu0 %v6567
    %6599 = vmatprep.subr.mxu0 0.0
    %6600 = vmatpush1.msra.mxu0 %v6568
    %6601 = vmatprep.subr.mxu0 0.0
    %6602 = vmatpush1.msra.mxu0 0.0
    %6603 = vmatprep.subr.mxu0 0.0
    %6604 = vmatpush1.msra.mxu0 0.0
    %6605 = vmatprep.subr.mxu0 0.0
    %6606 = vmatpush1.msra.mxu0 0.0
    %6607 = vmatprep.subr.mxu0 0.0
    %6608 = vmatpush1.msra.mxu0 0.0
    %6609 = vmatprep.subr.mxu0 0.0
    %6610 = vmatpush1.msra.mxu0 0.0
    %6611 = vmatprep.subr.mxu0 0.0
    %6612 = vmatpush1.msra.mxu0 0.0
    %6613 = vmatprep.subr.mxu0 0.0
    %6614 = vmatpush1.msra.mxu0 0.0
    %6615 = vmatprep.subr.mxu0 0.0
    %6616 = vmatpush1.msra.mxu0 0.0
    %6617 = vmatprep.subr.mxu0 0.0
    %6618 = vmatpush1.msra.mxu0 0.0
    %6619 = vmatprep.subr.mxu0 0.0
    %6620 = vmatpush1.msra.mxu0 0.0
    %6621 = vmatprep.subr.mxu0 0.0
    %6622 = vmatpush1.msra.mxu0 0.0
    %6623 = vmatprep.subr.mxu0 0.0
    %6624 = vmatpush1.msra.mxu0 0.0
    %6625 = vmatprep.subr.mxu0 0.0
    %6626 = vmatpush1.msra.mxu0 0.0
    %6627 = vmatprep.subr.mxu0 0.0
    %6628 = vmatpush1.msra.mxu0 0.0
    %6629 = vmatprep.subr.mxu0 0.0
    %6630 = vmatpush1.msra.mxu0 0.0
    %6631 = vmatprep.subr.mxu0 0.0
    %6632 = vmatpush1.msra.mxu0 0.0
    %6633 = vmatprep.mubr.f32.mxu0 0.0
    %6634 = vmatmul.mubr.f32.gmra.mrb[0].mxu0 %v6488
    %v6635 = vpop.f32.mrb[0].mxu0
    %v6636 = vadd.f32 0.0, %v6635
    %v6637 = vpop.f32.mrb[0].mxu0
    %6638 = vmatprep.mubr.f32.mxu0 0.0
    %6639 = vmatmul.mubr.f32.gmra.mrb[0].mxu0 %v6489
    %v6640 = vpop.f32.mrb[0].mxu0
    %v6641 = vadd.f32 0.0, %v6640
    %v6642 = vpop.f32.mrb[0].mxu0
    %6643 = vmatprep.mubr.f32.mxu0 0.0
    %6644 = vmatmul.mubr.f32.gmra.mrb[0].mxu0 %v6490
    %v6645 = vpop.f32.mrb[0].mxu0
    %v6646 = vadd.f32 0.0, %v6645
    %v6647 = vpop.f32.mrb[0].mxu0
    %6648 = vmatprep.mubr.f32.mxu0 0.0
    %6649 = vmatmul.mubr.f32.gmra.mrb[0].mxu0 %v6491
    %v6650 = vpop.f32.mrb[0].mxu0
    %v6651 = vadd.f32 0.0, %v6650
    %v6652 = vpop.f32.mrb[0].mxu0
    %6653 = vmatprep.mubr.f32.mxu0 0.0
    %6654 = vmatmul.mubr.f32.gmra.mrb[0].mxu0 %v6492
    %v6655 = vpop.f32.mrb[0].mxu0
    %v6656 = vadd.f32 0.0, %v6655
    %v6657 = vpop.f32.mrb[0].mxu0
    %6658 = vmatprep.mubr.f32.mxu0 0.0
    %6659 = vmatmul.mubr.f32.gmra.mrb[0].mxu0 %v6493
    %v6660 = vpop.f32.mrb[0].mxu0
    %v6661 = vadd.f32 0.0, %v6660
    %v6662 = vpop.f32.mrb[0].mxu0
    %6663 = vmatprep.mubr.f32.mxu0 0.0
    %6664 = vmatmul.mubr.f32.gmra.mrb[0].mxu0 %v6494
    %v6665 = vpop.f32.mrb[0].mxu0
    %v6666 = vadd.f32 0.0, %v6665
    %v6667 = vpop.f32.mrb[0].mxu0
    %6668 = vmatprep.mubr.f32.mxu0 0.0
    %6669 = vmatmul.mubr.f32.gmra.mrb[0].mxu0 %v6495
    %v6670 = vpop.f32.mrb[0].mxu0
    %v6671 = vadd.f32 0.0, %v6670
    %v6672 = vpop.f32.mrb[0].mxu0
    %6673 = vmatprep.mubr.f32.mxu0 0.0
    %6674 = vmatmul.mubr.f32.gmra.mrb[0].mxu0 %v6496
    %v6675 = vpop.f32.mrb[0].mxu0
    %v6676 = vadd.f32 0.0, %v6675
    %v6677 = vpop.f32.mrb[0].mxu0
    %6678 = vmatprep.mubr.f32.mxu0 0.0
    %6679 = vmatmul.mubr.f32.gmra.mrb[0].mxu0 %v6497
    %v6680 = vpop.f32.mrb[0].mxu0
    %v6681 = vadd.f32 0.0, %v6680
    %v6682 = vpop.f32.mrb[0].mxu0
    %6683 = vmatprep.mubr.f32.mxu0 0.0
    %6684 = vmatmul.mubr.f32.gmra.mrb[0].mxu0 %v6498
    %v6685 = vpop.f32.mrb[0].mxu0
    %v6686 = vadd.f32 0.0, %v6685
    %v6687 = vpop.f32.mrb[0].mxu0
    %6688 = vmatprep.mubr.f32.mxu0 0.0
    %6689 = vmatmul.mubr.f32.gmra.mrb[0].mxu0 %v6499
    %v6690 = vpop.f32.mrb[0].mxu0
    %v6691 = vadd.f32 0.0, %v6690
    %v6692 = vpop.f32.mrb[0].mxu0
    %6693 = vmatprep.mubr.f32.mxu0 0.0
    %6694 = vmatmul.mubr.f32.gmra.mrb[0].mxu0 %v6500
    %v6695 = vpop.f32.mrb[0].mxu0
    %v6696 = vadd.f32 0.0, %v6695
    %v6697 = vpop.f32.mrb[0].mxu0
    %6698 = vmatprep.mubr.f32.mxu0 0.0
    %6699 = vmatmul.mubr.f32.gmra.mrb[0].mxu0 %v6501
    %v6700 = vpop.f32.mrb[0].mxu0
    %v6701 = vadd.f32 0.0, %v6700
    %v6702 = vpop.f32.mrb[0].mxu0
    %6703 = vmatprep.mubr.f32.mxu0 0.0
    %6704 = vmatmul.mubr.f32.gmra.mrb[0].mxu0 %v6502
    %v6705 = vpop.f32.mrb[0].mxu0
    %v6706 = vadd.f32 0.0, %v6705
    %v6707 = vpop.f32.mrb[0].mxu0
    %6708 = vmatprep.mubr.f32.mxu0 0.0
    %6709 = vmatmul.mubr.f32.gmra.mrb[0].mxu0 %v6503
    %v6710 = vpop.f32.mrb[0].mxu0
    %v6711 = vadd.f32 0.0, %v6710
    %v6712 = vpop.f32.mrb[0].mxu0
    %6713 = vmatprep.mubr.f32.mxu0 0.0
    %6714 = vmatmul.mubr.f32.gmra.mrb[0].mxu0 %v6504
    %v6715 = vpop.f32.mrb[0].mxu0
    %v6716 = vadd.f32 0.0, %v6715
    %v6717 = vpop.f32.mrb[0].mxu0
    %6718 = vmatprep.mubr.f32.mxu0 0.0
    %6719 = vmatmul.mubr.f32.gmra.mrb[0].mxu0 %v6505
    %v6720 = vpop.f32.mrb[0].mxu0
    %v6721 = vadd.f32 0.0, %v6720
    %v6722 = vpop.f32.mrb[0].mxu0
    %6723 = vmatprep.mubr.f32.mxu0 0.0
    %6724 = vmatmul.mubr.f32.gmra.mrb[0].mxu0 %v6506
    %v6725 = vpop.f32.mrb[0].mxu0
    %v6726 = vadd.f32 0.0, %v6725
    %v6727 = vpop.f32.mrb[0].mxu0
    %6728 = vmatprep.mubr.f32.mxu0 0.0
    %6729 = vmatmul.mubr.f32.gmra.mrb[0].mxu0 %v6507
    %v6730 = vpop.f32.mrb[0].mxu0
    %v6731 = vadd.f32 0.0, %v6730
    %v6732 = vpop.f32.mrb[0].mxu0
    %6733 = vmatprep.mubr.f32.mxu0 0.0
    %6734 = vmatmul.mubr.f32.gmra.mrb[0].mxu0 %v6508
    %v6735 = vpop.f32.mrb[0].mxu0
    %v6736 = vadd.f32 0.0, %v6735
    %v6737 = vpop.f32.mrb[0].mxu0
    %6738 = vmatprep.mubr.f32.mxu0 0.0
    %6739 = vmatmul.mubr.f32.gmra.mrb[0].mxu0 %v6509
    %v6740 = vpop.f32.mrb[0].mxu0
    %v6741 = vadd.f32 0.0, %v6740
    %v6742 = vpop.f32.mrb[0].mxu0
    %6743 = vmatprep.mubr.f32.mxu0 0.0
    %6744 = vmatmul.mubr.f32.gmra.mrb[0].mxu0 %v6510
    %v6745 = vpop.f32.mrb[0].mxu0
    %v6746 = vadd.f32 0.0, %v6745
    %v6747 = vpop.f32.mrb[0].mxu0
    %6748 = vmatprep.mubr.f32.mxu0 0.0
    %6749 = vmatmul.mubr.f32.gmra.mrb[0].mxu0 %v6511
    %v6750 = vpop.f32.mrb[0].mxu0
    %v6751 = vadd.f32 0.0, %v6750
    %v6752 = vpop.f32.mrb[0].mxu0
    %6753 = vmatprep.mubr.f32.mxu0 0.0
    %6754 = vmatmul.mubr.f32.gmra.mrb[0].mxu0 %v6512
    %v6755 = vpop.f32.mrb[0].mxu0
    %v6756 = vadd.f32 0.0, %v6755
    %v6757 = vpop.f32.mrb[0].mxu0
    %6758 = vmatprep.mubr.f32.mxu0 0.0
    %6759 = vmatmul.mubr.f32.gmra.mrb[0].mxu0 %v6513
    %v6760 = vpop.f32.mrb[0].mxu0
    %v6761 = vadd.f32 0.0, %v6760
    %v6762 = vpop.f32.mrb[0].mxu0
    %6763 = vmatprep.mubr.f32.mxu0 0.0
    %6764 = vmatmul.mubr.f32.gmra.mrb[0].mxu0 %v6514
    %v6765 = vpop.f32.mrb[0].mxu0
    %v6766 = vadd.f32 0.0, %v6765
    %v6767 = vpop.f32.mrb[0].mxu0
    %6768 = vmatprep.mubr.f32.mxu0 0.0
    %6769 = vmatmul.mubr.f32.gmra.mrb[0].mxu0 %v6515
    %v6770 = vpop.f32.mrb[0].mxu0
    %v6771 = vadd.f32 0.0, %v6770
    %v6772 = vpop.f32.mrb[0].mxu0
    %6773 = vmatprep.mubr.f32.mxu0 0.0
    %6774 = vmatmul.mubr.f32.gmra.mrb[0].mxu0 %v6516
    %v6775 = vpop.f32.mrb[0].mxu0
    %v6776 = vadd.f32 0.0, %v6775
    %v6777 = vpop.f32.mrb[0].mxu0
    %6778 = vmatprep.mubr.f32.mxu0 0.0
    %6779 = vmatmul.mubr.f32.gmra.mrb[0].mxu0 %v6517
    %v6780 = vpop.f32.mrb[0].mxu0
    %v6781 = vadd.f32 0.0, %v6780
    %v6782 = vpop.f32.mrb[0].mxu0
    %6783 = vmatprep.mubr.f32.mxu0 0.0
    %6784 = vmatmul.mubr.f32.gmra.mrb[0].mxu0 %v6518
    %v6785 = vpop.f32.mrb[0].mxu0
    %v6786 = vadd.f32 0.0, %v6785
    %v6787 = vpop.f32.mrb[0].mxu0
    %6788 = vmatprep.mubr.f32.mxu0 0.0
    %6789 = vmatmul.mubr.f32.gmra.mrb[0].mxu0 %v6519
    %v6790 = vpop.f32.mrb[0].mxu0
    %v6791 = vadd.f32 0.0, %v6790
    %v6792 = vpop.f32.mrb[0].mxu0
    %6793 = vmatprep.mubr.f32.mxu0 0.0
    %6794 = vmatmul.mubr.f32.gmra.mrb[0].mxu0 %v6520
    %v6795 = vpop.f32.mrb[0].mxu0
    %v6796 = vadd.f32 0.0, %v6795
    %v6797 = vpop.f32.mrb[0].mxu0
    %6798 = vmatprep.mubr.f32.mxu0 0.0
    %6799 = vmatmul.mubr.f32.gmra.mrb[0].mxu0 %v6521
    %v6800 = vpop.f32.mrb[0].mxu0
    %v6801 = vadd.f32 0.0, %v6800
    %v6802 = vpop.f32.mrb[0].mxu0
    %6803 = vmatprep.mubr.f32.mxu0 0.0
    %6804 = vmatmul.mubr.f32.gmra.mrb[0].mxu0 %v6522
    %v6805 = vpop.f32.mrb[0].mxu0
    %v6806 = vadd.f32 0.0, %v6805
    %v6807 = vpop.f32.mrb[0].mxu0
    %6808 = vmatprep.mubr.f32.mxu0 0.0
    %6809 = vmatmul.mubr.f32.gmra.mrb[0].mxu0 %v6523
    %v6810 = vpop.f32.mrb[0].mxu0
    %v6811 = vadd.f32 0.0, %v6810
    %v6812 = vpop.f32.mrb[0].mxu0
    %6813 = vmatprep.mubr.f32.mxu0 0.0
    %6814 = vmatmul.mubr.f32.gmra.mrb[0].mxu0 %v6524
    %v6815 = vpop.f32.mrb[0].mxu0
    %v6816 = vadd.f32 0.0, %v6815
    %v6817 = vpop.f32.mrb[0].mxu0
    %6818 = vmatprep.mubr.f32.mxu0 0.0
    %6819 = vmatmul.mubr.f32.gmra.mrb[0].mxu0 %v6525
    %v6820 = vpop.f32.mrb[0].mxu0
    %v6821 = vadd.f32 0.0, %v6820
    %v6822 = vpop.f32.mrb[0].mxu0
    %6823 = vmatprep.mubr.f32.mxu0 0.0
    %6824 = vmatmul.mubr.f32.gmra.mrb[0].mxu0 %v6526
    %v6825 = vpop.f32.mrb[0].mxu0
    %v6826 = vadd.f32 0.0, %v6825
    %v6827 = vpop.f32.mrb[0].mxu0
    %6828 = vmatprep.mubr.f32.mxu0 0.0
    %6829 = vmatmul.mubr.f32.gmra.mrb[0].mxu0 %v6527
    %v6830 = vpop.f32.mrb[0].mxu0
    %v6831 = vadd.f32 0.0, %v6830
    %v6832 = vpop.f32.mrb[0].mxu0
    %6833 = vmatprep.mubr.f32.mxu0 0.0
    %6834 = vmatmul.mubr.f32.gmra.mrb[0].mxu0 %v6528
    %v6835 = vpop.f32.mrb[0].mxu0
    %v6836 = vadd.f32 0.0, %v6835
    %v6837 = vpop.f32.mrb[0].mxu0
    %6838 = vmatprep.mubr.f32.mxu0 0.0
    %6839 = vmatmul.mubr.f32.gmra.mrb[0].mxu0 %v6529
    %v6840 = vpop.f32.mrb[0].mxu0
    %v6841 = vadd.f32 0.0, %v6840
    %v6842 = vpop.f32.mrb[0].mxu0
    %6843 = vmatprep.mubr.f32.mxu0 0.0
    %6844 = vmatmul.mubr.f32.gmra.mrb[0].mxu0 %v6530
    %v6845 = vpop.f32.mrb[0].mxu0
    %v6846 = vadd.f32 0.0, %v6845
    %v6847 = vpop.f32.mrb[0].mxu0
    %6848 = vmatprep.mubr.f32.mxu0 0.0
    %6849 = vmatmul.mubr.f32.gmra.mrb[0].mxu0 %v6531
    %v6850 = vpop.f32.mrb[0].mxu0
    %v6851 = vadd.f32 0.0, %v6850
    %v6852 = vpop.f32.mrb[0].mxu0
    %6853 = vmatprep.mubr.f32.mxu0 0.0
    %6854 = vmatmul.mubr.f32.gmra.mrb[0].mxu0 %v6532
    %v6855 = vpop.f32.mrb[0].mxu0
    %v6856 = vadd.f32 0.0, %v6855
    %v6857 = vpop.f32.mrb[0].mxu0
    %6858 = vmatprep.mubr.f32.mxu0 0.0
    %6859 = vmatmul.mubr.f32.gmra.mrb[0].mxu0 %v6533
    %v6860 = vpop.f32.mrb[0].mxu0
    %v6861 = vadd.f32 0.0, %v6860
    %v6862 = vpop.f32.mrb[0].mxu0
    %6863 = vmatprep.mubr.f32.mxu0 0.0
    %6864 = vmatmul.mubr.f32.gmra.mrb[0].mxu0 %v6534
    %v6865 = vpop.f32.mrb[0].mxu0
    %v6866 = vadd.f32 0.0, %v6865
    %v6867 = vpop.f32.mrb[0].mxu0
    %6868 = vmatprep.mubr.f32.mxu0 0.0
    %6869 = vmatmul.mubr.f32.gmra.mrb[0].mxu0 %v6535
    %v6870 = vpop.f32.mrb[0].mxu0
    %v6871 = vadd.f32 0.0, %v6870
    %v6872 = vpop.f32.mrb[0].mxu0
    %6873 = vmatprep.mubr.f32.mxu0 0.0
    %6874 = vmatmul.mubr.f32.gmra.mrb[0].mxu0 %v6536
    %v6875 = vpop.f32.mrb[0].mxu0
    %v6876 = vadd.f32 0.0, %v6875
    %v6877 = vpop.f32.mrb[0].mxu0
    %6878 = vmatprep.mubr.f32.mxu0 0.0
    %6879 = vmatmul.mubr.f32.gmra.mrb[0].mxu0 %v6537
    %v6880 = vpop.f32.mrb[0].mxu0
    %v6881 = vadd.f32 0.0, %v6880
    %v6882 = vpop.f32.mrb[0].mxu0
    %6883 = vmatprep.mubr.f32.mxu0 0.0
    %6884 = vmatmul.mubr.f32.gmra.mrb[0].mxu0 %v6538
    %v6885 = vpop.f32.mrb[0].mxu0
    %v6886 = vadd.f32 0.0, %v6885
    %v6887 = vpop.f32.mrb[0].mxu0
    %6888 = vmatprep.mubr.f32.mxu0 0.0
    %6889 = vmatmul.mubr.f32.gmra.mrb[0].mxu0 %v6539
    %v6890 = vpop.f32.mrb[0].mxu0
    %v6891 = vadd.f32 0.0, %v6890
    %v6892 = vpop.f32.mrb[0].mxu0
    %6893 = vmatprep.mubr.f32.mxu0 0.0
    %6894 = vmatmul.mubr.f32.gmra.mrb[0].mxu0 %v6540
    %v6895 = vpop.f32.mrb[0].mxu0
    %v6896 = vadd.f32 0.0, %v6895
    %v6897 = vpop.f32.mrb[0].mxu0
    %6898 = vmatprep.mubr.f32.mxu0 0.0
    %6899 = vmatmul.mubr.f32.gmra.mrb[0].mxu0 %v6541
    %v6900 = vpop.f32.mrb[0].mxu0
    %v6901 = vadd.f32 0.0, %v6900
    %v6902 = vpop.f32.mrb[0].mxu0
    %6903 = vmatprep.mubr.f32.mxu0 0.0
    %6904 = vmatmul.mubr.f32.gmra.mrb[0].mxu0 %v6542
    %v6905 = vpop.f32.mrb[0].mxu0
    %v6906 = vadd.f32 0.0, %v6905
    %v6907 = vpop.f32.mrb[0].mxu0
    %6908 = vmatprep.mubr.f32.mxu0 0.0
    %6909 = vmatmul.mubr.f32.gmra.mrb[0].mxu0 %v6543
    %v6910 = vpop.f32.mrb[0].mxu0
    %v6911 = vadd.f32 0.0, %v6910
    %v6912 = vpop.f32.mrb[0].mxu0
    %6913 = vmatprep.mubr.f32.mxu0 0.0
    %6914 = vmatmul.mubr.f32.gmra.mrb[0].mxu0 %v6544
    %v6915 = vpop.f32.mrb[0].mxu0
    %v6916 = vadd.f32 0.0, %v6915
    %v6917 = vpop.f32.mrb[0].mxu0
    %6918 = vmatprep.mubr.f32.mxu0 0.0
    %6919 = vmatmul.mubr.f32.gmra.mrb[0].mxu0 %v6545
    %v6920 = vpop.f32.mrb[0].mxu0
    %v6921 = vadd.f32 0.0, %v6920
    %v6922 = vpop.f32.mrb[0].mxu0
    %6923 = vmatprep.mubr.f32.mxu0 0.0
    %6924 = vmatmul.mubr.f32.gmra.mrb[0].mxu0 %v6546
    %v6925 = vpop.f32.mrb[0].mxu0
    %v6926 = vadd.f32 0.0, %v6925
    %v6927 = vpop.f32.mrb[0].mxu0
    %6928 = vmatprep.mubr.f32.mxu0 0.0
    %6929 = vmatmul.mubr.f32.gmra.mrb[0].mxu0 %v6547
    %v6930 = vpop.f32.mrb[0].mxu0
    %v6931 = vadd.f32 0.0, %v6930
    %v6932 = vpop.f32.mrb[0].mxu0
    %6933 = vmatprep.mubr.f32.mxu0 0.0
    %6934 = vmatmul.mubr.f32.gmra.mrb[0].mxu0 %v6548
    %v6935 = vpop.f32.mrb[0].mxu0
    %v6936 = vadd.f32 0.0, %v6935
    %v6937 = vpop.f32.mrb[0].mxu0
    %6938 = vmatprep.mubr.f32.mxu0 0.0
    %6939 = vmatmul.mubr.f32.gmra.mrb[0].mxu0 %v6549
    %v6940 = vpop.f32.mrb[0].mxu0
    %v6941 = vadd.f32 0.0, %v6940
    %v6942 = vpop.f32.mrb[0].mxu0
    %6943 = vmatprep.mubr.f32.mxu0 0.0
    %6944 = vmatmul.mubr.f32.gmra.mrb[0].mxu0 %v6550
    %v6945 = vpop.f32.mrb[0].mxu0
    %v6946 = vadd.f32 0.0, %v6945
    %v6947 = vpop.f32.mrb[0].mxu0
    %6948 = vmatprep.mubr.f32.mxu0 0.0
    %6949 = vmatmul.mubr.f32.gmra.mrb[0].mxu0 %v6551
    %v6950 = vpop.f32.mrb[0].mxu0
    %v6951 = vadd.f32 0.0, %v6950
    %v6952 = vpop.f32.mrb[0].mxu0
    %6953 = vdwg.mxu0
    %v6954 = vadd.f32 %v6424, %v6636
    %v6955 = vadd.f32 %v6425, %v6641
    %v6956 = vadd.f32 %v6426, %v6646
    %v6957 = vadd.f32 %v6427, %v6651
    %v6958 = vadd.f32 %v6428, %v6656
    %v6959 = vadd.f32 %v6429, %v6661
    %v6960 = vadd.f32 %v6430, %v6666
    %v6961 = vadd.f32 %v6431, %v6671
    %v6962 = vadd.f32 %v6432, %v6676
    %v6963 = vadd.f32 %v6433, %v6681
    %v6964 = vadd.f32 %v6434, %v6686
    %v6965 = vadd.f32 %v6435, %v6691
    %v6966 = vadd.f32 %v6436, %v6696
    %v6967 = vadd.f32 %v6437, %v6701
    %v6968 = vadd.f32 %v6438, %v6706
    %v6969 = vadd.f32 %v6439, %v6711
    %v6970 = vadd.f32 %v6440, %v6716
    %v6971 = vadd.f32 %v6441, %v6721
    %v6972 = vadd.f32 %v6442, %v6726
    %v6973 = vadd.f32 %v6443, %v6731
    %v6974 = vadd.f32 %v6444, %v6736
    %v6975 = vadd.f32 %v6445, %v6741
    %v6976 = vadd.f32 %v6446, %v6746
    %v6977 = vadd.f32 %v6447, %v6751
    %v6978 = vadd.f32 %v6448, %v6756
    %v6979 = vadd.f32 %v6449, %v6761
    %v6980 = vadd.f32 %v6450, %v6766
    %v6981 = vadd.f32 %v6451, %v6771
    %v6982 = vadd.f32 %v6452, %v6776
    %v6983 = vadd.f32 %v6453, %v6781
    %v6984 = vadd.f32 %v6454, %v6786
    %v6985 = vadd.f32 %v6455, %v6791
    %v6986 = vadd.f32 %v6456, %v6796
    %v6987 = vadd.f32 %v6457, %v6801
    %v6988 = vadd.f32 %v6458, %v6806
    %v6989 = vadd.f32 %v6459, %v6811
    %v6990 = vadd.f32 %v6460, %v6816
    %v6991 = vadd.f32 %v6461, %v6821
    %v6992 = vadd.f32 %v6462, %v6826
    %v6993 = vadd.f32 %v6463, %v6831
    %v6994 = vadd.f32 %v6464, %v6836
    %v6995 = vadd.f32 %v6465, %v6841
    %v6996 = vadd.f32 %v6466, %v6846
    %v6997 = vadd.f32 %v6467, %v6851
    %v6998 = vadd.f32 %v6468, %v6856
    %v6999 = vadd.f32 %v6469, %v6861
    %v7000 = vadd.f32 %v6470, %v6866
    %v7001 = vadd.f32 %v6471, %v6871
    %v7002 = vadd.f32 %v6472, %v6876
    %v7003 = vadd.f32 %v6473, %v6881
    %v7004 = vadd.f32 %v6474, %v6886
    %v7005 = vadd.f32 %v6475, %v6891
    %v7006 = vadd.f32 %v6476, %v6896
    %v7007 = vadd.f32 %v6477, %v6901
    %v7008 = vadd.f32 %v6478, %v6906
    %v7009 = vadd.f32 %v6479, %v6911
    %v7010 = vadd.f32 %v6480, %v6916
    %v7011 = vadd.f32 %v6481, %v6921
    %v7012 = vadd.f32 %v6482, %v6926
    %v7013 = vadd.f32 %v6483, %v6931
    %v7014 = vadd.f32 %v6484, %v6936
    %v7015 = vadd.f32 %v6485, %v6941
    %v7016 = vadd.f32 %v6486, %v6946
    %v7017 = vadd.f32 %v6487, %v6951
    %v7018 = vld [vmem:[%s4962 + $0x1] sm:$0xff]
    %v7019 = vld [vmem:[%s4962 + $0x9] sm:$0xff]
    %v7020 = vld [vmem:[%s4962 + $0x19] sm:$0xff]
    %v7021 = vld [vmem:[%s4962 + $0x21] sm:$0xff]
    %v7022 = vld [vmem:[%s4962 + $0x31] sm:$0xff]
    %v7023 = vld [vmem:[%s4962 + $0x39] sm:$0xff]
    %v7024 = vld [vmem:[%s4962 + $0x49] sm:$0xff]
    %v7025 = vld [vmem:[%s4962 + $0x51] sm:$0xff]
    %v7026 = vld [vmem:[%s4962 + $0x61] sm:$0xff]
    %v7027 = vld [vmem:[%s4962 + $0x69] sm:$0xff]
    %v7028 = vld [vmem:[%s4962 + $0x79] sm:$0xff]
    %v7029 = vld [vmem:[%s4962 + $0x81] sm:$0xff]
    %v7030 = vld [vmem:[%s4962 + $0x91] sm:$0xff]
    %v7031 = vld [vmem:[%s4962 + $0x99] sm:$0xff]
    %v7032 = vld [vmem:[%s4962 + $0xa9] sm:$0xff]
    %v7033 = vld [vmem:[%s4962 + $0xb1] sm:$0xff]
    %v7034 = vld [vmem:[%s4962 + $0xc1] sm:$0xff]
    %v7035 = vld [vmem:[%s4962 + $0xc9] sm:$0xff]
    %v7036 = vld [vmem:[%s4962 + $0xd9] sm:$0xff]
    %v7037 = vld [vmem:[%s4962 + $0xe1] sm:$0xff]
    %v7038 = vld [vmem:[%s4962 + $0xf1] sm:$0xff]
    %v7039 = vld [vmem:[%s4962 + $0xf9] sm:$0xff]
    %v7040 = vld [vmem:[%s4962 + $0x109] sm:$0xff]
    %v7041 = vld [vmem:[%s4962 + $0x111] sm:$0xff]
    %v7042 = vld [vmem:[%s4962 + $0x121] sm:$0xff]
    %v7043 = vld [vmem:[%s4962 + $0x129] sm:$0xff]
    %v7044 = vld [vmem:[%s4962 + $0x139] sm:$0xff]
    %v7045 = vld [vmem:[%s4962 + $0x141] sm:$0xff]
    %v7046 = vld [vmem:[%s4962 + $0x151] sm:$0xff]
    %v7047 = vld [vmem:[%s4962 + $0x159] sm:$0xff]
    %v7048 = vld [vmem:[%s4962 + $0x169] sm:$0xff]
    %v7049 = vld [vmem:[%s4962 + $0x171] sm:$0xff]
    %v7050 = vld [vmem:[%s4962 + $0x1b1] sm:$0xff]
    %v7051 = vld [vmem:[%s4962 + $0x1b9] sm:$0xff]
    %v7052 = vld [vmem:[%s4962 + $0x1c9] sm:$0xff]
    %v7053 = vld [vmem:[%s4962 + $0x1d1] sm:$0xff]
    %v7054 = vld [vmem:[%s4962 + $0x1e1] sm:$0xff]
    %v7055 = vld [vmem:[%s4962 + $0x1e9] sm:$0xff]
    %v7056 = vld [vmem:[%s4962 + $0x1f9] sm:$0xff]
    %v7057 = vld [vmem:[%s4962 + $0x201] sm:$0xff]
    %v7058 = vld [vmem:[%s4962 + $0x211] sm:$0xff]
    %v7059 = vld [vmem:[%s4962 + $0x219] sm:$0xff]
    %v7060 = vld [vmem:[%s4962 + $0x229] sm:$0xff]
    %v7061 = vld [vmem:[%s4962 + $0x231] sm:$0xff]
    %v7062 = vld [vmem:[%s4962 + $0x241] sm:$0xff]
    %v7063 = vld [vmem:[%s4962 + $0x249] sm:$0xff]
    %v7064 = vld [vmem:[%s4962 + $0x259] sm:$0xff]
    %v7065 = vld [vmem:[%s4962 + $0x261] sm:$0xff]
    %v7066 = vld [vmem:[%s4962 + $0x271] sm:$0xff]
    %v7067 = vld [vmem:[%s4962 + $0x279] sm:$0xff]
    %v7068 = vld [vmem:[%s4962 + $0x289] sm:$0xff]
    %v7069 = vld [vmem:[%s4962 + $0x291] sm:$0xff]
    %v7070 = vld [vmem:[%s4962 + $0x2a1] sm:$0xff]
    %v7071 = vld [vmem:[%s4962 + $0x2a9] sm:$0xff]
    %v7072 = vld [vmem:[%s4962 + $0x2b9] sm:$0xff]
    %v7073 = vld [vmem:[%s4962 + $0x2c1] sm:$0xff]
    %v7074 = vld [vmem:[%s4962 + $0x2d1] sm:$0xff]
    %v7075 = vld [vmem:[%s4962 + $0x2d9] sm:$0xff]
    %v7076 = vld [vmem:[%s4962 + $0x2e9] sm:$0xff]
    %v7077 = vld [vmem:[%s4962 + $0x2f1] sm:$0xff]
    %v7078 = vld [vmem:[%s4962 + $0x301] sm:$0xff]
    %v7079 = vld [vmem:[%s4962 + $0x309] sm:$0xff]
    %v7080 = vld [vmem:[%s4962 + $0x319] sm:$0xff]
    %v7081 = vld [vmem:[%s4962 + $0x321] sm:$0xff]
    %s7082 = scalar_lea.vmem [#allocation3], 512
    %v7083 = vld [vmem:[%s7082] sm:$0xff]
    %v7084 = vld [vmem:[%s7082 + $0x8] sm:$0xff]
    %v7085 = vld [vmem:[%s7082 + $0x10] sm:$0xff]
    %v7086 = vld [vmem:[%s7082 + $0x18] sm:$0xff]
    %v7087 = vld [vmem:[%s7082 + $0x20] sm:$0xff]
    %v7088 = vld [vmem:[%s7082 + $0x28] sm:$0xff]
    %v7089 = vld [vmem:[%s7082 + $0x30] sm:$0xff]
    %v7090 = vld [vmem:[%s7082 + $0x38] sm:$0xff]
    %v7091 = vld [vmem:[%s7082 + $0x40] sm:$0xff]
    %v7092 = vld [vmem:[%s7082 + $0x48] sm:$0xff]
    %v7093 = vld [vmem:[%s7082 + $0x50] sm:$0xff]
    %v7094 = vld [vmem:[%s7082 + $0x58] sm:$0xff]
    %v7095 = vld [vmem:[%s7082 + $0x60] sm:$0xff]
    %v7096 = vld [vmem:[%s7082 + $0x68] sm:$0xff]
    %v7097 = vld [vmem:[%s7082 + $0x70] sm:$0xff]
    %v7098 = vld [vmem:[%s7082 + $0x78] sm:$0xff]
    %7099 = vmatprep.subr.mxu0 0.0
    %7100 = vmatpush1.msra.mxu0 %v7083
    %7101 = vmatprep.subr.mxu0 0.0
    %7102 = vmatpush1.msra.mxu0 %v7084
    %7103 = vmatprep.subr.mxu0 0.0
    %7104 = vmatpush1.msra.mxu0 %v7085
    %7105 = vmatprep.subr.mxu0 0.0
    %7106 = vmatpush1.msra.mxu0 %v7086
    %7107 = vmatprep.subr.mxu0 0.0
    %7108 = vmatpush1.msra.mxu0 %v7087
    %7109 = vmatprep.subr.mxu0 0.0
    %7110 = vmatpush1.msra.mxu0 %v7088
    %7111 = vmatprep.subr.mxu0 0.0
    %7112 = vmatpush1.msra.mxu0 %v7089
    %7113 = vmatprep.subr.mxu0 0.0
    %7114 = vmatpush1.msra.mxu0 %v7090
    %7115 = vmatprep.subr.mxu0 0.0
    %7116 = vmatpush1.msra.mxu0 %v7091
    %7117 = vmatprep.subr.mxu0 0.0
    %7118 = vmatpush1.msra.mxu0 %v7092
    %7119 = vmatprep.subr.mxu0 0.0
    %7120 = vmatpush1.msra.mxu0 %v7093
    %7121 = vmatprep.subr.mxu0 0.0
    %7122 = vmatpush1.msra.mxu0 %v7094
    %7123 = vmatprep.subr.mxu0 0.0
    %7124 = vmatpush1.msra.mxu0 %v7095
    %7125 = vmatprep.subr.mxu0 0.0
    %7126 = vmatpush1.msra.mxu0 %v7096
    %7127 = vmatprep.subr.mxu0 0.0
    %7128 = vmatpush1.msra.mxu0 %v7097
    %7129 = vmatprep.subr.mxu0 0.0
    %7130 = vmatpush1.msra.mxu0 %v7098
    %7131 = vmatprep.subr.mxu0 0.0
    %7132 = vmatpush1.msra.mxu0 0.0
    %7133 = vmatprep.subr.mxu0 0.0
    %7134 = vmatpush1.msra.mxu0 0.0
    %7135 = vmatprep.subr.mxu0 0.0
    %7136 = vmatpush1.msra.mxu0 0.0
    %7137 = vmatprep.subr.mxu0 0.0
    %7138 = vmatpush1.msra.mxu0 0.0
    %7139 = vmatprep.subr.mxu0 0.0
    %7140 = vmatpush1.msra.mxu0 0.0
    %7141 = vmatprep.subr.mxu0 0.0
    %7142 = vmatpush1.msra.mxu0 0.0
    %7143 = vmatprep.subr.mxu0 0.0
    %7144 = vmatpush1.msra.mxu0 0.0
    %7145 = vmatprep.subr.mxu0 0.0
    %7146 = vmatpush1.msra.mxu0 0.0
    %7147 = vmatprep.subr.mxu0 0.0
    %7148 = vmatpush1.msra.mxu0 0.0
    %7149 = vmatprep.subr.mxu0 0.0
    %7150 = vmatpush1.msra.mxu0 0.0
    %7151 = vmatprep.subr.mxu0 0.0
    %7152 = vmatpush1.msra.mxu0 0.0
    %7153 = vmatprep.subr.mxu0 0.0
    %7154 = vmatpush1.msra.mxu0 0.0
    %7155 = vmatprep.subr.mxu0 0.0
    %7156 = vmatpush1.msra.mxu0 0.0
    %7157 = vmatprep.subr.mxu0 0.0
    %7158 = vmatpush1.msra.mxu0 0.0
    %7159 = vmatprep.subr.mxu0 0.0
    %7160 = vmatpush1.msra.mxu0 0.0
    %7161 = vmatprep.subr.mxu0 0.0
    %7162 = vmatpush1.msra.mxu0 0.0
    %7163 = vmatprep.mubr.f32.mxu0 0.0
    %7164 = vmatmul.mubr.f32.gmra.mrb[0].mxu0 %v7018
    %v7165 = vpop.f32.mrb[0].mxu0
    %v7166 = vadd.f32 0.0, %v7165
    %v7167 = vpop.f32.mrb[0].mxu0
    %7168 = vmatprep.mubr.f32.mxu0 0.0
    %7169 = vmatmul.mubr.f32.gmra.mrb[0].mxu0 %v7019
    %v7170 = vpop.f32.mrb[0].mxu0
    %v7171 = vadd.f32 0.0, %v7170
    %v7172 = vpop.f32.mrb[0].mxu0
    %7173 = vmatprep.mubr.f32.mxu0 0.0
    %7174 = vmatmul.mubr.f32.gmra.mrb[0].mxu0 %v7020
    %v7175 = vpop.f32.mrb[0].mxu0
    %v7176 = vadd.f32 0.0, %v7175
    %v7177 = vpop.f32.mrb[0].mxu0
    %7178 = vmatprep.mubr.f32.mxu0 0.0
    %7179 = vmatmul.mubr.f32.gmra.mrb[0].mxu0 %v7021
    %v7180 = vpop.f32.mrb[0].mxu0
    %v7181 = vadd.f32 0.0, %v7180
    %v7182 = vpop.f32.mrb[0].mxu0
    %7183 = vmatprep.mubr.f32.mxu0 0.0
    %7184 = vmatmul.mubr.f32.gmra.mrb[0].mxu0 %v7022
    %v7185 = vpop.f32.mrb[0].mxu0
    %v7186 = vadd.f32 0.0, %v7185
    %v7187 = vpop.f32.mrb[0].mxu0
    %7188 = vmatprep.mubr.f32.mxu0 0.0
    %7189 = vmatmul.mubr.f32.gmra.mrb[0].mxu0 %v7023
    %v7190 = vpop.f32.mrb[0].mxu0
    %v7191 = vadd.f32 0.0, %v7190
    %v7192 = vpop.f32.mrb[0].mxu0
    %7193 = vmatprep.mubr.f32.mxu0 0.0
    %7194 = vmatmul.mubr.f32.gmra.mrb[0].mxu0 %v7024
    %v7195 = vpop.f32.mrb[0].mxu0
    %v7196 = vadd.f32 0.0, %v7195
    %v7197 = vpop.f32.mrb[0].mxu0
    %7198 = vmatprep.mubr.f32.mxu0 0.0
    %7199 = vmatmul.mubr.f32.gmra.mrb[0].mxu0 %v7025
    %v7200 = vpop.f32.mrb[0].mxu0
    %v7201 = vadd.f32 0.0, %v7200
    %v7202 = vpop.f32.mrb[0].mxu0
    %7203 = vmatprep.mubr.f32.mxu0 0.0
    %7204 = vmatmul.mubr.f32.gmra.mrb[0].mxu0 %v7026
    %v7205 = vpop.f32.mrb[0].mxu0
    %v7206 = vadd.f32 0.0, %v7205
    %v7207 = vpop.f32.mrb[0].mxu0
    %7208 = vmatprep.mubr.f32.mxu0 0.0
    %7209 = vmatmul.mubr.f32.gmra.mrb[0].mxu0 %v7027
    %v7210 = vpop.f32.mrb[0].mxu0
    %v7211 = vadd.f32 0.0, %v7210
    %v7212 = vpop.f32.mrb[0].mxu0
    %7213 = vmatprep.mubr.f32.mxu0 0.0
    %7214 = vmatmul.mubr.f32.gmra.mrb[0].mxu0 %v7028
    %v7215 = vpop.f32.mrb[0].mxu0
    %v7216 = vadd.f32 0.0, %v7215
    %v7217 = vpop.f32.mrb[0].mxu0
    %7218 = vmatprep.mubr.f32.mxu0 0.0
    %7219 = vmatmul.mubr.f32.gmra.mrb[0].mxu0 %v7029
    %v7220 = vpop.f32.mrb[0].mxu0
    %v7221 = vadd.f32 0.0, %v7220
    %v7222 = vpop.f32.mrb[0].mxu0
    %7223 = vmatprep.mubr.f32.mxu0 0.0
    %7224 = vmatmul.mubr.f32.gmra.mrb[0].mxu0 %v7030
    %v7225 = vpop.f32.mrb[0].mxu0
    %v7226 = vadd.f32 0.0, %v7225
    %v7227 = vpop.f32.mrb[0].mxu0
    %7228 = vmatprep.mubr.f32.mxu0 0.0
    %7229 = vmatmul.mubr.f32.gmra.mrb[0].mxu0 %v7031
    %v7230 = vpop.f32.mrb[0].mxu0
    %v7231 = vadd.f32 0.0, %v7230
    %v7232 = vpop.f32.mrb[0].mxu0
    %7233 = vmatprep.mubr.f32.mxu0 0.0
    %7234 = vmatmul.mubr.f32.gmra.mrb[0].mxu0 %v7032
    %v7235 = vpop.f32.mrb[0].mxu0
    %v7236 = vadd.f32 0.0, %v7235
    %v7237 = vpop.f32.mrb[0].mxu0
    %7238 = vmatprep.mubr.f32.mxu0 0.0
    %7239 = vmatmul.mubr.f32.gmra.mrb[0].mxu0 %v7033
    %v7240 = vpop.f32.mrb[0].mxu0
    %v7241 = vadd.f32 0.0, %v7240
    %v7242 = vpop.f32.mrb[0].mxu0
    %7243 = vmatprep.mubr.f32.mxu0 0.0
    %7244 = vmatmul.mubr.f32.gmra.mrb[0].mxu0 %v7034
    %v7245 = vpop.f32.mrb[0].mxu0
    %v7246 = vadd.f32 0.0, %v7245
    %v7247 = vpop.f32.mrb[0].mxu0
    %7248 = vmatprep.mubr.f32.mxu0 0.0
    %7249 = vmatmul.mubr.f32.gmra.mrb[0].mxu0 %v7035
    %v7250 = vpop.f32.mrb[0].mxu0
    %v7251 = vadd.f32 0.0, %v7250
    %v7252 = vpop.f32.mrb[0].mxu0
    %7253 = vmatprep.mubr.f32.mxu0 0.0
    %7254 = vmatmul.mubr.f32.gmra.mrb[0].mxu0 %v7036
    %v7255 = vpop.f32.mrb[0].mxu0
    %v7256 = vadd.f32 0.0, %v7255
    %v7257 = vpop.f32.mrb[0].mxu0
    %7258 = vmatprep.mubr.f32.mxu0 0.0
    %7259 = vmatmul.mubr.f32.gmra.mrb[0].mxu0 %v7037
    %v7260 = vpop.f32.mrb[0].mxu0
    %v7261 = vadd.f32 0.0, %v7260
    %v7262 = vpop.f32.mrb[0].mxu0
    %7263 = vmatprep.mubr.f32.mxu0 0.0
    %7264 = vmatmul.mubr.f32.gmra.mrb[0].mxu0 %v7038
    %v7265 = vpop.f32.mrb[0].mxu0
    %v7266 = vadd.f32 0.0, %v7265
    %v7267 = vpop.f32.mrb[0].mxu0
    %7268 = vmatprep.mubr.f32.mxu0 0.0
    %7269 = vmatmul.mubr.f32.gmra.mrb[0].mxu0 %v7039
    %v7270 = vpop.f32.mrb[0].mxu0
    %v7271 = vadd.f32 0.0, %v7270
    %v7272 = vpop.f32.mrb[0].mxu0
    %7273 = vmatprep.mubr.f32.mxu0 0.0
    %7274 = vmatmul.mubr.f32.gmra.mrb[0].mxu0 %v7040
    %v7275 = vpop.f32.mrb[0].mxu0
    %v7276 = vadd.f32 0.0, %v7275
    %v7277 = vpop.f32.mrb[0].mxu0
    %7278 = vmatprep.mubr.f32.mxu0 0.0
    %7279 = vmatmul.mubr.f32.gmra.mrb[0].mxu0 %v7041
    %v7280 = vpop.f32.mrb[0].mxu0
    %v7281 = vadd.f32 0.0, %v7280
    %v7282 = vpop.f32.mrb[0].mxu0
    %7283 = vmatprep.mubr.f32.mxu0 0.0
    %7284 = vmatmul.mubr.f32.gmra.mrb[0].mxu0 %v7042
    %v7285 = vpop.f32.mrb[0].mxu0
    %v7286 = vadd.f32 0.0, %v7285
    %v7287 = vpop.f32.mrb[0].mxu0
    %7288 = vmatprep.mubr.f32.mxu0 0.0
    %7289 = vmatmul.mubr.f32.gmra.mrb[0].mxu0 %v7043
    %v7290 = vpop.f32.mrb[0].mxu0
    %v7291 = vadd.f32 0.0, %v7290
    %v7292 = vpop.f32.mrb[0].mxu0
    %7293 = vmatprep.mubr.f32.mxu0 0.0
    %7294 = vmatmul.mubr.f32.gmra.mrb[0].mxu0 %v7044
    %v7295 = vpop.f32.mrb[0].mxu0
    %v7296 = vadd.f32 0.0, %v7295
    %v7297 = vpop.f32.mrb[0].mxu0
    %7298 = vmatprep.mubr.f32.mxu0 0.0
    %7299 = vmatmul.mubr.f32.gmra.mrb[0].mxu0 %v7045
    %v7300 = vpop.f32.mrb[0].mxu0
    %v7301 = vadd.f32 0.0, %v7300
    %v7302 = vpop.f32.mrb[0].mxu0
    %7303 = vmatprep.mubr.f32.mxu0 0.0
    %7304 = vmatmul.mubr.f32.gmra.mrb[0].mxu0 %v7046
    %v7305 = vpop.f32.mrb[0].mxu0
    %v7306 = vadd.f32 0.0, %v7305
    %v7307 = vpop.f32.mrb[0].mxu0
    %7308 = vmatprep.mubr.f32.mxu0 0.0
    %7309 = vmatmul.mubr.f32.gmra.mrb[0].mxu0 %v7047
    %v7310 = vpop.f32.mrb[0].mxu0
    %v7311 = vadd.f32 0.0, %v7310
    %v7312 = vpop.f32.mrb[0].mxu0
    %7313 = vmatprep.mubr.f32.mxu0 0.0
    %7314 = vmatmul.mubr.f32.gmra.mrb[0].mxu0 %v7048
    %v7315 = vpop.f32.mrb[0].mxu0
    %v7316 = vadd.f32 0.0, %v7315
    %v7317 = vpop.f32.mrb[0].mxu0
    %7318 = vmatprep.mubr.f32.mxu0 0.0
    %7319 = vmatmul.mubr.f32.gmra.mrb[0].mxu0 %v7049
    %v7320 = vpop.f32.mrb[0].mxu0
    %v7321 = vadd.f32 0.0, %v7320
    %v7322 = vpop.f32.mrb[0].mxu0
    %7323 = vmatprep.mubr.f32.mxu0 0.0
    %7324 = vmatmul.mubr.f32.gmra.mrb[0].mxu0 %v7050
    %v7325 = vpop.f32.mrb[0].mxu0
    %v7326 = vadd.f32 0.0, %v7325
    %v7327 = vpop.f32.mrb[0].mxu0
    %7328 = vmatprep.mubr.f32.mxu0 0.0
    %7329 = vmatmul.mubr.f32.gmra.mrb[0].mxu0 %v7051
    %v7330 = vpop.f32.mrb[0].mxu0
    %v7331 = vadd.f32 0.0, %v7330
    %v7332 = vpop.f32.mrb[0].mxu0
    %7333 = vmatprep.mubr.f32.mxu0 0.0
    %7334 = vmatmul.mubr.f32.gmra.mrb[0].mxu0 %v7052
    %v7335 = vpop.f32.mrb[0].mxu0
    %v7336 = vadd.f32 0.0, %v7335
    %v7337 = vpop.f32.mrb[0].mxu0
    %7338 = vmatprep.mubr.f32.mxu0 0.0
    %7339 = vmatmul.mubr.f32.gmra.mrb[0].mxu0 %v7053
    %v7340 = vpop.f32.mrb[0].mxu0
    %v7341 = vadd.f32 0.0, %v7340
    %v7342 = vpop.f32.mrb[0].mxu0
    %7343 = vmatprep.mubr.f32.mxu0 0.0
    %7344 = vmatmul.mubr.f32.gmra.mrb[0].mxu0 %v7054
    %v7345 = vpop.f32.mrb[0].mxu0
    %v7346 = vadd.f32 0.0, %v7345
    %v7347 = vpop.f32.mrb[0].mxu0
    %7348 = vmatprep.mubr.f32.mxu0 0.0
    %7349 = vmatmul.mubr.f32.gmra.mrb[0].mxu0 %v7055
    %v7350 = vpop.f32.mrb[0].mxu0
    %v7351 = vadd.f32 0.0, %v7350
    %v7352 = vpop.f32.mrb[0].mxu0
    %7353 = vmatprep.mubr.f32.mxu0 0.0
    %7354 = vmatmul.mubr.f32.gmra.mrb[0].mxu0 %v7056
    %v7355 = vpop.f32.mrb[0].mxu0
    %v7356 = vadd.f32 0.0, %v7355
    %v7357 = vpop.f32.mrb[0].mxu0
    %7358 = vmatprep.mubr.f32.mxu0 0.0
    %7359 = vmatmul.mubr.f32.gmra.mrb[0].mxu0 %v7057
    %v7360 = vpop.f32.mrb[0].mxu0
    %v7361 = vadd.f32 0.0, %v7360
    %v7362 = vpop.f32.mrb[0].mxu0
    %7363 = vmatprep.mubr.f32.mxu0 0.0
    %7364 = vmatmul.mubr.f32.gmra.mrb[0].mxu0 %v7058
    %v7365 = vpop.f32.mrb[0].mxu0
    %v7366 = vadd.f32 0.0, %v7365
    %v7367 = vpop.f32.mrb[0].mxu0
    %7368 = vmatprep.mubr.f32.mxu0 0.0
    %7369 = vmatmul.mubr.f32.gmra.mrb[0].mxu0 %v7059
    %v7370 = vpop.f32.mrb[0].mxu0
    %v7371 = vadd.f32 0.0, %v7370
    %v7372 = vpop.f32.mrb[0].mxu0
    %7373 = vmatprep.mubr.f32.mxu0 0.0
    %7374 = vmatmul.mubr.f32.gmra.mrb[0].mxu0 %v7060
    %v7375 = vpop.f32.mrb[0].mxu0
    %v7376 = vadd.f32 0.0, %v7375
    %v7377 = vpop.f32.mrb[0].mxu0
    %7378 = vmatprep.mubr.f32.mxu0 0.0
    %7379 = vmatmul.mubr.f32.gmra.mrb[0].mxu0 %v7061
    %v7380 = vpop.f32.mrb[0].mxu0
    %v7381 = vadd.f32 0.0, %v7380
    %v7382 = vpop.f32.mrb[0].mxu0
    %7383 = vmatprep.mubr.f32.mxu0 0.0
    %7384 = vmatmul.mubr.f32.gmra.mrb[0].mxu0 %v7062
    %v7385 = vpop.f32.mrb[0].mxu0
    %v7386 = vadd.f32 0.0, %v7385
    %v7387 = vpop.f32.mrb[0].mxu0
    %7388 = vmatprep.mubr.f32.mxu0 0.0
    %7389 = vmatmul.mubr.f32.gmra.mrb[0].mxu0 %v7063
    %v7390 = vpop.f32.mrb[0].mxu0
    %v7391 = vadd.f32 0.0, %v7390
    %v7392 = vpop.f32.mrb[0].mxu0
    %7393 = vmatprep.mubr.f32.mxu0 0.0
    %7394 = vmatmul.mubr.f32.gmra.mrb[0].mxu0 %v7064
    %v7395 = vpop.f32.mrb[0].mxu0
    %v7396 = vadd.f32 0.0, %v7395
    %v7397 = vpop.f32.mrb[0].mxu0
    %7398 = vmatprep.mubr.f32.mxu0 0.0
    %7399 = vmatmul.mubr.f32.gmra.mrb[0].mxu0 %v7065
    %v7400 = vpop.f32.mrb[0].mxu0
    %v7401 = vadd.f32 0.0, %v7400
    %v7402 = vpop.f32.mrb[0].mxu0
    %7403 = vmatprep.mubr.f32.mxu0 0.0
    %7404 = vmatmul.mubr.f32.gmra.mrb[0].mxu0 %v7066
    %v7405 = vpop.f32.mrb[0].mxu0
    %v7406 = vadd.f32 0.0, %v7405
    %v7407 = vpop.f32.mrb[0].mxu0
    %7408 = vmatprep.mubr.f32.mxu0 0.0
    %7409 = vmatmul.mubr.f32.gmra.mrb[0].mxu0 %v7067
    %v7410 = vpop.f32.mrb[0].mxu0
    %v7411 = vadd.f32 0.0, %v7410
    %v7412 = vpop.f32.mrb[0].mxu0
    %7413 = vmatprep.mubr.f32.mxu0 0.0
    %7414 = vmatmul.mubr.f32.gmra.mrb[0].mxu0 %v7068
    %v7415 = vpop.f32.mrb[0].mxu0
    %v7416 = vadd.f32 0.0, %v7415
    %v7417 = vpop.f32.mrb[0].mxu0
    %7418 = vmatprep.mubr.f32.mxu0 0.0
    %7419 = vmatmul.mubr.f32.gmra.mrb[0].mxu0 %v7069
    %v7420 = vpop.f32.mrb[0].mxu0
    %v7421 = vadd.f32 0.0, %v7420
    %v7422 = vpop.f32.mrb[0].mxu0
    %7423 = vmatprep.mubr.f32.mxu0 0.0
    %7424 = vmatmul.mubr.f32.gmra.mrb[0].mxu0 %v7070
    %v7425 = vpop.f32.mrb[0].mxu0
    %v7426 = vadd.f32 0.0, %v7425
    %v7427 = vpop.f32.mrb[0].mxu0
    %7428 = vmatprep.mubr.f32.mxu0 0.0
    %7429 = vmatmul.mubr.f32.gmra.mrb[0].mxu0 %v7071
    %v7430 = vpop.f32.mrb[0].mxu0
    %v7431 = vadd.f32 0.0, %v7430
    %v7432 = vpop.f32.mrb[0].mxu0
    %7433 = vmatprep.mubr.f32.mxu0 0.0
    %7434 = vmatmul.mubr.f32.gmra.mrb[0].mxu0 %v7072
    %v7435 = vpop.f32.mrb[0].mxu0
    %v7436 = vadd.f32 0.0, %v7435
    %v7437 = vpop.f32.mrb[0].mxu0
    %7438 = vmatprep.mubr.f32.mxu0 0.0
    %7439 = vmatmul.mubr.f32.gmra.mrb[0].mxu0 %v7073
    %v7440 = vpop.f32.mrb[0].mxu0
    %v7441 = vadd.f32 0.0, %v7440
    %v7442 = vpop.f32.mrb[0].mxu0
    %7443 = vmatprep.mubr.f32.mxu0 0.0
    %7444 = vmatmul.mubr.f32.gmra.mrb[0].mxu0 %v7074
    %v7445 = vpop.f32.mrb[0].mxu0
    %v7446 = vadd.f32 0.0, %v7445
    %v7447 = vpop.f32.mrb[0].mxu0
    %7448 = vmatprep.mubr.f32.mxu0 0.0
    %7449 = vmatmul.mubr.f32.gmra.mrb[0].mxu0 %v7075
    %v7450 = vpop.f32.mrb[0].mxu0
    %v7451 = vadd.f32 0.0, %v7450
    %v7452 = vpop.f32.mrb[0].mxu0
    %7453 = vmatprep.mubr.f32.mxu0 0.0
    %7454 = vmatmul.mubr.f32.gmra.mrb[0].mxu0 %v7076
    %v7455 = vpop.f32.mrb[0].mxu0
    %v7456 = vadd.f32 0.0, %v7455
    %v7457 = vpop.f32.mrb[0].mxu0
    %7458 = vmatprep.mubr.f32.mxu0 0.0
    %7459 = vmatmul.mubr.f32.gmra.mrb[0].mxu0 %v7077
    %v7460 = vpop.f32.mrb[0].mxu0
    %v7461 = vadd.f32 0.0, %v7460
    %v7462 = vpop.f32.mrb[0].mxu0
    %7463 = vmatprep.mubr.f32.mxu0 0.0
    %7464 = vmatmul.mubr.f32.gmra.mrb[0].mxu0 %v7078
    %v7465 = vpop.f32.mrb[0].mxu0
    %v7466 = vadd.f32 0.0, %v7465
    %v7467 = vpop.f32.mrb[0].mxu0
    %7468 = vmatprep.mubr.f32.mxu0 0.0
    %7469 = vmatmul.mubr.f32.gmra.mrb[0].mxu0 %v7079
    %v7470 = vpop.f32.mrb[0].mxu0
    %v7471 = vadd.f32 0.0, %v7470
    %v7472 = vpop.f32.mrb[0].mxu0
    %7473 = vmatprep.mubr.f32.mxu0 0.0
    %7474 = vmatmul.mubr.f32.gmra.mrb[0].mxu0 %v7080
    %v7475 = vpop.f32.mrb[0].mxu0
    %v7476 = vadd.f32 0.0, %v7475
    %v7477 = vpop.f32.mrb[0].mxu0
    %7478 = vmatprep.mubr.f32.mxu0 0.0
    %7479 = vmatmul.mubr.f32.gmra.mrb[0].mxu0 %v7081
    %v7480 = vpop.f32.mrb[0].mxu0
    %v7481 = vadd.f32 0.0, %v7480
    %v7482 = vpop.f32.mrb[0].mxu0
    %7483 = vdwg.mxu0
    %v7484 = vadd.f32 %v6954, %v7166
    %v7485 = vadd.f32 %v6955, %v7171
    %v7486 = vadd.f32 %v6956, %v7176
    %v7487 = vadd.f32 %v6957, %v7181
    %v7488 = vadd.f32 %v6958, %v7186
    %v7489 = vadd.f32 %v6959, %v7191
    %v7490 = vadd.f32 %v6960, %v7196
    %v7491 = vadd.f32 %v6961, %v7201
    %v7492 = vadd.f32 %v6962, %v7206
    %v7493 = vadd.f32 %v6963, %v7211
    %v7494 = vadd.f32 %v6964, %v7216
    %v7495 = vadd.f32 %v6965, %v7221
    %v7496 = vadd.f32 %v6966, %v7226
    %v7497 = vadd.f32 %v6967, %v7231
    %v7498 = vadd.f32 %v6968, %v7236
    %v7499 = vadd.f32 %v6969, %v7241
    %v7500 = vadd.f32 %v6970, %v7246
    %v7501 = vadd.f32 %v6971, %v7251
    %v7502 = vadd.f32 %v6972, %v7256
    %v7503 = vadd.f32 %v6973, %v7261
    %v7504 = vadd.f32 %v6974, %v7266
    %v7505 = vadd.f32 %v6975, %v7271
    %v7506 = vadd.f32 %v6976, %v7276
    %v7507 = vadd.f32 %v6977, %v7281
    %v7508 = vadd.f32 %v6978, %v7286
    %v7509 = vadd.f32 %v6979, %v7291
    %v7510 = vadd.f32 %v6980, %v7296
    %v7511 = vadd.f32 %v6981, %v7301
    %v7512 = vadd.f32 %v6982, %v7306
    %v7513 = vadd.f32 %v6983, %v7311
    %v7514 = vadd.f32 %v6984, %v7316
    %v7515 = vadd.f32 %v6985, %v7321
    %v7516 = vadd.f32 %v6986, %v7326
    %v7517 = vadd.f32 %v6987, %v7331
    %v7518 = vadd.f32 %v6988, %v7336
    %v7519 = vadd.f32 %v6989, %v7341
    %v7520 = vadd.f32 %v6990, %v7346
    %v7521 = vadd.f32 %v6991, %v7351
    %v7522 = vadd.f32 %v6992, %v7356
    %v7523 = vadd.f32 %v6993, %v7361
    %v7524 = vadd.f32 %v6994, %v7366
    %v7525 = vadd.f32 %v6995, %v7371
    %v7526 = vadd.f32 %v6996, %v7376
    %v7527 = vadd.f32 %v6997, %v7381
    %v7528 = vadd.f32 %v6998, %v7386
    %v7529 = vadd.f32 %v6999, %v7391
    %v7530 = vadd.f32 %v7000, %v7396
    %v7531 = vadd.f32 %v7001, %v7401
    %v7532 = vadd.f32 %v7002, %v7406
    %v7533 = vadd.f32 %v7003, %v7411
    %v7534 = vadd.f32 %v7004, %v7416
    %v7535 = vadd.f32 %v7005, %v7421
    %v7536 = vadd.f32 %v7006, %v7426
    %v7537 = vadd.f32 %v7007, %v7431
    %v7538 = vadd.f32 %v7008, %v7436
    %v7539 = vadd.f32 %v7009, %v7441
    %v7540 = vadd.f32 %v7010, %v7446
    %v7541 = vadd.f32 %v7011, %v7451
    %v7542 = vadd.f32 %v7012, %v7456
    %v7543 = vadd.f32 %v7013, %v7461
    %v7544 = vadd.f32 %v7014, %v7466
    %v7545 = vadd.f32 %v7015, %v7471
    %v7546 = vadd.f32 %v7016, %v7476
    %v7547 = vadd.f32 %v7017, %v7481
    %v7548 = vld [vmem:[%s4962 + $0x2] sm:$0xff]
    %v7549 = vld [vmem:[%s4962 + $0xa] sm:$0xff]
    %v7550 = vld [vmem:[%s4962 + $0x1a] sm:$0xff]
    %v7551 = vld [vmem:[%s4962 + $0x22] sm:$0xff]
    %v7552 = vld [vmem:[%s4962 + $0x32] sm:$0xff]
    %v7553 = vld [vmem:[%s4962 + $0x3a] sm:$0xff]
    %v7554 = vld [vmem:[%s4962 + $0x4a] sm:$0xff]
    %v7555 = vld [vmem:[%s4962 + $0x52] sm:$0xff]
    %v7556 = vld [vmem:[%s4962 + $0x62] sm:$0xff]
    %v7557 = vld [vmem:[%s4962 + $0x6a] sm:$0xff]
    %v7558 = vld [vmem:[%s4962 + $0x7a] sm:$0xff]
    %v7559 = vld [vmem:[%s4962 + $0x82] sm:$0xff]
    %v7560 = vld [vmem:[%s4962 + $0x92] sm:$0xff]
    %v7561 = vld [vmem:[%s4962 + $0x9a] sm:$0xff]
    %v7562 = vld [vmem:[%s4962 + $0xaa] sm:$0xff]
    %v7563 = vld [vmem:[%s4962 + $0xb2] sm:$0xff]
    %v7564 = vld [vmem:[%s4962 + $0xc2] sm:$0xff]
    %v7565 = vld [vmem:[%s4962 + $0xca] sm:$0xff]
    %v7566 = vld [vmem:[%s4962 + $0xda] sm:$0xff]
    %v7567 = vld [vmem:[%s4962 + $0xe2] sm:$0xff]
    %v7568 = vld [vmem:[%s4962 + $0xf2] sm:$0xff]
    %v7569 = vld [vmem:[%s4962 + $0xfa] sm:$0xff]
    %v7570 = vld [vmem:[%s4962 + $0x10a] sm:$0xff]
    %v7571 = vld [vmem:[%s4962 + $0x112] sm:$0xff]
    %v7572 = vld [vmem:[%s4962 + $0x122] sm:$0xff]
    %v7573 = vld [vmem:[%s4962 + $0x12a] sm:$0xff]
    %v7574 = vld [vmem:[%s4962 + $0x13a] sm:$0xff]
    %v7575 = vld [vmem:[%s4962 + $0x142] sm:$0xff]
    %v7576 = vld [vmem:[%s4962 + $0x152] sm:$0xff]
    %v7577 = vld [vmem:[%s4962 + $0x15a] sm:$0xff]
    %v7578 = vld [vmem:[%s4962 + $0x16a] sm:$0xff]
    %v7579 = vld [vmem:[%s4962 + $0x172] sm:$0xff]
    %v7580 = vld [vmem:[%s4962 + $0x1b2] sm:$0xff]
    %v7581 = vld [vmem:[%s4962 + $0x1ba] sm:$0xff]
    %v7582 = vld [vmem:[%s4962 + $0x1ca] sm:$0xff]
    %v7583 = vld [vmem:[%s4962 + $0x1d2] sm:$0xff]
    %v7584 = vld [vmem:[%s4962 + $0x1e2] sm:$0xff]
    %v7585 = vld [vmem:[%s4962 + $0x1ea] sm:$0xff]
    %v7586 = vld [vmem:[%s4962 + $0x1fa] sm:$0xff]
    %v7587 = vld [vmem:[%s4962 + $0x202] sm:$0xff]
    %v7588 = vld [vmem:[%s4962 + $0x212] sm:$0xff]
    %v7589 = vld [vmem:[%s4962 + $0x21a] sm:$0xff]
    %v7590 = vld [vmem:[%s4962 + $0x22a] sm:$0xff]
    %v7591 = vld [vmem:[%s4962 + $0x232] sm:$0xff]
    %v7592 = vld [vmem:[%s4962 + $0x242] sm:$0xff]
    %v7593 = vld [vmem:[%s4962 + $0x24a] sm:$0xff]
    %v7594 = vld [vmem:[%s4962 + $0x25a] sm:$0xff]
    %v7595 = vld [vmem:[%s4962 + $0x262] sm:$0xff]
    %v7596 = vld [vmem:[%s4962 + $0x272] sm:$0xff]
    %v7597 = vld [vmem:[%s4962 + $0x27a] sm:$0xff]
    %v7598 = vld [vmem:[%s4962 + $0x28a] sm:$0xff]
    %v7599 = vld [vmem:[%s4962 + $0x292] sm:$0xff]
    %v7600 = vld [vmem:[%s4962 + $0x2a2] sm:$0xff]
    %v7601 = vld [vmem:[%s4962 + $0x2aa] sm:$0xff]
    %v7602 = vld [vmem:[%s4962 + $0x2ba] sm:$0xff]
    %v7603 = vld [vmem:[%s4962 + $0x2c2] sm:$0xff]
    %v7604 = vld [vmem:[%s4962 + $0x2d2] sm:$0xff]
    %v7605 = vld [vmem:[%s4962 + $0x2da] sm:$0xff]
    %v7606 = vld [vmem:[%s4962 + $0x2ea] sm:$0xff]
    %v7607 = vld [vmem:[%s4962 + $0x2f2] sm:$0xff]
    %v7608 = vld [vmem:[%s4962 + $0x302] sm:$0xff]
    %v7609 = vld [vmem:[%s4962 + $0x30a] sm:$0xff]
    %v7610 = vld [vmem:[%s4962 + $0x31a] sm:$0xff]
    %v7611 = vld [vmem:[%s4962 + $0x322] sm:$0xff]
    %s7612 = scalar_lea.vmem [#allocation3], 640
    %v7613 = vld [vmem:[%s7612] sm:$0xff]
    %v7614 = vld [vmem:[%s7612 + $0x8] sm:$0xff]
    %v7615 = vld [vmem:[%s7612 + $0x10] sm:$0xff]
    %v7616 = vld [vmem:[%s7612 + $0x18] sm:$0xff]
    %v7617 = vld [vmem:[%s7612 + $0x20] sm:$0xff]
    %v7618 = vld [vmem:[%s7612 + $0x28] sm:$0xff]
    %v7619 = vld [vmem:[%s7612 + $0x30] sm:$0xff]
    %v7620 = vld [vmem:[%s7612 + $0x38] sm:$0xff]
    %v7621 = vld [vmem:[%s7612 + $0x40] sm:$0xff]
    %v7622 = vld [vmem:[%s7612 + $0x48] sm:$0xff]
    %v7623 = vld [vmem:[%s7612 + $0x50] sm:$0xff]
    %v7624 = vld [vmem:[%s7612 + $0x58] sm:$0xff]
    %v7625 = vld [vmem:[%s7612 + $0x60] sm:$0xff]
    %v7626 = vld [vmem:[%s7612 + $0x68] sm:$0xff]
    %v7627 = vld [vmem:[%s7612 + $0x70] sm:$0xff]
    %v7628 = vld [vmem:[%s7612 + $0x78] sm:$0xff]
    %7629 = vmatprep.subr.mxu0 0.0
    %7630 = vmatpush1.msra.mxu0 %v7613
    %7631 = vmatprep.subr.mxu0 0.0
    %7632 = vmatpush1.msra.mxu0 %v7614
    %7633 = vmatprep.subr.mxu0 0.0
    %7634 = vmatpush1.msra.mxu0 %v7615
    %7635 = vmatprep.subr.mxu0 0.0
    %7636 = vmatpush1.msra.mxu0 %v7616
    %7637 = vmatprep.subr.mxu0 0.0
    %7638 = vmatpush1.msra.mxu0 %v7617
    %7639 = vmatprep.subr.mxu0 0.0
    %7640 = vmatpush1.msra.mxu0 %v7618
    %7641 = vmatprep.subr.mxu0 0.0
    %7642 = vmatpush1.msra.mxu0 %v7619
    %7643 = vmatprep.subr.mxu0 0.0
    %7644 = vmatpush1.msra.mxu0 %v7620
    %7645 = vmatprep.subr.mxu0 0.0
    %7646 = vmatpush1.msra.mxu0 %v7621
    %7647 = vmatprep.subr.mxu0 0.0
    %7648 = vmatpush1.msra.mxu0 %v7622
    %7649 = vmatprep.subr.mxu0 0.0
    %7650 = vmatpush1.msra.mxu0 %v7623
    %7651 = vmatprep.subr.mxu0 0.0
    %7652 = vmatpush1.msra.mxu0 %v7624
    %7653 = vmatprep.subr.mxu0 0.0
    %7654 = vmatpush1.msra.mxu0 %v7625
    %7655 = vmatprep.subr.mxu0 0.0
    %7656 = vmatpush1.msra.mxu0 %v7626
    %7657 = vmatprep.subr.mxu0 0.0
    %7658 = vmatpush1.msra.mxu0 %v7627
    %7659 = vmatprep.subr.mxu0 0.0
    %7660 = vmatpush1.msra.mxu0 %v7628
    %7661 = vmatprep.subr.mxu0 0.0
    %7662 = vmatpush1.msra.mxu0 0.0
    %7663 = vmatprep.subr.mxu0 0.0
    %7664 = vmatpush1.msra.mxu0 0.0
    %7665 = vmatprep.subr.mxu0 0.0
    %7666 = vmatpush1.msra.mxu0 0.0
    %7667 = vmatprep.subr.mxu0 0.0
    %7668 = vmatpush1.msra.mxu0 0.0
    %7669 = vmatprep.subr.mxu0 0.0
    %7670 = vmatpush1.msra.mxu0 0.0
    %7671 = vmatprep.subr.mxu0 0.0
    %7672 = vmatpush1.msra.mxu0 0.0
    %7673 = vmatprep.subr.mxu0 0.0
    %7674 = vmatpush1.msra.mxu0 0.0
    %7675 = vmatprep.subr.mxu0 0.0
    %7676 = vmatpush1.msra.mxu0 0.0
    %7677 = vmatprep.subr.mxu0 0.0
    %7678 = vmatpush1.msra.mxu0 0.0
    %7679 = vmatprep.subr.mxu0 0.0
    %7680 = vmatpush1.msra.mxu0 0.0
    %7681 = vmatprep.subr.mxu0 0.0
    %7682 = vmatpush1.msra.mxu0 0.0
    %7683 = vmatprep.subr.mxu0 0.0
    %7684 = vmatpush1.msra.mxu0 0.0
    %7685 = vmatprep.subr.mxu0 0.0
    %7686 = vmatpush1.msra.mxu0 0.0
    %7687 = vmatprep.subr.mxu0 0.0
    %7688 = vmatpush1.msra.mxu0 0.0
    %7689 = vmatprep.subr.mxu0 0.0
    %7690 = vmatpush1.msra.mxu0 0.0
    %7691 = vmatprep.subr.mxu0 0.0
    %7692 = vmatpush1.msra.mxu0 0.0
    %7693 = vmatprep.mubr.f32.mxu0 0.0
    %7694 = vmatmul.mubr.f32.gmra.mrb[0].mxu0 %v7548
    %v7695 = vpop.f32.mrb[0].mxu0
    %v7696 = vadd.f32 0.0, %v7695
    %v7697 = vpop.f32.mrb[0].mxu0
    %7698 = vmatprep.mubr.f32.mxu0 0.0
    %7699 = vmatmul.mubr.f32.gmra.mrb[0].mxu0 %v7549
    %v7700 = vpop.f32.mrb[0].mxu0
    %v7701 = vadd.f32 0.0, %v7700
    %v7702 = vpop.f32.mrb[0].mxu0
    %7703 = vmatprep.mubr.f32.mxu0 0.0
    %7704 = vmatmul.mubr.f32.gmra.mrb[0].mxu0 %v7550
    %v7705 = vpop.f32.mrb[0].mxu0
    %v7706 = vadd.f32 0.0, %v7705
    %v7707 = vpop.f32.mrb[0].mxu0
    %7708 = vmatprep.mubr.f32.mxu0 0.0
    %7709 = vmatmul.mubr.f32.gmra.mrb[0].mxu0 %v7551
    %v7710 = vpop.f32.mrb[0].mxu0
    %v7711 = vadd.f32 0.0, %v7710
    %v7712 = vpop.f32.mrb[0].mxu0
    %7713 = vmatprep.mubr.f32.mxu0 0.0
    %7714 = vmatmul.mubr.f32.gmra.mrb[0].mxu0 %v7552
    %v7715 = vpop.f32.mrb[0].mxu0
    %v7716 = vadd.f32 0.0, %v7715
    %v7717 = vpop.f32.mrb[0].mxu0
    %7718 = vmatprep.mubr.f32.mxu0 0.0
    %7719 = vmatmul.mubr.f32.gmra.mrb[0].mxu0 %v7553
    %v7720 = vpop.f32.mrb[0].mxu0
    %v7721 = vadd.f32 0.0, %v7720
    %v7722 = vpop.f32.mrb[0].mxu0
    %7723 = vmatprep.mubr.f32.mxu0 0.0
    %7724 = vmatmul.mubr.f32.gmra.mrb[0].mxu0 %v7554
    %v7725 = vpop.f32.mrb[0].mxu0
    %v7726 = vadd.f32 0.0, %v7725
    %v7727 = vpop.f32.mrb[0].mxu0
    %7728 = vmatprep.mubr.f32.mxu0 0.0
    %7729 = vmatmul.mubr.f32.gmra.mrb[0].mxu0 %v7555
    %v7730 = vpop.f32.mrb[0].mxu0
    %v7731 = vadd.f32 0.0, %v7730
    %v7732 = vpop.f32.mrb[0].mxu0
    %7733 = vmatprep.mubr.f32.mxu0 0.0
    %7734 = vmatmul.mubr.f32.gmra.mrb[0].mxu0 %v7556
    %v7735 = vpop.f32.mrb[0].mxu0
    %v7736 = vadd.f32 0.0, %v7735
    %v7737 = vpop.f32.mrb[0].mxu0
    %7738 = vmatprep.mubr.f32.mxu0 0.0
    %7739 = vmatmul.mubr.f32.gmra.mrb[0].mxu0 %v7557
    %v7740 = vpop.f32.mrb[0].mxu0
    %v7741 = vadd.f32 0.0, %v7740
    %v7742 = vpop.f32.mrb[0].mxu0
    %7743 = vmatprep.mubr.f32.mxu0 0.0
    %7744 = vmatmul.mubr.f32.gmra.mrb[0].mxu0 %v7558
    %v7745 = vpop.f32.mrb[0].mxu0
    %v7746 = vadd.f32 0.0, %v7745
    %v7747 = vpop.f32.mrb[0].mxu0
    %7748 = vmatprep.mubr.f32.mxu0 0.0
    %7749 = vmatmul.mubr.f32.gmra.mrb[0].mxu0 %v7559
    %v7750 = vpop.f32.mrb[0].mxu0
    %v7751 = vadd.f32 0.0, %v7750
    %v7752 = vpop.f32.mrb[0].mxu0
    %7753 = vmatprep.mubr.f32.mxu0 0.0
    %7754 = vmatmul.mubr.f32.gmra.mrb[0].mxu0 %v7560
    %v7755 = vpop.f32.mrb[0].mxu0
    %v7756 = vadd.f32 0.0, %v7755
    %v7757 = vpop.f32.mrb[0].mxu0
    %7758 = vmatprep.mubr.f32.mxu0 0.0
    %7759 = vmatmul.mubr.f32.gmra.mrb[0].mxu0 %v7561
    %v7760 = vpop.f32.mrb[0].mxu0
    %v7761 = vadd.f32 0.0, %v7760
    %v7762 = vpop.f32.mrb[0].mxu0
    %7763 = vmatprep.mubr.f32.mxu0 0.0
    %7764 = vmatmul.mubr.f32.gmra.mrb[0].mxu0 %v7562
    %v7765 = vpop.f32.mrb[0].mxu0
    %v7766 = vadd.f32 0.0, %v7765
    %v7767 = vpop.f32.mrb[0].mxu0
    %7768 = vmatprep.mubr.f32.mxu0 0.0
    %7769 = vmatmul.mubr.f32.gmra.mrb[0].mxu0 %v7563
    %v7770 = vpop.f32.mrb[0].mxu0
    %v7771 = vadd.f32 0.0, %v7770
    %v7772 = vpop.f32.mrb[0].mxu0
    %7773 = vmatprep.mubr.f32.mxu0 0.0
    %7774 = vmatmul.mubr.f32.gmra.mrb[0].mxu0 %v7564
    %v7775 = vpop.f32.mrb[0].mxu0
    %v7776 = vadd.f32 0.0, %v7775
    %v7777 = vpop.f32.mrb[0].mxu0
    %7778 = vmatprep.mubr.f32.mxu0 0.0
    %7779 = vmatmul.mubr.f32.gmra.mrb[0].mxu0 %v7565
    %v7780 = vpop.f32.mrb[0].mxu0
    %v7781 = vadd.f32 0.0, %v7780
    %v7782 = vpop.f32.mrb[0].mxu0
    %7783 = vmatprep.mubr.f32.mxu0 0.0
    %7784 = vmatmul.mubr.f32.gmra.mrb[0].mxu0 %v7566
    %v7785 = vpop.f32.mrb[0].mxu0
    %v7786 = vadd.f32 0.0, %v7785
    %v7787 = vpop.f32.mrb[0].mxu0
    %7788 = vmatprep.mubr.f32.mxu0 0.0
    %7789 = vmatmul.mubr.f32.gmra.mrb[0].mxu0 %v7567
    %v7790 = vpop.f32.mrb[0].mxu0
    %v7791 = vadd.f32 0.0, %v7790
    %v7792 = vpop.f32.mrb[0].mxu0
    %7793 = vmatprep.mubr.f32.mxu0 0.0
    %7794 = vmatmul.mubr.f32.gmra.mrb[0].mxu0 %v7568
    %v7795 = vpop.f32.mrb[0].mxu0
    %v7796 = vadd.f32 0.0, %v7795
    %v7797 = vpop.f32.mrb[0].mxu0
    %7798 = vmatprep.mubr.f32.mxu0 0.0
    %7799 = vmatmul.mubr.f32.gmra.mrb[0].mxu0 %v7569
    %v7800 = vpop.f32.mrb[0].mxu0
    %v7801 = vadd.f32 0.0, %v7800
    %v7802 = vpop.f32.mrb[0].mxu0
    %7803 = vmatprep.mubr.f32.mxu0 0.0
    %7804 = vmatmul.mubr.f32.gmra.mrb[0].mxu0 %v7570
    %v7805 = vpop.f32.mrb[0].mxu0
    %v7806 = vadd.f32 0.0, %v7805
    %v7807 = vpop.f32.mrb[0].mxu0
    %7808 = vmatprep.mubr.f32.mxu0 0.0
    %7809 = vmatmul.mubr.f32.gmra.mrb[0].mxu0 %v7571
    %v7810 = vpop.f32.mrb[0].mxu0
    %v7811 = vadd.f32 0.0, %v7810
    %v7812 = vpop.f32.mrb[0].mxu0
    %7813 = vmatprep.mubr.f32.mxu0 0.0
    %7814 = vmatmul.mubr.f32.gmra.mrb[0].mxu0 %v7572
    %v7815 = vpop.f32.mrb[0].mxu0
    %v7816 = vadd.f32 0.0, %v7815
    %v7817 = vpop.f32.mrb[0].mxu0
    %7818 = vmatprep.mubr.f32.mxu0 0.0
    %7819 = vmatmul.mubr.f32.gmra.mrb[0].mxu0 %v7573
    %v7820 = vpop.f32.mrb[0].mxu0
    %v7821 = vadd.f32 0.0, %v7820
    %v7822 = vpop.f32.mrb[0].mxu0
    %7823 = vmatprep.mubr.f32.mxu0 0.0
    %7824 = vmatmul.mubr.f32.gmra.mrb[0].mxu0 %v7574
    %v7825 = vpop.f32.mrb[0].mxu0
    %v7826 = vadd.f32 0.0, %v7825
    %v7827 = vpop.f32.mrb[0].mxu0
    %7828 = vmatprep.mubr.f32.mxu0 0.0
    %7829 = vmatmul.mubr.f32.gmra.mrb[0].mxu0 %v7575
    %v7830 = vpop.f32.mrb[0].mxu0
    %v7831 = vadd.f32 0.0, %v7830
    %v7832 = vpop.f32.mrb[0].mxu0
    %7833 = vmatprep.mubr.f32.mxu0 0.0
    %7834 = vmatmul.mubr.f32.gmra.mrb[0].mxu0 %v7576
    %v7835 = vpop.f32.mrb[0].mxu0
    %v7836 = vadd.f32 0.0, %v7835
    %v7837 = vpop.f32.mrb[0].mxu0
    %7838 = vmatprep.mubr.f32.mxu0 0.0
    %7839 = vmatmul.mubr.f32.gmra.mrb[0].mxu0 %v7577
    %v7840 = vpop.f32.mrb[0].mxu0
    %v7841 = vadd.f32 0.0, %v7840
    %v7842 = vpop.f32.mrb[0].mxu0
    %7843 = vmatprep.mubr.f32.mxu0 0.0
    %7844 = vmatmul.mubr.f32.gmra.mrb[0].mxu0 %v7578
    %v7845 = vpop.f32.mrb[0].mxu0
    %v7846 = vadd.f32 0.0, %v7845
    %v7847 = vpop.f32.mrb[0].mxu0
    %7848 = vmatprep.mubr.f32.mxu0 0.0
    %7849 = vmatmul.mubr.f32.gmra.mrb[0].mxu0 %v7579
    %v7850 = vpop.f32.mrb[0].mxu0
    %v7851 = vadd.f32 0.0, %v7850
    %v7852 = vpop.f32.mrb[0].mxu0
    %7853 = vmatprep.mubr.f32.mxu0 0.0
    %7854 = vmatmul.mubr.f32.gmra.mrb[0].mxu0 %v7580
    %v7855 = vpop.f32.mrb[0].mxu0
    %v7856 = vadd.f32 0.0, %v7855
    %v7857 = vpop.f32.mrb[0].mxu0
    %7858 = vmatprep.mubr.f32.mxu0 0.0
    %7859 = vmatmul.mubr.f32.gmra.mrb[0].mxu0 %v7581
    %v7860 = vpop.f32.mrb[0].mxu0
    %v7861 = vadd.f32 0.0, %v7860
    %v7862 = vpop.f32.mrb[0].mxu0
    %7863 = vmatprep.mubr.f32.mxu0 0.0
    %7864 = vmatmul.mubr.f32.gmra.mrb[0].mxu0 %v7582
    %v7865 = vpop.f32.mrb[0].mxu0
    %v7866 = vadd.f32 0.0, %v7865
    %v7867 = vpop.f32.mrb[0].mxu0
    %7868 = vmatprep.mubr.f32.mxu0 0.0
    %7869 = vmatmul.mubr.f32.gmra.mrb[0].mxu0 %v7583
    %v7870 = vpop.f32.mrb[0].mxu0
    %v7871 = vadd.f32 0.0, %v7870
    %v7872 = vpop.f32.mrb[0].mxu0
    %7873 = vmatprep.mubr.f32.mxu0 0.0
    %7874 = vmatmul.mubr.f32.gmra.mrb[0].mxu0 %v7584
    %v7875 = vpop.f32.mrb[0].mxu0
    %v7876 = vadd.f32 0.0, %v7875
    %v7877 = vpop.f32.mrb[0].mxu0
    %7878 = vmatprep.mubr.f32.mxu0 0.0
    %7879 = vmatmul.mubr.f32.gmra.mrb[0].mxu0 %v7585
    %v7880 = vpop.f32.mrb[0].mxu0
    %v7881 = vadd.f32 0.0, %v7880
    %v7882 = vpop.f32.mrb[0].mxu0
    %7883 = vmatprep.mubr.f32.mxu0 0.0
    %7884 = vmatmul.mubr.f32.gmra.mrb[0].mxu0 %v7586
    %v7885 = vpop.f32.mrb[0].mxu0
    %v7886 = vadd.f32 0.0, %v7885
    %v7887 = vpop.f32.mrb[0].mxu0
    %7888 = vmatprep.mubr.f32.mxu0 0.0
    %7889 = vmatmul.mubr.f32.gmra.mrb[0].mxu0 %v7587
    %v7890 = vpop.f32.mrb[0].mxu0
    %v7891 = vadd.f32 0.0, %v7890
    %v7892 = vpop.f32.mrb[0].mxu0
    %7893 = vmatprep.mubr.f32.mxu0 0.0
    %7894 = vmatmul.mubr.f32.gmra.mrb[0].mxu0 %v7588
    %v7895 = vpop.f32.mrb[0].mxu0
    %v7896 = vadd.f32 0.0, %v7895
    %v7897 = vpop.f32.mrb[0].mxu0
    %7898 = vmatprep.mubr.f32.mxu0 0.0
    %7899 = vmatmul.mubr.f32.gmra.mrb[0].mxu0 %v7589
    %v7900 = vpop.f32.mrb[0].mxu0
    %v7901 = vadd.f32 0.0, %v7900
    %v7902 = vpop.f32.mrb[0].mxu0
    %7903 = vmatprep.mubr.f32.mxu0 0.0
    %7904 = vmatmul.mubr.f32.gmra.mrb[0].mxu0 %v7590
    %v7905 = vpop.f32.mrb[0].mxu0
    %v7906 = vadd.f32 0.0, %v7905
    %v7907 = vpop.f32.mrb[0].mxu0
    %7908 = vmatprep.mubr.f32.mxu0 0.0
    %7909 = vmatmul.mubr.f32.gmra.mrb[0].mxu0 %v7591
    %v7910 = vpop.f32.mrb[0].mxu0
    %v7911 = vadd.f32 0.0, %v7910
    %v7912 = vpop.f32.mrb[0].mxu0
    %7913 = vmatprep.mubr.f32.mxu0 0.0
    %7914 = vmatmul.mubr.f32.gmra.mrb[0].mxu0 %v7592
    %v7915 = vpop.f32.mrb[0].mxu0
    %v7916 = vadd.f32 0.0, %v7915
    %v7917 = vpop.f32.mrb[0].mxu0
    %7918 = vmatprep.mubr.f32.mxu0 0.0
    %7919 = vmatmul.mubr.f32.gmra.mrb[0].mxu0 %v7593
    %v7920 = vpop.f32.mrb[0].mxu0
    %v7921 = vadd.f32 0.0, %v7920
    %v7922 = vpop.f32.mrb[0].mxu0
    %7923 = vmatprep.mubr.f32.mxu0 0.0
    %7924 = vmatmul.mubr.f32.gmra.mrb[0].mxu0 %v7594
    %v7925 = vpop.f32.mrb[0].mxu0
    %v7926 = vadd.f32 0.0, %v7925
    %v7927 = vpop.f32.mrb[0].mxu0
    %7928 = vmatprep.mubr.f32.mxu0 0.0
    %7929 = vmatmul.mubr.f32.gmra.mrb[0].mxu0 %v7595
    %v7930 = vpop.f32.mrb[0].mxu0
    %v7931 = vadd.f32 0.0, %v7930
    %v7932 = vpop.f32.mrb[0].mxu0
    %7933 = vmatprep.mubr.f32.mxu0 0.0
    %7934 = vmatmul.mubr.f32.gmra.mrb[0].mxu0 %v7596
    %v7935 = vpop.f32.mrb[0].mxu0
    %v7936 = vadd.f32 0.0, %v7935
    %v7937 = vpop.f32.mrb[0].mxu0
    %7938 = vmatprep.mubr.f32.mxu0 0.0
    %7939 = vmatmul.mubr.f32.gmra.mrb[0].mxu0 %v7597
    %v7940 = vpop.f32.mrb[0].mxu0
    %v7941 = vadd.f32 0.0, %v7940
    %v7942 = vpop.f32.mrb[0].mxu0
    %7943 = vmatprep.mubr.f32.mxu0 0.0
    %7944 = vmatmul.mubr.f32.gmra.mrb[0].mxu0 %v7598
    %v7945 = vpop.f32.mrb[0].mxu0
    %v7946 = vadd.f32 0.0, %v7945
    %v7947 = vpop.f32.mrb[0].mxu0
    %7948 = vmatprep.mubr.f32.mxu0 0.0
    %7949 = vmatmul.mubr.f32.gmra.mrb[0].mxu0 %v7599
    %v7950 = vpop.f32.mrb[0].mxu0
    %v7951 = vadd.f32 0.0, %v7950
    %v7952 = vpop.f32.mrb[0].mxu0
    %7953 = vmatprep.mubr.f32.mxu0 0.0
    %7954 = vmatmul.mubr.f32.gmra.mrb[0].mxu0 %v7600
    %v7955 = vpop.f32.mrb[0].mxu0
    %v7956 = vadd.f32 0.0, %v7955
    %v7957 = vpop.f32.mrb[0].mxu0
    %7958 = vmatprep.mubr.f32.mxu0 0.0
    %7959 = vmatmul.mubr.f32.gmra.mrb[0].mxu0 %v7601
    %v7960 = vpop.f32.mrb[0].mxu0
    %v7961 = vadd.f32 0.0, %v7960
    %v7962 = vpop.f32.mrb[0].mxu0
    %7963 = vmatprep.mubr.f32.mxu0 0.0
    %7964 = vmatmul.mubr.f32.gmra.mrb[0].mxu0 %v7602
    %v7965 = vpop.f32.mrb[0].mxu0
    %v7966 = vadd.f32 0.0, %v7965
    %v7967 = vpop.f32.mrb[0].mxu0
    %7968 = vmatprep.mubr.f32.mxu0 0.0
    %7969 = vmatmul.mubr.f32.gmra.mrb[0].mxu0 %v7603
    %v7970 = vpop.f32.mrb[0].mxu0
    %v7971 = vadd.f32 0.0, %v7970
    %v7972 = vpop.f32.mrb[0].mxu0
    %7973 = vmatprep.mubr.f32.mxu0 0.0
    %7974 = vmatmul.mubr.f32.gmra.mrb[0].mxu0 %v7604
    %v7975 = vpop.f32.mrb[0].mxu0
    %v7976 = vadd.f32 0.0, %v7975
    %v7977 = vpop.f32.mrb[0].mxu0
    %7978 = vmatprep.mubr.f32.mxu0 0.0
    %7979 = vmatmul.mubr.f32.gmra.mrb[0].mxu0 %v7605
    %v7980 = vpop.f32.mrb[0].mxu0
    %v7981 = vadd.f32 0.0, %v7980
    %v7982 = vpop.f32.mrb[0].mxu0
    %7983 = vmatprep.mubr.f32.mxu0 0.0
    %7984 = vmatmul.mubr.f32.gmra.mrb[0].mxu0 %v7606
    %v7985 = vpop.f32.mrb[0].mxu0
    %v7986 = vadd.f32 0.0, %v7985
    %v7987 = vpop.f32.mrb[0].mxu0
    %7988 = vmatprep.mubr.f32.mxu0 0.0
    %7989 = vmatmul.mubr.f32.gmra.mrb[0].mxu0 %v7607
    %v7990 = vpop.f32.mrb[0].mxu0
    %v7991 = vadd.f32 0.0, %v7990
    %v7992 = vpop.f32.mrb[0].mxu0
    %7993 = vmatprep.mubr.f32.mxu0 0.0
    %7994 = vmatmul.mubr.f32.gmra.mrb[0].mxu0 %v7608
    %v7995 = vpop.f32.mrb[0].mxu0
    %v7996 = vadd.f32 0.0, %v7995
    %v7997 = vpop.f32.mrb[0].mxu0
    %7998 = vmatprep.mubr.f32.mxu0 0.0
    %7999 = vmatmul.mubr.f32.gmra.mrb[0].mxu0 %v7609
    %v8000 = vpop.f32.mrb[0].mxu0
    %v8001 = vadd.f32 0.0, %v8000
    %v8002 = vpop.f32.mrb[0].mxu0
    %8003 = vmatprep.mubr.f32.mxu0 0.0
    %8004 = vmatmul.mubr.f32.gmra.mrb[0].mxu0 %v7610
    %v8005 = vpop.f32.mrb[0].mxu0
    %v8006 = vadd.f32 0.0, %v8005
    %v8007 = vpop.f32.mrb[0].mxu0
    %8008 = vmatprep.mubr.f32.mxu0 0.0
    %8009 = vmatmul.mubr.f32.gmra.mrb[0].mxu0 %v7611
    %v8010 = vpop.f32.mrb[0].mxu0
    %v8011 = vadd.f32 0.0, %v8010
    %v8012 = vpop.f32.mrb[0].mxu0
    %8013 = vdwg.mxu0
    %v8014 = vadd.f32 %v7484, %v7696
    %v8015 = vadd.f32 %v7485, %v7701
    %v8016 = vadd.f32 %v7486, %v7706
    %v8017 = vadd.f32 %v7487, %v7711
    %v8018 = vadd.f32 %v7488, %v7716
    %v8019 = vadd.f32 %v7489, %v7721
    %v8020 = vadd.f32 %v7490, %v7726
    %v8021 = vadd.f32 %v7491, %v7731
    %v8022 = vadd.f32 %v7492, %v7736
    %v8023 = vadd.f32 %v7493, %v7741
    %v8024 = vadd.f32 %v7494, %v7746
    %v8025 = vadd.f32 %v7495, %v7751
    %v8026 = vadd.f32 %v7496, %v7756
    %v8027 = vadd.f32 %v7497, %v7761
    %v8028 = vadd.f32 %v7498, %v7766
    %v8029 = vadd.f32 %v7499, %v7771
    %v8030 = vadd.f32 %v7500, %v7776
    %v8031 = vadd.f32 %v7501, %v7781
    %v8032 = vadd.f32 %v7502, %v7786
    %v8033 = vadd.f32 %v7503, %v7791
    %v8034 = vadd.f32 %v7504, %v7796
    %v8035 = vadd.f32 %v7505, %v7801
    %v8036 = vadd.f32 %v7506, %v7806
    %v8037 = vadd.f32 %v7507, %v7811
    %v8038 = vadd.f32 %v7508, %v7816
    %v8039 = vadd.f32 %v7509, %v7821
    %v8040 = vadd.f32 %v7510, %v7826
    %v8041 = vadd.f32 %v7511, %v7831
    %v8042 = vadd.f32 %v7512, %v7836
    %v8043 = vadd.f32 %v7513, %v7841
    %v8044 = vadd.f32 %v7514, %v7846
    %v8045 = vadd.f32 %v7515, %v7851
    %v8046 = vadd.f32 %v7516, %v7856
    %v8047 = vadd.f32 %v7517, %v7861
    %v8048 = vadd.f32 %v7518, %v7866
    %v8049 = vadd.f32 %v7519, %v7871
    %v8050 = vadd.f32 %v7520, %v7876
    %v8051 = vadd.f32 %v7521, %v7881
    %v8052 = vadd.f32 %v7522, %v7886
    %v8053 = vadd.f32 %v7523, %v7891
    %v8054 = vadd.f32 %v7524, %v7896
    %v8055 = vadd.f32 %v7525, %v7901
    %v8056 = vadd.f32 %v7526, %v7906
    %v8057 = vadd.f32 %v7527, %v7911
    %v8058 = vadd.f32 %v7528, %v7916
    %v8059 = vadd.f32 %v7529, %v7921
    %v8060 = vadd.f32 %v7530, %v7926
    %v8061 = vadd.f32 %v7531, %v7931
    %v8062 = vadd.f32 %v7532, %v7936
    %v8063 = vadd.f32 %v7533, %v7941
    %v8064 = vadd.f32 %v7534, %v7946
    %v8065 = vadd.f32 %v7535, %v7951
    %v8066 = vadd.f32 %v7536, %v7956
    %v8067 = vadd.f32 %v7537, %v7961
    %v8068 = vadd.f32 %v7538, %v7966
    %v8069 = vadd.f32 %v7539, %v7971
    %v8070 = vadd.f32 %v7540, %v7976
    %v8071 = vadd.f32 %v7541, %v7981
    %v8072 = vadd.f32 %v7542, %v7986
    %v8073 = vadd.f32 %v7543, %v7991
    %v8074 = vadd.f32 %v7544, %v7996
    %v8075 = vadd.f32 %v7545, %v8001
    %v8076 = vadd.f32 %v7546, %v8006
    %v8077 = vadd.f32 %v7547, %v8011
    %s8078 = scalar_lea.vmem [#allocation2], 48
    %v8079 = vld [vmem:[%s8078] sm:$0xff]
    %v8080 = vld [vmem:[%s8078 + $0x8] sm:$0xff]
    %v8081 = vld [vmem:[%s8078 + $0x18] sm:$0xff]
    %v8082 = vld [vmem:[%s8078 + $0x20] sm:$0xff]
    %v8083 = vld [vmem:[%s8078 + $0x30] sm:$0xff]
    %v8084 = vld [vmem:[%s8078 + $0x38] sm:$0xff]
    %v8085 = vld [vmem:[%s8078 + $0x48] sm:$0xff]
    %v8086 = vld [vmem:[%s8078 + $0x50] sm:$0xff]
    %v8087 = vld [vmem:[%s8078 + $0x60] sm:$0xff]
    %v8088 = vld [vmem:[%s8078 + $0x68] sm:$0xff]
    %v8089 = vld [vmem:[%s8078 + $0x78] sm:$0xff]
    %v8090 = vld [vmem:[%s8078 + $0x80] sm:$0xff]
    %v8091 = vld [vmem:[%s8078 + $0x90] sm:$0xff]
    %v8092 = vld [vmem:[%s8078 + $0x98] sm:$0xff]
    %v8093 = vld [vmem:[%s8078 + $0xa8] sm:$0xff]
    %v8094 = vld [vmem:[%s8078 + $0xb0] sm:$0xff]
    %v8095 = vld [vmem:[%s8078 + $0xc0] sm:$0xff]
    %v8096 = vld [vmem:[%s8078 + $0xc8] sm:$0xff]
    %v8097 = vld [vmem:[%s8078 + $0xd8] sm:$0xff]
    %v8098 = vld [vmem:[%s8078 + $0xe0] sm:$0xff]
    %v8099 = vld [vmem:[%s8078 + $0xf0] sm:$0xff]
    %v8100 = vld [vmem:[%s8078 + $0xf8] sm:$0xff]
    %v8101 = vld [vmem:[%s8078 + $0x108] sm:$0xff]
    %v8102 = vld [vmem:[%s8078 + $0x110] sm:$0xff]
    %v8103 = vld [vmem:[%s8078 + $0x120] sm:$0xff]
    %v8104 = vld [vmem:[%s8078 + $0x128] sm:$0xff]
    %v8105 = vld [vmem:[%s8078 + $0x138] sm:$0xff]
    %v8106 = vld [vmem:[%s8078 + $0x140] sm:$0xff]
    %v8107 = vld [vmem:[%s8078 + $0x150] sm:$0xff]
    %v8108 = vld [vmem:[%s8078 + $0x158] sm:$0xff]
    %v8109 = vld [vmem:[%s8078 + $0x168] sm:$0xff]
    %v8110 = vld [vmem:[%s8078 + $0x170] sm:$0xff]
    %v8111 = vld [vmem:[%s8078 + $0x1b0] sm:$0xff]
    %v8112 = vld [vmem:[%s8078 + $0x1b8] sm:$0xff]
    %v8113 = vld [vmem:[%s8078 + $0x1c8] sm:$0xff]
    %v8114 = vld [vmem:[%s8078 + $0x1d0] sm:$0xff]
    %v8115 = vld [vmem:[%s8078 + $0x1e0] sm:$0xff]
    %v8116 = vld [vmem:[%s8078 + $0x1e8] sm:$0xff]
    %v8117 = vld [vmem:[%s8078 + $0x1f8] sm:$0xff]
    %v8118 = vld [vmem:[%s8078 + $0x200] sm:$0xff]
    %v8119 = vld [vmem:[%s8078 + $0x210] sm:$0xff]
    %v8120 = vld [vmem:[%s8078 + $0x218] sm:$0xff]
    %v8121 = vld [vmem:[%s8078 + $0x228] sm:$0xff]
    %v8122 = vld [vmem:[%s8078 + $0x230] sm:$0xff]
    %v8123 = vld [vmem:[%s8078 + $0x240] sm:$0xff]
    %v8124 = vld [vmem:[%s8078 + $0x248] sm:$0xff]
    %v8125 = vld [vmem:[%s8078 + $0x258] sm:$0xff]
    %v8126 = vld [vmem:[%s8078 + $0x260] sm:$0xff]
    %v8127 = vld [vmem:[%s8078 + $0x270] sm:$0xff]
    %v8128 = vld [vmem:[%s8078 + $0x278] sm:$0xff]
    %v8129 = vld [vmem:[%s8078 + $0x288] sm:$0xff]
    %v8130 = vld [vmem:[%s8078 + $0x290] sm:$0xff]
    %v8131 = vld [vmem:[%s8078 + $0x2a0] sm:$0xff]
    %v8132 = vld [vmem:[%s8078 + $0x2a8] sm:$0xff]
    %v8133 = vld [vmem:[%s8078 + $0x2b8] sm:$0xff]
    %v8134 = vld [vmem:[%s8078 + $0x2c0] sm:$0xff]
    %v8135 = vld [vmem:[%s8078 + $0x2d0] sm:$0xff]
    %v8136 = vld [vmem:[%s8078 + $0x2d8] sm:$0xff]
    %v8137 = vld [vmem:[%s8078 + $0x2e8] sm:$0xff]
    %v8138 = vld [vmem:[%s8078 + $0x2f0] sm:$0xff]
    %v8139 = vld [vmem:[%s8078 + $0x300] sm:$0xff]
    %v8140 = vld [vmem:[%s8078 + $0x308] sm:$0xff]
    %v8141 = vld [vmem:[%s8078 + $0x318] sm:$0xff]
    %v8142 = vld [vmem:[%s8078 + $0x320] sm:$0xff]
    %s8143 = scalar_lea.vmem [#allocation3], 768
    %v8144 = vld [vmem:[%s8143] sm:$0xff]
    %v8145 = vld [vmem:[%s8143 + $0x8] sm:$0xff]
    %v8146 = vld [vmem:[%s8143 + $0x10] sm:$0xff]
    %v8147 = vld [vmem:[%s8143 + $0x18] sm:$0xff]
    %v8148 = vld [vmem:[%s8143 + $0x20] sm:$0xff]
    %v8149 = vld [vmem:[%s8143 + $0x28] sm:$0xff]
    %v8150 = vld [vmem:[%s8143 + $0x30] sm:$0xff]
    %v8151 = vld [vmem:[%s8143 + $0x38] sm:$0xff]
    %v8152 = vld [vmem:[%s8143 + $0x40] sm:$0xff]
    %v8153 = vld [vmem:[%s8143 + $0x48] sm:$0xff]
    %v8154 = vld [vmem:[%s8143 + $0x50] sm:$0xff]
    %v8155 = vld [vmem:[%s8143 + $0x58] sm:$0xff]
    %v8156 = vld [vmem:[%s8143 + $0x60] sm:$0xff]
    %v8157 = vld [vmem:[%s8143 + $0x68] sm:$0xff]
    %v8158 = vld [vmem:[%s8143 + $0x70] sm:$0xff]
    %v8159 = vld [vmem:[%s8143 + $0x78] sm:$0xff]
    %8160 = vmatprep.subr.mxu0 0.0
    %8161 = vmatpush1.msra.mxu0 %v8144
    %8162 = vmatprep.subr.mxu0 0.0
    %8163 = vmatpush1.msra.mxu0 %v8145
    %8164 = vmatprep.subr.mxu0 0.0
    %8165 = vmatpush1.msra.mxu0 %v8146
    %8166 = vmatprep.subr.mxu0 0.0
    %8167 = vmatpush1.msra.mxu0 %v8147
    %8168 = vmatprep.subr.mxu0 0.0
    %8169 = vmatpush1.msra.mxu0 %v8148
    %8170 = vmatprep.subr.mxu0 0.0
    %8171 = vmatpush1.msra.mxu0 %v8149
    %8172 = vmatprep.subr.mxu0 0.0
    %8173 = vmatpush1.msra.mxu0 %v8150
    %8174 = vmatprep.subr.mxu0 0.0
    %8175 = vmatpush1.msra.mxu0 %v8151
    %8176 = vmatprep.subr.mxu0 0.0
    %8177 = vmatpush1.msra.mxu0 %v8152
    %8178 = vmatprep.subr.mxu0 0.0
    %8179 = vmatpush1.msra.mxu0 %v8153
    %8180 = vmatprep.subr.mxu0 0.0
    %8181 = vmatpush1.msra.mxu0 %v8154
    %8182 = vmatprep.subr.mxu0 0.0
    %8183 = vmatpush1.msra.mxu0 %v8155
    %8184 = vmatprep.subr.mxu0 0.0
    %8185 = vmatpush1.msra.mxu0 %v8156
    %8186 = vmatprep.subr.mxu0 0.0
    %8187 = vmatpush1.msra.mxu0 %v8157
    %8188 = vmatprep.subr.mxu0 0.0
    %8189 = vmatpush1.msra.mxu0 %v8158
    %8190 = vmatprep.subr.mxu0 0.0
    %8191 = vmatpush1.msra.mxu0 %v8159
    %8192 = vmatprep.subr.mxu0 0.0
    %8193 = vmatpush1.msra.mxu0 0.0
    %8194 = vmatprep.subr.mxu0 0.0
    %8195 = vmatpush1.msra.mxu0 0.0
    %8196 = vmatprep.subr.mxu0 0.0
    %8197 = vmatpush1.msra.mxu0 0.0
    %8198 = vmatprep.subr.mxu0 0.0
    %8199 = vmatpush1.msra.mxu0 0.0
    %8200 = vmatprep.subr.mxu0 0.0
    %8201 = vmatpush1.msra.mxu0 0.0
    %8202 = vmatprep.subr.mxu0 0.0
    %8203 = vmatpush1.msra.mxu0 0.0
    %8204 = vmatprep.subr.mxu0 0.0
    %8205 = vmatpush1.msra.mxu0 0.0
    %8206 = vmatprep.subr.mxu0 0.0
    %8207 = vmatpush1.msra.mxu0 0.0
    %8208 = vmatprep.subr.mxu0 0.0
    %8209 = vmatpush1.msra.mxu0 0.0
    %8210 = vmatprep.subr.mxu0 0.0
    %8211 = vmatpush1.msra.mxu0 0.0
    %8212 = vmatprep.subr.mxu0 0.0
    %8213 = vmatpush1.msra.mxu0 0.0
    %8214 = vmatprep.subr.mxu0 0.0
    %8215 = vmatpush1.msra.mxu0 0.0
    %8216 = vmatprep.subr.mxu0 0.0
    %8217 = vmatpush1.msra.mxu0 0.0
    %8218 = vmatprep.subr.mxu0 0.0
    %8219 = vmatpush1.msra.mxu0 0.0
    %8220 = vmatprep.subr.mxu0 0.0
    %8221 = vmatpush1.msra.mxu0 0.0
    %8222 = vmatprep.subr.mxu0 0.0
    %8223 = vmatpush1.msra.mxu0 0.0
    %8224 = vmatprep.mubr.f32.mxu0 0.0
    %8225 = vmatmul.mubr.f32.gmra.mrb[0].mxu0 %v8079
    %v8226 = vpop.f32.mrb[0].mxu0
    %v8227 = vadd.f32 0.0, %v8226
    %v8228 = vpop.f32.mrb[0].mxu0
    %8229 = vmatprep.mubr.f32.mxu0 0.0
    %8230 = vmatmul.mubr.f32.gmra.mrb[0].mxu0 %v8080
    %v8231 = vpop.f32.mrb[0].mxu0
    %v8232 = vadd.f32 0.0, %v8231
    %v8233 = vpop.f32.mrb[0].mxu0
    %8234 = vmatprep.mubr.f32.mxu0 0.0
    %8235 = vmatmul.mubr.f32.gmra.mrb[0].mxu0 %v8081
    %v8236 = vpop.f32.mrb[0].mxu0
    %v8237 = vadd.f32 0.0, %v8236
    %v8238 = vpop.f32.mrb[0].mxu0
    %8239 = vmatprep.mubr.f32.mxu0 0.0
    %8240 = vmatmul.mubr.f32.gmra.mrb[0].mxu0 %v8082
    %v8241 = vpop.f32.mrb[0].mxu0
    %v8242 = vadd.f32 0.0, %v8241
    %v8243 = vpop.f32.mrb[0].mxu0
    %8244 = vmatprep.mubr.f32.mxu0 0.0
    %8245 = vmatmul.mubr.f32.gmra.mrb[0].mxu0 %v8083
    %v8246 = vpop.f32.mrb[0].mxu0
    %v8247 = vadd.f32 0.0, %v8246
    %v8248 = vpop.f32.mrb[0].mxu0
    %8249 = vmatprep.mubr.f32.mxu0 0.0
    %8250 = vmatmul.mubr.f32.gmra.mrb[0].mxu0 %v8084
    %v8251 = vpop.f32.mrb[0].mxu0
    %v8252 = vadd.f32 0.0, %v8251
    %v8253 = vpop.f32.mrb[0].mxu0
    %8254 = vmatprep.mubr.f32.mxu0 0.0
    %8255 = vmatmul.mubr.f32.gmra.mrb[0].mxu0 %v8085
    %v8256 = vpop.f32.mrb[0].mxu0
    %v8257 = vadd.f32 0.0, %v8256
    %v8258 = vpop.f32.mrb[0].mxu0
    %8259 = vmatprep.mubr.f32.mxu0 0.0
    %8260 = vmatmul.mubr.f32.gmra.mrb[0].mxu0 %v8086
    %v8261 = vpop.f32.mrb[0].mxu0
    %v8262 = vadd.f32 0.0, %v8261
    %v8263 = vpop.f32.mrb[0].mxu0
    %8264 = vmatprep.mubr.f32.mxu0 0.0
    %8265 = vmatmul.mubr.f32.gmra.mrb[0].mxu0 %v8087
    %v8266 = vpop.f32.mrb[0].mxu0
    %v8267 = vadd.f32 0.0, %v8266
    %v8268 = vpop.f32.mrb[0].mxu0
    %8269 = vmatprep.mubr.f32.mxu0 0.0
    %8270 = vmatmul.mubr.f32.gmra.mrb[0].mxu0 %v8088
    %v8271 = vpop.f32.mrb[0].mxu0
    %v8272 = vadd.f32 0.0, %v8271
    %v8273 = vpop.f32.mrb[0].mxu0
    %8274 = vmatprep.mubr.f32.mxu0 0.0
    %8275 = vmatmul.mubr.f32.gmra.mrb[0].mxu0 %v8089
    %v8276 = vpop.f32.mrb[0].mxu0
    %v8277 = vadd.f32 0.0, %v8276
    %v8278 = vpop.f32.mrb[0].mxu0
    %8279 = vmatprep.mubr.f32.mxu0 0.0
    %8280 = vmatmul.mubr.f32.gmra.mrb[0].mxu0 %v8090
    %v8281 = vpop.f32.mrb[0].mxu0
    %v8282 = vadd.f32 0.0, %v8281
    %v8283 = vpop.f32.mrb[0].mxu0
    %8284 = vmatprep.mubr.f32.mxu0 0.0
    %8285 = vmatmul.mubr.f32.gmra.mrb[0].mxu0 %v8091
    %v8286 = vpop.f32.mrb[0].mxu0
    %v8287 = vadd.f32 0.0, %v8286
    %v8288 = vpop.f32.mrb[0].mxu0
    %8289 = vmatprep.mubr.f32.mxu0 0.0
    %8290 = vmatmul.mubr.f32.gmra.mrb[0].mxu0 %v8092
    %v8291 = vpop.f32.mrb[0].mxu0
    %v8292 = vadd.f32 0.0, %v8291
    %v8293 = vpop.f32.mrb[0].mxu0
    %8294 = vmatprep.mubr.f32.mxu0 0.0
    %8295 = vmatmul.mubr.f32.gmra.mrb[0].mxu0 %v8093
    %v8296 = vpop.f32.mrb[0].mxu0
    %v8297 = vadd.f32 0.0, %v8296
    %v8298 = vpop.f32.mrb[0].mxu0
    %8299 = vmatprep.mubr.f32.mxu0 0.0
    %8300 = vmatmul.mubr.f32.gmra.mrb[0].mxu0 %v8094
    %v8301 = vpop.f32.mrb[0].mxu0
    %v8302 = vadd.f32 0.0, %v8301
    %v8303 = vpop.f32.mrb[0].mxu0
    %8304 = vmatprep.mubr.f32.mxu0 0.0
    %8305 = vmatmul.mubr.f32.gmra.mrb[0].mxu0 %v8095
    %v8306 = vpop.f32.mrb[0].mxu0
    %v8307 = vadd.f32 0.0, %v8306
    %v8308 = vpop.f32.mrb[0].mxu0
    %8309 = vmatprep.mubr.f32.mxu0 0.0
    %8310 = vmatmul.mubr.f32.gmra.mrb[0].mxu0 %v8096
    %v8311 = vpop.f32.mrb[0].mxu0
    %v8312 = vadd.f32 0.0, %v8311
    %v8313 = vpop.f32.mrb[0].mxu0
    %8314 = vmatprep.mubr.f32.mxu0 0.0
    %8315 = vmatmul.mubr.f32.gmra.mrb[0].mxu0 %v8097
    %v8316 = vpop.f32.mrb[0].mxu0
    %v8317 = vadd.f32 0.0, %v8316
    %v8318 = vpop.f32.mrb[0].mxu0
    %8319 = vmatprep.mubr.f32.mxu0 0.0
    %8320 = vmatmul.mubr.f32.gmra.mrb[0].mxu0 %v8098
    %v8321 = vpop.f32.mrb[0].mxu0
    %v8322 = vadd.f32 0.0, %v8321
    %v8323 = vpop.f32.mrb[0].mxu0
    %8324 = vmatprep.mubr.f32.mxu0 0.0
    %8325 = vmatmul.mubr.f32.gmra.mrb[0].mxu0 %v8099
    %v8326 = vpop.f32.mrb[0].mxu0
    %v8327 = vadd.f32 0.0, %v8326
    %v8328 = vpop.f32.mrb[0].mxu0
    %8329 = vmatprep.mubr.f32.mxu0 0.0
    %8330 = vmatmul.mubr.f32.gmra.mrb[0].mxu0 %v8100
    %v8331 = vpop.f32.mrb[0].mxu0
    %v8332 = vadd.f32 0.0, %v8331
    %v8333 = vpop.f32.mrb[0].mxu0
    %8334 = vmatprep.mubr.f32.mxu0 0.0
    %8335 = vmatmul.mubr.f32.gmra.mrb[0].mxu0 %v8101
    %v8336 = vpop.f32.mrb[0].mxu0
    %v8337 = vadd.f32 0.0, %v8336
    %v8338 = vpop.f32.mrb[0].mxu0
    %8339 = vmatprep.mubr.f32.mxu0 0.0
    %8340 = vmatmul.mubr.f32.gmra.mrb[0].mxu0 %v8102
    %v8341 = vpop.f32.mrb[0].mxu0
    %v8342 = vadd.f32 0.0, %v8341
    %v8343 = vpop.f32.mrb[0].mxu0
    %8344 = vmatprep.mubr.f32.mxu0 0.0
    %8345 = vmatmul.mubr.f32.gmra.mrb[0].mxu0 %v8103
    %v8346 = vpop.f32.mrb[0].mxu0
    %v8347 = vadd.f32 0.0, %v8346
    %v8348 = vpop.f32.mrb[0].mxu0
    %8349 = vmatprep.mubr.f32.mxu0 0.0
    %8350 = vmatmul.mubr.f32.gmra.mrb[0].mxu0 %v8104
    %v8351 = vpop.f32.mrb[0].mxu0
    %v8352 = vadd.f32 0.0, %v8351
    %v8353 = vpop.f32.mrb[0].mxu0
    %8354 = vmatprep.mubr.f32.mxu0 0.0
    %8355 = vmatmul.mubr.f32.gmra.mrb[0].mxu0 %v8105
    %v8356 = vpop.f32.mrb[0].mxu0
    %v8357 = vadd.f32 0.0, %v8356
    %v8358 = vpop.f32.mrb[0].mxu0
    %8359 = vmatprep.mubr.f32.mxu0 0.0
    %8360 = vmatmul.mubr.f32.gmra.mrb[0].mxu0 %v8106
    %v8361 = vpop.f32.mrb[0].mxu0
    %v8362 = vadd.f32 0.0, %v8361
    %v8363 = vpop.f32.mrb[0].mxu0
    %8364 = vmatprep.mubr.f32.mxu0 0.0
    %8365 = vmatmul.mubr.f32.gmra.mrb[0].mxu0 %v8107
    %v8366 = vpop.f32.mrb[0].mxu0
    %v8367 = vadd.f32 0.0, %v8366
    %v8368 = vpop.f32.mrb[0].mxu0
    %8369 = vmatprep.mubr.f32.mxu0 0.0
    %8370 = vmatmul.mubr.f32.gmra.mrb[0].mxu0 %v8108
    %v8371 = vpop.f32.mrb[0].mxu0
    %v8372 = vadd.f32 0.0, %v8371
    %v8373 = vpop.f32.mrb[0].mxu0
    %8374 = vmatprep.mubr.f32.mxu0 0.0
    %8375 = vmatmul.mubr.f32.gmra.mrb[0].mxu0 %v8109
    %v8376 = vpop.f32.mrb[0].mxu0
    %v8377 = vadd.f32 0.0, %v8376
    %v8378 = vpop.f32.mrb[0].mxu0
    %8379 = vmatprep.mubr.f32.mxu0 0.0
    %8380 = vmatmul.mubr.f32.gmra.mrb[0].mxu0 %v8110
    %v8381 = vpop.f32.mrb[0].mxu0
    %v8382 = vadd.f32 0.0, %v8381
    %v8383 = vpop.f32.mrb[0].mxu0
    %8384 = vmatprep.mubr.f32.mxu0 0.0
    %8385 = vmatmul.mubr.f32.gmra.mrb[0].mxu0 %v8111
    %v8386 = vpop.f32.mrb[0].mxu0
    %v8387 = vadd.f32 0.0, %v8386
    %v8388 = vpop.f32.mrb[0].mxu0
    %8389 = vmatprep.mubr.f32.mxu0 0.0
    %8390 = vmatmul.mubr.f32.gmra.mrb[0].mxu0 %v8112
    %v8391 = vpop.f32.mrb[0].mxu0
    %v8392 = vadd.f32 0.0, %v8391
    %v8393 = vpop.f32.mrb[0].mxu0
    %8394 = vmatprep.mubr.f32.mxu0 0.0
    %8395 = vmatmul.mubr.f32.gmra.mrb[0].mxu0 %v8113
    %v8396 = vpop.f32.mrb[0].mxu0
    %v8397 = vadd.f32 0.0, %v8396
    %v8398 = vpop.f32.mrb[0].mxu0
    %8399 = vmatprep.mubr.f32.mxu0 0.0
    %8400 = vmatmul.mubr.f32.gmra.mrb[0].mxu0 %v8114
    %v8401 = vpop.f32.mrb[0].mxu0
    %v8402 = vadd.f32 0.0, %v8401
    %v8403 = vpop.f32.mrb[0].mxu0
    %8404 = vmatprep.mubr.f32.mxu0 0.0
    %8405 = vmatmul.mubr.f32.gmra.mrb[0].mxu0 %v8115
    %v8406 = vpop.f32.mrb[0].mxu0
    %v8407 = vadd.f32 0.0, %v8406
    %v8408 = vpop.f32.mrb[0].mxu0
    %8409 = vmatprep.mubr.f32.mxu0 0.0
    %8410 = vmatmul.mubr.f32.gmra.mrb[0].mxu0 %v8116
    %v8411 = vpop.f32.mrb[0].mxu0
    %v8412 = vadd.f32 0.0, %v8411
    %v8413 = vpop.f32.mrb[0].mxu0
    %8414 = vmatprep.mubr.f32.mxu0 0.0
    %8415 = vmatmul.mubr.f32.gmra.mrb[0].mxu0 %v8117
    %v8416 = vpop.f32.mrb[0].mxu0
    %v8417 = vadd.f32 0.0, %v8416
    %v8418 = vpop.f32.mrb[0].mxu0
    %8419 = vmatprep.mubr.f32.mxu0 0.0
    %8420 = vmatmul.mubr.f32.gmra.mrb[0].mxu0 %v8118
    %v8421 = vpop.f32.mrb[0].mxu0
    %v8422 = vadd.f32 0.0, %v8421
    %v8423 = vpop.f32.mrb[0].mxu0
    %8424 = vmatprep.mubr.f32.mxu0 0.0
    %8425 = vmatmul.mubr.f32.gmra.mrb[0].mxu0 %v8119
    %v8426 = vpop.f32.mrb[0].mxu0
    %v8427 = vadd.f32 0.0, %v8426
    %v8428 = vpop.f32.mrb[0].mxu0
    %8429 = vmatprep.mubr.f32.mxu0 0.0
    %8430 = vmatmul.mubr.f32.gmra.mrb[0].mxu0 %v8120
    %v8431 = vpop.f32.mrb[0].mxu0
    %v8432 = vadd.f32 0.0, %v8431
    %v8433 = vpop.f32.mrb[0].mxu0
    %8434 = vmatprep.mubr.f32.mxu0 0.0
    %8435 = vmatmul.mubr.f32.gmra.mrb[0].mxu0 %v8121
    %v8436 = vpop.f32.mrb[0].mxu0
    %v8437 = vadd.f32 0.0, %v8436
    %v8438 = vpop.f32.mrb[0].mxu0
    %8439 = vmatprep.mubr.f32.mxu0 0.0
    %8440 = vmatmul.mubr.f32.gmra.mrb[0].mxu0 %v8122
    %v8441 = vpop.f32.mrb[0].mxu0
    %v8442 = vadd.f32 0.0, %v8441
    %v8443 = vpop.f32.mrb[0].mxu0
    %8444 = vmatprep.mubr.f32.mxu0 0.0
    %8445 = vmatmul.mubr.f32.gmra.mrb[0].mxu0 %v8123
    %v8446 = vpop.f32.mrb[0].mxu0
    %v8447 = vadd.f32 0.0, %v8446
    %v8448 = vpop.f32.mrb[0].mxu0
    %8449 = vmatprep.mubr.f32.mxu0 0.0
    %8450 = vmatmul.mubr.f32.gmra.mrb[0].mxu0 %v8124
    %v8451 = vpop.f32.mrb[0].mxu0
    %v8452 = vadd.f32 0.0, %v8451
    %v8453 = vpop.f32.mrb[0].mxu0
    %8454 = vmatprep.mubr.f32.mxu0 0.0
    %8455 = vmatmul.mubr.f32.gmra.mrb[0].mxu0 %v8125
    %v8456 = vpop.f32.mrb[0].mxu0
    %v8457 = vadd.f32 0.0, %v8456
    %v8458 = vpop.f32.mrb[0].mxu0
    %8459 = vmatprep.mubr.f32.mxu0 0.0
    %8460 = vmatmul.mubr.f32.gmra.mrb[0].mxu0 %v8126
    %v8461 = vpop.f32.mrb[0].mxu0
    %v8462 = vadd.f32 0.0, %v8461
    %v8463 = vpop.f32.mrb[0].mxu0
    %8464 = vmatprep.mubr.f32.mxu0 0.0
    %8465 = vmatmul.mubr.f32.gmra.mrb[0].mxu0 %v8127
    %v8466 = vpop.f32.mrb[0].mxu0
    %v8467 = vadd.f32 0.0, %v8466
    %v8468 = vpop.f32.mrb[0].mxu0
    %8469 = vmatprep.mubr.f32.mxu0 0.0
    %8470 = vmatmul.mubr.f32.gmra.mrb[0].mxu0 %v8128
    %v8471 = vpop.f32.mrb[0].mxu0
    %v8472 = vadd.f32 0.0, %v8471
    %v8473 = vpop.f32.mrb[0].mxu0
    %8474 = vmatprep.mubr.f32.mxu0 0.0
    %8475 = vmatmul.mubr.f32.gmra.mrb[0].mxu0 %v8129
    %v8476 = vpop.f32.mrb[0].mxu0
    %v8477 = vadd.f32 0.0, %v8476
    %v8478 = vpop.f32.mrb[0].mxu0
    %8479 = vmatprep.mubr.f32.mxu0 0.0
    %8480 = vmatmul.mubr.f32.gmra.mrb[0].mxu0 %v8130
    %v8481 = vpop.f32.mrb[0].mxu0
    %v8482 = vadd.f32 0.0, %v8481
    %v8483 = vpop.f32.mrb[0].mxu0
    %8484 = vmatprep.mubr.f32.mxu0 0.0
    %8485 = vmatmul.mubr.f32.gmra.mrb[0].mxu0 %v8131
    %v8486 = vpop.f32.mrb[0].mxu0
    %v8487 = vadd.f32 0.0, %v8486
    %v8488 = vpop.f32.mrb[0].mxu0
    %8489 = vmatprep.mubr.f32.mxu0 0.0
    %8490 = vmatmul.mubr.f32.gmra.mrb[0].mxu0 %v8132
    %v8491 = vpop.f32.mrb[0].mxu0
    %v8492 = vadd.f32 0.0, %v8491
    %v8493 = vpop.f32.mrb[0].mxu0
    %8494 = vmatprep.mubr.f32.mxu0 0.0
    %8495 = vmatmul.mubr.f32.gmra.mrb[0].mxu0 %v8133
    %v8496 = vpop.f32.mrb[0].mxu0
    %v8497 = vadd.f32 0.0, %v8496
    %v8498 = vpop.f32.mrb[0].mxu0
    %8499 = vmatprep.mubr.f32.mxu0 0.0
    %8500 = vmatmul.mubr.f32.gmra.mrb[0].mxu0 %v8134
    %v8501 = vpop.f32.mrb[0].mxu0
    %v8502 = vadd.f32 0.0, %v8501
    %v8503 = vpop.f32.mrb[0].mxu0
    %8504 = vmatprep.mubr.f32.mxu0 0.0
    %8505 = vmatmul.mubr.f32.gmra.mrb[0].mxu0 %v8135
    %v8506 = vpop.f32.mrb[0].mxu0
    %v8507 = vadd.f32 0.0, %v8506
    %v8508 = vpop.f32.mrb[0].mxu0
    %8509 = vmatprep.mubr.f32.mxu0 0.0
    %8510 = vmatmul.mubr.f32.gmra.mrb[0].mxu0 %v8136
    %v8511 = vpop.f32.mrb[0].mxu0
    %v8512 = vadd.f32 0.0, %v8511
    %v8513 = vpop.f32.mrb[0].mxu0
    %8514 = vmatprep.mubr.f32.mxu0 0.0
    %8515 = vmatmul.mubr.f32.gmra.mrb[0].mxu0 %v8137
    %v8516 = vpop.f32.mrb[0].mxu0
    %v8517 = vadd.f32 0.0, %v8516
    %v8518 = vpop.f32.mrb[0].mxu0
    %8519 = vmatprep.mubr.f32.mxu0 0.0
    %8520 = vmatmul.mubr.f32.gmra.mrb[0].mxu0 %v8138
    %v8521 = vpop.f32.mrb[0].mxu0
    %v8522 = vadd.f32 0.0, %v8521
    %v8523 = vpop.f32.mrb[0].mxu0
    %8524 = vmatprep.mubr.f32.mxu0 0.0
    %8525 = vmatmul.mubr.f32.gmra.mrb[0].mxu0 %v8139
    %v8526 = vpop.f32.mrb[0].mxu0
    %v8527 = vadd.f32 0.0, %v8526
    %v8528 = vpop.f32.mrb[0].mxu0
    %8529 = vmatprep.mubr.f32.mxu0 0.0
    %8530 = vmatmul.mubr.f32.gmra.mrb[0].mxu0 %v8140
    %v8531 = vpop.f32.mrb[0].mxu0
    %v8532 = vadd.f32 0.0, %v8531
    %v8533 = vpop.f32.mrb[0].mxu0
    %8534 = vmatprep.mubr.f32.mxu0 0.0
    %8535 = vmatmul.mubr.f32.gmra.mrb[0].mxu0 %v8141
    %v8536 = vpop.f32.mrb[0].mxu0
    %v8537 = vadd.f32 0.0, %v8536
    %v8538 = vpop.f32.mrb[0].mxu0
    %8539 = vmatprep.mubr.f32.mxu0 0.0
    %8540 = vmatmul.mubr.f32.gmra.mrb[0].mxu0 %v8142
    %v8541 = vpop.f32.mrb[0].mxu0
    %v8542 = vadd.f32 0.0, %v8541
    %v8543 = vpop.f32.mrb[0].mxu0
    %8544 = vdwg.mxu0
    %v8545 = vadd.f32 %v8014, %v8227
    %v8546 = vadd.f32 %v8015, %v8232
    %v8547 = vadd.f32 %v8016, %v8237
    %v8548 = vadd.f32 %v8017, %v8242
    %v8549 = vadd.f32 %v8018, %v8247
    %v8550 = vadd.f32 %v8019, %v8252
    %v8551 = vadd.f32 %v8020, %v8257
    %v8552 = vadd.f32 %v8021, %v8262
    %v8553 = vadd.f32 %v8022, %v8267
    %v8554 = vadd.f32 %v8023, %v8272
    %v8555 = vadd.f32 %v8024, %v8277
    %v8556 = vadd.f32 %v8025, %v8282
    %v8557 = vadd.f32 %v8026, %v8287
    %v8558 = vadd.f32 %v8027, %v8292
    %v8559 = vadd.f32 %v8028, %v8297
    %v8560 = vadd.f32 %v8029, %v8302
    %v8561 = vadd.f32 %v8030, %v8307
    %v8562 = vadd.f32 %v8031, %v8312
    %v8563 = vadd.f32 %v8032, %v8317
    %v8564 = vadd.f32 %v8033, %v8322
    %v8565 = vadd.f32 %v8034, %v8327
    %v8566 = vadd.f32 %v8035, %v8332
    %v8567 = vadd.f32 %v8036, %v8337
    %v8568 = vadd.f32 %v8037, %v8342
    %v8569 = vadd.f32 %v8038, %v8347
    %v8570 = vadd.f32 %v8039, %v8352
    %v8571 = vadd.f32 %v8040, %v8357
    %v8572 = vadd.f32 %v8041, %v8362
    %v8573 = vadd.f32 %v8042, %v8367
    %v8574 = vadd.f32 %v8043, %v8372
    %v8575 = vadd.f32 %v8044, %v8377
    %v8576 = vadd.f32 %v8045, %v8382
    %v8577 = vadd.f32 %v8046, %v8387
    %v8578 = vadd.f32 %v8047, %v8392
    %v8579 = vadd.f32 %v8048, %v8397
    %v8580 = vadd.f32 %v8049, %v8402
    %v8581 = vadd.f32 %v8050, %v8407
    %v8582 = vadd.f32 %v8051, %v8412
    %v8583 = vadd.f32 %v8052, %v8417
    %v8584 = vadd.f32 %v8053, %v8422
    %v8585 = vadd.f32 %v8054, %v8427
    %v8586 = vadd.f32 %v8055, %v8432
    %v8587 = vadd.f32 %v8056, %v8437
    %v8588 = vadd.f32 %v8057, %v8442
    %v8589 = vadd.f32 %v8058, %v8447
    %v8590 = vadd.f32 %v8059, %v8452
    %v8591 = vadd.f32 %v8060, %v8457
    %v8592 = vadd.f32 %v8061, %v8462
    %v8593 = vadd.f32 %v8062, %v8467
    %v8594 = vadd.f32 %v8063, %v8472
    %v8595 = vadd.f32 %v8064, %v8477
    %v8596 = vadd.f32 %v8065, %v8482
    %v8597 = vadd.f32 %v8066, %v8487
    %v8598 = vadd.f32 %v8067, %v8492
    %v8599 = vadd.f32 %v8068, %v8497
    %v8600 = vadd.f32 %v8069, %v8502
    %v8601 = vadd.f32 %v8070, %v8507
    %v8602 = vadd.f32 %v8071, %v8512
    %v8603 = vadd.f32 %v8072, %v8517
    %v8604 = vadd.f32 %v8073, %v8522
    %v8605 = vadd.f32 %v8074, %v8527
    %v8606 = vadd.f32 %v8075, %v8532
    %v8607 = vadd.f32 %v8076, %v8537
    %v8608 = vadd.f32 %v8077, %v8542
    %v8609 = vld [vmem:[%s8078 + $0x1] sm:$0xff]
    %v8610 = vld [vmem:[%s8078 + $0x9] sm:$0xff]
    %v8611 = vld [vmem:[%s8078 + $0x19] sm:$0xff]
    %v8612 = vld [vmem:[%s8078 + $0x21] sm:$0xff]
    %v8613 = vld [vmem:[%s8078 + $0x31] sm:$0xff]
    %v8614 = vld [vmem:[%s8078 + $0x39] sm:$0xff]
    %v8615 = vld [vmem:[%s8078 + $0x49] sm:$0xff]
    %v8616 = vld [vmem:[%s8078 + $0x51] sm:$0xff]
    %v8617 = vld [vmem:[%s8078 + $0x61] sm:$0xff]
    %v8618 = vld [vmem:[%s8078 + $0x69] sm:$0xff]
    %v8619 = vld [vmem:[%s8078 + $0x79] sm:$0xff]
    %v8620 = vld [vmem:[%s8078 + $0x81] sm:$0xff]
    %v8621 = vld [vmem:[%s8078 + $0x91] sm:$0xff]
    %v8622 = vld [vmem:[%s8078 + $0x99] sm:$0xff]
    %v8623 = vld [vmem:[%s8078 + $0xa9] sm:$0xff]
    %v8624 = vld [vmem:[%s8078 + $0xb1] sm:$0xff]
    %v8625 = vld [vmem:[%s8078 + $0xc1] sm:$0xff]
    %v8626 = vld [vmem:[%s8078 + $0xc9] sm:$0xff]
    %v8627 = vld [vmem:[%s8078 + $0xd9] sm:$0xff]
    %v8628 = vld [vmem:[%s8078 + $0xe1] sm:$0xff]
    %v8629 = vld [vmem:[%s8078 + $0xf1] sm:$0xff]
    %v8630 = vld [vmem:[%s8078 + $0xf9] sm:$0xff]
    %v8631 = vld [vmem:[%s8078 + $0x109] sm:$0xff]
    %v8632 = vld [vmem:[%s8078 + $0x111] sm:$0xff]
    %v8633 = vld [vmem:[%s8078 + $0x121] sm:$0xff]
    %v8634 = vld [vmem:[%s8078 + $0x129] sm:$0xff]
    %v8635 = vld [vmem:[%s8078 + $0x139] sm:$0xff]
    %v8636 = vld [vmem:[%s8078 + $0x141] sm:$0xff]
    %v8637 = vld [vmem:[%s8078 + $0x151] sm:$0xff]
    %v8638 = vld [vmem:[%s8078 + $0x159] sm:$0xff]
    %v8639 = vld [vmem:[%s8078 + $0x169] sm:$0xff]
    %v8640 = vld [vmem:[%s8078 + $0x171] sm:$0xff]
    %v8641 = vld [vmem:[%s8078 + $0x1b1] sm:$0xff]
    %v8642 = vld [vmem:[%s8078 + $0x1b9] sm:$0xff]
    %v8643 = vld [vmem:[%s8078 + $0x1c9] sm:$0xff]
    %v8644 = vld [vmem:[%s8078 + $0x1d1] sm:$0xff]
    %v8645 = vld [vmem:[%s8078 + $0x1e1] sm:$0xff]
    %v8646 = vld [vmem:[%s8078 + $0x1e9] sm:$0xff]
    %v8647 = vld [vmem:[%s8078 + $0x1f9] sm:$0xff]
    %v8648 = vld [vmem:[%s8078 + $0x201] sm:$0xff]
    %v8649 = vld [vmem:[%s8078 + $0x211] sm:$0xff]
    %v8650 = vld [vmem:[%s8078 + $0x219] sm:$0xff]
    %v8651 = vld [vmem:[%s8078 + $0x229] sm:$0xff]
    %v8652 = vld [vmem:[%s8078 + $0x231] sm:$0xff]
    %v8653 = vld [vmem:[%s8078 + $0x241] sm:$0xff]
    %v8654 = vld [vmem:[%s8078 + $0x249] sm:$0xff]
    %v8655 = vld [vmem:[%s8078 + $0x259] sm:$0xff]
    %v8656 = vld [vmem:[%s8078 + $0x261] sm:$0xff]
    %v8657 = vld [vmem:[%s8078 + $0x271] sm:$0xff]
    %v8658 = vld [vmem:[%s8078 + $0x279] sm:$0xff]
    %v8659 = vld [vmem:[%s8078 + $0x289] sm:$0xff]
    %v8660 = vld [vmem:[%s8078 + $0x291] sm:$0xff]
    %v8661 = vld [vmem:[%s8078 + $0x2a1] sm:$0xff]
    %v8662 = vld [vmem:[%s8078 + $0x2a9] sm:$0xff]
    %v8663 = vld [vmem:[%s8078 + $0x2b9] sm:$0xff]
    %v8664 = vld [vmem:[%s8078 + $0x2c1] sm:$0xff]
    %v8665 = vld [vmem:[%s8078 + $0x2d1] sm:$0xff]
    %v8666 = vld [vmem:[%s8078 + $0x2d9] sm:$0xff]
    %v8667 = vld [vmem:[%s8078 + $0x2e9] sm:$0xff]
    %v8668 = vld [vmem:[%s8078 + $0x2f1] sm:$0xff]
    %v8669 = vld [vmem:[%s8078 + $0x301] sm:$0xff]
    %v8670 = vld [vmem:[%s8078 + $0x309] sm:$0xff]
    %v8671 = vld [vmem:[%s8078 + $0x319] sm:$0xff]
    %v8672 = vld [vmem:[%s8078 + $0x321] sm:$0xff]
    %s8673 = scalar_lea.vmem [#allocation3], 896
    %v8674 = vld [vmem:[%s8673] sm:$0xff]
    %v8675 = vld [vmem:[%s8673 + $0x8] sm:$0xff]
    %v8676 = vld [vmem:[%s8673 + $0x10] sm:$0xff]
    %v8677 = vld [vmem:[%s8673 + $0x18] sm:$0xff]
    %v8678 = vld [vmem:[%s8673 + $0x20] sm:$0xff]
    %v8679 = vld [vmem:[%s8673 + $0x28] sm:$0xff]
    %v8680 = vld [vmem:[%s8673 + $0x30] sm:$0xff]
    %v8681 = vld [vmem:[%s8673 + $0x38] sm:$0xff]
    %v8682 = vld [vmem:[%s8673 + $0x40] sm:$0xff]
    %v8683 = vld [vmem:[%s8673 + $0x48] sm:$0xff]
    %v8684 = vld [vmem:[%s8673 + $0x50] sm:$0xff]
    %v8685 = vld [vmem:[%s8673 + $0x58] sm:$0xff]
    %v8686 = vld [vmem:[%s8673 + $0x60] sm:$0xff]
    %v8687 = vld [vmem:[%s8673 + $0x68] sm:$0xff]
    %v8688 = vld [vmem:[%s8673 + $0x70] sm:$0xff]
    %v8689 = vld [vmem:[%s8673 + $0x78] sm:$0xff]
    %8690 = vmatprep.subr.mxu0 0.0
    %8691 = vmatpush1.msra.mxu0 %v8674
    %8692 = vmatprep.subr.mxu0 0.0
    %8693 = vmatpush1.msra.mxu0 %v8675
    %8694 = vmatprep.subr.mxu0 0.0
    %8695 = vmatpush1.msra.mxu0 %v8676
    %8696 = vmatprep.subr.mxu0 0.0
    %8697 = vmatpush1.msra.mxu0 %v8677
    %8698 = vmatprep.subr.mxu0 0.0
    %8699 = vmatpush1.msra.mxu0 %v8678
    %8700 = vmatprep.subr.mxu0 0.0
    %8701 = vmatpush1.msra.mxu0 %v8679
    %8702 = vmatprep.subr.mxu0 0.0
    %8703 = vmatpush1.msra.mxu0 %v8680
    %8704 = vmatprep.subr.mxu0 0.0
    %8705 = vmatpush1.msra.mxu0 %v8681
    %8706 = vmatprep.subr.mxu0 0.0
    %8707 = vmatpush1.msra.mxu0 %v8682
    %8708 = vmatprep.subr.mxu0 0.0
    %8709 = vmatpush1.msra.mxu0 %v8683
    %8710 = vmatprep.subr.mxu0 0.0
    %8711 = vmatpush1.msra.mxu0 %v8684
    %8712 = vmatprep.subr.mxu0 0.0
    %8713 = vmatpush1.msra.mxu0 %v8685
    %8714 = vmatprep.subr.mxu0 0.0
    %8715 = vmatpush1.msra.mxu0 %v8686
    %8716 = vmatprep.subr.mxu0 0.0
    %8717 = vmatpush1.msra.mxu0 %v8687
    %8718 = vmatprep.subr.mxu0 0.0
    %8719 = vmatpush1.msra.mxu0 %v8688
    %8720 = vmatprep.subr.mxu0 0.0
    %8721 = vmatpush1.msra.mxu0 %v8689
    %8722 = vmatprep.subr.mxu0 0.0
    %8723 = vmatpush1.msra.mxu0 0.0
    %8724 = vmatprep.subr.mxu0 0.0
    %8725 = vmatpush1.msra.mxu0 0.0
    %8726 = vmatprep.subr.mxu0 0.0
    %8727 = vmatpush1.msra.mxu0 0.0
    %8728 = vmatprep.subr.mxu0 0.0
    %8729 = vmatpush1.msra.mxu0 0.0
    %8730 = vmatprep.subr.mxu0 0.0
    %8731 = vmatpush1.msra.mxu0 0.0
    %8732 = vmatprep.subr.mxu0 0.0
    %8733 = vmatpush1.msra.mxu0 0.0
    %8734 = vmatprep.subr.mxu0 0.0
    %8735 = vmatpush1.msra.mxu0 0.0
    %8736 = vmatprep.subr.mxu0 0.0
    %8737 = vmatpush1.msra.mxu0 0.0
    %8738 = vmatprep.subr.mxu0 0.0
    %8739 = vmatpush1.msra.mxu0 0.0
    %8740 = vmatprep.subr.mxu0 0.0
    %8741 = vmatpush1.msra.mxu0 0.0
    %8742 = vmatprep.subr.mxu0 0.0
    %8743 = vmatpush1.msra.mxu0 0.0
    %8744 = vmatprep.subr.mxu0 0.0
    %8745 = vmatpush1.msra.mxu0 0.0
    %8746 = vmatprep.subr.mxu0 0.0
    %8747 = vmatpush1.msra.mxu0 0.0
    %8748 = vmatprep.subr.mxu0 0.0
    %8749 = vmatpush1.msra.mxu0 0.0
    %8750 = vmatprep.subr.mxu0 0.0
    %8751 = vmatpush1.msra.mxu0 0.0
    %8752 = vmatprep.subr.mxu0 0.0
    %8753 = vmatpush1.msra.mxu0 0.0
    %8754 = vmatprep.mubr.f32.mxu0 0.0
    %8755 = vmatmul.mubr.f32.gmra.mrb[0].mxu0 %v8609
    %v8756 = vpop.f32.mrb[0].mxu0
    %v8757 = vadd.f32 0.0, %v8756
    %v8758 = vpop.f32.mrb[0].mxu0
    %8759 = vmatprep.mubr.f32.mxu0 0.0
    %8760 = vmatmul.mubr.f32.gmra.mrb[0].mxu0 %v8610
    %v8761 = vpop.f32.mrb[0].mxu0
    %v8762 = vadd.f32 0.0, %v8761
    %v8763 = vpop.f32.mrb[0].mxu0
    %8764 = vmatprep.mubr.f32.mxu0 0.0
    %8765 = vmatmul.mubr.f32.gmra.mrb[0].mxu0 %v8611
    %v8766 = vpop.f32.mrb[0].mxu0
    %v8767 = vadd.f32 0.0, %v8766
    %v8768 = vpop.f32.mrb[0].mxu0
    %8769 = vmatprep.mubr.f32.mxu0 0.0
    %8770 = vmatmul.mubr.f32.gmra.mrb[0].mxu0 %v8612
    %v8771 = vpop.f32.mrb[0].mxu0
    %v8772 = vadd.f32 0.0, %v8771
    %v8773 = vpop.f32.mrb[0].mxu0
    %8774 = vmatprep.mubr.f32.mxu0 0.0
    %8775 = vmatmul.mubr.f32.gmra.mrb[0].mxu0 %v8613
    %v8776 = vpop.f32.mrb[0].mxu0
    %v8777 = vadd.f32 0.0, %v8776
    %v8778 = vpop.f32.mrb[0].mxu0
    %8779 = vmatprep.mubr.f32.mxu0 0.0
    %8780 = vmatmul.mubr.f32.gmra.mrb[0].mxu0 %v8614
    %v8781 = vpop.f32.mrb[0].mxu0
    %v8782 = vadd.f32 0.0, %v8781
    %v8783 = vpop.f32.mrb[0].mxu0
    %8784 = vmatprep.mubr.f32.mxu0 0.0
    %8785 = vmatmul.mubr.f32.gmra.mrb[0].mxu0 %v8615
    %v8786 = vpop.f32.mrb[0].mxu0
    %v8787 = vadd.f32 0.0, %v8786
    %v8788 = vpop.f32.mrb[0].mxu0
    %8789 = vmatprep.mubr.f32.mxu0 0.0
    %8790 = vmatmul.mubr.f32.gmra.mrb[0].mxu0 %v8616
    %v8791 = vpop.f32.mrb[0].mxu0
    %v8792 = vadd.f32 0.0, %v8791
    %v8793 = vpop.f32.mrb[0].mxu0
    %8794 = vmatprep.mubr.f32.mxu0 0.0
    %8795 = vmatmul.mubr.f32.gmra.mrb[0].mxu0 %v8617
    %v8796 = vpop.f32.mrb[0].mxu0
    %v8797 = vadd.f32 0.0, %v8796
    %v8798 = vpop.f32.mrb[0].mxu0
    %8799 = vmatprep.mubr.f32.mxu0 0.0
    %8800 = vmatmul.mubr.f32.gmra.mrb[0].mxu0 %v8618
    %v8801 = vpop.f32.mrb[0].mxu0
    %v8802 = vadd.f32 0.0, %v8801
    %v8803 = vpop.f32.mrb[0].mxu0
    %8804 = vmatprep.mubr.f32.mxu0 0.0
    %8805 = vmatmul.mubr.f32.gmra.mrb[0].mxu0 %v8619
    %v8806 = vpop.f32.mrb[0].mxu0
    %v8807 = vadd.f32 0.0, %v8806
    %v8808 = vpop.f32.mrb[0].mxu0
    %8809 = vmatprep.mubr.f32.mxu0 0.0
    %8810 = vmatmul.mubr.f32.gmra.mrb[0].mxu0 %v8620
    %v8811 = vpop.f32.mrb[0].mxu0
    %v8812 = vadd.f32 0.0, %v8811
    %v8813 = vpop.f32.mrb[0].mxu0
    %8814 = vmatprep.mubr.f32.mxu0 0.0
    %8815 = vmatmul.mubr.f32.gmra.mrb[0].mxu0 %v8621
    %v8816 = vpop.f32.mrb[0].mxu0
    %v8817 = vadd.f32 0.0, %v8816
    %v8818 = vpop.f32.mrb[0].mxu0
    %8819 = vmatprep.mubr.f32.mxu0 0.0
    %8820 = vmatmul.mubr.f32.gmra.mrb[0].mxu0 %v8622
    %v8821 = vpop.f32.mrb[0].mxu0
    %v8822 = vadd.f32 0.0, %v8821
    %v8823 = vpop.f32.mrb[0].mxu0
    %8824 = vmatprep.mubr.f32.mxu0 0.0
    %8825 = vmatmul.mubr.f32.gmra.mrb[0].mxu0 %v8623
    %v8826 = vpop.f32.mrb[0].mxu0
    %v8827 = vadd.f32 0.0, %v8826
    %v8828 = vpop.f32.mrb[0].mxu0
    %8829 = vmatprep.mubr.f32.mxu0 0.0
    %8830 = vmatmul.mubr.f32.gmra.mrb[0].mxu0 %v8624
    %v8831 = vpop.f32.mrb[0].mxu0
    %v8832 = vadd.f32 0.0, %v8831
    %v8833 = vpop.f32.mrb[0].mxu0
    %8834 = vmatprep.mubr.f32.mxu0 0.0
    %8835 = vmatmul.mubr.f32.gmra.mrb[0].mxu0 %v8625
    %v8836 = vpop.f32.mrb[0].mxu0
    %v8837 = vadd.f32 0.0, %v8836
    %v8838 = vpop.f32.mrb[0].mxu0
    %8839 = vmatprep.mubr.f32.mxu0 0.0
    %8840 = vmatmul.mubr.f32.gmra.mrb[0].mxu0 %v8626
    %v8841 = vpop.f32.mrb[0].mxu0
    %v8842 = vadd.f32 0.0, %v8841
    %v8843 = vpop.f32.mrb[0].mxu0
    %8844 = vmatprep.mubr.f32.mxu0 0.0
    %8845 = vmatmul.mubr.f32.gmra.mrb[0].mxu0 %v8627
    %v8846 = vpop.f32.mrb[0].mxu0
    %v8847 = vadd.f32 0.0, %v8846
    %v8848 = vpop.f32.mrb[0].mxu0
    %8849 = vmatprep.mubr.f32.mxu0 0.0
    %8850 = vmatmul.mubr.f32.gmra.mrb[0].mxu0 %v8628
    %v8851 = vpop.f32.mrb[0].mxu0
    %v8852 = vadd.f32 0.0, %v8851
    %v8853 = vpop.f32.mrb[0].mxu0
    %8854 = vmatprep.mubr.f32.mxu0 0.0
    %8855 = vmatmul.mubr.f32.gmra.mrb[0].mxu0 %v8629
    %v8856 = vpop.f32.mrb[0].mxu0
    %v8857 = vadd.f32 0.0, %v8856
    %v8858 = vpop.f32.mrb[0].mxu0
    %8859 = vmatprep.mubr.f32.mxu0 0.0
    %8860 = vmatmul.mubr.f32.gmra.mrb[0].mxu0 %v8630
    %v8861 = vpop.f32.mrb[0].mxu0
    %v8862 = vadd.f32 0.0, %v8861
    %v8863 = vpop.f32.mrb[0].mxu0
    %8864 = vmatprep.mubr.f32.mxu0 0.0
    %8865 = vmatmul.mubr.f32.gmra.mrb[0].mxu0 %v8631
    %v8866 = vpop.f32.mrb[0].mxu0
    %v8867 = vadd.f32 0.0, %v8866
    %v8868 = vpop.f32.mrb[0].mxu0
    %8869 = vmatprep.mubr.f32.mxu0 0.0
    %8870 = vmatmul.mubr.f32.gmra.mrb[0].mxu0 %v8632
    %v8871 = vpop.f32.mrb[0].mxu0
    %v8872 = vadd.f32 0.0, %v8871
    %v8873 = vpop.f32.mrb[0].mxu0
    %8874 = vmatprep.mubr.f32.mxu0 0.0
    %8875 = vmatmul.mubr.f32.gmra.mrb[0].mxu0 %v8633
    %v8876 = vpop.f32.mrb[0].mxu0
    %v8877 = vadd.f32 0.0, %v8876
    %v8878 = vpop.f32.mrb[0].mxu0
    %8879 = vmatprep.mubr.f32.mxu0 0.0
    %8880 = vmatmul.mubr.f32.gmra.mrb[0].mxu0 %v8634
    %v8881 = vpop.f32.mrb[0].mxu0
    %v8882 = vadd.f32 0.0, %v8881
    %v8883 = vpop.f32.mrb[0].mxu0
    %8884 = vmatprep.mubr.f32.mxu0 0.0
    %8885 = vmatmul.mubr.f32.gmra.mrb[0].mxu0 %v8635
    %v8886 = vpop.f32.mrb[0].mxu0
    %v8887 = vadd.f32 0.0, %v8886
    %v8888 = vpop.f32.mrb[0].mxu0
    %8889 = vmatprep.mubr.f32.mxu0 0.0
    %8890 = vmatmul.mubr.f32.gmra.mrb[0].mxu0 %v8636
    %v8891 = vpop.f32.mrb[0].mxu0
    %v8892 = vadd.f32 0.0, %v8891
    %v8893 = vpop.f32.mrb[0].mxu0
    %8894 = vmatprep.mubr.f32.mxu0 0.0
    %8895 = vmatmul.mubr.f32.gmra.mrb[0].mxu0 %v8637
    %v8896 = vpop.f32.mrb[0].mxu0
    %v8897 = vadd.f32 0.0, %v8896
    %v8898 = vpop.f32.mrb[0].mxu0
    %8899 = vmatprep.mubr.f32.mxu0 0.0
    %8900 = vmatmul.mubr.f32.gmra.mrb[0].mxu0 %v8638
    %v8901 = vpop.f32.mrb[0].mxu0
    %v8902 = vadd.f32 0.0, %v8901
    %v8903 = vpop.f32.mrb[0].mxu0
    %8904 = vmatprep.mubr.f32.mxu0 0.0
    %8905 = vmatmul.mubr.f32.gmra.mrb[0].mxu0 %v8639
    %v8906 = vpop.f32.mrb[0].mxu0
    %v8907 = vadd.f32 0.0, %v8906
    %v8908 = vpop.f32.mrb[0].mxu0
    %8909 = vmatprep.mubr.f32.mxu0 0.0
    %8910 = vmatmul.mubr.f32.gmra.mrb[0].mxu0 %v8640
    %v8911 = vpop.f32.mrb[0].mxu0
    %v8912 = vadd.f32 0.0, %v8911
    %v8913 = vpop.f32.mrb[0].mxu0
    %8914 = vmatprep.mubr.f32.mxu0 0.0
    %8915 = vmatmul.mubr.f32.gmra.mrb[0].mxu0 %v8641
    %v8916 = vpop.f32.mrb[0].mxu0
    %v8917 = vadd.f32 0.0, %v8916
    %v8918 = vpop.f32.mrb[0].mxu0
    %8919 = vmatprep.mubr.f32.mxu0 0.0
    %8920 = vmatmul.mubr.f32.gmra.mrb[0].mxu0 %v8642
    %v8921 = vpop.f32.mrb[0].mxu0
    %v8922 = vadd.f32 0.0, %v8921
    %v8923 = vpop.f32.mrb[0].mxu0
    %8924 = vmatprep.mubr.f32.mxu0 0.0
    %8925 = vmatmul.mubr.f32.gmra.mrb[0].mxu0 %v8643
    %v8926 = vpop.f32.mrb[0].mxu0
    %v8927 = vadd.f32 0.0, %v8926
    %v8928 = vpop.f32.mrb[0].mxu0
    %8929 = vmatprep.mubr.f32.mxu0 0.0
    %8930 = vmatmul.mubr.f32.gmra.mrb[0].mxu0 %v8644
    %v8931 = vpop.f32.mrb[0].mxu0
    %v8932 = vadd.f32 0.0, %v8931
    %v8933 = vpop.f32.mrb[0].mxu0
    %8934 = vmatprep.mubr.f32.mxu0 0.0
    %8935 = vmatmul.mubr.f32.gmra.mrb[0].mxu0 %v8645
    %v8936 = vpop.f32.mrb[0].mxu0
    %v8937 = vadd.f32 0.0, %v8936
    %v8938 = vpop.f32.mrb[0].mxu0
    %8939 = vmatprep.mubr.f32.mxu0 0.0
    %8940 = vmatmul.mubr.f32.gmra.mrb[0].mxu0 %v8646
    %v8941 = vpop.f32.mrb[0].mxu0
    %v8942 = vadd.f32 0.0, %v8941
    %v8943 = vpop.f32.mrb[0].mxu0
    %8944 = vmatprep.mubr.f32.mxu0 0.0
    %8945 = vmatmul.mubr.f32.gmra.mrb[0].mxu0 %v8647
    %v8946 = vpop.f32.mrb[0].mxu0
    %v8947 = vadd.f32 0.0, %v8946
    %v8948 = vpop.f32.mrb[0].mxu0
    %8949 = vmatprep.mubr.f32.mxu0 0.0
    %8950 = vmatmul.mubr.f32.gmra.mrb[0].mxu0 %v8648
    %v8951 = vpop.f32.mrb[0].mxu0
    %v8952 = vadd.f32 0.0, %v8951
    %v8953 = vpop.f32.mrb[0].mxu0
    %8954 = vmatprep.mubr.f32.mxu0 0.0
    %8955 = vmatmul.mubr.f32.gmra.mrb[0].mxu0 %v8649
    %v8956 = vpop.f32.mrb[0].mxu0
    %v8957 = vadd.f32 0.0, %v8956
    %v8958 = vpop.f32.mrb[0].mxu0
    %8959 = vmatprep.mubr.f32.mxu0 0.0
    %8960 = vmatmul.mubr.f32.gmra.mrb[0].mxu0 %v8650
    %v8961 = vpop.f32.mrb[0].mxu0
    %v8962 = vadd.f32 0.0, %v8961
    %v8963 = vpop.f32.mrb[0].mxu0
    %8964 = vmatprep.mubr.f32.mxu0 0.0
    %8965 = vmatmul.mubr.f32.gmra.mrb[0].mxu0 %v8651
    %v8966 = vpop.f32.mrb[0].mxu0
    %v8967 = vadd.f32 0.0, %v8966
    %v8968 = vpop.f32.mrb[0].mxu0
    %8969 = vmatprep.mubr.f32.mxu0 0.0
    %8970 = vmatmul.mubr.f32.gmra.mrb[0].mxu0 %v8652
    %v8971 = vpop.f32.mrb[0].mxu0
    %v8972 = vadd.f32 0.0, %v8971
    %v8973 = vpop.f32.mrb[0].mxu0
    %8974 = vmatprep.mubr.f32.mxu0 0.0
    %8975 = vmatmul.mubr.f32.gmra.mrb[0].mxu0 %v8653
    %v8976 = vpop.f32.mrb[0].mxu0
    %v8977 = vadd.f32 0.0, %v8976
    %v8978 = vpop.f32.mrb[0].mxu0
    %8979 = vmatprep.mubr.f32.mxu0 0.0
    %8980 = vmatmul.mubr.f32.gmra.mrb[0].mxu0 %v8654
    %v8981 = vpop.f32.mrb[0].mxu0
    %v8982 = vadd.f32 0.0, %v8981
    %v8983 = vpop.f32.mrb[0].mxu0
    %8984 = vmatprep.mubr.f32.mxu0 0.0
    %8985 = vmatmul.mubr.f32.gmra.mrb[0].mxu0 %v8655
    %v8986 = vpop.f32.mrb[0].mxu0
    %v8987 = vadd.f32 0.0, %v8986
    %v8988 = vpop.f32.mrb[0].mxu0
    %8989 = vmatprep.mubr.f32.mxu0 0.0
    %8990 = vmatmul.mubr.f32.gmra.mrb[0].mxu0 %v8656
    %v8991 = vpop.f32.mrb[0].mxu0
    %v8992 = vadd.f32 0.0, %v8991
    %v8993 = vpop.f32.mrb[0].mxu0
    %8994 = vmatprep.mubr.f32.mxu0 0.0
    %8995 = vmatmul.mubr.f32.gmra.mrb[0].mxu0 %v8657
    %v8996 = vpop.f32.mrb[0].mxu0
    %v8997 = vadd.f32 0.0, %v8996
    %v8998 = vpop.f32.mrb[0].mxu0
    %8999 = vmatprep.mubr.f32.mxu0 0.0
    %9000 = vmatmul.mubr.f32.gmra.mrb[0].mxu0 %v8658
    %v9001 = vpop.f32.mrb[0].mxu0
    %v9002 = vadd.f32 0.0, %v9001
    %v9003 = vpop.f32.mrb[0].mxu0
    %9004 = vmatprep.mubr.f32.mxu0 0.0
    %9005 = vmatmul.mubr.f32.gmra.mrb[0].mxu0 %v8659
    %v9006 = vpop.f32.mrb[0].mxu0
    %v9007 = vadd.f32 0.0, %v9006
    %v9008 = vpop.f32.mrb[0].mxu0
    %9009 = vmatprep.mubr.f32.mxu0 0.0
    %9010 = vmatmul.mubr.f32.gmra.mrb[0].mxu0 %v8660
    %v9011 = vpop.f32.mrb[0].mxu0
    %v9012 = vadd.f32 0.0, %v9011
    %v9013 = vpop.f32.mrb[0].mxu0
    %9014 = vmatprep.mubr.f32.mxu0 0.0
    %9015 = vmatmul.mubr.f32.gmra.mrb[0].mxu0 %v8661
    %v9016 = vpop.f32.mrb[0].mxu0
    %v9017 = vadd.f32 0.0, %v9016
    %v9018 = vpop.f32.mrb[0].mxu0
    %9019 = vmatprep.mubr.f32.mxu0 0.0
    %9020 = vmatmul.mubr.f32.gmra.mrb[0].mxu0 %v8662
    %v9021 = vpop.f32.mrb[0].mxu0
    %v9022 = vadd.f32 0.0, %v9021
    %v9023 = vpop.f32.mrb[0].mxu0
    %9024 = vmatprep.mubr.f32.mxu0 0.0
    %9025 = vmatmul.mubr.f32.gmra.mrb[0].mxu0 %v8663
    %v9026 = vpop.f32.mrb[0].mxu0
    %v9027 = vadd.f32 0.0, %v9026
    %v9028 = vpop.f32.mrb[0].mxu0
    %9029 = vmatprep.mubr.f32.mxu0 0.0
    %9030 = vmatmul.mubr.f32.gmra.mrb[0].mxu0 %v8664
    %v9031 = vpop.f32.mrb[0].mxu0
    %v9032 = vadd.f32 0.0, %v9031
    %v9033 = vpop.f32.mrb[0].mxu0
    %9034 = vmatprep.mubr.f32.mxu0 0.0
    %9035 = vmatmul.mubr.f32.gmra.mrb[0].mxu0 %v8665
    %v9036 = vpop.f32.mrb[0].mxu0
    %v9037 = vadd.f32 0.0, %v9036
    %v9038 = vpop.f32.mrb[0].mxu0
    %9039 = vmatprep.mubr.f32.mxu0 0.0
    %9040 = vmatmul.mubr.f32.gmra.mrb[0].mxu0 %v8666
    %v9041 = vpop.f32.mrb[0].mxu0
    %v9042 = vadd.f32 0.0, %v9041
    %v9043 = vpop.f32.mrb[0].mxu0
    %9044 = vmatprep.mubr.f32.mxu0 0.0
    %9045 = vmatmul.mubr.f32.gmra.mrb[0].mxu0 %v8667
    %v9046 = vpop.f32.mrb[0].mxu0
    %v9047 = vadd.f32 0.0, %v9046
    %v9048 = vpop.f32.mrb[0].mxu0
    %9049 = vmatprep.mubr.f32.mxu0 0.0
    %9050 = vmatmul.mubr.f32.gmra.mrb[0].mxu0 %v8668
    %v9051 = vpop.f32.mrb[0].mxu0
    %v9052 = vadd.f32 0.0, %v9051
    %v9053 = vpop.f32.mrb[0].mxu0
    %9054 = vmatprep.mubr.f32.mxu0 0.0
    %9055 = vmatmul.mubr.f32.gmra.mrb[0].mxu0 %v8669
    %v9056 = vpop.f32.mrb[0].mxu0
    %v9057 = vadd.f32 0.0, %v9056
    %v9058 = vpop.f32.mrb[0].mxu0
    %9059 = vmatprep.mubr.f32.mxu0 0.0
    %9060 = vmatmul.mubr.f32.gmra.mrb[0].mxu0 %v8670
    %v9061 = vpop.f32.mrb[0].mxu0
    %v9062 = vadd.f32 0.0, %v9061
    %v9063 = vpop.f32.mrb[0].mxu0
    %9064 = vmatprep.mubr.f32.mxu0 0.0
    %9065 = vmatmul.mubr.f32.gmra.mrb[0].mxu0 %v8671
    %v9066 = vpop.f32.mrb[0].mxu0
    %v9067 = vadd.f32 0.0, %v9066
    %v9068 = vpop.f32.mrb[0].mxu0
    %9069 = vmatprep.mubr.f32.mxu0 0.0
    %9070 = vmatmul.mubr.f32.gmra.mrb[0].mxu0 %v8672
    %v9071 = vpop.f32.mrb[0].mxu0
    %v9072 = vadd.f32 0.0, %v9071
    %v9073 = vpop.f32.mrb[0].mxu0
    %9074 = vdwg.mxu0
    %v9075 = vadd.f32 %v8545, %v8757
    %v9076 = vadd.f32 %v8546, %v8762
    %v9077 = vadd.f32 %v8547, %v8767
    %v9078 = vadd.f32 %v8548, %v8772
    %v9079 = vadd.f32 %v8549, %v8777
    %v9080 = vadd.f32 %v8550, %v8782
    %v9081 = vadd.f32 %v8551, %v8787
    %v9082 = vadd.f32 %v8552, %v8792
    %v9083 = vadd.f32 %v8553, %v8797
    %v9084 = vadd.f32 %v8554, %v8802
    %v9085 = vadd.f32 %v8555, %v8807
    %v9086 = vadd.f32 %v8556, %v8812
    %v9087 = vadd.f32 %v8557, %v8817
    %v9088 = vadd.f32 %v8558, %v8822
    %v9089 = vadd.f32 %v8559, %v8827
    %v9090 = vadd.f32 %v8560, %v8832
    %v9091 = vadd.f32 %v8561, %v8837
    %v9092 = vadd.f32 %v8562, %v8842
    %v9093 = vadd.f32 %v8563, %v8847
    %v9094 = vadd.f32 %v8564, %v8852
    %v9095 = vadd.f32 %v8565, %v8857
    %v9096 = vadd.f32 %v8566, %v8862
    %v9097 = vadd.f32 %v8567, %v8867
    %v9098 = vadd.f32 %v8568, %v8872
    %v9099 = vadd.f32 %v8569, %v8877
    %v9100 = vadd.f32 %v8570, %v8882
    %v9101 = vadd.f32 %v8571, %v8887
    %v9102 = vadd.f32 %v8572, %v8892
    %v9103 = vadd.f32 %v8573, %v8897
    %v9104 = vadd.f32 %v8574, %v8902
    %v9105 = vadd.f32 %v8575, %v8907
    %v9106 = vadd.f32 %v8576, %v8912
    %v9107 = vadd.f32 %v8577, %v8917
    %v9108 = vadd.f32 %v8578, %v8922
    %v9109 = vadd.f32 %v8579, %v8927
    %v9110 = vadd.f32 %v8580, %v8932
    %v9111 = vadd.f32 %v8581, %v8937
    %v9112 = vadd.f32 %v8582, %v8942
    %v9113 = vadd.f32 %v8583, %v8947
    %v9114 = vadd.f32 %v8584, %v8952
    %v9115 = vadd.f32 %v8585, %v8957
    %v9116 = vadd.f32 %v8586, %v8962
    %v9117 = vadd.f32 %v8587, %v8967
    %v9118 = vadd.f32 %v8588, %v8972
    %v9119 = vadd.f32 %v8589, %v8977
    %v9120 = vadd.f32 %v8590, %v8982
    %v9121 = vadd.f32 %v8591, %v8987
    %v9122 = vadd.f32 %v8592, %v8992
    %v9123 = vadd.f32 %v8593, %v8997
    %v9124 = vadd.f32 %v8594, %v9002
    %v9125 = vadd.f32 %v8595, %v9007
    %v9126 = vadd.f32 %v8596, %v9012
    %v9127 = vadd.f32 %v8597, %v9017
    %v9128 = vadd.f32 %v8598, %v9022
    %v9129 = vadd.f32 %v8599, %v9027
    %v9130 = vadd.f32 %v8600, %v9032
    %v9131 = vadd.f32 %v8601, %v9037
    %v9132 = vadd.f32 %v8602, %v9042
    %v9133 = vadd.f32 %v8603, %v9047
    %v9134 = vadd.f32 %v8604, %v9052
    %v9135 = vadd.f32 %v8605, %v9057
    %v9136 = vadd.f32 %v8606, %v9062
    %v9137 = vadd.f32 %v8607, %v9067
    %v9138 = vadd.f32 %v8608, %v9072
    %v9139 = vld [vmem:[%s8078 + $0x2] sm:$0xff]
    %v9140 = vld [vmem:[%s8078 + $0xa] sm:$0xff]
    %v9141 = vld [vmem:[%s8078 + $0x1a] sm:$0xff]
    %v9142 = vld [vmem:[%s8078 + $0x22] sm:$0xff]
    %v9143 = vld [vmem:[%s8078 + $0x32] sm:$0xff]
    %v9144 = vld [vmem:[%s8078 + $0x3a] sm:$0xff]
    %v9145 = vld [vmem:[%s8078 + $0x4a] sm:$0xff]
    %v9146 = vld [vmem:[%s8078 + $0x52] sm:$0xff]
    %v9147 = vld [vmem:[%s8078 + $0x62] sm:$0xff]
    %v9148 = vld [vmem:[%s8078 + $0x6a] sm:$0xff]
    %v9149 = vld [vmem:[%s8078 + $0x7a] sm:$0xff]
    %v9150 = vld [vmem:[%s8078 + $0x82] sm:$0xff]
    %v9151 = vld [vmem:[%s8078 + $0x92] sm:$0xff]
    %v9152 = vld [vmem:[%s8078 + $0x9a] sm:$0xff]
    %v9153 = vld [vmem:[%s8078 + $0xaa] sm:$0xff]
    %v9154 = vld [vmem:[%s8078 + $0xb2] sm:$0xff]
    %v9155 = vld [vmem:[%s8078 + $0xc2] sm:$0xff]
    %v9156 = vld [vmem:[%s8078 + $0xca] sm:$0xff]
    %v9157 = vld [vmem:[%s8078 + $0xda] sm:$0xff]
    %v9158 = vld [vmem:[%s8078 + $0xe2] sm:$0xff]
    %v9159 = vld [vmem:[%s8078 + $0xf2] sm:$0xff]
    %v9160 = vld [vmem:[%s8078 + $0xfa] sm:$0xff]
    %v9161 = vld [vmem:[%s8078 + $0x10a] sm:$0xff]
    %v9162 = vld [vmem:[%s8078 + $0x112] sm:$0xff]
    %v9163 = vld [vmem:[%s8078 + $0x122] sm:$0xff]
    %v9164 = vld [vmem:[%s8078 + $0x12a] sm:$0xff]
    %v9165 = vld [vmem:[%s8078 + $0x13a] sm:$0xff]
    %v9166 = vld [vmem:[%s8078 + $0x142] sm:$0xff]
    %v9167 = vld [vmem:[%s8078 + $0x152] sm:$0xff]
    %v9168 = vld [vmem:[%s8078 + $0x15a] sm:$0xff]
    %v9169 = vld [vmem:[%s8078 + $0x16a] sm:$0xff]
    %v9170 = vld [vmem:[%s8078 + $0x172] sm:$0xff]
    %v9171 = vld [vmem:[%s8078 + $0x1b2] sm:$0xff]
    %v9172 = vld [vmem:[%s8078 + $0x1ba] sm:$0xff]
    %v9173 = vld [vmem:[%s8078 + $0x1ca] sm:$0xff]
    %v9174 = vld [vmem:[%s8078 + $0x1d2] sm:$0xff]
    %v9175 = vld [vmem:[%s8078 + $0x1e2] sm:$0xff]
    %v9176 = vld [vmem:[%s8078 + $0x1ea] sm:$0xff]
    %v9177 = vld [vmem:[%s8078 + $0x1fa] sm:$0xff]
    %v9178 = vld [vmem:[%s8078 + $0x202] sm:$0xff]
    %v9179 = vld [vmem:[%s8078 + $0x212] sm:$0xff]
    %v9180 = vld [vmem:[%s8078 + $0x21a] sm:$0xff]
    %v9181 = vld [vmem:[%s8078 + $0x22a] sm:$0xff]
    %v9182 = vld [vmem:[%s8078 + $0x232] sm:$0xff]
    %v9183 = vld [vmem:[%s8078 + $0x242] sm:$0xff]
    %v9184 = vld [vmem:[%s8078 + $0x24a] sm:$0xff]
    %v9185 = vld [vmem:[%s8078 + $0x25a] sm:$0xff]
    %v9186 = vld [vmem:[%s8078 + $0x262] sm:$0xff]
    %v9187 = vld [vmem:[%s8078 + $0x272] sm:$0xff]
    %v9188 = vld [vmem:[%s8078 + $0x27a] sm:$0xff]
    %v9189 = vld [vmem:[%s8078 + $0x28a] sm:$0xff]
    %v9190 = vld [vmem:[%s8078 + $0x292] sm:$0xff]
    %v9191 = vld [vmem:[%s8078 + $0x2a2] sm:$0xff]
    %v9192 = vld [vmem:[%s8078 + $0x2aa] sm:$0xff]
    %v9193 = vld [vmem:[%s8078 + $0x2ba] sm:$0xff]
    %v9194 = vld [vmem:[%s8078 + $0x2c2] sm:$0xff]
    %v9195 = vld [vmem:[%s8078 + $0x2d2] sm:$0xff]
    %v9196 = vld [vmem:[%s8078 + $0x2da] sm:$0xff]
    %v9197 = vld [vmem:[%s8078 + $0x2ea] sm:$0xff]
    %v9198 = vld [vmem:[%s8078 + $0x2f2] sm:$0xff]
    %v9199 = vld [vmem:[%s8078 + $0x302] sm:$0xff]
    %v9200 = vld [vmem:[%s8078 + $0x30a] sm:$0xff]
    %v9201 = vld [vmem:[%s8078 + $0x31a] sm:$0xff]
    %v9202 = vld [vmem:[%s8078 + $0x322] sm:$0xff]
    %s9203 = scalar_lea.vmem [#allocation3], 1024
    %v9204 = vld [vmem:[%s9203] sm:$0xff]
    %v9205 = vld [vmem:[%s9203 + $0x8] sm:$0xff]
    %v9206 = vld [vmem:[%s9203 + $0x10] sm:$0xff]
    %v9207 = vld [vmem:[%s9203 + $0x18] sm:$0xff]
    %v9208 = vld [vmem:[%s9203 + $0x20] sm:$0xff]
    %v9209 = vld [vmem:[%s9203 + $0x28] sm:$0xff]
    %v9210 = vld [vmem:[%s9203 + $0x30] sm:$0xff]
    %v9211 = vld [vmem:[%s9203 + $0x38] sm:$0xff]
    %v9212 = vld [vmem:[%s9203 + $0x40] sm:$0xff]
    %v9213 = vld [vmem:[%s9203 + $0x48] sm:$0xff]
    %v9214 = vld [vmem:[%s9203 + $0x50] sm:$0xff]
    %v9215 = vld [vmem:[%s9203 + $0x58] sm:$0xff]
    %v9216 = vld [vmem:[%s9203 + $0x60] sm:$0xff]
    %v9217 = vld [vmem:[%s9203 + $0x68] sm:$0xff]
    %v9218 = vld [vmem:[%s9203 + $0x70] sm:$0xff]
    %v9219 = vld [vmem:[%s9203 + $0x78] sm:$0xff]
    %9220 = vmatprep.subr.mxu0 0.0
    %9221 = vmatpush1.msra.mxu0 %v9204
    %9222 = vmatprep.subr.mxu0 0.0
    %9223 = vmatpush1.msra.mxu0 %v9205
    %9224 = vmatprep.subr.mxu0 0.0
    %9225 = vmatpush1.msra.mxu0 %v9206
    %9226 = vmatprep.subr.mxu0 0.0
    %9227 = vmatpush1.msra.mxu0 %v9207
    %9228 = vmatprep.subr.mxu0 0.0
    %9229 = vmatpush1.msra.mxu0 %v9208
    %9230 = vmatprep.subr.mxu0 0.0
    %9231 = vmatpush1.msra.mxu0 %v9209
    %9232 = vmatprep.subr.mxu0 0.0
    %9233 = vmatpush1.msra.mxu0 %v9210
    %9234 = vmatprep.subr.mxu0 0.0
    %9235 = vmatpush1.msra.mxu0 %v9211
    %9236 = vmatprep.subr.mxu0 0.0
    %9237 = vmatpush1.msra.mxu0 %v9212
    %9238 = vmatprep.subr.mxu0 0.0
    %9239 = vmatpush1.msra.mxu0 %v9213
    %9240 = vmatprep.subr.mxu0 0.0
    %9241 = vmatpush1.msra.mxu0 %v9214
    %9242 = vmatprep.subr.mxu0 0.0
    %9243 = vmatpush1.msra.mxu0 %v9215
    %9244 = vmatprep.subr.mxu0 0.0
    %9245 = vmatpush1.msra.mxu0 %v9216
    %9246 = vmatprep.subr.mxu0 0.0
    %9247 = vmatpush1.msra.mxu0 %v9217
    %9248 = vmatprep.subr.mxu0 0.0
    %9249 = vmatpush1.msra.mxu0 %v9218
    %9250 = vmatprep.subr.mxu0 0.0
    %9251 = vmatpush1.msra.mxu0 %v9219
    %9252 = vmatprep.subr.mxu0 0.0
    %9253 = vmatpush1.msra.mxu0 0.0
    %9254 = vmatprep.subr.mxu0 0.0
    %9255 = vmatpush1.msra.mxu0 0.0
    %9256 = vmatprep.subr.mxu0 0.0
    %9257 = vmatpush1.msra.mxu0 0.0
    %9258 = vmatprep.subr.mxu0 0.0
    %9259 = vmatpush1.msra.mxu0 0.0
    %9260 = vmatprep.subr.mxu0 0.0
    %9261 = vmatpush1.msra.mxu0 0.0
    %9262 = vmatprep.subr.mxu0 0.0
    %9263 = vmatpush1.msra.mxu0 0.0
    %9264 = vmatprep.subr.mxu0 0.0
    %9265 = vmatpush1.msra.mxu0 0.0
    %9266 = vmatprep.subr.mxu0 0.0
    %9267 = vmatpush1.msra.mxu0 0.0
    %9268 = vmatprep.subr.mxu0 0.0
    %9269 = vmatpush1.msra.mxu0 0.0
    %9270 = vmatprep.subr.mxu0 0.0
    %9271 = vmatpush1.msra.mxu0 0.0
    %9272 = vmatprep.subr.mxu0 0.0
    %9273 = vmatpush1.msra.mxu0 0.0
    %9274 = vmatprep.subr.mxu0 0.0
    %9275 = vmatpush1.msra.mxu0 0.0
    %9276 = vmatprep.subr.mxu0 0.0
    %9277 = vmatpush1.msra.mxu0 0.0
    %9278 = vmatprep.subr.mxu0 0.0
    %9279 = vmatpush1.msra.mxu0 0.0
    %9280 = vmatprep.subr.mxu0 0.0
    %9281 = vmatpush1.msra.mxu0 0.0
    %9282 = vmatprep.subr.mxu0 0.0
    %9283 = vmatpush1.msra.mxu0 0.0
    %9284 = vmatprep.mubr.f32.mxu0 0.0
    %9285 = vmatmul.mubr.f32.gmra.mrb[0].mxu0 %v9139
    %v9286 = vpop.f32.mrb[0].mxu0
    %v9287 = vadd.f32 0.0, %v9286
    %v9288 = vpop.f32.mrb[0].mxu0
    %9289 = vmatprep.mubr.f32.mxu0 0.0
    %9290 = vmatmul.mubr.f32.gmra.mrb[0].mxu0 %v9140
    %v9291 = vpop.f32.mrb[0].mxu0
    %v9292 = vadd.f32 0.0, %v9291
    %v9293 = vpop.f32.mrb[0].mxu0
    %9294 = vmatprep.mubr.f32.mxu0 0.0
    %9295 = vmatmul.mubr.f32.gmra.mrb[0].mxu0 %v9141
    %v9296 = vpop.f32.mrb[0].mxu0
    %v9297 = vadd.f32 0.0, %v9296
    %v9298 = vpop.f32.mrb[0].mxu0
    %9299 = vmatprep.mubr.f32.mxu0 0.0
    %9300 = vmatmul.mubr.f32.gmra.mrb[0].mxu0 %v9142
    %v9301 = vpop.f32.mrb[0].mxu0
    %v9302 = vadd.f32 0.0, %v9301
    %v9303 = vpop.f32.mrb[0].mxu0
    %9304 = vmatprep.mubr.f32.mxu0 0.0
    %9305 = vmatmul.mubr.f32.gmra.mrb[0].mxu0 %v9143
    %v9306 = vpop.f32.mrb[0].mxu0
    %v9307 = vadd.f32 0.0, %v9306
    %v9308 = vpop.f32.mrb[0].mxu0
    %9309 = vmatprep.mubr.f32.mxu0 0.0
    %9310 = vmatmul.mubr.f32.gmra.mrb[0].mxu0 %v9144
    %v9311 = vpop.f32.mrb[0].mxu0
    %v9312 = vadd.f32 0.0, %v9311
    %v9313 = vpop.f32.mrb[0].mxu0
    %9314 = vmatprep.mubr.f32.mxu0 0.0
    %9315 = vmatmul.mubr.f32.gmra.mrb[0].mxu0 %v9145
    %v9316 = vpop.f32.mrb[0].mxu0
    %v9317 = vadd.f32 0.0, %v9316
    %v9318 = vpop.f32.mrb[0].mxu0
    %9319 = vmatprep.mubr.f32.mxu0 0.0
    %9320 = vmatmul.mubr.f32.gmra.mrb[0].mxu0 %v9146
    %v9321 = vpop.f32.mrb[0].mxu0
    %v9322 = vadd.f32 0.0, %v9321
    %v9323 = vpop.f32.mrb[0].mxu0
    %9324 = vmatprep.mubr.f32.mxu0 0.0
    %9325 = vmatmul.mubr.f32.gmra.mrb[0].mxu0 %v9147
    %v9326 = vpop.f32.mrb[0].mxu0
    %v9327 = vadd.f32 0.0, %v9326
    %v9328 = vpop.f32.mrb[0].mxu0
    %9329 = vmatprep.mubr.f32.mxu0 0.0
    %9330 = vmatmul.mubr.f32.gmra.mrb[0].mxu0 %v9148
    %v9331 = vpop.f32.mrb[0].mxu0
    %v9332 = vadd.f32 0.0, %v9331
    %v9333 = vpop.f32.mrb[0].mxu0
    %9334 = vmatprep.mubr.f32.mxu0 0.0
    %9335 = vmatmul.mubr.f32.gmra.mrb[0].mxu0 %v9149
    %v9336 = vpop.f32.mrb[0].mxu0
    %v9337 = vadd.f32 0.0, %v9336
    %v9338 = vpop.f32.mrb[0].mxu0
    %9339 = vmatprep.mubr.f32.mxu0 0.0
    %9340 = vmatmul.mubr.f32.gmra.mrb[0].mxu0 %v9150
    %v9341 = vpop.f32.mrb[0].mxu0
    %v9342 = vadd.f32 0.0, %v9341
    %v9343 = vpop.f32.mrb[0].mxu0
    %9344 = vmatprep.mubr.f32.mxu0 0.0
    %9345 = vmatmul.mubr.f32.gmra.mrb[0].mxu0 %v9151
    %v9346 = vpop.f32.mrb[0].mxu0
    %v9347 = vadd.f32 0.0, %v9346
    %v9348 = vpop.f32.mrb[0].mxu0
    %9349 = vmatprep.mubr.f32.mxu0 0.0
    %9350 = vmatmul.mubr.f32.gmra.mrb[0].mxu0 %v9152
    %v9351 = vpop.f32.mrb[0].mxu0
    %v9352 = vadd.f32 0.0, %v9351
    %v9353 = vpop.f32.mrb[0].mxu0
    %9354 = vmatprep.mubr.f32.mxu0 0.0
    %9355 = vmatmul.mubr.f32.gmra.mrb[0].mxu0 %v9153
    %v9356 = vpop.f32.mrb[0].mxu0
    %v9357 = vadd.f32 0.0, %v9356
    %v9358 = vpop.f32.mrb[0].mxu0
    %9359 = vmatprep.mubr.f32.mxu0 0.0
    %9360 = vmatmul.mubr.f32.gmra.mrb[0].mxu0 %v9154
    %v9361 = vpop.f32.mrb[0].mxu0
    %v9362 = vadd.f32 0.0, %v9361
    %v9363 = vpop.f32.mrb[0].mxu0
    %9364 = vmatprep.mubr.f32.mxu0 0.0
    %9365 = vmatmul.mubr.f32.gmra.mrb[0].mxu0 %v9155
    %v9366 = vpop.f32.mrb[0].mxu0
    %v9367 = vadd.f32 0.0, %v9366
    %v9368 = vpop.f32.mrb[0].mxu0
    %9369 = vmatprep.mubr.f32.mxu0 0.0
    %9370 = vmatmul.mubr.f32.gmra.mrb[0].mxu0 %v9156
    %v9371 = vpop.f32.mrb[0].mxu0
    %v9372 = vadd.f32 0.0, %v9371
    %v9373 = vpop.f32.mrb[0].mxu0
    %9374 = vmatprep.mubr.f32.mxu0 0.0
    %9375 = vmatmul.mubr.f32.gmra.mrb[0].mxu0 %v9157
    %v9376 = vpop.f32.mrb[0].mxu0
    %v9377 = vadd.f32 0.0, %v9376
    %v9378 = vpop.f32.mrb[0].mxu0
    %9379 = vmatprep.mubr.f32.mxu0 0.0
    %9380 = vmatmul.mubr.f32.gmra.mrb[0].mxu0 %v9158
    %v9381 = vpop.f32.mrb[0].mxu0
    %v9382 = vadd.f32 0.0, %v9381
    %v9383 = vpop.f32.mrb[0].mxu0
    %9384 = vmatprep.mubr.f32.mxu0 0.0
    %9385 = vmatmul.mubr.f32.gmra.mrb[0].mxu0 %v9159
    %v9386 = vpop.f32.mrb[0].mxu0
    %v9387 = vadd.f32 0.0, %v9386
    %v9388 = vpop.f32.mrb[0].mxu0
    %9389 = vmatprep.mubr.f32.mxu0 0.0
    %9390 = vmatmul.mubr.f32.gmra.mrb[0].mxu0 %v9160
    %v9391 = vpop.f32.mrb[0].mxu0
    %v9392 = vadd.f32 0.0, %v9391
    %v9393 = vpop.f32.mrb[0].mxu0
    %9394 = vmatprep.mubr.f32.mxu0 0.0
    %9395 = vmatmul.mubr.f32.gmra.mrb[0].mxu0 %v9161
    %v9396 = vpop.f32.mrb[0].mxu0
    %v9397 = vadd.f32 0.0, %v9396
    %v9398 = vpop.f32.mrb[0].mxu0
    %9399 = vmatprep.mubr.f32.mxu0 0.0
    %9400 = vmatmul.mubr.f32.gmra.mrb[0].mxu0 %v9162
    %v9401 = vpop.f32.mrb[0].mxu0
    %v9402 = vadd.f32 0.0, %v9401
    %v9403 = vpop.f32.mrb[0].mxu0
    %9404 = vmatprep.mubr.f32.mxu0 0.0
    %9405 = vmatmul.mubr.f32.gmra.mrb[0].mxu0 %v9163
    %v9406 = vpop.f32.mrb[0].mxu0
    %v9407 = vadd.f32 0.0, %v9406
    %v9408 = vpop.f32.mrb[0].mxu0
    %9409 = vmatprep.mubr.f32.mxu0 0.0
    %9410 = vmatmul.mubr.f32.gmra.mrb[0].mxu0 %v9164
    %v9411 = vpop.f32.mrb[0].mxu0
    %v9412 = vadd.f32 0.0, %v9411
    %v9413 = vpop.f32.mrb[0].mxu0
    %9414 = vmatprep.mubr.f32.mxu0 0.0
    %9415 = vmatmul.mubr.f32.gmra.mrb[0].mxu0 %v9165
    %v9416 = vpop.f32.mrb[0].mxu0
    %v9417 = vadd.f32 0.0, %v9416
    %v9418 = vpop.f32.mrb[0].mxu0
    %9419 = vmatprep.mubr.f32.mxu0 0.0
    %9420 = vmatmul.mubr.f32.gmra.mrb[0].mxu0 %v9166
    %v9421 = vpop.f32.mrb[0].mxu0
    %v9422 = vadd.f32 0.0, %v9421
    %v9423 = vpop.f32.mrb[0].mxu0
    %9424 = vmatprep.mubr.f32.mxu0 0.0
    %9425 = vmatmul.mubr.f32.gmra.mrb[0].mxu0 %v9167
    %v9426 = vpop.f32.mrb[0].mxu0
    %v9427 = vadd.f32 0.0, %v9426
    %v9428 = vpop.f32.mrb[0].mxu0
    %9429 = vmatprep.mubr.f32.mxu0 0.0
    %9430 = vmatmul.mubr.f32.gmra.mrb[0].mxu0 %v9168
    %v9431 = vpop.f32.mrb[0].mxu0
    %v9432 = vadd.f32 0.0, %v9431
    %v9433 = vpop.f32.mrb[0].mxu0
    %9434 = vmatprep.mubr.f32.mxu0 0.0
    %9435 = vmatmul.mubr.f32.gmra.mrb[0].mxu0 %v9169
    %v9436 = vpop.f32.mrb[0].mxu0
    %v9437 = vadd.f32 0.0, %v9436
    %v9438 = vpop.f32.mrb[0].mxu0
    %9439 = vmatprep.mubr.f32.mxu0 0.0
    %9440 = vmatmul.mubr.f32.gmra.mrb[0].mxu0 %v9170
    %v9441 = vpop.f32.mrb[0].mxu0
    %v9442 = vadd.f32 0.0, %v9441
    %v9443 = vpop.f32.mrb[0].mxu0
    %9444 = vmatprep.mubr.f32.mxu0 0.0
    %9445 = vmatmul.mubr.f32.gmra.mrb[0].mxu0 %v9171
    %v9446 = vpop.f32.mrb[0].mxu0
    %v9447 = vadd.f32 0.0, %v9446
    %v9448 = vpop.f32.mrb[0].mxu0
    %9449 = vmatprep.mubr.f32.mxu0 0.0
    %9450 = vmatmul.mubr.f32.gmra.mrb[0].mxu0 %v9172
    %v9451 = vpop.f32.mrb[0].mxu0
    %v9452 = vadd.f32 0.0, %v9451
    %v9453 = vpop.f32.mrb[0].mxu0
    %9454 = vmatprep.mubr.f32.mxu0 0.0
    %9455 = vmatmul.mubr.f32.gmra.mrb[0].mxu0 %v9173
    %v9456 = vpop.f32.mrb[0].mxu0
    %v9457 = vadd.f32 0.0, %v9456
    %v9458 = vpop.f32.mrb[0].mxu0
    %9459 = vmatprep.mubr.f32.mxu0 0.0
    %9460 = vmatmul.mubr.f32.gmra.mrb[0].mxu0 %v9174
    %v9461 = vpop.f32.mrb[0].mxu0
    %v9462 = vadd.f32 0.0, %v9461
    %v9463 = vpop.f32.mrb[0].mxu0
    %9464 = vmatprep.mubr.f32.mxu0 0.0
    %9465 = vmatmul.mubr.f32.gmra.mrb[0].mxu0 %v9175
    %v9466 = vpop.f32.mrb[0].mxu0
    %v9467 = vadd.f32 0.0, %v9466
    %v9468 = vpop.f32.mrb[0].mxu0
    %9469 = vmatprep.mubr.f32.mxu0 0.0
    %9470 = vmatmul.mubr.f32.gmra.mrb[0].mxu0 %v9176
    %v9471 = vpop.f32.mrb[0].mxu0
    %v9472 = vadd.f32 0.0, %v9471
    %v9473 = vpop.f32.mrb[0].mxu0
    %9474 = vmatprep.mubr.f32.mxu0 0.0
    %9475 = vmatmul.mubr.f32.gmra.mrb[0].mxu0 %v9177
    %v9476 = vpop.f32.mrb[0].mxu0
    %v9477 = vadd.f32 0.0, %v9476
    %v9478 = vpop.f32.mrb[0].mxu0
    %9479 = vmatprep.mubr.f32.mxu0 0.0
    %9480 = vmatmul.mubr.f32.gmra.mrb[0].mxu0 %v9178
    %v9481 = vpop.f32.mrb[0].mxu0
    %v9482 = vadd.f32 0.0, %v9481
    %v9483 = vpop.f32.mrb[0].mxu0
    %9484 = vmatprep.mubr.f32.mxu0 0.0
    %9485 = vmatmul.mubr.f32.gmra.mrb[0].mxu0 %v9179
    %v9486 = vpop.f32.mrb[0].mxu0
    %v9487 = vadd.f32 0.0, %v9486
    %v9488 = vpop.f32.mrb[0].mxu0
    %9489 = vmatprep.mubr.f32.mxu0 0.0
    %9490 = vmatmul.mubr.f32.gmra.mrb[0].mxu0 %v9180
    %v9491 = vpop.f32.mrb[0].mxu0
    %v9492 = vadd.f32 0.0, %v9491
    %v9493 = vpop.f32.mrb[0].mxu0
    %9494 = vmatprep.mubr.f32.mxu0 0.0
    %9495 = vmatmul.mubr.f32.gmra.mrb[0].mxu0 %v9181
    %v9496 = vpop.f32.mrb[0].mxu0
    %v9497 = vadd.f32 0.0, %v9496
    %v9498 = vpop.f32.mrb[0].mxu0
    %9499 = vmatprep.mubr.f32.mxu0 0.0
    %9500 = vmatmul.mubr.f32.gmra.mrb[0].mxu0 %v9182
    %v9501 = vpop.f32.mrb[0].mxu0
    %v9502 = vadd.f32 0.0, %v9501
    %v9503 = vpop.f32.mrb[0].mxu0
    %9504 = vmatprep.mubr.f32.mxu0 0.0
    %9505 = vmatmul.mubr.f32.gmra.mrb[0].mxu0 %v9183
    %v9506 = vpop.f32.mrb[0].mxu0
    %v9507 = vadd.f32 0.0, %v9506
    %v9508 = vpop.f32.mrb[0].mxu0
    %9509 = vmatprep.mubr.f32.mxu0 0.0
    %9510 = vmatmul.mubr.f32.gmra.mrb[0].mxu0 %v9184
    %v9511 = vpop.f32.mrb[0].mxu0
    %v9512 = vadd.f32 0.0, %v9511
    %v9513 = vpop.f32.mrb[0].mxu0
    %9514 = vmatprep.mubr.f32.mxu0 0.0
    %9515 = vmatmul.mubr.f32.gmra.mrb[0].mxu0 %v9185
    %v9516 = vpop.f32.mrb[0].mxu0
    %v9517 = vadd.f32 0.0, %v9516
    %v9518 = vpop.f32.mrb[0].mxu0
    %9519 = vmatprep.mubr.f32.mxu0 0.0
    %9520 = vmatmul.mubr.f32.gmra.mrb[0].mxu0 %v9186
    %v9521 = vpop.f32.mrb[0].mxu0
    %v9522 = vadd.f32 0.0, %v9521
    %v9523 = vpop.f32.mrb[0].mxu0
    %9524 = vmatprep.mubr.f32.mxu0 0.0
    %9525 = vmatmul.mubr.f32.gmra.mrb[0].mxu0 %v9187
    %v9526 = vpop.f32.mrb[0].mxu0
    %v9527 = vadd.f32 0.0, %v9526
    %v9528 = vpop.f32.mrb[0].mxu0
    %9529 = vmatprep.mubr.f32.mxu0 0.0
    %9530 = vmatmul.mubr.f32.gmra.mrb[0].mxu0 %v9188
    %v9531 = vpop.f32.mrb[0].mxu0
    %v9532 = vadd.f32 0.0, %v9531
    %v9533 = vpop.f32.mrb[0].mxu0
    %9534 = vmatprep.mubr.f32.mxu0 0.0
    %9535 = vmatmul.mubr.f32.gmra.mrb[0].mxu0 %v9189
    %v9536 = vpop.f32.mrb[0].mxu0
    %v9537 = vadd.f32 0.0, %v9536
    %v9538 = vpop.f32.mrb[0].mxu0
    %9539 = vmatprep.mubr.f32.mxu0 0.0
    %9540 = vmatmul.mubr.f32.gmra.mrb[0].mxu0 %v9190
    %v9541 = vpop.f32.mrb[0].mxu0
    %v9542 = vadd.f32 0.0, %v9541
    %v9543 = vpop.f32.mrb[0].mxu0
    %9544 = vmatprep.mubr.f32.mxu0 0.0
    %9545 = vmatmul.mubr.f32.gmra.mrb[0].mxu0 %v9191
    %v9546 = vpop.f32.mrb[0].mxu0
    %v9547 = vadd.f32 0.0, %v9546
    %v9548 = vpop.f32.mrb[0].mxu0
    %9549 = vmatprep.mubr.f32.mxu0 0.0
    %9550 = vmatmul.mubr.f32.gmra.mrb[0].mxu0 %v9192
    %v9551 = vpop.f32.mrb[0].mxu0
    %v9552 = vadd.f32 0.0, %v9551
    %v9553 = vpop.f32.mrb[0].mxu0
    %9554 = vmatprep.mubr.f32.mxu0 0.0
    %9555 = vmatmul.mubr.f32.gmra.mrb[0].mxu0 %v9193
    %v9556 = vpop.f32.mrb[0].mxu0
    %v9557 = vadd.f32 0.0, %v9556
    %v9558 = vpop.f32.mrb[0].mxu0
    %9559 = vmatprep.mubr.f32.mxu0 0.0
    %9560 = vmatmul.mubr.f32.gmra.mrb[0].mxu0 %v9194
    %v9561 = vpop.f32.mrb[0].mxu0
    %v9562 = vadd.f32 0.0, %v9561
    %v9563 = vpop.f32.mrb[0].mxu0
    %9564 = vmatprep.mubr.f32.mxu0 0.0
    %9565 = vmatmul.mubr.f32.gmra.mrb[0].mxu0 %v9195
    %v9566 = vpop.f32.mrb[0].mxu0
    %v9567 = vadd.f32 0.0, %v9566
    %v9568 = vpop.f32.mrb[0].mxu0
    %9569 = vmatprep.mubr.f32.mxu0 0.0
    %9570 = vmatmul.mubr.f32.gmra.mrb[0].mxu0 %v9196
    %v9571 = vpop.f32.mrb[0].mxu0
    %v9572 = vadd.f32 0.0, %v9571
    %v9573 = vpop.f32.mrb[0].mxu0
    %9574 = vmatprep.mubr.f32.mxu0 0.0
    %9575 = vmatmul.mubr.f32.gmra.mrb[0].mxu0 %v9197
    %v9576 = vpop.f32.mrb[0].mxu0
    %v9577 = vadd.f32 0.0, %v9576
    %v9578 = vpop.f32.mrb[0].mxu0
    %9579 = vmatprep.mubr.f32.mxu0 0.0
    %9580 = vmatmul.mubr.f32.gmra.mrb[0].mxu0 %v9198
    %v9581 = vpop.f32.mrb[0].mxu0
    %v9582 = vadd.f32 0.0, %v9581
    %v9583 = vpop.f32.mrb[0].mxu0
    %9584 = vmatprep.mubr.f32.mxu0 0.0
    %9585 = vmatmul.mubr.f32.gmra.mrb[0].mxu0 %v9199
    %v9586 = vpop.f32.mrb[0].mxu0
    %v9587 = vadd.f32 0.0, %v9586
    %v9588 = vpop.f32.mrb[0].mxu0
    %9589 = vmatprep.mubr.f32.mxu0 0.0
    %9590 = vmatmul.mubr.f32.gmra.mrb[0].mxu0 %v9200
    %v9591 = vpop.f32.mrb[0].mxu0
    %v9592 = vadd.f32 0.0, %v9591
    %v9593 = vpop.f32.mrb[0].mxu0
    %9594 = vmatprep.mubr.f32.mxu0 0.0
    %9595 = vmatmul.mubr.f32.gmra.mrb[0].mxu0 %v9201
    %v9596 = vpop.f32.mrb[0].mxu0
    %v9597 = vadd.f32 0.0, %v9596
    %v9598 = vpop.f32.mrb[0].mxu0
    %9599 = vmatprep.mubr.f32.mxu0 0.0
    %9600 = vmatmul.mubr.f32.gmra.mrb[0].mxu0 %v9202
    %v9601 = vpop.f32.mrb[0].mxu0
    %v9602 = vadd.f32 0.0, %v9601
    %v9603 = vpop.f32.mrb[0].mxu0
    %9604 = vdwg.mxu0
    %v9605 = vadd.f32 %v9075, %v9287
    %v9606 = vadd.f32 %v9076, %v9292
    %v9607 = vadd.f32 %v9077, %v9297
    %v9608 = vadd.f32 %v9078, %v9302
    %v9609 = vadd.f32 %v9079, %v9307
    %v9610 = vadd.f32 %v9080, %v9312
    %v9611 = vadd.f32 %v9081, %v9317
    %v9612 = vadd.f32 %v9082, %v9322
    %v9613 = vadd.f32 %v9083, %v9327
    %v9614 = vadd.f32 %v9084, %v9332
    %v9615 = vadd.f32 %v9085, %v9337
    %v9616 = vadd.f32 %v9086, %v9342
    %v9617 = vadd.f32 %v9087, %v9347
    %v9618 = vadd.f32 %v9088, %v9352
    %v9619 = vadd.f32 %v9089, %v9357
    %v9620 = vadd.f32 %v9090, %v9362
    %v9621 = vadd.f32 %v9091, %v9367
    %v9622 = vadd.f32 %v9092, %v9372
    %v9623 = vadd.f32 %v9093, %v9377
    %v9624 = vadd.f32 %v9094, %v9382
    %v9625 = vadd.f32 %v9095, %v9387
    %v9626 = vadd.f32 %v9096, %v9392
    %v9627 = vadd.f32 %v9097, %v9397
    %v9628 = vadd.f32 %v9098, %v9402
    %v9629 = vadd.f32 %v9099, %v9407
    %v9630 = vadd.f32 %v9100, %v9412
    %v9631 = vadd.f32 %v9101, %v9417
    %v9632 = vadd.f32 %v9102, %v9422
    %v9633 = vadd.f32 %v9103, %v9427
    %v9634 = vadd.f32 %v9104, %v9432
    %v9635 = vadd.f32 %v9105, %v9437
    %v9636 = vadd.f32 %v9106, %v9442
    %v9637 = vadd.f32 %v9107, %v9447
    %v9638 = vadd.f32 %v9108, %v9452
    %v9639 = vadd.f32 %v9109, %v9457
    %v9640 = vadd.f32 %v9110, %v9462
    %v9641 = vadd.f32 %v9111, %v9467
    %v9642 = vadd.f32 %v9112, %v9472
    %v9643 = vadd.f32 %v9113, %v9477
    %v9644 = vadd.f32 %v9114, %v9482
    %v9645 = vadd.f32 %v9115, %v9487
    %v9646 = vadd.f32 %v9116, %v9492
    %v9647 = vadd.f32 %v9117, %v9497
    %v9648 = vadd.f32 %v9118, %v9502
    %v9649 = vadd.f32 %v9119, %v9507
    %v9650 = vadd.f32 %v9120, %v9512
    %v9651 = vadd.f32 %v9121, %v9517
    %v9652 = vadd.f32 %v9122, %v9522
    %v9653 = vadd.f32 %v9123, %v9527
    %v9654 = vadd.f32 %v9124, %v9532
    %v9655 = vadd.f32 %v9125, %v9537
    %v9656 = vadd.f32 %v9126, %v9542
    %v9657 = vadd.f32 %v9127, %v9547
    %v9658 = vadd.f32 %v9128, %v9552
    %v9659 = vadd.f32 %v9129, %v9557
    %v9660 = vadd.f32 %v9130, %v9562
    %v9661 = vadd.f32 %v9131, %v9567
    %v9662 = vadd.f32 %v9132, %v9572
    %v9663 = vadd.f32 %v9133, %v9577
    %v9664 = vadd.f32 %v9134, %v9582
    %v9665 = vadd.f32 %v9135, %v9587
    %v9666 = vadd.f32 %v9136, %v9592
    %v9667 = vadd.f32 %v9137, %v9597
    %v9668 = vadd.f32 %v9138, %v9602
    %v9669 = vld [vmem:[%s3 + $0x2] sm:$0x1]
    %v9670 = vlaneseq
    %v9671 = vshrl.u32 %v9670, 7
    %v9672 = vsub.s32 0, %v9671
    %v9673 = vrot.slane %v9669, %v9672
    %v9674 = vmul.f32 %v9605, %v9673
    %v9675 = vmul.f32 %v9606, %v9673
    %v9676 = vmul.f32 %v9607, %v9673
    %v9677 = vmul.f32 %v9608, %v9673
    %v9678 = vmul.f32 %v9609, %v9673
    %v9679 = vmul.f32 %v9610, %v9673
    %v9680 = vmul.f32 %v9611, %v9673
    %v9681 = vmul.f32 %v9612, %v9673
    %v9682 = vmul.f32 %v9613, %v9673
    %v9683 = vmul.f32 %v9614, %v9673
    %v9684 = vmul.f32 %v9615, %v9673
    %v9685 = vmul.f32 %v9616, %v9673
    %v9686 = vmul.f32 %v9617, %v9673
    %v9687 = vmul.f32 %v9618, %v9673
    %v9688 = vmul.f32 %v9619, %v9673
    %v9689 = vmul.f32 %v9620, %v9673
    %v9690 = vmul.f32 %v9621, %v9673
    %v9691 = vmul.f32 %v9622, %v9673
    %v9692 = vmul.f32 %v9623, %v9673
    %v9693 = vmul.f32 %v9624, %v9673
    %v9694 = vmul.f32 %v9625, %v9673
    %v9695 = vmul.f32 %v9626, %v9673
    %v9696 = vmul.f32 %v9627, %v9673
    %v9697 = vmul.f32 %v9628, %v9673
    %v9698 = vmul.f32 %v9629, %v9673
    %v9699 = vmul.f32 %v9630, %v9673
    %v9700 = vmul.f32 %v9631, %v9673
    %v9701 = vmul.f32 %v9632, %v9673
    %v9702 = vmul.f32 %v9633, %v9673
    %v9703 = vmul.f32 %v9634, %v9673
    %v9704 = vmul.f32 %v9635, %v9673
    %v9705 = vmul.f32 %v9636, %v9673
    %v9706 = vmul.f32 %v9637, %v9673
    %v9707 = vmul.f32 %v9638, %v9673
    %v9708 = vmul.f32 %v9639, %v9673
    %v9709 = vmul.f32 %v9640, %v9673
    %v9710 = vmul.f32 %v9641, %v9673
    %v9711 = vmul.f32 %v9642, %v9673
    %v9712 = vmul.f32 %v9643, %v9673
    %v9713 = vmul.f32 %v9644, %v9673
    %v9714 = vmul.f32 %v9645, %v9673
    %v9715 = vmul.f32 %v9646, %v9673
    %v9716 = vmul.f32 %v9647, %v9673
    %v9717 = vmul.f32 %v9648, %v9673
    %v9718 = vmul.f32 %v9649, %v9673
    %v9719 = vmul.f32 %v9650, %v9673
    %v9720 = vmul.f32 %v9651, %v9673
    %v9721 = vmul.f32 %v9652, %v9673
    %v9722 = vmul.f32 %v9653, %v9673
    %v9723 = vmul.f32 %v9654, %v9673
    %v9724 = vmul.f32 %v9655, %v9673
    %v9725 = vmul.f32 %v9656, %v9673
    %v9726 = vmul.f32 %v9657, %v9673
    %v9727 = vmul.f32 %v9658, %v9673
    %v9728 = vmul.f32 %v9659, %v9673
    %v9729 = vmul.f32 %v9660, %v9673
    %v9730 = vmul.f32 %v9661, %v9673
    %v9731 = vmul.f32 %v9662, %v9673
    %v9732 = vmul.f32 %v9663, %v9673
    %v9733 = vmul.f32 %v9664, %v9673
    %v9734 = vmul.f32 %v9665, %v9673
    %v9735 = vmul.f32 %v9666, %v9673
    %v9736 = vmul.f32 %v9667, %v9673
    %v9737 = vmul.f32 %v9668, %v9673
    %v9738 = vld [vmem:[%s3 + $0x3] sm:$0x1]
    %v9739 = vlaneseq
    %v9740 = vshrl.u32 %v9739, 7
    %v9741 = vsub.s32 0, %v9740
    %v9742 = vrot.slane %v9738, %v9741
    %v9743 = vadd.f32 %v9674, %v9742
    %v9744 = vadd.f32 %v9675, %v9742
    %v9745 = vadd.f32 %v9676, %v9742
    %v9746 = vadd.f32 %v9677, %v9742
    %v9747 = vadd.f32 %v9678, %v9742
    %v9748 = vadd.f32 %v9679, %v9742
    %v9749 = vadd.f32 %v9680, %v9742
    %v9750 = vadd.f32 %v9681, %v9742
    %v9751 = vadd.f32 %v9682, %v9742
    %v9752 = vadd.f32 %v9683, %v9742
    %v9753 = vadd.f32 %v9684, %v9742
    %v9754 = vadd.f32 %v9685, %v9742
    %v9755 = vadd.f32 %v9686, %v9742
    %v9756 = vadd.f32 %v9687, %v9742
    %v9757 = vadd.f32 %v9688, %v9742
    %v9758 = vadd.f32 %v9689, %v9742
    %v9759 = vadd.f32 %v9690, %v9742
    %v9760 = vadd.f32 %v9691, %v9742
    %v9761 = vadd.f32 %v9692, %v9742
    %v9762 = vadd.f32 %v9693, %v9742
    %v9763 = vadd.f32 %v9694, %v9742
    %v9764 = vadd.f32 %v9695, %v9742
    %v9765 = vadd.f32 %v9696, %v9742
    %v9766 = vadd.f32 %v9697, %v9742
    %v9767 = vadd.f32 %v9698, %v9742
    %v9768 = vadd.f32 %v9699, %v9742
    %v9769 = vadd.f32 %v9700, %v9742
    %v9770 = vadd.f32 %v9701, %v9742
    %v9771 = vadd.f32 %v9702, %v9742
    %v9772 = vadd.f32 %v9703, %v9742
    %v9773 = vadd.f32 %v9704, %v9742
    %v9774 = vadd.f32 %v9705, %v9742
    %v9775 = vadd.f32 %v9706, %v9742
    %v9776 = vadd.f32 %v9707, %v9742
    %v9777 = vadd.f32 %v9708, %v9742
    %v9778 = vadd.f32 %v9709, %v9742
    %v9779 = vadd.f32 %v9710, %v9742
    %v9780 = vadd.f32 %v9711, %v9742
    %v9781 = vadd.f32 %v9712, %v9742
    %v9782 = vadd.f32 %v9713, %v9742
    %v9783 = vadd.f32 %v9714, %v9742
    %v9784 = vadd.f32 %v9715, %v9742
    %v9785 = vadd.f32 %v9716, %v9742
    %v9786 = vadd.f32 %v9717, %v9742
    %v9787 = vadd.f32 %v9718, %v9742
    %v9788 = vadd.f32 %v9719, %v9742
    %v9789 = vadd.f32 %v9720, %v9742
    %v9790 = vadd.f32 %v9721, %v9742
    %v9791 = vadd.f32 %v9722, %v9742
    %v9792 = vadd.f32 %v9723, %v9742
    %v9793 = vadd.f32 %v9724, %v9742
    %v9794 = vadd.f32 %v9725, %v9742
    %v9795 = vadd.f32 %v9726, %v9742
    %v9796 = vadd.f32 %v9727, %v9742
    %v9797 = vadd.f32 %v9728, %v9742
    %v9798 = vadd.f32 %v9729, %v9742
    %v9799 = vadd.f32 %v9730, %v9742
    %v9800 = vadd.f32 %v9731, %v9742
    %v9801 = vadd.f32 %v9732, %v9742
    %v9802 = vadd.f32 %v9733, %v9742
    %v9803 = vadd.f32 %v9734, %v9742
    %v9804 = vadd.f32 %v9735, %v9742
    %v9805 = vadd.f32 %v9736, %v9742
    %v9806 = vadd.f32 %v9737, %v9742
    %v9807 = vld [vmem:[%s1493 + $0x1] sm:$0xff]
    %v9808 = vld [vmem:[%s1493 + $0x9] sm:$0xff]
    %v9809 = vld [vmem:[%s1493 + $0x19] sm:$0xff]
    %v9810 = vld [vmem:[%s1493 + $0x21] sm:$0xff]
    %v9811 = vld [vmem:[%s1493 + $0x31] sm:$0xff]
    %v9812 = vld [vmem:[%s1493 + $0x39] sm:$0xff]
    %v9813 = vld [vmem:[%s1493 + $0x49] sm:$0xff]
    %v9814 = vld [vmem:[%s1493 + $0x51] sm:$0xff]
    %v9815 = vld [vmem:[%s1493 + $0x61] sm:$0xff]
    %v9816 = vld [vmem:[%s1493 + $0x69] sm:$0xff]
    %v9817 = vld [vmem:[%s1493 + $0x79] sm:$0xff]
    %v9818 = vld [vmem:[%s1493 + $0x81] sm:$0xff]
    %v9819 = vld [vmem:[%s1493 + $0x91] sm:$0xff]
    %v9820 = vld [vmem:[%s1493 + $0x99] sm:$0xff]
    %v9821 = vld [vmem:[%s1493 + $0xa9] sm:$0xff]
    %v9822 = vld [vmem:[%s1493 + $0xb1] sm:$0xff]
    %v9823 = vld [vmem:[%s1493 + $0xc1] sm:$0xff]
    %v9824 = vld [vmem:[%s1493 + $0xc9] sm:$0xff]
    %v9825 = vld [vmem:[%s1493 + $0xd9] sm:$0xff]
    %v9826 = vld [vmem:[%s1493 + $0xe1] sm:$0xff]
    %v9827 = vld [vmem:[%s1493 + $0xf1] sm:$0xff]
    %v9828 = vld [vmem:[%s1493 + $0xf9] sm:$0xff]
    %v9829 = vld [vmem:[%s1493 + $0x109] sm:$0xff]
    %v9830 = vld [vmem:[%s1493 + $0x111] sm:$0xff]
    %v9831 = vld [vmem:[%s1493 + $0x121] sm:$0xff]
    %v9832 = vld [vmem:[%s1493 + $0x129] sm:$0xff]
    %v9833 = vld [vmem:[%s1493 + $0x139] sm:$0xff]
    %v9834 = vld [vmem:[%s1493 + $0x141] sm:$0xff]
    %v9835 = vld [vmem:[%s1493 + $0x151] sm:$0xff]
    %v9836 = vld [vmem:[%s1493 + $0x159] sm:$0xff]
    %v9837 = vld [vmem:[%s1493 + $0x169] sm:$0xff]
    %v9838 = vld [vmem:[%s1493 + $0x171] sm:$0xff]
    %v9839 = vld [vmem:[%s1493 + $0x1b1] sm:$0xff]
    %v9840 = vld [vmem:[%s1493 + $0x1b9] sm:$0xff]
    %v9841 = vld [vmem:[%s1493 + $0x1c9] sm:$0xff]
    %v9842 = vld [vmem:[%s1493 + $0x1d1] sm:$0xff]
    %v9843 = vld [vmem:[%s1493 + $0x1e1] sm:$0xff]
    %v9844 = vld [vmem:[%s1493 + $0x1e9] sm:$0xff]
    %v9845 = vld [vmem:[%s1493 + $0x1f9] sm:$0xff]
    %v9846 = vld [vmem:[%s1493 + $0x201] sm:$0xff]
    %v9847 = vld [vmem:[%s1493 + $0x211] sm:$0xff]
    %v9848 = vld [vmem:[%s1493 + $0x219] sm:$0xff]
    %v9849 = vld [vmem:[%s1493 + $0x229] sm:$0xff]
    %v9850 = vld [vmem:[%s1493 + $0x231] sm:$0xff]
    %v9851 = vld [vmem:[%s1493 + $0x241] sm:$0xff]
    %v9852 = vld [vmem:[%s1493 + $0x249] sm:$0xff]
    %v9853 = vld [vmem:[%s1493 + $0x259] sm:$0xff]
    %v9854 = vld [vmem:[%s1493 + $0x261] sm:$0xff]
    %v9855 = vld [vmem:[%s1493 + $0x271] sm:$0xff]
    %v9856 = vld [vmem:[%s1493 + $0x279] sm:$0xff]
    %v9857 = vld [vmem:[%s1493 + $0x289] sm:$0xff]
    %v9858 = vld [vmem:[%s1493 + $0x291] sm:$0xff]
    %v9859 = vld [vmem:[%s1493 + $0x2a1] sm:$0xff]
    %v9860 = vld [vmem:[%s1493 + $0x2a9] sm:$0xff]
    %v9861 = vld [vmem:[%s1493 + $0x2b9] sm:$0xff]
    %v9862 = vld [vmem:[%s1493 + $0x2c1] sm:$0xff]
    %v9863 = vld [vmem:[%s1493 + $0x2d1] sm:$0xff]
    %v9864 = vld [vmem:[%s1493 + $0x2d9] sm:$0xff]
    %v9865 = vld [vmem:[%s1493 + $0x2e9] sm:$0xff]
    %v9866 = vld [vmem:[%s1493 + $0x2f1] sm:$0xff]
    %v9867 = vld [vmem:[%s1493 + $0x301] sm:$0xff]
    %v9868 = vld [vmem:[%s1493 + $0x309] sm:$0xff]
    %v9869 = vld [vmem:[%s1493 + $0x319] sm:$0xff]
    %v9870 = vld [vmem:[%s1493 + $0x321] sm:$0xff]
    %v9871 = vadd.f32 %v9807, %v9743
    %v9872 = vadd.f32 %v9808, %v9744
    %v9873 = vadd.f32 %v9809, %v9745
    %v9874 = vadd.f32 %v9810, %v9746
    %v9875 = vadd.f32 %v9811, %v9747
    %v9876 = vadd.f32 %v9812, %v9748
    %v9877 = vadd.f32 %v9813, %v9749
    %v9878 = vadd.f32 %v9814, %v9750
    %v9879 = vadd.f32 %v9815, %v9751
    %v9880 = vadd.f32 %v9816, %v9752
    %v9881 = vadd.f32 %v9817, %v9753
    %v9882 = vadd.f32 %v9818, %v9754
    %v9883 = vadd.f32 %v9819, %v9755
    %v9884 = vadd.f32 %v9820, %v9756
    %v9885 = vadd.f32 %v9821, %v9757
    %v9886 = vadd.f32 %v9822, %v9758
    %v9887 = vadd.f32 %v9823, %v9759
    %v9888 = vadd.f32 %v9824, %v9760
    %v9889 = vadd.f32 %v9825, %v9761
    %v9890 = vadd.f32 %v9826, %v9762
    %v9891 = vadd.f32 %v9827, %v9763
    %v9892 = vadd.f32 %v9828, %v9764
    %v9893 = vadd.f32 %v9829, %v9765
    %v9894 = vadd.f32 %v9830, %v9766
    %v9895 = vadd.f32 %v9831, %v9767
    %v9896 = vadd.f32 %v9832, %v9768
    %v9897 = vadd.f32 %v9833, %v9769
    %v9898 = vadd.f32 %v9834, %v9770
    %v9899 = vadd.f32 %v9835, %v9771
    %v9900 = vadd.f32 %v9836, %v9772
    %v9901 = vadd.f32 %v9837, %v9773
    %v9902 = vadd.f32 %v9838, %v9774
    %v9903 = vadd.f32 %v9839, %v9775
    %v9904 = vadd.f32 %v9840, %v9776
    %v9905 = vadd.f32 %v9841, %v9777
    %v9906 = vadd.f32 %v9842, %v9778
    %v9907 = vadd.f32 %v9843, %v9779
    %v9908 = vadd.f32 %v9844, %v9780
    %v9909 = vadd.f32 %v9845, %v9781
    %v9910 = vadd.f32 %v9846, %v9782
    %v9911 = vadd.f32 %v9847, %v9783
    %v9912 = vadd.f32 %v9848, %v9784
    %v9913 = vadd.f32 %v9849, %v9785
    %v9914 = vadd.f32 %v9850, %v9786
    %v9915 = vadd.f32 %v9851, %v9787
    %v9916 = vadd.f32 %v9852, %v9788
    %v9917 = vadd.f32 %v9853, %v9789
    %v9918 = vadd.f32 %v9854, %v9790
    %v9919 = vadd.f32 %v9855, %v9791
    %v9920 = vadd.f32 %v9856, %v9792
    %v9921 = vadd.f32 %v9857, %v9793
    %v9922 = vadd.f32 %v9858, %v9794
    %v9923 = vadd.f32 %v9859, %v9795
    %v9924 = vadd.f32 %v9860, %v9796
    %v9925 = vadd.f32 %v9861, %v9797
    %v9926 = vadd.f32 %v9862, %v9798
    %v9927 = vadd.f32 %v9863, %v9799
    %v9928 = vadd.f32 %v9864, %v9800
    %v9929 = vadd.f32 %v9865, %v9801
    %v9930 = vadd.f32 %v9866, %v9802
    %v9931 = vadd.f32 %v9867, %v9803
    %v9932 = vadd.f32 %v9868, %v9804
    %v9933 = vadd.f32 %v9869, %v9805
    %v9934 = vadd.f32 %v9870, %v9806
    %9935 = vst [vmem:[#allocation6] sm:$0xff] %v9871
    %9936 = vst [vmem:[#allocation6 + $0x8] sm:$0xff] %v9872
    %9937 = vst [vmem:[#allocation6 + $0x10] sm:$0xff] %v9873
    %9938 = vst [vmem:[#allocation6 + $0x18] sm:$0xff] %v9874
    %9939 = vst [vmem:[#allocation6 + $0x20] sm:$0xff] %v9875
    %9940 = vst [vmem:[#allocation6 + $0x28] sm:$0xff] %v9876
    %9941 = vst [vmem:[#allocation6 + $0x30] sm:$0xff] %v9877
    %9942 = vst [vmem:[#allocation6 + $0x38] sm:$0xff] %v9878
    %9943 = vst [vmem:[#allocation6 + $0x40] sm:$0xff] %v9879
    %9944 = vst [vmem:[#allocation6 + $0x48] sm:$0xff] %v9880
    %9945 = vst [vmem:[#allocation6 + $0x50] sm:$0xff] %v9881
    %9946 = vst [vmem:[#allocation6 + $0x58] sm:$0xff] %v9882
    %9947 = vst [vmem:[#allocation6 + $0x60] sm:$0xff] %v9883
    %9948 = vst [vmem:[#allocation6 + $0x68] sm:$0xff] %v9884
    %9949 = vst [vmem:[#allocation6 + $0x70] sm:$0xff] %v9885
    %9950 = vst [vmem:[#allocation6 + $0x78] sm:$0xff] %v9886
    %9951 = vst [vmem:[#allocation6 + $0x80] sm:$0xff] %v9887
    %9952 = vst [vmem:[#allocation6 + $0x88] sm:$0xff] %v9888
    %9953 = vst [vmem:[#allocation6 + $0x90] sm:$0xff] %v9889
    %9954 = vst [vmem:[#allocation6 + $0x98] sm:$0xff] %v9890
    %9955 = vst [vmem:[#allocation6 + $0xa0] sm:$0xff] %v9891
    %9956 = vst [vmem:[#allocation6 + $0xa8] sm:$0xff] %v9892
    %9957 = vst [vmem:[#allocation6 + $0xb0] sm:$0xff] %v9893
    %9958 = vst [vmem:[#allocation6 + $0xb8] sm:$0xff] %v9894
    %9959 = vst [vmem:[#allocation6 + $0xc0] sm:$0xff] %v9895
    %9960 = vst [vmem:[#allocation6 + $0xc8] sm:$0xff] %v9896
    %9961 = vst [vmem:[#allocation6 + $0xd0] sm:$0xff] %v9897
    %9962 = vst [vmem:[#allocation6 + $0xd8] sm:$0xff] %v9898
    %9963 = vst [vmem:[#allocation6 + $0xe0] sm:$0xff] %v9899
    %9964 = vst [vmem:[#allocation6 + $0xe8] sm:$0xff] %v9900
    %9965 = vst [vmem:[#allocation6 + $0xf0] sm:$0xff] %v9901
    %9966 = vst [vmem:[#allocation6 + $0xf8] sm:$0xff] %v9902
    %9967 = vst [vmem:[#allocation6 + $0x100] sm:$0xff] %v9903
    %9968 = vst [vmem:[#allocation6 + $0x108] sm:$0xff] %v9904
    %9969 = vst [vmem:[#allocation6 + $0x110] sm:$0xff] %v9905
    %9970 = vst [vmem:[#allocation6 + $0x118] sm:$0xff] %v9906
    %9971 = vst [vmem:[#allocation6 + $0x120] sm:$0xff] %v9907
    %9972 = vst [vmem:[#allocation6 + $0x128] sm:$0xff] %v9908
    %9973 = vst [vmem:[#allocation6 + $0x130] sm:$0xff] %v9909
    %9974 = vst [vmem:[#allocation6 + $0x138] sm:$0xff] %v9910
    %9975 = vst [vmem:[#allocation6 + $0x140] sm:$0xff] %v9911
    %9976 = vst [vmem:[#allocation6 + $0x148] sm:$0xff] %v9912
    %9977 = vst [vmem:[#allocation6 + $0x150] sm:$0xff] %v9913
    %9978 = vst [vmem:[#allocation6 + $0x158] sm:$0xff] %v9914
    %9979 = vst [vmem:[#allocation6 + $0x160] sm:$0xff] %v9915
    %9980 = vst [vmem:[#allocation6 + $0x168] sm:$0xff] %v9916
    %9981 = vst [vmem:[#allocation6 + $0x170] sm:$0xff] %v9917
    %9982 = vst [vmem:[#allocation6 + $0x178] sm:$0xff] %v9918
    %9983 = vst [vmem:[#allocation6 + $0x180] sm:$0xff] %v9919
    %9984 = vst [vmem:[#allocation6 + $0x188] sm:$0xff] %v9920
    %9985 = vst [vmem:[#allocation6 + $0x190] sm:$0xff] %v9921
    %9986 = vst [vmem:[#allocation6 + $0x198] sm:$0xff] %v9922
    %9987 = vst [vmem:[#allocation6 + $0x1a0] sm:$0xff] %v9923
    %9988 = vst [vmem:[#allocation6 + $0x1a8] sm:$0xff] %v9924
    %9989 = vst [vmem:[#allocation6 + $0x1b0] sm:$0xff] %v9925
    %9990 = vst [vmem:[#allocation6 + $0x1b8] sm:$0xff] %v9926
    %9991 = vst [vmem:[#allocation6 + $0x1c0] sm:$0xff] %v9927
    %9992 = vst [vmem:[#allocation6 + $0x1c8] sm:$0xff] %v9928
    %9993 = vst [vmem:[#allocation6 + $0x1d0] sm:$0xff] %v9929
    %9994 = vst [vmem:[#allocation6 + $0x1d8] sm:$0xff] %v9930
    %9995 = vst [vmem:[#allocation6 + $0x1e0] sm:$0xff] %v9931
    %9996 = vst [vmem:[#allocation6 + $0x1e8] sm:$0xff] %v9932
    %9997 = vst [vmem:[#allocation6 + $0x1f0] sm:$0xff] %v9933
    %9998 = vst [vmem:[#allocation6 + $0x1f8] sm:$0xff] %v9934
    // Predicated region
    $region22: #{tpu_custom_call.1} parent=1 // pred_check
      _
    $region23: #{tpu_custom_call.1} parent=1 // pred_check_branch
      %10000 = sbr.rel (0) target = $region25
    $region24: #{tpu_custom_call.1} parent=1 // pred_region
      %s10002 = ssub.s32 8192, 8192
      %10003 = vsyncadd [#allocation5], %s10002
      %s10004 = sshll.u32 [#allocation6], 4
      %s10005 = int_to_ptr.vmem [resolvable:$true] %s10004
      %10010 = dma.vmem_to_hbm [thread:$0]  %s10005, 8192, %s4, [#allocation5], 128, 128, 8
    $region25: #{tpu_custom_call.1} parent=1 // pred_fallthru
      _
    // Predicated region
    $region26: #{tpu_custom_call.1} parent=1 // pred_check
      _
    $region27: #{tpu_custom_call.1} parent=1 // pred_check_branch
      %10012 = sbr.rel (0) target = $region29
    $region28: #{tpu_custom_call.1} parent=1 // pred_region
      %10013 = dma.done [#allocation5], 8192
    $region29: #{tpu_custom_call.1} parent=1 // pred_fallthru
      _
    %10014 = vsyncpa [#allocation4], 1
    %10015 = vsyncpa [#allocation5], 1

</llo_original>
